<compile_context>
chip_gen: v6e
topology: v6e:2x2x1
jax: 0.10.0
libtpu: 0.0.40
codegen_flags: <defaults>
</compile_context>

<pallas_src>
import functools

import jax
import jax.numpy as jnp
from jax.experimental import pallas as pl
from jax.experimental.pallas import tpu as pltpu

# Lane-dense channel choices (all multiples of 128).
STEM_C = 128   # stem output channels
EXP_C = 128    # inverted-residual expansion channels
HEAD_C = 128   # pre-pool head channels
FEAT_D = 128   # feature dim (stands in for MobileNetV2's 1000-d classifier)
IN_C = 3       # RGB input channels


def _relu6(x):
    return jnp.clip(x, 0.0, 6.0)


# ---------------------------------------------------------------------------
# Fully fused kernel: one grid step == one siamese branch; last step also
# computes the distance -> BatchNorm1d -> sigmoid head.
# ---------------------------------------------------------------------------
def _siamese_kernel(x1_ref, x2_ref, swT_ref, sb_ref, ew_ref, eb_ref,
                    dww_ref, dwb_ref, pw_ref, pb_ref, hw_ref, hb_ref,
                    cw_ref, cb_ref, gamma_ref, beta_ref,
                    o_ref,
                    h0_ref, xp_ref, feats_ref, *, B, H, W):
    f32 = jnp.float32
    HW = H * W
    R = B * HW
    n = pl.program_id(0)
    last = pl.num_programs(0) - 1

    # --- stem 1x1 conv (3 -> STEM_C), ReLU6 --------------------------------
    def stem_into_h0(x_ref):
        # Per-image channels-first K=3 matmul, then an (8,128)-aligned
        # (STEM_C, HW) -> (HW, STEM_C) transpose: no lane-sparse (R, 3) tile,
        # no pre-kernel NHWC relayout.
        for b in range(B):                               # B tiny & static
            xb = x_ref[b]                                # (3, HW) lane-dense
            hcf = jnp.dot(swT_ref[0], xb,
                          preferred_element_type=f32)    # (STEM_C, HW)
            hb = _relu6(hcf.T + sb_ref[0])               # (HW, STEM_C)
            h0_ref[b * HW:(b + 1) * HW, :] = hb          # park h0 in VMEM

    @pl.when(n == 0)
    def _():
        stem_into_h0(x1_ref)

    @pl.when(n == 1)
    def _():
        stem_into_h0(x2_ref)

    # --- inverted residual: expand 1x1, ReLU6 -------------------------------
    e = _relu6(jnp.dot(h0_ref[...], ew_ref[0], preferred_element_type=f32)
               + eb_ref[0])

    # --- depthwise 3x3 (stride 1, pad 1), ReLU6 -----------------------------
    # Zero only the 1-wide halo frame, and only once (it persists across the
    # two grid steps); the interior is overwritten each step.
    @pl.when(n == 0)
    def _():
        xp_ref[:, 0:1, :, :] = jnp.zeros((B, 1, W + 2, EXP_C), f32)
        xp_ref[:, H + 1:H + 2, :, :] = jnp.zeros((B, 1, W + 2, EXP_C), f32)
        xp_ref[:, 1:H + 1, 0:1, :] = jnp.zeros((B, H, 1, EXP_C), f32)
        xp_ref[:, 1:H + 1, W + 1:W + 2, :] = jnp.zeros((B, H, 1, EXP_C), f32)

    xp_ref[:, 1:H + 1, 1:W + 1, :] = e.reshape(B, H, W, EXP_C)
    w9 = dww_ref[0]                                      # (9, EXP_C)
    acc = jnp.zeros((B, H, W, EXP_C), f32)
    for i in range(3):
        for j in range(3):
            k = i * 3 + j
            acc = acc + xp_ref[:, i:i + H, j:j + W, :] * w9[k:k + 1, :]
    d = _relu6(acc + dwb_ref[0]).reshape(R, EXP_C)

    # --- project 1x1 (linear) + residual add (h0 reloaded only here) --------
    p = jnp.dot(d, pw_ref[0], preferred_element_type=f32) + pb_ref[0]
    r = h0_ref[...] + p

    # --- head 1x1 conv, ReLU6 ------------------------------------------------
    hd = _relu6(jnp.dot(r, hw_ref[0], preferred_element_type=f32) + hb_ref[0])

    # --- global average pool + classifier ------------------------------------
    pooled = jnp.mean(hd.reshape(B, HW, HEAD_C), axis=1)            # (B, HEAD_C)
    feats = jnp.dot(pooled, cw_ref[0], preferred_element_type=f32) + cb_ref[0]
    feats_ref[pl.ds(n, 1)] = feats.reshape(1, B, FEAT_D)

    # --- fused siamese head on the last grid step ----------------------------
    @pl.when(n == last)
    def _():
        # torch.nn.PairwiseDistance(p=2, eps=1e-6, keepdim=True): eps on diff.
        diff = feats_ref[0] - feats_ref[1] + 1e-6
        dist = jnp.sqrt(jnp.sum(diff * diff, axis=-1, keepdims=True))  # (B, 1)
        # BatchNorm1d(1): training-mode batch statistics (biased var), eps=1e-5.
        mean = jnp.mean(dist, axis=0, keepdims=True)
        var = jnp.mean((dist - mean) ** 2, axis=0, keepdims=True)
        y = (dist - mean) * jax.lax.rsqrt(var + 1e-5)
        y = y * gamma_ref[0] + beta_ref[0]
        o_ref[...] = (1.0 / (1.0 + jnp.exp(-y))).astype(o_ref.dtype)


# ---------------------------------------------------------------------------
# pallas_call wrapper
# ---------------------------------------------------------------------------
def _siamese_pallas(params, bn_gamma, bn_beta, x1r, x2r, *, B, H, W):
    HW = H * W
    R = B * HW
    kernel = functools.partial(_siamese_kernel, B=B, H=H, W=W)

    weights = (params["stemT_w"], params["stem_b"],
               params["exp_w"], params["exp_b"],
               params["dw_w"], params["dw_b"],
               params["proj_w"], params["proj_b"],
               params["head_w"], params["head_b"],
               params["cls_w"], params["cls_b"])

    img_spec = pl.BlockSpec((B, IN_C, HW), lambda n: (0, 0, 0))
    w_specs = [pl.BlockSpec((1,) + w.shape[1:], lambda n: (n, 0, 0))
               for w in weights]
    smem_spec = pl.BlockSpec(memory_space=pltpu.MemorySpace.SMEM)

    # Advisory cost estimate (both branches + head).
    def mm(m, k, n_):
        return 2 * m * k * n_
    flops_branch = (B * mm(STEM_C, IN_C, HW) + mm(R, STEM_C, EXP_C)
                    + 2 * 9 * R * EXP_C + mm(R, EXP_C, STEM_C)
                    + mm(R, STEM_C, HEAD_C) + mm(B, HEAD_C, FEAT_D))
    operands = (x1r, x2r) + weights + (bn_gamma, bn_beta)
    bytes_accessed = sum(int(a.size) * a.dtype.itemsize for a in operands) + B * 4
    cost = pl.CostEstimate(flops=2 * flops_branch,
                           transcendentals=4 * B + 4,
                           bytes_accessed=int(bytes_accessed))

    return pl.pallas_call(
        kernel,
        grid=(2,),                                   # the two siamese branches
        in_specs=[img_spec, img_spec] + w_specs + [smem_spec, smem_spec],
        out_specs=pl.BlockSpec((B, 1), lambda n: (0, 0)),
        out_shape=jax.ShapeDtypeStruct((B, 1), jnp.float32),
        scratch_shapes=[
            pltpu.VMEM((R, STEM_C), jnp.float32),               # parked h0
            pltpu.VMEM((B, H + 2, W + 2, EXP_C), jnp.float32),  # depthwise halo
            pltpu.VMEM((2, B, FEAT_D), jnp.float32),            # branch features
        ],
        compiler_params=pltpu.CompilerParams(
            dimension_semantics=("arbitrary",),      # scratch carries across steps
            vmem_limit_bytes=32 * 1024 * 1024),
        cost_estimate=cost,
    )(x1r, x2r, *weights, bn_gamma, bn_beta)


@jax.jit
def siamese_forward(params, bn_gamma, bn_beta, x1, x2):
    """x1, x2: NCHW float inputs (PyTorch convention) -> (B, 1) similarity."""
    B, C, H, W = x1.shape
    # Contiguous (no-relayout) reshape only: channels stay on the sublane axis,
    # H*W is the lane-dense last dim.  No NCHW->NHWC transpose, no stack.
    x1r = x1.reshape(B, C, H * W).astype(jnp.float32)
    x2r = x2.reshape(B, C, H * W).astype(jnp.float32)
    return _siamese_pallas(params, bn_gamma, bn_beta, x1r, x2r, B=B, H=H, W=W)


# ---------------------------------------------------------------------------
# Deterministic parameter init (leading dim 2 = the two independent branches)
# ---------------------------------------------------------------------------
def _init_params(key):
    ks = jax.random.split(key, 12)

    def n(k, shape):
        return (0.1 * jax.random.normal(k, shape)).astype(jnp.float32)

    return {
        # stem weight stored pre-transposed (out_ch, in_ch) for the in-kernel
        # channels-first K=3 matmul.
        "stemT_w": n(ks[0], (2, STEM_C, IN_C)),
        "stem_b":  n(ks[1], (2, 1, STEM_C)),
        "exp_w":   n(ks[2], (2, STEM_C, EXP_C)),   # 1x1 expand
        "exp_b":   n(ks[3], (2, 1, EXP_C)),
        "dw_w":    n(ks[4], (2, 9, EXP_C)),        # depthwise 3x3 (flat taps)
        "dw_b":    n(ks[5], (2, 1, EXP_C)),
        "proj_w":  n(ks[6], (2, EXP_C, STEM_C)),   # 1x1 project (linear)
        "proj_b":  n(ks[7], (2, 1, STEM_C)),
        "head_w":  n(ks[8], (2, STEM_C, HEAD_C)),  # 1x1 head conv
        "head_b":  n(ks[9], (2, 1, HEAD_C)),
        "cls_w":   n(ks[10], (2, HEAD_C, FEAT_D)), # classifier
        "cls_b":   n(ks[11], (2, 1, FEAT_D)),
    }


if __name__ == "__main__":
    key = jax.random.PRNGKey(0)
    k_p, k_x1, k_x2 = jax.random.split(key, 3)

    params = _init_params(k_p)
    bn_gamma = jnp.ones((1,), jnp.float32)    # BatchNorm1d(1) weight
    bn_beta = jnp.zeros((1,), jnp.float32)    # BatchNorm1d(1) bias

    # Small NCHW inputs (PyTorch convention): batch=2, channels=3, 16x16
    x1 = jax.random.normal(k_x1, (2, 3, 16, 16), jnp.float32)
    x2 = jax.random.normal(k_x2, (2, 3, 16, 16), jnp.float32)

    out = siamese_forward(params, bn_gamma, bn_beta, x1, x2)
    out = jax.block_until_ready(out)
    assert out.shape == (2, 1) and out.dtype == jnp.float32
    assert bool(jnp.all(jnp.isfinite(out)))
    print("KERNEL_OK")
</pallas_src>

<mosaic_0001>
module attributes {stable_mosaic.version = 11 : i64} {
  func.func @_siamese_kernel(%arg0: i32, %arg1: memref<2x3x256xf32, #tpu.memory_space<vmem>>, %arg2: memref<2x3x256xf32, #tpu.memory_space<vmem>>, %arg3: memref<1x128x3xf32, #tpu.memory_space<vmem>>, %arg4: memref<1x1x128xf32, #tpu.memory_space<vmem>>, %arg5: memref<1x128x128xf32, #tpu.memory_space<vmem>>, %arg6: memref<1x1x128xf32, #tpu.memory_space<vmem>>, %arg7: memref<1x9x128xf32, #tpu.memory_space<vmem>>, %arg8: memref<1x1x128xf32, #tpu.memory_space<vmem>>, %arg9: memref<1x128x128xf32, #tpu.memory_space<vmem>>, %arg10: memref<1x1x128xf32, #tpu.memory_space<vmem>>, %arg11: memref<1x128x128xf32, #tpu.memory_space<vmem>>, %arg12: memref<1x1x128xf32, #tpu.memory_space<vmem>>, %arg13: memref<1x128x128xf32, #tpu.memory_space<vmem>>, %arg14: memref<1x1x128xf32, #tpu.memory_space<vmem>>, %arg15: memref<1xf32, #tpu.memory_space<smem>>, %arg16: memref<1xf32, #tpu.memory_space<smem>>, %arg17: memref<2x1xf32, #tpu.memory_space<vmem>>, %arg18: memref<512x128xf32, #tpu.memory_space<vmem>>, %arg19: memref<2x18x18x128xf32, #tpu.memory_space<vmem>>, %arg20: memref<2x2x128xf32, #tpu.memory_space<vmem>>) attributes {dimension_semantics = [#tpu.dimension_semantics<arbitrary>], iteration_bounds = array<i64: 2>, scalar_prefetch = 0 : i64, scratch_operands = 3 : i64, tpu.core_type = #tpu.core_type<tc>, window_params = [{pipeline_mode = #tpu.pipeline_mode<synchronous>, transform_indices = @transform_0, window_bounds = array<i64: 2, 3, 256>}, {pipeline_mode = #tpu.pipeline_mode<synchronous>, transform_indices = @transform_1, window_bounds = array<i64: 2, 3, 256>}, {transform_indices = @transform_2, window_bounds = array<i64: 1, 128, 3>}, {transform_indices = @transform_3, window_bounds = array<i64: 1, 1, 128>}, {transform_indices = @transform_4, window_bounds = array<i64: 1, 128, 128>}, {transform_indices = @transform_5, window_bounds = array<i64: 1, 1, 128>}, {transform_indices = @transform_6, window_bounds = array<i64: 1, 9, 128>}, {transform_indices = @transform_7, window_bounds = array<i64: 1, 1, 128>}, {transform_indices = @transform_8, window_bounds = array<i64: 1, 128, 128>}, {transform_indices = @transform_9, window_bounds = array<i64: 1, 1, 128>}, {transform_indices = @transform_10, window_bounds = array<i64: 1, 128, 128>}, {transform_indices = @transform_11, window_bounds = array<i64: 1, 1, 128>}, {transform_indices = @transform_12, window_bounds = array<i64: 1, 128, 128>}, {transform_indices = @transform_13, window_bounds = array<i64: 1, 1, 128>}, {transform_indices = @transform_14, window_bounds = array<i64: 1>}, {transform_indices = @transform_15, window_bounds = array<i64: 1>}, {pipeline_mode = #tpu.pipeline_mode<synchronous>, transform_indices = @transform_16, window_bounds = array<i64: 2, 1>}]} {
    %c0_i32 = arith.constant 0 : i32
    %0 = arith.cmpi eq, %arg0, %c0_i32 : i32
    %1 = arith.extui %0 : i1 to i32
    %c0_i32_0 = arith.constant 0 : i32
    %2 = arith.cmpi ne, %1, %c0_i32_0 : i32
    scf.if %2 {
      %c0_91 = arith.constant 0 : index
      %c0_92 = arith.constant 0 : index
      %c0_93 = arith.constant 0 : index
      %127 = vector.load %arg1[%c0_91, %c0_92, %c0_93] : memref<2x3x256xf32, #tpu.memory_space<vmem>>, vector<1x3x256xf32>
      %128 = vector.shape_cast %127 : vector<1x3x256xf32> to vector<3x256xf32>
      %c0_94 = arith.constant 0 : index
      %c0_95 = arith.constant 0 : index
      %c0_96 = arith.constant 0 : index
      %129 = vector.load %arg3[%c0_94, %c0_95, %c0_96] : memref<1x128x3xf32, #tpu.memory_space<vmem>>, vector<1x128x3xf32>
      %130 = vector.shape_cast %129 : vector<1x128x3xf32> to vector<128x3xf32>
      %cst_97 = arith.constant dense<0.000000e+00> : vector<128x256xf32>
      %131 = tpu.matmul %130, %128, %cst_97 {dimension_numbers = #tpu.dot_dimension_numbers<[1], [0], [0], [1], [0, 0, 1, 1], [], []>} : vector<128x3xf32>, vector<3x256xf32>, vector<128x256xf32> -> vector<128x256xf32>
      %132 = tpu.transpose %131, [1, 0] : vector<128x256xf32> -> vector<256x128xf32>
      %c0_98 = arith.constant 0 : index
      %c0_99 = arith.constant 0 : index
      %c0_100 = arith.constant 0 : index
      %133 = vector.load %arg4[%c0_98, %c0_99, %c0_100] : memref<1x1x128xf32, #tpu.memory_space<vmem>>, vector<1x1x128xf32>
      %134 = vector.shape_cast %133 : vector<1x1x128xf32> to vector<1x128xf32>
      %135 = vector.broadcast %134 : vector<1x128xf32> to vector<256x128xf32>
      %136 = arith.addf %132, %135 : vector<256x128xf32>
      %cst_101 = arith.constant 0.000000e+00 : f32
      %cst_102 = arith.constant 6.000000e+00 : f32
      %137 = vector.broadcast %cst_101 : f32 to vector<256x128xf32>
      %138 = arith.maximumf %137, %136 : vector<256x128xf32>
      %139 = vector.broadcast %cst_102 : f32 to vector<256x128xf32>
      %140 = arith.minimumf %139, %138 : vector<256x128xf32>
      %c0_103 = arith.constant 0 : index
      %c0_104 = arith.constant 0 : index
      %141 = vector.load %arg18[%c0_103, %c0_104] : memref<512x128xf32, #tpu.memory_space<vmem>>, vector<256x128xf32>
      tpu.vector_store %arg18[%c0_103, %c0_104], %140 {strides = array<i32>} : memref<512x128xf32, #tpu.memory_space<vmem>>, vector<256x128xf32>,
      %c1_105 = arith.constant 1 : index
      %c0_106 = arith.constant 0 : index
      %c0_107 = arith.constant 0 : index
      %142 = vector.load %arg1[%c1_105, %c0_106, %c0_107] : memref<2x3x256xf32, #tpu.memory_space<vmem>>, vector<1x3x256xf32>
      %143 = vector.shape_cast %142 : vector<1x3x256xf32> to vector<3x256xf32>
      %c0_108 = arith.constant 0 : index
      %c0_109 = arith.constant 0 : index
      %c0_110 = arith.constant 0 : index
      %144 = vector.load %arg3[%c0_108, %c0_109, %c0_110] : memref<1x128x3xf32, #tpu.memory_space<vmem>>, vector<1x128x3xf32>
      %145 = vector.shape_cast %144 : vector<1x128x3xf32> to vector<128x3xf32>
      %cst_111 = arith.constant dense<0.000000e+00> : vector<128x256xf32>
      %146 = tpu.matmul %145, %143, %cst_111 {dimension_numbers = #tpu.dot_dimension_numbers<[1], [0], [0], [1], [0, 0, 1, 1], [], []>} : vector<128x3xf32>, vector<3x256xf32>, vector<128x256xf32> -> vector<128x256xf32>
      %147 = tpu.transpose %146, [1, 0] : vector<128x256xf32> -> vector<256x128xf32>
      %c0_112 = arith.constant 0 : index
      %c0_113 = arith.constant 0 : index
      %c0_114 = arith.constant 0 : index
      %148 = vector.load %arg4[%c0_112, %c0_113, %c0_114] : memref<1x1x128xf32, #tpu.memory_space<vmem>>, vector<1x1x128xf32>
      %149 = vector.shape_cast %148 : vector<1x1x128xf32> to vector<1x128xf32>
      %150 = vector.broadcast %149 : vector<1x128xf32> to vector<256x128xf32>
      %151 = arith.addf %147, %150 : vector<256x128xf32>
      %cst_115 = arith.constant 0.000000e+00 : f32
      %cst_116 = arith.constant 6.000000e+00 : f32
      %152 = vector.broadcast %cst_115 : f32 to vector<256x128xf32>
      %153 = arith.maximumf %152, %151 : vector<256x128xf32>
      %154 = vector.broadcast %cst_116 : f32 to vector<256x128xf32>
      %155 = arith.minimumf %154, %153 : vector<256x128xf32>
      %c256 = arith.constant 256 : index
      %c0_117 = arith.constant 0 : index
      %156 = vector.load %arg18[%c256, %c0_117] : memref<512x128xf32, #tpu.memory_space<vmem>>, vector<256x128xf32>
      tpu.vector_store %arg18[%c256, %c0_117], %155 {strides = array<i32>} : memref<512x128xf32, #tpu.memory_space<vmem>>, vector<256x128xf32>,
    } else {
    }
    %c1_i32 = arith.constant 1 : i32
    %3 = arith.cmpi eq, %arg0, %c1_i32 : i32
    %4 = arith.extui %3 : i1 to i32
    %c0_i32_1 = arith.constant 0 : i32
    %5 = arith.cmpi ne, %4, %c0_i32_1 : i32
    scf.if %5 {
      %c0_91 = arith.constant 0 : index
      %c0_92 = arith.constant 0 : index
      %c0_93 = arith.constant 0 : index
      %127 = vector.load %arg2[%c0_91, %c0_92, %c0_93] : memref<2x3x256xf32, #tpu.memory_space<vmem>>, vector<1x3x256xf32>
      %128 = vector.shape_cast %127 : vector<1x3x256xf32> to vector<3x256xf32>
      %c0_94 = arith.constant 0 : index
      %c0_95 = arith.constant 0 : index
      %c0_96 = arith.constant 0 : index
      %129 = vector.load %arg3[%c0_94, %c0_95, %c0_96] : memref<1x128x3xf32, #tpu.memory_space<vmem>>, vector<1x128x3xf32>
      %130 = vector.shape_cast %129 : vector<1x128x3xf32> to vector<128x3xf32>
      %cst_97 = arith.constant dense<0.000000e+00> : vector<128x256xf32>
      %131 = tpu.matmul %130, %128, %cst_97 {dimension_numbers = #tpu.dot_dimension_numbers<[1], [0], [0], [1], [0, 0, 1, 1], [], []>} : vector<128x3xf32>, vector<3x256xf32>, vector<128x256xf32> -> vector<128x256xf32>
      %132 = tpu.transpose %131, [1, 0] : vector<128x256xf32> -> vector<256x128xf32>
      %c0_98 = arith.constant 0 : index
      %c0_99 = arith.constant 0 : index
      %c0_100 = arith.constant 0 : index
      %133 = vector.load %arg4[%c0_98, %c0_99, %c0_100] : memref<1x1x128xf32, #tpu.memory_space<vmem>>, vector<1x1x128xf32>
      %134 = vector.shape_cast %133 : vector<1x1x128xf32> to vector<1x128xf32>
      %135 = vector.broadcast %134 : vector<1x128xf32> to vector<256x128xf32>
      %136 = arith.addf %132, %135 : vector<256x128xf32>
      %cst_101 = arith.constant 0.000000e+00 : f32
      %cst_102 = arith.constant 6.000000e+00 : f32
      %137 = vector.broadcast %cst_101 : f32 to vector<256x128xf32>
      %138 = arith.maximumf %137, %136 : vector<256x128xf32>
      %139 = vector.broadcast %cst_102 : f32 to vector<256x128xf32>
      %140 = arith.minimumf %139, %138 : vector<256x128xf32>
      %c0_103 = arith.constant 0 : index
      %c0_104 = arith.constant 0 : index
      %141 = vector.load %arg18[%c0_103, %c0_104] : memref<512x128xf32, #tpu.memory_space<vmem>>, vector<256x128xf32>
      tpu.vector_store %arg18[%c0_103, %c0_104], %140 {strides = array<i32>} : memref<512x128xf32, #tpu.memory_space<vmem>>, vector<256x128xf32>,
      %c1_105 = arith.constant 1 : index
      %c0_106 = arith.constant 0 : index
      %c0_107 = arith.constant 0 : index
      %142 = vector.load %arg2[%c1_105, %c0_106, %c0_107] : memref<2x3x256xf32, #tpu.memory_space<vmem>>, vector<1x3x256xf32>
      %143 = vector.shape_cast %142 : vector<1x3x256xf32> to vector<3x256xf32>
      %c0_108 = arith.constant 0 : index
      %c0_109 = arith.constant 0 : index
      %c0_110 = arith.constant 0 : index
      %144 = vector.load %arg3[%c0_108, %c0_109, %c0_110] : memref<1x128x3xf32, #tpu.memory_space<vmem>>, vector<1x128x3xf32>
      %145 = vector.shape_cast %144 : vector<1x128x3xf32> to vector<128x3xf32>
      %cst_111 = arith.constant dense<0.000000e+00> : vector<128x256xf32>
      %146 = tpu.matmul %145, %143, %cst_111 {dimension_numbers = #tpu.dot_dimension_numbers<[1], [0], [0], [1], [0, 0, 1, 1], [], []>} : vector<128x3xf32>, vector<3x256xf32>, vector<128x256xf32> -> vector<128x256xf32>
      %147 = tpu.transpose %146, [1, 0] : vector<128x256xf32> -> vector<256x128xf32>
      %c0_112 = arith.constant 0 : index
      %c0_113 = arith.constant 0 : index
      %c0_114 = arith.constant 0 : index
      %148 = vector.load %arg4[%c0_112, %c0_113, %c0_114] : memref<1x1x128xf32, #tpu.memory_space<vmem>>, vector<1x1x128xf32>
      %149 = vector.shape_cast %148 : vector<1x1x128xf32> to vector<1x128xf32>
      %150 = vector.broadcast %149 : vector<1x128xf32> to vector<256x128xf32>
      %151 = arith.addf %147, %150 : vector<256x128xf32>
      %cst_115 = arith.constant 0.000000e+00 : f32
      %cst_116 = arith.constant 6.000000e+00 : f32
      %152 = vector.broadcast %cst_115 : f32 to vector<256x128xf32>
      %153 = arith.maximumf %152, %151 : vector<256x128xf32>
      %154 = vector.broadcast %cst_116 : f32 to vector<256x128xf32>
      %155 = arith.minimumf %154, %153 : vector<256x128xf32>
      %c256 = arith.constant 256 : index
      %c0_117 = arith.constant 0 : index
      %156 = vector.load %arg18[%c256, %c0_117] : memref<512x128xf32, #tpu.memory_space<vmem>>, vector<256x128xf32>
      tpu.vector_store %arg18[%c256, %c0_117], %155 {strides = array<i32>} : memref<512x128xf32, #tpu.memory_space<vmem>>, vector<256x128xf32>,
    } else {
    }
    %c0 = arith.constant 0 : index
    %c0_2 = arith.constant 0 : index
    %6 = vector.load %arg18[%c0, %c0_2] : memref<512x128xf32, #tpu.memory_space<vmem>>, vector<512x128xf32>
    %c0_3 = arith.constant 0 : index
    %c0_4 = arith.constant 0 : index
    %c0_5 = arith.constant 0 : index
    %7 = vector.load %arg5[%c0_3, %c0_4, %c0_5] : memref<1x128x128xf32, #tpu.memory_space<vmem>>, vector<1x128x128xf32>
    %8 = vector.shape_cast %7 : vector<1x128x128xf32> to vector<128x128xf32>
    %cst = arith.constant dense<0.000000e+00> : vector<512x128xf32>
    %9 = tpu.matmul %6, %8, %cst {dimension_numbers = #tpu.dot_dimension_numbers<[1], [0], [0], [1], [0, 0, 1, 1], [], []>} : vector<512x128xf32>, vector<128x128xf32>, vector<512x128xf32> -> vector<512x128xf32>
    %c0_6 = arith.constant 0 : index
    %c0_7 = arith.constant 0 : index
    %c0_8 = arith.constant 0 : index
    %10 = vector.load %arg6[%c0_6, %c0_7, %c0_8] : memref<1x1x128xf32, #tpu.memory_space<vmem>>, vector<1x1x128xf32>
    %11 = vector.shape_cast %10 : vector<1x1x128xf32> to vector<1x128xf32>
    %12 = vector.broadcast %11 : vector<1x128xf32> to vector<512x128xf32>
    %13 = arith.addf %9, %12 : vector<512x128xf32>
    %cst_9 = arith.constant 0.000000e+00 : f32
    %cst_10 = arith.constant 6.000000e+00 : f32
    %14 = vector.broadcast %cst_9 : f32 to vector<512x128xf32>
    %15 = arith.maximumf %14, %13 : vector<512x128xf32>
    %16 = vector.broadcast %cst_10 : f32 to vector<512x128xf32>
    %17 = arith.minimumf %16, %15 : vector<512x128xf32>
    %c0_i32_11 = arith.constant 0 : i32
    %18 = arith.cmpi eq, %arg0, %c0_i32_11 : i32
    %19 = arith.extui %18 : i1 to i32
    %c0_i32_12 = arith.constant 0 : i32
    %20 = arith.cmpi ne, %19, %c0_i32_12 : i32
    scf.if %20 {
      %cst_91 = arith.constant 0.000000e+00 : f32
      %127 = vector.broadcast %cst_91 : f32 to vector<2x1x18x128xf32>
      %c0_92 = arith.constant 0 : index
      %c0_93 = arith.constant 0 : index
      %c0_94 = arith.constant 0 : index
      %c0_95 = arith.constant 0 : index
      %128 = vector.load %arg19[%c0_92, %c0_93, %c0_94, %c0_95] : memref<2x18x18x128xf32, #tpu.memory_space<vmem>>, vector<2x1x18x128xf32>
      tpu.vector_store %arg19[%c0_92, %c0_93, %c0_94, %c0_95], %127 {strides = array<i32>} : memref<2x18x18x128xf32, #tpu.memory_space<vmem>>, vector<2x1x18x128xf32>,
      %cst_96 = arith.constant 0.000000e+00 : f32
      %129 = vector.broadcast %cst_96 : f32 to vector<2x1x18x128xf32>
      %c0_97 = arith.constant 0 : index
      %c17 = arith.constant 17 : index
      %c0_98 = arith.constant 0 : index
      %c0_99 = arith.constant 0 : index
      %130 = vector.load %arg19[%c0_97, %c17, %c0_98, %c0_99] : memref<2x18x18x128xf32, #tpu.memory_space<vmem>>, vector<2x1x18x128xf32>
      tpu.vector_store %arg19[%c0_97, %c17, %c0_98, %c0_99], %129 {strides = array<i32>} : memref<2x18x18x128xf32, #tpu.memory_space<vmem>>, vector<2x1x18x128xf32>,
      %cst_100 = arith.constant 0.000000e+00 : f32
      %131 = vector.broadcast %cst_100 : f32 to vector<2x16x1x128xf32>
      %c0_101 = arith.constant 0 : index
      %c1_102 = arith.constant 1 : index
      %c0_103 = arith.constant 0 : index
      %c0_104 = arith.constant 0 : index
      %132 = vector.load %arg19[%c0_101, %c1_102, %c0_103, %c0_104] : memref<2x18x18x128xf32, #tpu.memory_space<vmem>>, vector<2x16x1x128xf32>
      tpu.vector_store %arg19[%c0_101, %c1_102, %c0_103, %c0_104], %131 {strides = array<i32>} : memref<2x18x18x128xf32, #tpu.memory_space<vmem>>, vector<2x16x1x128xf32>,
      %cst_105 = arith.constant 0.000000e+00 : f32
      %133 = vector.broadcast %cst_105 : f32 to vector<2x16x1x128xf32>
      %c0_106 = arith.constant 0 : index
      %c1_107 = arith.constant 1 : index
      %c17_108 = arith.constant 17 : index
      %c0_109 = arith.constant 0 : index
      %134 = vector.load %arg19[%c0_106, %c1_107, %c17_108, %c0_109] : memref<2x18x18x128xf32, #tpu.memory_space<vmem>>, vector<2x16x1x128xf32>
      tpu.vector_store %arg19[%c0_106, %c1_107, %c17_108, %c0_109], %133 {strides = array<i32>} : memref<2x18x18x128xf32, #tpu.memory_space<vmem>>, vector<2x16x1x128xf32>,
    } else {
    }
    %21 = vector.shape_cast %17 : vector<512x128xf32> to vector<2x16x16x128xf32>
    %c0_13 = arith.constant 0 : index
    %c1 = arith.constant 1 : index
    %c1_14 = arith.constant 1 : index
    %c0_15 = arith.constant 0 : index
    %22 = vector.load %arg19[%c0_13, %c1, %c1_14, %c0_15] : memref<2x18x18x128xf32, #tpu.memory_space<vmem>>, vector<2x16x16x128xf32>
    tpu.vector_store %arg19[%c0_13, %c1, %c1_14, %c0_15], %21 {strides = array<i32>} : memref<2x18x18x128xf32, #tpu.memory_space<vmem>>, vector<2x16x16x128xf32>,
    %c0_16 = arith.constant 0 : index
    %c0_17 = arith.constant 0 : index
    %c0_18 = arith.constant 0 : index
    %23 = vector.load %arg7[%c0_16, %c0_17, %c0_18] : memref<1x9x128xf32, #tpu.memory_space<vmem>>, vector<1x9x128xf32>
    %24 = vector.shape_cast %23 : vector<1x9x128xf32> to vector<9x128xf32>
    %cst_19 = arith.constant 0.000000e+00 : f32
    %25 = vector.broadcast %cst_19 : f32 to vector<2x16x16x128xf32>
    %c0_20 = arith.constant 0 : index
    %c0_21 = arith.constant 0 : index
    %c0_22 = arith.constant 0 : index
    %c0_23 = arith.constant 0 : index
    %26 = vector.load %arg19[%c0_20, %c0_21, %c0_22, %c0_23] : memref<2x18x18x128xf32, #tpu.memory_space<vmem>>, vector<2x16x16x128xf32>
    %27 = vector.extract_strided_slice %24 {offsets = [0, 0], sizes = [1, 128], strides = [1, 1]} : vector<9x128xf32> to vector<1x128xf32>
    %28 = vector.shape_cast %27 : vector<1x128xf32> to vector<1x1x1x128xf32>
    %29 = vector.broadcast %28 : vector<1x1x1x128xf32> to vector<2x16x16x128xf32>
    %30 = arith.mulf %26, %29 : vector<2x16x16x128xf32>
    %31 = arith.addf %25, %30 : vector<2x16x16x128xf32>
    %c0_24 = arith.constant 0 : index
    %c0_25 = arith.constant 0 : index
    %c1_26 = arith.constant 1 : index
    %c0_27 = arith.constant 0 : index
    %32 = vector.load %arg19[%c0_24, %c0_25, %c1_26, %c0_27] : memref<2x18x18x128xf32, #tpu.memory_space<vmem>>, vector<2x16x16x128xf32>
    %33 = vector.extract_strided_slice %24 {offsets = [1, 0], sizes = [1, 128], strides = [1, 1]} : vector<9x128xf32> to vector<1x128xf32>
    %34 = vector.shape_cast %33 : vector<1x128xf32> to vector<1x1x1x128xf32>
    %35 = vector.broadcast %34 : vector<1x1x1x128xf32> to vector<2x16x16x128xf32>
    %36 = arith.mulf %32, %35 : vector<2x16x16x128xf32>
    %37 = arith.addf %31, %36 : vector<2x16x16x128xf32>
    %c0_28 = arith.constant 0 : index
    %c0_29 = arith.constant 0 : index
    %c2 = arith.constant 2 : index
    %c0_30 = arith.constant 0 : index
    %38 = vector.load %arg19[%c0_28, %c0_29, %c2, %c0_30] : memref<2x18x18x128xf32, #tpu.memory_space<vmem>>, vector<2x16x16x128xf32>
    %39 = vector.extract_strided_slice %24 {offsets = [2, 0], sizes = [1, 128], strides = [1, 1]} : vector<9x128xf32> to vector<1x128xf32>
    %40 = vector.shape_cast %39 : vector<1x128xf32> to vector<1x1x1x128xf32>
    %41 = vector.broadcast %40 : vector<1x1x1x128xf32> to vector<2x16x16x128xf32>
    %42 = arith.mulf %38, %41 : vector<2x16x16x128xf32>
    %43 = arith.addf %37, %42 : vector<2x16x16x128xf32>
    %c0_31 = arith.constant 0 : index
    %c1_32 = arith.constant 1 : index
    %c0_33 = arith.constant 0 : index
    %c0_34 = arith.constant 0 : index
    %44 = vector.load %arg19[%c0_31, %c1_32, %c0_33, %c0_34] : memref<2x18x18x128xf32, #tpu.memory_space<vmem>>, vector<2x16x16x128xf32>
    %45 = vector.extract_strided_slice %24 {offsets = [3, 0], sizes = [1, 128], strides = [1, 1]} : vector<9x128xf32> to vector<1x128xf32>
    %46 = vector.shape_cast %45 : vector<1x128xf32> to vector<1x1x1x128xf32>
    %47 = vector.broadcast %46 : vector<1x1x1x128xf32> to vector<2x16x16x128xf32>
    %48 = arith.mulf %44, %47 : vector<2x16x16x128xf32>
    %49 = arith.addf %43, %48 : vector<2x16x16x128xf32>
    %c0_35 = arith.constant 0 : index
    %c1_36 = arith.constant 1 : index
    %c1_37 = arith.constant 1 : index
    %c0_38 = arith.constant 0 : index
    %50 = vector.load %arg19[%c0_35, %c1_36, %c1_37, %c0_38] : memref<2x18x18x128xf32, #tpu.memory_space<vmem>>, vector<2x16x16x128xf32>
    %51 = vector.extract_strided_slice %24 {offsets = [4, 0], sizes = [1, 128], strides = [1, 1]} : vector<9x128xf32> to vector<1x128xf32>
    %52 = vector.shape_cast %51 : vector<1x128xf32> to vector<1x1x1x128xf32>
    %53 = vector.broadcast %52 : vector<1x1x1x128xf32> to vector<2x16x16x128xf32>
    %54 = arith.mulf %50, %53 : vector<2x16x16x128xf32>
    %55 = arith.addf %49, %54 : vector<2x16x16x128xf32>
    %c0_39 = arith.constant 0 : index
    %c1_40 = arith.constant 1 : index
    %c2_41 = arith.constant 2 : index
    %c0_42 = arith.constant 0 : index
    %56 = vector.load %arg19[%c0_39, %c1_40, %c2_41, %c0_42] : memref<2x18x18x128xf32, #tpu.memory_space<vmem>>, vector<2x16x16x128xf32>
    %57 = vector.extract_strided_slice %24 {offsets = [5, 0], sizes = [1, 128], strides = [1, 1]} : vector<9x128xf32> to vector<1x128xf32>
    %58 = vector.shape_cast %57 : vector<1x128xf32> to vector<1x1x1x128xf32>
    %59 = vector.broadcast %58 : vector<1x1x1x128xf32> to vector<2x16x16x128xf32>
    %60 = arith.mulf %56, %59 : vector<2x16x16x128xf32>
    %61 = arith.addf %55, %60 : vector<2x16x16x128xf32>
    %c0_43 = arith.constant 0 : index
    %c2_44 = arith.constant 2 : index
    %c0_45 = arith.constant 0 : index
    %c0_46 = arith.constant 0 : index
    %62 = vector.load %arg19[%c0_43, %c2_44, %c0_45, %c0_46] : memref<2x18x18x128xf32, #tpu.memory_space<vmem>>, vector<2x16x16x128xf32>
    %63 = vector.extract_strided_slice %24 {offsets = [6, 0], sizes = [1, 128], strides = [1, 1]} : vector<9x128xf32> to vector<1x128xf32>
    %64 = vector.shape_cast %63 : vector<1x128xf32> to vector<1x1x1x128xf32>
    %65 = vector.broadcast %64 : vector<1x1x1x128xf32> to vector<2x16x16x128xf32>
    %66 = arith.mulf %62, %65 : vector<2x16x16x128xf32>
    %67 = arith.addf %61, %66 : vector<2x16x16x128xf32>
    %c0_47 = arith.constant 0 : index
    %c2_48 = arith.constant 2 : index
    %c1_49 = arith.constant 1 : index
    %c0_50 = arith.constant 0 : index
    %68 = vector.load %arg19[%c0_47, %c2_48, %c1_49, %c0_50] : memref<2x18x18x128xf32, #tpu.memory_space<vmem>>, vector<2x16x16x128xf32>
    %69 = vector.extract_strided_slice %24 {offsets = [7, 0], sizes = [1, 128], strides = [1, 1]} : vector<9x128xf32> to vector<1x128xf32>
    %70 = vector.shape_cast %69 : vector<1x128xf32> to vector<1x1x1x128xf32>
    %71 = vector.broadcast %70 : vector<1x1x1x128xf32> to vector<2x16x16x128xf32>
    %72 = arith.mulf %68, %71 : vector<2x16x16x128xf32>
    %73 = arith.addf %67, %72 : vector<2x16x16x128xf32>
    %c0_51 = arith.constant 0 : index
    %c2_52 = arith.constant 2 : index
    %c2_53 = arith.constant 2 : index
    %c0_54 = arith.constant 0 : index
    %74 = vector.load %arg19[%c0_51, %c2_52, %c2_53, %c0_54] : memref<2x18x18x128xf32, #tpu.memory_space<vmem>>, vector<2x16x16x128xf32>
    %75 = vector.extract_strided_slice %24 {offsets = [8, 0], sizes = [1, 128], strides = [1, 1]} : vector<9x128xf32> to vector<1x128xf32>
    %76 = vector.shape_cast %75 : vector<1x128xf32> to vector<1x1x1x128xf32>
    %77 = vector.broadcast %76 : vector<1x1x1x128xf32> to vector<2x16x16x128xf32>
    %78 = arith.mulf %74, %77 : vector<2x16x16x128xf32>
    %79 = arith.addf %73, %78 : vector<2x16x16x128xf32>
    %c0_55 = arith.constant 0 : index
    %c0_56 = arith.constant 0 : index
    %c0_57 = arith.constant 0 : index
    %80 = vector.load %arg8[%c0_55, %c0_56, %c0_57] : memref<1x1x128xf32, #tpu.memory_space<vmem>>, vector<1x1x128xf32>
    %81 = vector.shape_cast %80 : vector<1x1x128xf32> to vector<1x128xf32>
    %82 = vector.shape_cast %81 : vector<1x128xf32> to vector<1x1x1x128xf32>
    %83 = vector.broadcast %82 : vector<1x1x1x128xf32> to vector<2x16x16x128xf32>
    %84 = arith.addf %79, %83 : vector<2x16x16x128xf32>
    %cst_58 = arith.constant 0.000000e+00 : f32
    %cst_59 = arith.constant 6.000000e+00 : f32
    %85 = vector.broadcast %cst_58 : f32 to vector<2x16x16x128xf32>
    %86 = arith.maximumf %85, %84 : vector<2x16x16x128xf32>
    %87 = vector.broadcast %cst_59 : f32 to vector<2x16x16x128xf32>
    %88 = arith.minimumf %87, %86 : vector<2x16x16x128xf32>
    %89 = vector.shape_cast %88 : vector<2x16x16x128xf32> to vector<512x128xf32>
    %c0_60 = arith.constant 0 : index
    %c0_61 = arith.constant 0 : index
    %c0_62 = arith.constant 0 : index
    %90 = vector.load %arg9[%c0_60, %c0_61, %c0_62] : memref<1x128x128xf32, #tpu.memory_space<vmem>>, vector<1x128x128xf32>
    %91 = vector.shape_cast %90 : vector<1x128x128xf32> to vector<128x128xf32>
    %cst_63 = arith.constant dense<0.000000e+00> : vector<512x128xf32>
    %92 = tpu.matmul %89, %91, %cst_63 {dimension_numbers = #tpu.dot_dimension_numbers<[1], [0], [0], [1], [0, 0, 1, 1], [], []>} : vector<512x128xf32>, vector<128x128xf32>, vector<512x128xf32> -> vector<512x128xf32>
    %c0_64 = arith.constant 0 : index
    %c0_65 = arith.constant 0 : index
    %c0_66 = arith.constant 0 : index
    %93 = vector.load %arg10[%c0_64, %c0_65, %c0_66] : memref<1x1x128xf32, #tpu.memory_space<vmem>>, vector<1x1x128xf32>
    %94 = vector.shape_cast %93 : vector<1x1x128xf32> to vector<1x128xf32>
    %95 = vector.broadcast %94 : vector<1x128xf32> to vector<512x128xf32>
    %96 = arith.addf %92, %95 : vector<512x128xf32>
    %c0_67 = arith.constant 0 : index
    %c0_68 = arith.constant 0 : index
    %97 = vector.load %arg18[%c0_67, %c0_68] : memref<512x128xf32, #tpu.memory_space<vmem>>, vector<512x128xf32>
    %98 = arith.addf %97, %96 : vector<512x128xf32>
    %c0_69 = arith.constant 0 : index
    %c0_70 = arith.constant 0 : index
    %c0_71 = arith.constant 0 : index
    %99 = vector.load %arg11[%c0_69, %c0_70, %c0_71] : memref<1x128x128xf32, #tpu.memory_space<vmem>>, vector<1x128x128xf32>
    %100 = vector.shape_cast %99 : vector<1x128x128xf32> to vector<128x128xf32>
    %cst_72 = arith.constant dense<0.000000e+00> : vector<512x128xf32>
    %101 = tpu.matmul %98, %100, %cst_72 {dimension_numbers = #tpu.dot_dimension_numbers<[1], [0], [0], [1], [0, 0, 1, 1], [], []>} : vector<512x128xf32>, vector<128x128xf32>, vector<512x128xf32> -> vector<512x128xf32>
    %c0_73 = arith.constant 0 : index
    %c0_74 = arith.constant 0 : index
    %c0_75 = arith.constant 0 : index
    %102 = vector.load %arg12[%c0_73, %c0_74, %c0_75] : memref<1x1x128xf32, #tpu.memory_space<vmem>>, vector<1x1x128xf32>
    %103 = vector.shape_cast %102 : vector<1x1x128xf32> to vector<1x128xf32>
    %104 = vector.broadcast %103 : vector<1x128xf32> to vector<512x128xf32>
    %105 = arith.addf %101, %104 : vector<512x128xf32>
    %cst_76 = arith.constant 0.000000e+00 : f32
    %cst_77 = arith.constant 6.000000e+00 : f32
    %106 = vector.broadcast %cst_76 : f32 to vector<512x128xf32>
    %107 = arith.maximumf %106, %105 : vector<512x128xf32>
    %108 = vector.broadcast %cst_77 : f32 to vector<512x128xf32>
    %109 = arith.minimumf %108, %107 : vector<512x128xf32>
    %110 = vector.shape_cast %109 : vector<512x128xf32> to vector<2x256x128xf32>
    %cst_78 = arith.constant dense<0.000000e+00> : vector<2x128xf32>
    %111 = vector.multi_reduction <add>, %110, %cst_78 [1] : vector<2x256x128xf32> to vector<2x128xf32>
    %cst_79 = arith.constant 2.560000e+02 : f32
    %112 = vector.broadcast %cst_79 : f32 to vector<2x128xf32>
    %113 = arith.divf %111, %112 : vector<2x128xf32>
    %c0_80 = arith.constant 0 : index
    %c0_81 = arith.constant 0 : index
    %c0_82 = arith.constant 0 : index
    %114 = vector.load %arg13[%c0_80, %c0_81, %c0_82] : memref<1x128x128xf32, #tpu.memory_space<vmem>>, vector<1x128x128xf32>
    %115 = vector.shape_cast %114 : vector<1x128x128xf32> to vector<128x128xf32>
    %cst_83 = arith.constant dense<0.000000e+00> : vector<2x128xf32>
    %116 = tpu.matmul %113, %115, %cst_83 {dimension_numbers = #tpu.dot_dimension_numbers<[1], [0], [0], [1], [0, 0, 1, 1], [], []>} : vector<2x128xf32>, vector<128x128xf32>, vector<2x128xf32> -> vector<2x128xf32>
    %c0_84 = arith.constant 0 : index
    %c0_85 = arith.constant 0 : index
    %c0_86 = arith.constant 0 : index
    %117 = vector.load %arg14[%c0_84, %c0_85, %c0_86] : memref<1x1x128xf32, #tpu.memory_space<vmem>>, vector<1x1x128xf32>
    %118 = vector.shape_cast %117 : vector<1x1x128xf32> to vector<1x128xf32>
    %119 = vector.broadcast %118 : vector<1x128xf32> to vector<2x128xf32>
    %120 = arith.addf %116, %119 : vector<2x128xf32>
    %121 = vector.shape_cast %120 : vector<2x128xf32> to vector<1x2x128xf32>
    %122 = arith.index_cast %arg0 : i32 to index
    %c0_87 = arith.constant 0 : index
    %c0_88 = arith.constant 0 : index
    %123 = vector.load %arg20[%122, %c0_87, %c0_88] : memref<2x2x128xf32, #tpu.memory_space<vmem>>, vector<1x2x128xf32>
    tpu.vector_store %arg20[%122, %c0_87, %c0_88], %121 {strides = array<i32>} : memref<2x2x128xf32, #tpu.memory_space<vmem>>, vector<1x2x128xf32>,
    %c1_i32_89 = arith.constant 1 : i32
    %124 = arith.cmpi eq, %arg0, %c1_i32_89 : i32
    %125 = arith.extui %124 : i1 to i32
    %c0_i32_90 = arith.constant 0 : i32
    %126 = arith.cmpi ne, %125, %c0_i32_90 : i32
    scf.if %126 {
      %c0_91 = arith.constant 0 : index
      %c0_92 = arith.constant 0 : index
      %c0_93 = arith.constant 0 : index
      %127 = vector.load %arg20[%c0_91, %c0_92, %c0_93] : memref<2x2x128xf32, #tpu.memory_space<vmem>>, vector<1x2x128xf32>
      %128 = vector.shape_cast %127 : vector<1x2x128xf32> to vector<2x128xf32>
      %c1_94 = arith.constant 1 : index
      %c0_95 = arith.constant 0 : index
      %c0_96 = arith.constant 0 : index
      %129 = vector.load %arg20[%c1_94, %c0_95, %c0_96] : memref<2x2x128xf32, #tpu.memory_space<vmem>>, vector<1x2x128xf32>
      %130 = vector.shape_cast %129 : vector<1x2x128xf32> to vector<2x128xf32>
      %131 = arith.subf %128, %130 : vector<2x128xf32>
      %cst_97 = arith.constant 9.99999997E-7 : f32
      %132 = vector.broadcast %cst_97 : f32 to vector<2x128xf32>
      %133 = arith.addf %131, %132 : vector<2x128xf32>
      %134 = arith.mulf %133, %133 : vector<2x128xf32>
      %cst_98 = arith.constant dense<0.000000e+00> : vector<2xf32>
      %135 = vector.multi_reduction <add>, %134, %cst_98 [1] : vector<2x128xf32> to vector<2xf32>
      %136 = vector.shape_cast %135 : vector<2xf32> to vector<2x1xf32>
      %137 = math.sqrt %136 : vector<2x1xf32>
      %cst_99 = arith.constant dense<0.000000e+00> : vector<1xf32>
      %138 = vector.multi_reduction <add>, %137, %cst_99 [0] : vector<2x1xf32> to vector<1xf32>
      %139 = vector.shape_cast %138 : vector<1xf32> to vector<1x1xf32>
      %cst_100 = arith.constant 2.000000e+00 : f32
      %140 = vector.broadcast %cst_100 : f32 to vector<1x1xf32>
      %141 = arith.divf %139, %140 : vector<1x1xf32>
      %142 = vector.broadcast %141 : vector<1x1xf32> to vector<2x1xf32>
      %143 = arith.subf %137, %142 : vector<2x1xf32>
      %144 = arith.mulf %143, %143 : vector<2x1xf32>
      %cst_101 = arith.constant dense<0.000000e+00> : vector<1xf32>
      %145 = vector.multi_reduction <add>, %144, %cst_101 [0] : vector<2x1xf32> to vector<1xf32>
      %146 = vector.shape_cast %145 : vector<1xf32> to vector<1x1xf32>
      %cst_102 = arith.constant 2.000000e+00 : f32
      %147 = vector.broadcast %cst_102 : f32 to vector<1x1xf32>
      %148 = arith.divf %146, %147 : vector<1x1xf32>
      %149 = vector.broadcast %141 : vector<1x1xf32> to vector<2x1xf32>
      %150 = arith.subf %137, %149 : vector<2x1xf32>
      %cst_103 = arith.constant 9.99999974E-6 : f32
      %151 = vector.broadcast %cst_103 : f32 to vector<1x1xf32>
      %152 = arith.addf %148, %151 : vector<1x1xf32>
      %153 = math.rsqrt %152 : vector<1x1xf32>
      %154 = vector.broadcast %153 : vector<1x1xf32> to vector<2x1xf32>
      %155 = arith.mulf %150, %154 : vector<2x1xf32>
      %c0_104 = arith.constant 0 : index
      %156 = memref.load %arg15[%c0_104] : memref<1xf32, #tpu.memory_space<smem>>
      %157 = vector.broadcast %156 : f32 to vector<2x1xf32>
      %158 = arith.mulf %155, %157 : vector<2x1xf32>
      %c0_105 = arith.constant 0 : index
      %159 = memref.load %arg16[%c0_105] : memref<1xf32, #tpu.memory_space<smem>>
      %160 = vector.broadcast %159 : f32 to vector<2x1xf32>
      %161 = arith.addf %158, %160 : vector<2x1xf32>
      %cst_106 = arith.constant 0.000000e+00 : f32
      %162 = vector.broadcast %cst_106 : f32 to vector<2x1xf32>
      %163 = arith.subf %162, %161 : vector<2x1xf32>
      %164 = math.exp %163 : vector<2x1xf32>
      %cst_107 = arith.constant 1.000000e+00 : f32
      %165 = vector.broadcast %cst_107 : f32 to vector<2x1xf32>
      %166 = arith.addf %165, %164 : vector<2x1xf32>
      %cst_108 = arith.constant 1.000000e+00 : f32
      %167 = vector.broadcast %cst_108 : f32 to vector<2x1xf32>
      %168 = arith.divf %167, %166 : vector<2x1xf32>
      %c0_109 = arith.constant 0 : index
      %c0_110 = arith.constant 0 : index
      %169 = vector.load %arg17[%c0_109, %c0_110] : memref<2x1xf32, #tpu.memory_space<vmem>>, vector<2x1xf32>
      tpu.vector_store %arg17[%c0_109, %c0_110], %168 {strides = array<i32>} : memref<2x1xf32, #tpu.memory_space<vmem>>, vector<2x1xf32>,
    } else {
    }
    return
  }
  func.func @transform_0(%arg0: i32) -> (i32, i32, i32) {
    %c0_i32 = arith.constant 0 : i32
    %c0_i32_0 = arith.constant 0 : i32
    %c0_i32_1 = arith.constant 0 : i32
    %c0_i32_2 = arith.constant 0 : i32
    return %c0_i32, %c0_i32_0, %c0_i32_1 : i32, i32, i32
  }
  func.func @transform_1(%arg0: i32) -> (i32, i32, i32) {
    %c0_i32 = arith.constant 0 : i32
    %c0_i32_0 = arith.constant 0 : i32
    %c0_i32_1 = arith.constant 0 : i32
    %c0_i32_2 = arith.constant 0 : i32
    return %c0_i32, %c0_i32_0, %c0_i32_1 : i32, i32, i32
  }
  func.func @transform_2(%arg0: i32) -> (i32, i32, i32) {
    %c0_i32 = arith.constant 0 : i32
    %c0_i32_0 = arith.constant 0 : i32
    %c0_i32_1 = arith.constant 0 : i32
    return %arg0, %c0_i32, %c0_i32_0 : i32, i32, i32
  }
  func.func @transform_3(%arg0: i32) -> (i32, i32, i32) {
    %c0_i32 = arith.constant 0 : i32
    %c0_i32_0 = arith.constant 0 : i32
    %c0_i32_1 = arith.constant 0 : i32
    return %arg0, %c0_i32, %c0_i32_0 : i32, i32, i32
  }
  func.func @transform_4(%arg0: i32) -> (i32, i32, i32) {
    %c0_i32 = arith.constant 0 : i32
    %c0_i32_0 = arith.constant 0 : i32
    %c0_i32_1 = arith.constant 0 : i32
    return %arg0, %c0_i32, %c0_i32_0 : i32, i32, i32
  }
  func.func @transform_5(%arg0: i32) -> (i32, i32, i32) {
    %c0_i32 = arith.constant 0 : i32
    %c0_i32_0 = arith.constant 0 : i32
    %c0_i32_1 = arith.constant 0 : i32
    return %arg0, %c0_i32, %c0_i32_0 : i32, i32, i32
  }
  func.func @transform_6(%arg0: i32) -> (i32, i32, i32) {
    %c0_i32 = arith.constant 0 : i32
    %c0_i32_0 = arith.constant 0 : i32
    %c0_i32_1 = arith.constant 0 : i32
    return %arg0, %c0_i32, %c0_i32_0 : i32, i32, i32
  }
  func.func @transform_7(%arg0: i32) -> (i32, i32, i32) {
    %c0_i32 = arith.constant 0 : i32
    %c0_i32_0 = arith.constant 0 : i32
    %c0_i32_1 = arith.constant 0 : i32
    return %arg0, %c0_i32, %c0_i32_0 : i32, i32, i32
  }
  func.func @transform_8(%arg0: i32) -> (i32, i32, i32) {
    %c0_i32 = arith.constant 0 : i32
    %c0_i32_0 = arith.constant 0 : i32
    %c0_i32_1 = arith.constant 0 : i32
    return %arg0, %c0_i32, %c0_i32_0 : i32, i32, i32
  }
  func.func @transform_9(%arg0: i32) -> (i32, i32, i32) {
    %c0_i32 = arith.constant 0 : i32
    %c0_i32_0 = arith.constant 0 : i32
    %c0_i32_1 = arith.constant 0 : i32
    return %arg0, %c0_i32, %c0_i32_0 : i32, i32, i32
  }
  func.func @transform_10(%arg0: i32) -> (i32, i32, i32) {
    %c0_i32 = arith.constant 0 : i32
    %c0_i32_0 = arith.constant 0 : i32
    %c0_i32_1 = arith.constant 0 : i32
    return %arg0, %c0_i32, %c0_i32_0 : i32, i32, i32
  }
  func.func @transform_11(%arg0: i32) -> (i32, i32, i32) {
    %c0_i32 = arith.constant 0 : i32
    %c0_i32_0 = arith.constant 0 : i32
    %c0_i32_1 = arith.constant 0 : i32
    return %arg0, %c0_i32, %c0_i32_0 : i32, i32, i32
  }
  func.func @transform_12(%arg0: i32) -> (i32, i32, i32) {
    %c0_i32 = arith.constant 0 : i32
    %c0_i32_0 = arith.constant 0 : i32
    %c0_i32_1 = arith.constant 0 : i32
    return %arg0, %c0_i32, %c0_i32_0 : i32, i32, i32
  }
  func.func @transform_13(%arg0: i32) -> (i32, i32, i32) {
    %c0_i32 = arith.constant 0 : i32
    %c0_i32_0 = arith.constant 0 : i32
    %c0_i32_1 = arith.constant 0 : i32
    return %arg0, %c0_i32, %c0_i32_0 : i32, i32, i32
  }
  func.func @transform_14(%arg0: i32) -> i32 {
    %c0_i32 = arith.constant 0 : i32
    %c0_i32_0 = arith.constant 0 : i32
    return %c0_i32 : i32
  }
  func.func @transform_15(%arg0: i32) -> i32 {
    %c0_i32 = arith.constant 0 : i32
    %c0_i32_0 = arith.constant 0 : i32
    return %c0_i32 : i32
  }
  func.func @transform_16(%arg0: i32) -> (i32, i32) {
    %c0_i32 = arith.constant 0 : i32
    %c0_i32_0 = arith.constant 0 : i32
    %c0_i32_1 = arith.constant 0 : i32
    return %c0_i32, %c0_i32_0 : i32, i32
  }
}

</mosaic_0001>

<llo_original>
// kernel: siamese_forward.1
$region0: #{siamese_forward.1}
  #allocation0 [shape = 'u32[]', space=smem, size = 0x4, offset = 0x4, fixed_abs, tag = 'smem constant byte address 0x4 - core index']
  #allocation1 [shape = 'u32[144,128]{1,0:T(1,128)}', space=vmem, size = 0x12000, scoped, tag = 'internal scratch']
  #allocation2 [shape = 'f32[512,128]{1,0:T(8,128)}', space=vmem, size = 0x40000, scoped, tag = 'scratch operand']
  #allocation3 [shape = 'f32[2,18,18,128]{3,2,1,0:T(8,128)}', space=vmem, size = 0x6c000, scoped, tag = 'scratch operand']
  #allocation4 [shape = 'f32[2,2,128]{2,1,0:T(2,128)}', space=vmem, size = 0x800, scoped, tag = 'scratch operand']
  #allocation5 [shape = 'f32[1]{0:T(128)S(6)}', space=smem, size = 0x200, scoped, tag = 'scoped memory for siamese_forward.1']
  #allocation6 [shape = 'f32[1]{0:T(128)S(6)}', space=smem, size = 0x200, scoped, tag = 'scoped memory for siamese_forward.1']
  %s0 = inlined_call_operand.vmem [shape: f32[2,3,256], index: 0, kind: input, shape index: {}]
  %s1 = inlined_call_operand.vmem [shape: f32[2,3,256], index: 1, kind: input, shape index: {}]
  %s2 = inlined_call_operand.vmem [shape: f32[2,128,3], index: 2, kind: input, shape index: {}]
  %s3 = inlined_call_operand.vmem [shape: f32[2,1,128], index: 3, kind: input, shape index: {}]
  %s4 = inlined_call_operand.vmem [shape: f32[2,128,128], index: 4, kind: input, shape index: {}]
  %s5 = inlined_call_operand.vmem [shape: f32[2,1,128], index: 5, kind: input, shape index: {}]
  %s6 = inlined_call_operand.vmem [shape: f32[2,9,128], index: 6, kind: input, shape index: {}]
  %s7 = inlined_call_operand.hbm [shape: f32[2,1,128], index: 7, kind: input, shape index: {}]
  %s8 = inlined_call_operand.vmem [shape: f32[2,128,128], index: 8, kind: input, shape index: {}]
  %s9 = inlined_call_operand.vmem [shape: f32[2,1,128], index: 9, kind: input, shape index: {}]
  %s10 = inlined_call_operand.hbm [shape: f32[2,128,128], index: 10, kind: input, shape index: {}]
  %s11 = inlined_call_operand.vmem [shape: f32[2,1,128], index: 11, kind: input, shape index: {}]
  %s12 = inlined_call_operand.hbm [shape: f32[2,128,128], index: 12, kind: input, shape index: {}]
  %s13 = inlined_call_operand.hbm [shape: f32[2,1,128], index: 13, kind: input, shape index: {}]
  %s14 = inlined_call_operand.<no memory space> [shape: f32[1], index: 14, kind: input, shape index: {}]
  %s15 = inlined_call_operand.<no memory space> [shape: f32[1], index: 15, kind: input, shape index: {}]
  %s16 = inlined_call_operand.vmem [shape: f32[2,1], index: 16, kind: output, shape index: {}]
  %s17 = sld [smem:[#allocation0]]
  $region129: #{siamese_forward.1} parent=0
    _
  %s19 = ssub.s32 1, %s17
  %s20 = scalar_select 0, %s19, %s17
  %21 = sst [smem:[#allocation5]] %s14
  %22 = sst [smem:[#allocation6]] %s15
  $region1: #{siamese_forward.1} parent=0
    #allocation7 [shape = 'u8[1024]{0}', space=vmem, size = 0x400, scoped, tag = 'input window, operand 7']
    #allocation8 [shape = 's32[2]{0}', space=sflag, size = 0x8, scoped, tag = 'scoped memory for siamese_forward.1']
    #allocation9 [shape = 'u8[131072]{0}', space=vmem, size = 0x20000, scoped, tag = 'input window, operand 10']
    #allocation10 [shape = 's32[2]{0}', space=sflag, size = 0x8, scoped, tag = 'scoped memory for siamese_forward.1']
    #allocation11 [shape = 'u8[131072]{0}', space=vmem, size = 0x20000, scoped, tag = 'input window, operand 12']
    #allocation12 [shape = 'u8[1024]{0}', space=vmem, size = 0x400, scoped, tag = 'input window, operand 13']
    #allocation13 [shape = 's32[2]{0}', space=sflag, size = 0x8, scoped, tag = 'scoped memory for siamese_forward.1']
    %23 = vsyncpa [#allocation8], 0
    %s24 = scalar_lea.sflag [#allocation8], 1
    %25 = vsyncpa %s24, 0
    %26 = vsyncpa [#allocation10], 0
    %s27 = scalar_lea.sflag [#allocation10], 1
    %28 = vsyncpa %s27, 0
    %29 = vsyncpa [#allocation13], 0
    %s30 = scalar_lea.sflag [#allocation13], 1
    %31 = vsyncpa %s30, 0
    loop: start=0, step=1, limit=4
    $region2: #{siamese_forward.1} parent=1 // loop_pre_header
      _
    $region3: #{siamese_forward.1} parent=1 // loop_header
      %s33 = sphi 0, %s37
      %p34 = scmp.ge.s32.totalorder %s33, 4
      %s41 = sphi 0, %s41
      %s43 = sphi 0, %s41
      %s44 = sphi 0, %s43
      %s58 = sphi 0, %s44
      %s62 = sphi 0, %s62
      %s64 = sphi 0, %s62
      %s65 = sphi 0, %s64
      %s79 = sphi 0, %s65
      %s85 = sphi 0, %s87
      %s88 = sphi 0, %s85
      %s89 = sphi 0, %s88
      %s105 = sphi 0, %s89
      %s111 = sphi 0, %s113
      %s114 = sphi 0, %s111
      %s115 = sphi 0, %s114
      %s131 = sphi 0, %s115
      %s137 = sphi 0, %s139
      %s140 = sphi 0, %s137
      %s141 = sphi 0, %s140
      %s157 = sphi 0, %s141
      %s163 = sphi 0, %s165
      %s166 = sphi 0, %s163
      %s167 = sphi 0, %s166
      %s183 = sphi 0, %s167
      %s189 = sphi 0, %s191
      %s192 = sphi 0, %s189
      %s193 = sphi 0, %s192
      %s209 = sphi 0, %s193
      %s215 = sphi 0, %s217
      %s218 = sphi 0, %s215
      %s219 = sphi 0, %s218
      %s235 = sphi 0, %s219
      %s241 = sphi 0, %s243
      %s244 = sphi 0, %s241
      %s245 = sphi 0, %s244
      %s261 = sphi 0, %s245
      %s267 = sphi 0, %s269
      %s270 = sphi 0, %s267
      %s271 = sphi 0, %s270
      %s287 = sphi 0, %s271
      %s293 = sphi 0, %s295
      %s296 = sphi 0, %s293
      %s297 = sphi 0, %s296
      %s313 = sphi 0, %s297
      %s319 = sphi 0, %s321
      %s322 = sphi 0, %s319
      %s323 = sphi 0, %s322
      %s339 = sphi 0, %s323
      %s345 = sphi 0, %s347
      %s348 = sphi 0, %s345
      %s349 = sphi 0, %s348
      %s365 = sphi 0, %s349
      %s371 = sphi 0, %s373
      %s374 = sphi 0, %s371
      %s375 = sphi 0, %s374
      %s391 = sphi 0, %s375
      %s395 = sphi 0, %s395
      %s397 = sphi 0, %s395
      %s398 = sphi 0, %s397
      %s412 = sphi 0, %s398
      %s416 = sphi 0, %s416
      %s418 = sphi 0, %s416
      %s419 = sphi 0, %s418
      %s433 = sphi 0, %s419
      %s437 = sphi 0, %s437
      %s439 = sphi 0, %s437
      %s440 = sphi 0, %s439
      %s454 = sphi 0, %s440
    $region4: #{siamese_forward.1} parent=1 // loop_header_branch
      %36 = sbr.rel (%p34) target = $region8
    $region5: #{siamese_forward.1} parent=1 // loop_body
      %s38 = ssub.s32 %s33, 1
      %s39 = ssub.s32 %s33, 2
      %s40 = sadd.s32 %s33, 1
      %s42 = sadd.s32 %s41, 1
      %p45 = scmp.eq.s32.totalorder %s33, 1
      %p46 = scmp.ne.s32.totalorder %s41, %s43
      %p47 = scmp.eq.s32.totalorder %s33, 0
      %p48 = por %p46, %p47
      %p49 = scmp.ne.s32.totalorder %s41, %s43
      %p50 = scmp.eq.s32.totalorder %s38, 1
      %p51 = por %p49, %p50
      %p52 = scmp.ne.s32.totalorder %s43, %s44
      %p53 = scmp.eq.s32.totalorder %s38, 0
      %p54 = por %p52, %p53
      %p55 = scmp.ne.s32.totalorder %s43, %s44
      %p56 = scmp.eq.s32.totalorder %s39, 1
      %p57 = por %p55, %p56
      %p59 = scmp.ne.s32.totalorder %s44, %s58
      %p60 = scmp.eq.s32.totalorder %s39, 0
      %p61 = por %p59, %p60
      %s63 = sadd.s32 %s62, 1
      %p66 = scmp.eq.s32.totalorder %s33, 1
      %p67 = scmp.ne.s32.totalorder %s62, %s64
      %p68 = scmp.eq.s32.totalorder %s33, 0
      %p69 = por %p67, %p68
      %p70 = scmp.ne.s32.totalorder %s62, %s64
      %p71 = scmp.eq.s32.totalorder %s38, 1
      %p72 = por %p70, %p71
      %p73 = scmp.ne.s32.totalorder %s64, %s65
      %p74 = scmp.eq.s32.totalorder %s38, 0
      %p75 = por %p73, %p74
      %p76 = scmp.ne.s32.totalorder %s64, %s65
      %p77 = scmp.eq.s32.totalorder %s39, 1
      %p78 = por %p76, %p77
      %p80 = scmp.ne.s32.totalorder %s65, %s79
      %p81 = scmp.eq.s32.totalorder %s39, 0
      %p82 = por %p80, %p81
      %s83 = ssub.s32 %s33, %s40
      %p84 = scmp.eq.s32.totalorder %s83, 0
      %s86 = sadd.s32 %s85, 1
      %s87 = scalar_select %p84, %s85, %s86
      %p90 = pneg %p84
      %p91 = scmp.eq.s32.totalorder %s33, 1
      %p92 = por %p90, %p91
      %p93 = scmp.ne.s32.totalorder %s85, %s88
      %p94 = scmp.eq.s32.totalorder %s33, 0
      %p95 = por %p93, %p94
      %p96 = scmp.ne.s32.totalorder %s85, %s88
      %p97 = scmp.eq.s32.totalorder %s38, 1
      %p98 = por %p96, %p97
      %p99 = scmp.ne.s32.totalorder %s88, %s89
      %p100 = scmp.eq.s32.totalorder %s38, 0
      %p101 = por %p99, %p100
      %p102 = scmp.ne.s32.totalorder %s88, %s89
      %p103 = scmp.eq.s32.totalorder %s39, 1
      %p104 = por %p102, %p103
      %p106 = scmp.ne.s32.totalorder %s89, %s105
      %p107 = scmp.eq.s32.totalorder %s39, 0
      %p108 = por %p106, %p107
      %s109 = ssub.s32 %s33, %s40
      %p110 = scmp.eq.s32.totalorder %s109, 0
      %s112 = sadd.s32 %s111, 1
      %s113 = scalar_select %p110, %s111, %s112
      %p116 = pneg %p110
      %p117 = scmp.eq.s32.totalorder %s33, 1
      %p118 = por %p116, %p117
      %p119 = scmp.ne.s32.totalorder %s111, %s114
      %p120 = scmp.eq.s32.totalorder %s33, 0
      %p121 = por %p119, %p120
      %p122 = scmp.ne.s32.totalorder %s111, %s114
      %p123 = scmp.eq.s32.totalorder %s38, 1
      %p124 = por %p122, %p123
      %p125 = scmp.ne.s32.totalorder %s114, %s115
      %p126 = scmp.eq.s32.totalorder %s38, 0
      %p127 = por %p125, %p126
      %p128 = scmp.ne.s32.totalorder %s114, %s115
      %p129 = scmp.eq.s32.totalorder %s39, 1
      %p130 = por %p128, %p129
      %p132 = scmp.ne.s32.totalorder %s115, %s131
      %p133 = scmp.eq.s32.totalorder %s39, 0
      %p134 = por %p132, %p133
      %s135 = ssub.s32 %s33, %s40
      %p136 = scmp.eq.s32.totalorder %s135, 0
      %s138 = sadd.s32 %s137, 1
      %s139 = scalar_select %p136, %s137, %s138
      %p142 = pneg %p136
      %p143 = scmp.eq.s32.totalorder %s33, 1
      %p144 = por %p142, %p143
      %p145 = scmp.ne.s32.totalorder %s137, %s140
      %p146 = scmp.eq.s32.totalorder %s33, 0
      %p147 = por %p145, %p146
      %p148 = scmp.ne.s32.totalorder %s137, %s140
      %p149 = scmp.eq.s32.totalorder %s38, 1
      %p150 = por %p148, %p149
      %p151 = scmp.ne.s32.totalorder %s140, %s141
      %p152 = scmp.eq.s32.totalorder %s38, 0
      %p153 = por %p151, %p152
      %p154 = scmp.ne.s32.totalorder %s140, %s141
      %p155 = scmp.eq.s32.totalorder %s39, 1
      %p156 = por %p154, %p155
      %p158 = scmp.ne.s32.totalorder %s141, %s157
      %p159 = scmp.eq.s32.totalorder %s39, 0
      %p160 = por %p158, %p159
      %s161 = ssub.s32 %s33, %s40
      %p162 = scmp.eq.s32.totalorder %s161, 0
      %s164 = sadd.s32 %s163, 1
      %s165 = scalar_select %p162, %s163, %s164
      %p168 = pneg %p162
      %p169 = scmp.eq.s32.totalorder %s33, 1
      %p170 = por %p168, %p169
      %p171 = scmp.ne.s32.totalorder %s163, %s166
      %p172 = scmp.eq.s32.totalorder %s33, 0
      %p173 = por %p171, %p172
      %p174 = scmp.ne.s32.totalorder %s163, %s166
      %p175 = scmp.eq.s32.totalorder %s38, 1
      %p176 = por %p174, %p175
      %p177 = scmp.ne.s32.totalorder %s166, %s167
      %p178 = scmp.eq.s32.totalorder %s38, 0
      %p179 = por %p177, %p178
      %p180 = scmp.ne.s32.totalorder %s166, %s167
      %p181 = scmp.eq.s32.totalorder %s39, 1
      %p182 = por %p180, %p181
      %p184 = scmp.ne.s32.totalorder %s167, %s183
      %p185 = scmp.eq.s32.totalorder %s39, 0
      %p186 = por %p184, %p185
      %s187 = ssub.s32 %s33, %s40
      %p188 = scmp.eq.s32.totalorder %s187, 0
      %s190 = sadd.s32 %s189, 1
      %s191 = scalar_select %p188, %s189, %s190
      %p194 = pneg %p188
      %p195 = scmp.eq.s32.totalorder %s33, 1
      %p196 = por %p194, %p195
      %p197 = scmp.ne.s32.totalorder %s189, %s192
      %p198 = scmp.eq.s32.totalorder %s33, 0
      %p199 = por %p197, %p198
      %p200 = scmp.ne.s32.totalorder %s189, %s192
      %p201 = scmp.eq.s32.totalorder %s38, 1
      %p202 = por %p200, %p201
      %p203 = scmp.ne.s32.totalorder %s192, %s193
      %p204 = scmp.eq.s32.totalorder %s38, 0
      %p205 = por %p203, %p204
      %p206 = scmp.ne.s32.totalorder %s192, %s193
      %p207 = scmp.eq.s32.totalorder %s39, 1
      %p208 = por %p206, %p207
      %p210 = scmp.ne.s32.totalorder %s193, %s209
      %p211 = scmp.eq.s32.totalorder %s39, 0
      %p212 = por %p210, %p211
      %s213 = ssub.s32 %s33, %s40
      %p214 = scmp.eq.s32.totalorder %s213, 0
      %s216 = sadd.s32 %s215, 1
      %s217 = scalar_select %p214, %s215, %s216
      %p220 = pneg %p214
      %p221 = scmp.eq.s32.totalorder %s33, 1
      %p222 = por %p220, %p221
      %p223 = scmp.ne.s32.totalorder %s215, %s218
      %p224 = scmp.eq.s32.totalorder %s33, 0
      %p225 = por %p223, %p224
      %p226 = scmp.ne.s32.totalorder %s215, %s218
      %p227 = scmp.eq.s32.totalorder %s38, 1
      %p228 = por %p226, %p227
      %p229 = scmp.ne.s32.totalorder %s218, %s219
      %p230 = scmp.eq.s32.totalorder %s38, 0
      %p231 = por %p229, %p230
      %p232 = scmp.ne.s32.totalorder %s218, %s219
      %p233 = scmp.eq.s32.totalorder %s39, 1
      %p234 = por %p232, %p233
      %p236 = scmp.ne.s32.totalorder %s219, %s235
      %p237 = scmp.eq.s32.totalorder %s39, 0
      %p238 = por %p236, %p237
      %s239 = ssub.s32 %s33, %s40
      %p240 = scmp.eq.s32.totalorder %s239, 0
      %s242 = sadd.s32 %s241, 1
      %s243 = scalar_select %p240, %s241, %s242
      %p246 = pneg %p240
      %p247 = scmp.eq.s32.totalorder %s33, 1
      %p248 = por %p246, %p247
      %p249 = scmp.ne.s32.totalorder %s241, %s244
      %p250 = scmp.eq.s32.totalorder %s33, 0
      %p251 = por %p249, %p250
      %p252 = scmp.ne.s32.totalorder %s241, %s244
      %p253 = scmp.eq.s32.totalorder %s38, 1
      %p254 = por %p252, %p253
      %p255 = scmp.ne.s32.totalorder %s244, %s245
      %p256 = scmp.eq.s32.totalorder %s38, 0
      %p257 = por %p255, %p256
      %p258 = scmp.ne.s32.totalorder %s244, %s245
      %p259 = scmp.eq.s32.totalorder %s39, 1
      %p260 = por %p258, %p259
      %p262 = scmp.ne.s32.totalorder %s245, %s261
      %p263 = scmp.eq.s32.totalorder %s39, 0
      %p264 = por %p262, %p263
      %s265 = ssub.s32 %s33, %s40
      %p266 = scmp.eq.s32.totalorder %s265, 0
      %s268 = sadd.s32 %s267, 1
      %s269 = scalar_select %p266, %s267, %s268
      %p272 = pneg %p266
      %p273 = scmp.eq.s32.totalorder %s33, 1
      %p274 = por %p272, %p273
      %p275 = scmp.ne.s32.totalorder %s267, %s270
      %p276 = scmp.eq.s32.totalorder %s33, 0
      %p277 = por %p275, %p276
      %p278 = scmp.ne.s32.totalorder %s267, %s270
      %p279 = scmp.eq.s32.totalorder %s38, 1
      %p280 = por %p278, %p279
      %p281 = scmp.ne.s32.totalorder %s270, %s271
      %p282 = scmp.eq.s32.totalorder %s38, 0
      %p283 = por %p281, %p282
      %p284 = scmp.ne.s32.totalorder %s270, %s271
      %p285 = scmp.eq.s32.totalorder %s39, 1
      %p286 = por %p284, %p285
      %p288 = scmp.ne.s32.totalorder %s271, %s287
      %p289 = scmp.eq.s32.totalorder %s39, 0
      %p290 = por %p288, %p289
      %s291 = ssub.s32 %s33, %s40
      %p292 = scmp.eq.s32.totalorder %s291, 0
      %s294 = sadd.s32 %s293, 1
      %s295 = scalar_select %p292, %s293, %s294
      %p298 = pneg %p292
      %p299 = scmp.eq.s32.totalorder %s33, 1
      %p300 = por %p298, %p299
      %p301 = scmp.ne.s32.totalorder %s293, %s296
      %p302 = scmp.eq.s32.totalorder %s33, 0
      %p303 = por %p301, %p302
      %p304 = scmp.ne.s32.totalorder %s293, %s296
      %p305 = scmp.eq.s32.totalorder %s38, 1
      %p306 = por %p304, %p305
      %p307 = scmp.ne.s32.totalorder %s296, %s297
      %p308 = scmp.eq.s32.totalorder %s38, 0
      %p309 = por %p307, %p308
      %p310 = scmp.ne.s32.totalorder %s296, %s297
      %p311 = scmp.eq.s32.totalorder %s39, 1
      %p312 = por %p310, %p311
      %p314 = scmp.ne.s32.totalorder %s297, %s313
      %p315 = scmp.eq.s32.totalorder %s39, 0
      %p316 = por %p314, %p315
      %s317 = ssub.s32 %s33, %s40
      %p318 = scmp.eq.s32.totalorder %s317, 0
      %s320 = sadd.s32 %s319, 1
      %s321 = scalar_select %p318, %s319, %s320
      %p324 = pneg %p318
      %p325 = scmp.eq.s32.totalorder %s33, 1
      %p326 = por %p324, %p325
      %p327 = scmp.ne.s32.totalorder %s319, %s322
      %p328 = scmp.eq.s32.totalorder %s33, 0
      %p329 = por %p327, %p328
      %p330 = scmp.ne.s32.totalorder %s319, %s322
      %p331 = scmp.eq.s32.totalorder %s38, 1
      %p332 = por %p330, %p331
      %p333 = scmp.ne.s32.totalorder %s322, %s323
      %p334 = scmp.eq.s32.totalorder %s38, 0
      %p335 = por %p333, %p334
      %p336 = scmp.ne.s32.totalorder %s322, %s323
      %p337 = scmp.eq.s32.totalorder %s39, 1
      %p338 = por %p336, %p337
      %p340 = scmp.ne.s32.totalorder %s323, %s339
      %p341 = scmp.eq.s32.totalorder %s39, 0
      %p342 = por %p340, %p341
      %s343 = ssub.s32 %s33, %s40
      %p344 = scmp.eq.s32.totalorder %s343, 0
      %s346 = sadd.s32 %s345, 1
      %s347 = scalar_select %p344, %s345, %s346
      %p350 = pneg %p344
      %p351 = scmp.eq.s32.totalorder %s33, 1
      %p352 = por %p350, %p351
      %p353 = scmp.ne.s32.totalorder %s345, %s348
      %p354 = scmp.eq.s32.totalorder %s33, 0
      %p355 = por %p353, %p354
      %p356 = scmp.ne.s32.totalorder %s345, %s348
      %p357 = scmp.eq.s32.totalorder %s38, 1
      %p358 = por %p356, %p357
      %p359 = scmp.ne.s32.totalorder %s348, %s349
      %p360 = scmp.eq.s32.totalorder %s38, 0
      %p361 = por %p359, %p360
      %p362 = scmp.ne.s32.totalorder %s348, %s349
      %p363 = scmp.eq.s32.totalorder %s39, 1
      %p364 = por %p362, %p363
      %p366 = scmp.ne.s32.totalorder %s349, %s365
      %p367 = scmp.eq.s32.totalorder %s39, 0
      %p368 = por %p366, %p367
      %s369 = ssub.s32 %s33, %s40
      %p370 = scmp.eq.s32.totalorder %s369, 0
      %s372 = sadd.s32 %s371, 1
      %s373 = scalar_select %p370, %s371, %s372
      %p376 = pneg %p370
      %p377 = scmp.eq.s32.totalorder %s33, 1
      %p378 = por %p376, %p377
      %p379 = scmp.ne.s32.totalorder %s371, %s374
      %p380 = scmp.eq.s32.totalorder %s33, 0
      %p381 = por %p379, %p380
      %p382 = scmp.ne.s32.totalorder %s371, %s374
      %p383 = scmp.eq.s32.totalorder %s38, 1
      %p384 = por %p382, %p383
      %p385 = scmp.ne.s32.totalorder %s374, %s375
      %p386 = scmp.eq.s32.totalorder %s38, 0
      %p387 = por %p385, %p386
      %p388 = scmp.ne.s32.totalorder %s374, %s375
      %p389 = scmp.eq.s32.totalorder %s39, 1
      %p390 = por %p388, %p389
      %p392 = scmp.ne.s32.totalorder %s375, %s391
      %p393 = scmp.eq.s32.totalorder %s39, 0
      %p394 = por %p392, %p393
      %s396 = sadd.s32 %s395, 1
      %p399 = scmp.eq.s32.totalorder %s33, 1
      %p400 = scmp.ne.s32.totalorder %s395, %s397
      %p401 = scmp.eq.s32.totalorder %s33, 0
      %p402 = por %p400, %p401
      %p403 = scmp.ne.s32.totalorder %s395, %s397
      %p404 = scmp.eq.s32.totalorder %s38, 1
      %p405 = por %p403, %p404
      %p406 = scmp.ne.s32.totalorder %s397, %s398
      %p407 = scmp.eq.s32.totalorder %s38, 0
      %p408 = por %p406, %p407
      %p409 = scmp.ne.s32.totalorder %s397, %s398
      %p410 = scmp.eq.s32.totalorder %s39, 1
      %p411 = por %p409, %p410
      %p413 = scmp.ne.s32.totalorder %s398, %s412
      %p414 = scmp.eq.s32.totalorder %s39, 0
      %p415 = por %p413, %p414
      %s417 = sadd.s32 %s416, 1
      %p420 = scmp.eq.s32.totalorder %s33, 1
      %p421 = scmp.ne.s32.totalorder %s416, %s418
      %p422 = scmp.eq.s32.totalorder %s33, 0
      %p423 = por %p421, %p422
      %p424 = scmp.ne.s32.totalorder %s416, %s418
      %p425 = scmp.eq.s32.totalorder %s38, 1
      %p426 = por %p424, %p425
      %p427 = scmp.ne.s32.totalorder %s418, %s419
      %p428 = scmp.eq.s32.totalorder %s38, 0
      %p429 = por %p427, %p428
      %p430 = scmp.ne.s32.totalorder %s418, %s419
      %p431 = scmp.eq.s32.totalorder %s39, 1
      %p432 = por %p430, %p431
      %p434 = scmp.ne.s32.totalorder %s419, %s433
      %p435 = scmp.eq.s32.totalorder %s39, 0
      %p436 = por %p434, %p435
      %s438 = sadd.s32 %s437, 1
      %p441 = scmp.eq.s32.totalorder %s33, 1
      %p442 = scmp.ne.s32.totalorder %s437, %s439
      %p443 = scmp.eq.s32.totalorder %s33, 0
      %p444 = por %p442, %p443
      %p445 = scmp.ne.s32.totalorder %s437, %s439
      %p446 = scmp.eq.s32.totalorder %s38, 1
      %p447 = por %p445, %p446
      %p448 = scmp.ne.s32.totalorder %s439, %s440
      %p449 = scmp.eq.s32.totalorder %s38, 0
      %p450 = por %p448, %p449
      %p451 = scmp.ne.s32.totalorder %s439, %s440
      %p452 = scmp.eq.s32.totalorder %s39, 1
      %p453 = por %p451, %p452
      %p455 = scmp.ne.s32.totalorder %s440, %s454
      %p456 = scmp.eq.s32.totalorder %s39, 0
      %p457 = por %p455, %p456
      %p458 = scmp.le.s32.totalorder 1, %s33
      %p459 = scmp.lt.s32.totalorder %s33, 3
      %p460 = pnand %p458, %p459
      %p461 = pneg %p460
      // Predicated region
      $region9: #{siamese_forward.1} parent=5 // pred_check
        _
      $region10: #{siamese_forward.1} parent=5 // pred_check_branch
        %463 = sbr.rel (%p460) target = $region12
      $region11: #{siamese_forward.1} parent=5 // pred_region
        %s464 = ssub.s32 %s33, 1
        // Predicated region
        $region13: #{siamese_forward.1} parent=11 // pred_check
          %p465 = pneg %p54
        $region14: #{siamese_forward.1} parent=11 // pred_check_branch
          %467 = sbr.rel (%p465) target = $region16
        $region15: #{siamese_forward.1} parent=11 // pred_region
          _
        $region16: #{siamese_forward.1} parent=11 // pred_fallthru
          _
        // Predicated region
        $region17: #{siamese_forward.1} parent=11 // pred_check
          %p468 = pneg %p75
        $region18: #{siamese_forward.1} parent=11 // pred_check_branch
          %470 = sbr.rel (%p468) target = $region20
        $region19: #{siamese_forward.1} parent=11 // pred_region
          _
        $region20: #{siamese_forward.1} parent=11 // pred_fallthru
          _
        // Predicated region
        $region21: #{siamese_forward.1} parent=11 // pred_check
          %p471 = pneg %p408
        $region22: #{siamese_forward.1} parent=11 // pred_check_branch
          %473 = sbr.rel (%p471) target = $region24
        $region23: #{siamese_forward.1} parent=11 // pred_region
          _
        $region24: #{siamese_forward.1} parent=11 // pred_fallthru
          _
        // Predicated region
        $region25: #{siamese_forward.1} parent=11 // pred_check
          %p474 = pneg %p429
        $region26: #{siamese_forward.1} parent=11 // pred_check_branch
          %476 = sbr.rel (%p474) target = $region28
        $region27: #{siamese_forward.1} parent=11 // pred_region
          _
        $region28: #{siamese_forward.1} parent=11 // pred_fallthru
          _
      $region12: #{siamese_forward.1} parent=5 // pred_fallthru
        _
      %p477 = scmp.lt.s32.totalorder %s33, 2
      // Predicated region
      $region29: #{siamese_forward.1} parent=5 // pred_check
        %p478 = pneg %p477
      $region30: #{siamese_forward.1} parent=5 // pred_check_branch
        %480 = sbr.rel (%p478) target = $region32
      $region31: #{siamese_forward.1} parent=5 // pred_region
        // Predicated region
        $region33: #{siamese_forward.1} parent=31 // pred_check
          %p481 = pneg %p95
        $region34: #{siamese_forward.1} parent=31 // pred_check_branch
          %483 = sbr.rel (%p481) target = $region36
        $region35: #{siamese_forward.1} parent=31 // pred_region
          %p484 = scmp.lt.s32.totalorder %s33, 1
          %s485 = scalar_select %p484, %s33, 1
          %s486 = smul.addr %s485, 16
          %s487 = smul.addr %s486, 8
          %s488 = scalar_lea.vmem %s2, %s487
        $region36: #{siamese_forward.1} parent=31 // pred_fallthru
          _
        // Predicated region
        $region37: #{siamese_forward.1} parent=31 // pred_check
          %p489 = pneg %p121
        $region38: #{siamese_forward.1} parent=31 // pred_check_branch
          %491 = sbr.rel (%p489) target = $region40
        $region39: #{siamese_forward.1} parent=31 // pred_region
          %p492 = scmp.lt.s32.totalorder %s33, 1
          %s493 = scalar_select %p492, %s33, 1
          %s494 = scalar_lea.vmem %s3, %s493
        $region40: #{siamese_forward.1} parent=31 // pred_fallthru
          _
        // Predicated region
        $region41: #{siamese_forward.1} parent=31 // pred_check
          %p495 = pneg %p147
        $region42: #{siamese_forward.1} parent=31 // pred_check_branch
          %497 = sbr.rel (%p495) target = $region44
        $region43: #{siamese_forward.1} parent=31 // pred_region
          %p498 = scmp.lt.s32.totalorder %s33, 1
          %s499 = scalar_select %p498, %s33, 1
          %s500 = smul.addr %s499, 16
          %s501 = smul.addr %s500, 8
          %s502 = scalar_lea.vmem %s4, %s501
        $region44: #{siamese_forward.1} parent=31 // pred_fallthru
          _
        // Predicated region
        $region45: #{siamese_forward.1} parent=31 // pred_check
          %p503 = pneg %p173
        $region46: #{siamese_forward.1} parent=31 // pred_check_branch
          %505 = sbr.rel (%p503) target = $region48
        $region47: #{siamese_forward.1} parent=31 // pred_region
          %p506 = scmp.lt.s32.totalorder %s33, 1
          %s507 = scalar_select %p506, %s33, 1
          %s508 = scalar_lea.vmem %s5, %s507
        $region48: #{siamese_forward.1} parent=31 // pred_fallthru
          _
        // Predicated region
        $region49: #{siamese_forward.1} parent=31 // pred_check
          %p509 = pneg %p199
        $region50: #{siamese_forward.1} parent=31 // pred_check_branch
          %511 = sbr.rel (%p509) target = $region52
        $region51: #{siamese_forward.1} parent=31 // pred_region
          %p512 = scmp.lt.s32.totalorder %s33, 1
          %s513 = scalar_select %p512, %s33, 1
          %s514 = smul.addr %s513, 2
          %s515 = smul.addr %s514, 8
          %s516 = scalar_lea.vmem %s6, %s515
        $region52: #{siamese_forward.1} parent=31 // pred_fallthru
          _
        // Predicated region
        $region53: #{siamese_forward.1} parent=31 // pred_check
          %p517 = pneg %p225
        $region54: #{siamese_forward.1} parent=31 // pred_check_branch
          %519 = sbr.rel (%p517) target = $region56
        $region55: #{siamese_forward.1} parent=31 // pred_region
          %s520 = sand.u32 %s215, 1
          %s521 = scalar_lea.sflag [#allocation8], %s520
          %s522 = sand.u32 %s215, 1
          %s523 = scalar_lea.vmem [#allocation7], %s522
          %s525 = ssub.s32 16, 16
          %526 = vsyncadd %s521, %s525
          %s527 = smul.addr %s33, 16
          %s528 = scalar_lea.hbm %s7, %s527
          %s530 = sshll.u32 %s523, 4
          %s531 = int_to_ptr.vmem [resolvable:$true] %s530
          %533 = dma.hbm_to_vmem [thread:$0]  %s528, 16, %s531, %s521
        $region56: #{siamese_forward.1} parent=31 // pred_fallthru
          _
        // Predicated region
        $region57: #{siamese_forward.1} parent=31 // pred_check
          %p534 = pneg %p251
        $region58: #{siamese_forward.1} parent=31 // pred_check_branch
          %536 = sbr.rel (%p534) target = $region60
        $region59: #{siamese_forward.1} parent=31 // pred_region
          %p537 = scmp.lt.s32.totalorder %s33, 1
          %s538 = scalar_select %p537, %s33, 1
          %s539 = smul.addr %s538, 16
          %s540 = smul.addr %s539, 8
          %s541 = scalar_lea.vmem %s8, %s540
        $region60: #{siamese_forward.1} parent=31 // pred_fallthru
          _
        // Predicated region
        $region61: #{siamese_forward.1} parent=31 // pred_check
          %p542 = pneg %p277
        $region62: #{siamese_forward.1} parent=31 // pred_check_branch
          %544 = sbr.rel (%p542) target = $region64
        $region63: #{siamese_forward.1} parent=31 // pred_region
          %p545 = scmp.lt.s32.totalorder %s33, 1
          %s546 = scalar_select %p545, %s33, 1
          %s547 = scalar_lea.vmem %s9, %s546
        $region64: #{siamese_forward.1} parent=31 // pred_fallthru
          _
        // Predicated region
        $region65: #{siamese_forward.1} parent=31 // pred_check
          %p548 = pneg %p303
        $region66: #{siamese_forward.1} parent=31 // pred_check_branch
          %550 = sbr.rel (%p548) target = $region68
        $region67: #{siamese_forward.1} parent=31 // pred_region
          %s551 = sand.u32 %s33, 1
          %s552 = scalar_lea.sflag [#allocation10], %s551
          %s553 = sand.u32 %s293, 1
          %s554 = smul.addr %s553, 128
          %s555 = scalar_lea.vmem [#allocation9], %s554
          %s557 = ssub.s32 2048, 2048
          %558 = vsyncadd %s552, %s557
          %s559 = smul.addr %s33, 16
          %s560 = smul.addr %s559, 128
          %s561 = scalar_lea.hbm %s10, %s560
          %s562 = sshll.u32 %s555, 4
          %s563 = int_to_ptr.vmem [resolvable:$true] %s562
          %568 = dma.hbm_to_vmem [thread:$0]  %s561, 2048, %s563, %s552, 128, 128, 8
        $region68: #{siamese_forward.1} parent=31 // pred_fallthru
          _
        // Predicated region
        $region69: #{siamese_forward.1} parent=31 // pred_check
          %p569 = pneg %p329
        $region70: #{siamese_forward.1} parent=31 // pred_check_branch
          %571 = sbr.rel (%p569) target = $region72
        $region71: #{siamese_forward.1} parent=31 // pred_region
          %p572 = scmp.lt.s32.totalorder %s33, 1
          %s573 = scalar_select %p572, %s33, 1
          %s574 = scalar_lea.vmem %s11, %s573
        $region72: #{siamese_forward.1} parent=31 // pred_fallthru
          _
        // Predicated region
        $region73: #{siamese_forward.1} parent=31 // pred_check
          %p575 = pneg %p355
        $region74: #{siamese_forward.1} parent=31 // pred_check_branch
          %577 = sbr.rel (%p575) target = $region76
        $region75: #{siamese_forward.1} parent=31 // pred_region
          %s578 = sand.u32 %s33, 1
          %s579 = scalar_lea.sflag [#allocation10], %s578
          %s580 = sand.u32 %s345, 1
          %s581 = smul.addr %s580, 128
          %s582 = scalar_lea.vmem [#allocation11], %s581
          %s584 = ssub.s32 2048, 2048
          %585 = vsyncadd %s579, %s584
          %s586 = smul.addr %s33, 16
          %s587 = smul.addr %s586, 128
          %s588 = scalar_lea.hbm %s12, %s587
          %s589 = sshll.u32 %s582, 4
          %s590 = int_to_ptr.vmem [resolvable:$true] %s589
          %595 = dma.hbm_to_vmem [thread:$0]  %s588, 2048, %s590, %s579, 128, 128, 8
        $region76: #{siamese_forward.1} parent=31 // pred_fallthru
          _
        // Predicated region
        $region77: #{siamese_forward.1} parent=31 // pred_check
          %p596 = pneg %p381
        $region78: #{siamese_forward.1} parent=31 // pred_check_branch
          %598 = sbr.rel (%p596) target = $region80
        $region79: #{siamese_forward.1} parent=31 // pred_region
          %s599 = sand.u32 %s371, 1
          %s600 = scalar_lea.sflag [#allocation13], %s599
          %s601 = sand.u32 %s371, 1
          %s602 = scalar_lea.vmem [#allocation12], %s601
          %s604 = ssub.s32 16, 16
          %605 = vsyncadd %s600, %s604
          %s606 = smul.addr %s33, 16
          %s607 = scalar_lea.hbm %s13, %s606
          %s609 = sshll.u32 %s602, 4
          %s610 = int_to_ptr.vmem [resolvable:$true] %s609
          %612 = dma.hbm_to_vmem [thread:$0]  %s607, 16, %s610, %s600
        $region80: #{siamese_forward.1} parent=31 // pred_fallthru
          _
      $region32: #{siamese_forward.1} parent=5 // pred_fallthru
        _
      %p613 = scmp.le.s32.totalorder 1, %s33
      %p614 = scmp.lt.s32.totalorder %s33, 3
      %p615 = pnand %p613, %p614
      %p616 = pneg %p615
      // Predicated region
      $region81: #{siamese_forward.1} parent=5 // pred_check
        _
      $region82: #{siamese_forward.1} parent=5 // pred_check_branch
        %618 = sbr.rel (%p615) target = $region84
      $region83: #{siamese_forward.1} parent=5 // pred_region
        %s619 = ssub.s32 %s33, 1
        %s620 = sand.u32 %s218, 1
        %s621 = scalar_lea.sflag [#allocation8], %s620
        %s622 = sand.u32 %s218, 1
        %s623 = scalar_lea.vmem [#allocation7], %s622
        // Predicated region
        $region85: #{siamese_forward.1} parent=83 // pred_check
          %p624 = pneg %p231
        $region86: #{siamese_forward.1} parent=83 // pred_check_branch
          %626 = sbr.rel (%p624) target = $region88
        $region87: #{siamese_forward.1} parent=83 // pred_region
          %627 = dma.done %s621, 16
        $region88: #{siamese_forward.1} parent=83 // pred_fallthru
          _
        %s628 = sand.u32 %s38, 1
        %s629 = scalar_lea.sflag [#allocation10], %s628
        %s630 = sand.u32 %s296, 1
        %s631 = smul.addr %s630, 128
        %s632 = scalar_lea.vmem [#allocation9], %s631
        // Predicated region
        $region89: #{siamese_forward.1} parent=83 // pred_check
          %p633 = pneg %p309
        $region90: #{siamese_forward.1} parent=83 // pred_check_branch
          %635 = sbr.rel (%p633) target = $region92
        $region91: #{siamese_forward.1} parent=83 // pred_region
          %636 = dma.done %s629, 2048
        $region92: #{siamese_forward.1} parent=83 // pred_fallthru
          _
        %s637 = sand.u32 %s38, 1
        %s638 = scalar_lea.sflag [#allocation10], %s637
        %s639 = sand.u32 %s348, 1
        %s640 = smul.addr %s639, 128
        %s641 = scalar_lea.vmem [#allocation11], %s640
        // Predicated region
        $region93: #{siamese_forward.1} parent=83 // pred_check
          %p642 = pneg %p361
        $region94: #{siamese_forward.1} parent=83 // pred_check_branch
          %644 = sbr.rel (%p642) target = $region96
        $region95: #{siamese_forward.1} parent=83 // pred_region
          %645 = dma.done %s638, 2048
        $region96: #{siamese_forward.1} parent=83 // pred_fallthru
          _
        %s646 = sand.u32 %s374, 1
        %s647 = scalar_lea.sflag [#allocation13], %s646
        %s648 = sand.u32 %s374, 1
        %s649 = scalar_lea.vmem [#allocation12], %s648
        // Predicated region
        $region97: #{siamese_forward.1} parent=83 // pred_check
          %p650 = pneg %p387
        $region98: #{siamese_forward.1} parent=83 // pred_check_branch
          %652 = sbr.rel (%p650) target = $region100
        $region99: #{siamese_forward.1} parent=83 // pred_region
          %653 = dma.done %s647, 16
        $region100: #{siamese_forward.1} parent=83 // pred_fallthru
          _
        %p654 = pneg %p54
        %p655 = pneg %p51
        %p656 = pneg %p75
        %p657 = pneg %p72
        %p658 = scmp.lt.s32.totalorder %s38, 1
        %s659 = scalar_select %p658, %s38, 1
        %s660 = smul.addr %s659, 16
        %s661 = smul.addr %s660, 8
        %s662 = scalar_lea.vmem %s2, %s661
        %p663 = pneg %p101
        %p664 = pneg %p98
        %p665 = scmp.lt.s32.totalorder %s38, 1
        %s666 = scalar_select %p665, %s38, 1
        %s667 = scalar_lea.vmem %s3, %s666
        %p668 = pneg %p127
        %p669 = pneg %p124
        %p670 = scmp.lt.s32.totalorder %s38, 1
        %s671 = scalar_select %p670, %s38, 1
        %s672 = smul.addr %s671, 16
        %s673 = smul.addr %s672, 8
        %s674 = scalar_lea.vmem %s4, %s673
        %p675 = pneg %p153
        %p676 = pneg %p150
        %p677 = scmp.lt.s32.totalorder %s38, 1
        %s678 = scalar_select %p677, %s38, 1
        %s679 = scalar_lea.vmem %s5, %s678
        %p680 = pneg %p179
        %p681 = pneg %p176
        %p682 = scmp.lt.s32.totalorder %s38, 1
        %s683 = scalar_select %p682, %s38, 1
        %s684 = smul.addr %s683, 2
        %s685 = smul.addr %s684, 8
        %s686 = scalar_lea.vmem %s6, %s685
        %p687 = pneg %p205
        %p688 = pneg %p202
        %s689 = sand.u32 %s218, 1
        %s690 = scalar_lea.sflag [#allocation8], %s689
        %s691 = sand.u32 %s218, 1
        %s692 = scalar_lea.vmem [#allocation7], %s691
        %p693 = pneg %p231
        %p694 = pneg %p228
        %p695 = scmp.lt.s32.totalorder %s38, 1
        %s696 = scalar_select %p695, %s38, 1
        %s697 = smul.addr %s696, 16
        %s698 = smul.addr %s697, 8
        %s699 = scalar_lea.vmem %s8, %s698
        %p700 = pneg %p257
        %p701 = pneg %p254
        %p702 = scmp.lt.s32.totalorder %s38, 1
        %s703 = scalar_select %p702, %s38, 1
        %s704 = scalar_lea.vmem %s9, %s703
        %p705 = pneg %p283
        %p706 = pneg %p280
        %s707 = sand.u32 %s38, 1
        %s708 = scalar_lea.sflag [#allocation10], %s707
        %s709 = sand.u32 %s296, 1
        %s710 = smul.addr %s709, 128
        %s711 = scalar_lea.vmem [#allocation9], %s710
        %p712 = pneg %p309
        %p713 = pneg %p306
        %p714 = scmp.lt.s32.totalorder %s38, 1
        %s715 = scalar_select %p714, %s38, 1
        %s716 = scalar_lea.vmem %s11, %s715
        %p717 = pneg %p335
        %p718 = pneg %p332
        %s719 = sand.u32 %s38, 1
        %s720 = scalar_lea.sflag [#allocation10], %s719
        %s721 = sand.u32 %s348, 1
        %s722 = smul.addr %s721, 128
        %s723 = scalar_lea.vmem [#allocation11], %s722
        %p724 = pneg %p361
        %p725 = pneg %p358
        %s726 = sand.u32 %s374, 1
        %s727 = scalar_lea.sflag [#allocation13], %s726
        %s728 = sand.u32 %s374, 1
        %s729 = scalar_lea.vmem [#allocation12], %s728
        %p730 = pneg %p387
        %p731 = pneg %p384
        %p732 = pneg %p408
        %p733 = pneg %p405
        %p734 = pneg %p429
        %p735 = pneg %p426
        %p736 = pneg %p450
        %p737 = pneg %p447
        %p738 = scmp.lt.s32.totalorder %s38, 1
        %s739 = scalar_select %p738, %s38, 1
        %s740 = smul.addr %s739, 16
        %s741 = smul.addr %s740, 8
        %s742 = scalar_lea.vmem %s2, %s741
        %p743 = scmp.lt.s32.totalorder %s38, 1
        %s744 = scalar_select %p743, %s38, 1
        %s745 = scalar_lea.vmem %s3, %s744
        %p746 = scmp.lt.s32.totalorder %s38, 1
        %s747 = scalar_select %p746, %s38, 1
        %s748 = smul.addr %s747, 16
        %s749 = smul.addr %s748, 8
        %s750 = scalar_lea.vmem %s4, %s749
        %p751 = scmp.lt.s32.totalorder %s38, 1
        %s752 = scalar_select %p751, %s38, 1
        %s753 = scalar_lea.vmem %s5, %s752
        %p754 = scmp.lt.s32.totalorder %s38, 1
        %s755 = scalar_select %p754, %s38, 1
        %s756 = smul.addr %s755, 2
        %s757 = smul.addr %s756, 8
        %s758 = scalar_lea.vmem %s6, %s757
        %p759 = scmp.lt.s32.totalorder %s38, 1
        %s760 = scalar_select %p759, %s38, 1
        %s761 = smul.addr %s760, 16
        %s762 = smul.addr %s761, 8
        %s763 = scalar_lea.vmem %s8, %s762
        %p764 = scmp.lt.s32.totalorder %s38, 1
        %s765 = scalar_select %p764, %s38, 1
        %s766 = scalar_lea.vmem %s9, %s765
        %p767 = scmp.lt.s32.totalorder %s38, 1
        %s768 = scalar_select %p767, %s38, 1
        %s769 = scalar_lea.vmem %s11, %s768
        %p770 = scmp.eq.s32.totalorder %s38, 0
        // Predicated region
        $region101: #{siamese_forward.1} parent=83 // pred_check
          %p771 = pneg %p770
        $region102: #{siamese_forward.1} parent=83 // pred_check_branch
          %773 = sbr.rel (%p771) target = $region104
        $region103: #{siamese_forward.1} parent=83 // pred_region
          %v774 = vld [vmem:[%s0] sm:$0x77]
          %v775 = vld [vmem:[%s742] sm:$0xff]
          %v776 = vld [vmem:[%s742 + $0x8] sm:$0xff]
          %v777 = vld [vmem:[%s742 + $0x10] sm:$0xff]
          %v778 = vld [vmem:[%s742 + $0x18] sm:$0xff]
          %v779 = vld [vmem:[%s742 + $0x20] sm:$0xff]
          %v780 = vld [vmem:[%s742 + $0x28] sm:$0xff]
          %v781 = vld [vmem:[%s742 + $0x30] sm:$0xff]
          %v782 = vld [vmem:[%s742 + $0x38] sm:$0xff]
          %v783 = vld [vmem:[%s742 + $0x40] sm:$0xff]
          %v784 = vld [vmem:[%s742 + $0x48] sm:$0xff]
          %v785 = vld [vmem:[%s742 + $0x50] sm:$0xff]
          %v786 = vld [vmem:[%s742 + $0x58] sm:$0xff]
          %v787 = vld [vmem:[%s742 + $0x60] sm:$0xff]
          %v788 = vld [vmem:[%s742 + $0x68] sm:$0xff]
          %v789 = vld [vmem:[%s742 + $0x70] sm:$0xff]
          %v790 = vld [vmem:[%s742 + $0x78] sm:$0xff]
          %v792 = vcombine.high %v774, %v774
          %vm793 = vcmask 23552
          %v795 = vsel %vm793, %v775, 0
          %v798 = vsel %vm793, %v776, 0
          %v801 = vsel %vm793, %v777, 0
          %v804 = vsel %vm793, %v778, 0
          %v807 = vsel %vm793, %v779, 0
          %v810 = vsel %vm793, %v780, 0
          %v813 = vsel %vm793, %v781, 0
          %v816 = vsel %vm793, %v782, 0
          %v819 = vsel %vm793, %v783, 0
          %v822 = vsel %vm793, %v784, 0
          %v825 = vsel %vm793, %v785, 0
          %v828 = vsel %vm793, %v786, 0
          %v831 = vsel %vm793, %v787, 0
          %v834 = vsel %vm793, %v788, 0
          %v837 = vsel %vm793, %v789, 0
          %v840 = vsel %vm793, %v790, 0
          %vm842 = vcmask 1042432
          %v843 = vsel %vm842, %v774, 0
          %v845 = vsel %vm842, %v792, 0
          %847 = vmatprep.subr.mxu0 0.0
          %848 = vmatpush1.msra.mxu0 0.0
          %849 = vmatprep.subr.mxu0 0.0
          %850 = vmatpush1.msra.mxu0 0.0
          %851 = vmatprep.subr.mxu0 0.0
          %852 = vmatpush1.msra.mxu0 0.0
          %853 = vmatprep.subr.mxu0 0.0
          %854 = vmatpush1.msra.mxu0 0.0
          %855 = vmatprep.subr.mxu0 0.0
          %856 = vmatpush1.msra.mxu0 0.0
          %857 = vmatprep.subr.mxu0 0.0
          %858 = vmatpush1.msra.mxu0 0.0
          %859 = vmatprep.subr.mxu0 0.0
          %860 = vmatpush1.msra.mxu0 0.0
          %861 = vmatprep.subr.mxu0 0.0
          %862 = vmatpush1.msra.mxu0 0.0
          %863 = vmatprep.subr.mxu0 0.0
          %864 = vmatpush1.msra.mxu0 0.0
          %865 = vmatprep.subr.mxu0 0.0
          %866 = vmatpush1.msra.mxu0 0.0
          %867 = vmatprep.subr.mxu0 0.0
          %868 = vmatpush1.msra.mxu0 0.0
          %869 = vmatprep.subr.mxu0 0.0
          %870 = vmatpush1.msra.mxu0 0.0
          %871 = vmatprep.subr.mxu0 0.0
          %872 = vmatpush1.msra.mxu0 0.0
          %873 = vmatprep.subr.mxu0 0.0
          %874 = vmatpush1.msra.mxu0 0.0
          %875 = vmatprep.subr.mxu0 0.0
          %876 = vmatpush1.msra.mxu0 0.0
          %877 = vmatprep.subr.mxu0 %v845
          %878 = vmatpush1.msra.mxu0 %v843
          %879 = vmatprep.subr.mxu0 0.0
          %880 = vmatpush2.msra.mxu0 0.0
          %881 = vmatprep.subr.mxu0 0.0
          %882 = vmatpush2.msra.mxu0 0.0
          %883 = vmatprep.subr.mxu0 0.0
          %884 = vmatpush2.msra.mxu0 0.0
          %885 = vmatprep.subr.mxu0 0.0
          %886 = vmatpush2.msra.mxu0 0.0
          %887 = vmatprep.subr.mxu0 0.0
          %888 = vmatpush2.msra.mxu0 0.0
          %889 = vmatprep.subr.mxu0 0.0
          %890 = vmatpush2.msra.mxu0 0.0
          %891 = vmatprep.subr.mxu0 0.0
          %892 = vmatpush2.msra.mxu0 0.0
          %893 = vmatprep.subr.mxu0 0.0
          %894 = vmatpush2.msra.mxu0 0.0
          %895 = vmatprep.subr.mxu0 0.0
          %896 = vmatpush2.msra.mxu0 0.0
          %897 = vmatprep.subr.mxu0 0.0
          %898 = vmatpush2.msra.mxu0 0.0
          %899 = vmatprep.subr.mxu0 0.0
          %900 = vmatpush2.msra.mxu0 0.0
          %901 = vmatprep.subr.mxu0 0.0
          %902 = vmatpush2.msra.mxu0 0.0
          %903 = vmatprep.subr.mxu0 0.0
          %904 = vmatpush2.msra.mxu0 0.0
          %905 = vmatprep.subr.mxu0 0.0
          %906 = vmatpush2.msra.mxu0 0.0
          %907 = vmatprep.subr.mxu0 0.0
          %908 = vmatpush2.msra.mxu0 0.0
          %909 = vmatprep.subr.mxu0 0.0
          %910 = vmatpush2.msra.mxu0 0.0
          %911 = vmatprep.mubr.f32.mxu0 0.0
          %912 = vmatmul.mubr.f32.gmra.mxu0 %v795
          %v913 = vpop.f32.mrf.mxu0
          %v914 = vadd.f32 0.0, %v913
          %v915 = vpop.f32.mrf.mxu0
          %v916 = vadd.f32 0.0, %v915
          %917 = vmatprep.mubr.f32.mxu0 0.0
          %918 = vmatmul.mubr.f32.gmra.mxu0 %v798
          %v919 = vpop.f32.mrf.mxu0
          %v920 = vadd.f32 0.0, %v919
          %v921 = vpop.f32.mrf.mxu0
          %v922 = vadd.f32 0.0, %v921
          %923 = vmatprep.mubr.f32.mxu0 0.0
          %924 = vmatmul.mubr.f32.gmra.mxu0 %v801
          %v925 = vpop.f32.mrf.mxu0
          %v926 = vadd.f32 0.0, %v925
          %v927 = vpop.f32.mrf.mxu0
          %v928 = vadd.f32 0.0, %v927
          %929 = vmatprep.mubr.f32.mxu0 0.0
          %930 = vmatmul.mubr.f32.gmra.mxu0 %v804
          %v931 = vpop.f32.mrf.mxu0
          %v932 = vadd.f32 0.0, %v931
          %v933 = vpop.f32.mrf.mxu0
          %v934 = vadd.f32 0.0, %v933
          %935 = vmatprep.mubr.f32.mxu0 0.0
          %936 = vmatmul.mubr.f32.gmra.mxu0 %v807
          %v937 = vpop.f32.mrf.mxu0
          %v938 = vadd.f32 0.0, %v937
          %v939 = vpop.f32.mrf.mxu0
          %v940 = vadd.f32 0.0, %v939
          %941 = vmatprep.mubr.f32.mxu0 0.0
          %942 = vmatmul.mubr.f32.gmra.mxu0 %v810
          %v943 = vpop.f32.mrf.mxu0
          %v944 = vadd.f32 0.0, %v943
          %v945 = vpop.f32.mrf.mxu0
          %v946 = vadd.f32 0.0, %v945
          %947 = vmatprep.mubr.f32.mxu0 0.0
          %948 = vmatmul.mubr.f32.gmra.mxu0 %v813
          %v949 = vpop.f32.mrf.mxu0
          %v950 = vadd.f32 0.0, %v949
          %v951 = vpop.f32.mrf.mxu0
          %v952 = vadd.f32 0.0, %v951
          %953 = vmatprep.mubr.f32.mxu0 0.0
          %954 = vmatmul.mubr.f32.gmra.mxu0 %v816
          %v955 = vpop.f32.mrf.mxu0
          %v956 = vadd.f32 0.0, %v955
          %v957 = vpop.f32.mrf.mxu0
          %v958 = vadd.f32 0.0, %v957
          %959 = vmatprep.mubr.f32.mxu0 0.0
          %960 = vmatmul.mubr.f32.gmra.mxu0 %v819
          %v961 = vpop.f32.mrf.mxu0
          %v962 = vadd.f32 0.0, %v961
          %v963 = vpop.f32.mrf.mxu0
          %v964 = vadd.f32 0.0, %v963
          %965 = vmatprep.mubr.f32.mxu0 0.0
          %966 = vmatmul.mubr.f32.gmra.mxu0 %v822
          %v967 = vpop.f32.mrf.mxu0
          %v968 = vadd.f32 0.0, %v967
          %v969 = vpop.f32.mrf.mxu0
          %v970 = vadd.f32 0.0, %v969
          %971 = vmatprep.mubr.f32.mxu0 0.0
          %972 = vmatmul.mubr.f32.gmra.mxu0 %v825
          %v973 = vpop.f32.mrf.mxu0
          %v974 = vadd.f32 0.0, %v973
          %v975 = vpop.f32.mrf.mxu0
          %v976 = vadd.f32 0.0, %v975
          %977 = vmatprep.mubr.f32.mxu0 0.0
          %978 = vmatmul.mubr.f32.gmra.mxu0 %v828
          %v979 = vpop.f32.mrf.mxu0
          %v980 = vadd.f32 0.0, %v979
          %v981 = vpop.f32.mrf.mxu0
          %v982 = vadd.f32 0.0, %v981
          %983 = vmatprep.mubr.f32.mxu0 0.0
          %984 = vmatmul.mubr.f32.gmra.mxu0 %v831
          %v985 = vpop.f32.mrf.mxu0
          %v986 = vadd.f32 0.0, %v985
          %v987 = vpop.f32.mrf.mxu0
          %v988 = vadd.f32 0.0, %v987
          %989 = vmatprep.mubr.f32.mxu0 0.0
          %990 = vmatmul.mubr.f32.gmra.mxu0 %v834
          %v991 = vpop.f32.mrf.mxu0
          %v992 = vadd.f32 0.0, %v991
          %v993 = vpop.f32.mrf.mxu0
          %v994 = vadd.f32 0.0, %v993
          %995 = vmatprep.mubr.f32.mxu0 0.0
          %996 = vmatmul.mubr.f32.gmra.mxu0 %v837
          %v997 = vpop.f32.mrf.mxu0
          %v998 = vadd.f32 0.0, %v997
          %v999 = vpop.f32.mrf.mxu0
          %v1000 = vadd.f32 0.0, %v999
          %1001 = vmatprep.mubr.f32.mxu0 0.0
          %1002 = vmatmul.mubr.f32.gmra.mxu0 %v840
          %v1003 = vpop.f32.mrf.mxu0
          %v1004 = vadd.f32 0.0, %v1003
          %v1005 = vpop.f32.mrf.mxu0
          %v1006 = vadd.f32 0.0, %v1005
          %1007 = vdwg.mxu0
          %1008 = vxpose.xlu0.b32.start [1/16] %v914, 128
          %1009 = vxpose.xlu0.b32.cont [2/16] %v920, 128
          %1010 = vxpose.xlu0.b32.cont [3/16] %v926, 128
          %1011 = vxpose.xlu0.b32.cont [4/16] %v932, 128
          %1012 = vxpose.xlu0.b32.cont [5/16] %v938, 128
          %1013 = vxpose.xlu0.b32.cont [6/16] %v944, 128
          %1014 = vxpose.xlu0.b32.cont [7/16] %v950, 128
          %1015 = vxpose.xlu0.b32.cont [8/16] %v956, 128
          %1016 = vxpose.xlu0.b32.cont [9/16] %v962, 128
          %1017 = vxpose.xlu0.b32.cont [10/16] %v968, 128
          %1018 = vxpose.xlu0.b32.cont [11/16] %v974, 128
          %1019 = vxpose.xlu0.b32.cont [12/16] %v980, 128
          %1020 = vxpose.xlu0.b32.cont [13/16] %v986, 128
          %1021 = vxpose.xlu0.b32.cont [14/16] %v992, 128
          %1022 = vxpose.xlu0.b32.cont [15/16] %v998, 128
          %1023 = vxpose.xlu0.b32.end [16/16] %v1004, 128
          %v1024 = vpop.trf.xlu0
          %v1025 = vpop.trf.xlu0
          %v1026 = vpop.trf.xlu0
          %v1027 = vpop.trf.xlu0
          %v1028 = vpop.trf.xlu0
          %v1029 = vpop.trf.xlu0
          %v1030 = vpop.trf.xlu0
          %v1031 = vpop.trf.xlu0
          %v1032 = vpop.trf.xlu0
          %v1033 = vpop.trf.xlu0
          %v1034 = vpop.trf.xlu0
          %v1035 = vpop.trf.xlu0
          %v1036 = vpop.trf.xlu0
          %v1037 = vpop.trf.xlu0
          %v1038 = vpop.trf.xlu0
          %v1039 = vpop.trf.xlu0
          %1040 = vxpose.xlu0.b32.start [1/16] %v916, 128
          %1041 = vxpose.xlu0.b32.cont [2/16] %v922, 128
          %1042 = vxpose.xlu0.b32.cont [3/16] %v928, 128
          %1043 = vxpose.xlu0.b32.cont [4/16] %v934, 128
          %1044 = vxpose.xlu0.b32.cont [5/16] %v940, 128
          %1045 = vxpose.xlu0.b32.cont [6/16] %v946, 128
          %1046 = vxpose.xlu0.b32.cont [7/16] %v952, 128
          %1047 = vxpose.xlu0.b32.cont [8/16] %v958, 128
          %1048 = vxpose.xlu0.b32.cont [9/16] %v964, 128
          %1049 = vxpose.xlu0.b32.cont [10/16] %v970, 128
          %1050 = vxpose.xlu0.b32.cont [11/16] %v976, 128
          %1051 = vxpose.xlu0.b32.cont [12/16] %v982, 128
          %1052 = vxpose.xlu0.b32.cont [13/16] %v988, 128
          %1053 = vxpose.xlu0.b32.cont [14/16] %v994, 128
          %1054 = vxpose.xlu0.b32.cont [15/16] %v1000, 128
          %1055 = vxpose.xlu0.b32.end [16/16] %v1006, 128
          %v1056 = vpop.trf.xlu0
          %v1057 = vpop.trf.xlu0
          %v1058 = vpop.trf.xlu0
          %v1059 = vpop.trf.xlu0
          %v1060 = vpop.trf.xlu0
          %v1061 = vpop.trf.xlu0
          %v1062 = vpop.trf.xlu0
          %v1063 = vpop.trf.xlu0
          %v1064 = vpop.trf.xlu0
          %v1065 = vpop.trf.xlu0
          %v1066 = vpop.trf.xlu0
          %v1067 = vpop.trf.xlu0
          %v1068 = vpop.trf.xlu0
          %v1069 = vpop.trf.xlu0
          %v1070 = vpop.trf.xlu0
          %v1071 = vpop.trf.xlu0
          %v1072 = vld [vmem:[%s745] sm:$0x1]
          %v1074 = vlaneseq
          %v1075 = vshrl.u32 %v1074, 7
          %v1076 = vsub.s32 0, %v1075
          %v1077 = vrot.slane %v1072, %v1076
          %v1079 = vadd.f32 %v1024, %v1077
          %v1080 = vadd.f32 %v1025, %v1077
          %v1081 = vadd.f32 %v1026, %v1077
          %v1082 = vadd.f32 %v1027, %v1077
          %v1083 = vadd.f32 %v1028, %v1077
          %v1084 = vadd.f32 %v1029, %v1077
          %v1085 = vadd.f32 %v1030, %v1077
          %v1086 = vadd.f32 %v1031, %v1077
          %v1087 = vadd.f32 %v1032, %v1077
          %v1088 = vadd.f32 %v1033, %v1077
          %v1089 = vadd.f32 %v1034, %v1077
          %v1090 = vadd.f32 %v1035, %v1077
          %v1091 = vadd.f32 %v1036, %v1077
          %v1092 = vadd.f32 %v1037, %v1077
          %v1093 = vadd.f32 %v1038, %v1077
          %v1094 = vadd.f32 %v1039, %v1077
          %v1095 = vadd.f32 %v1056, %v1077
          %v1096 = vadd.f32 %v1057, %v1077
          %v1097 = vadd.f32 %v1058, %v1077
          %v1098 = vadd.f32 %v1059, %v1077
          %v1099 = vadd.f32 %v1060, %v1077
          %v1100 = vadd.f32 %v1061, %v1077
          %v1101 = vadd.f32 %v1062, %v1077
          %v1102 = vadd.f32 %v1063, %v1077
          %v1103 = vadd.f32 %v1064, %v1077
          %v1104 = vadd.f32 %v1065, %v1077
          %v1105 = vadd.f32 %v1066, %v1077
          %v1106 = vadd.f32 %v1067, %v1077
          %v1107 = vadd.f32 %v1068, %v1077
          %v1108 = vadd.f32 %v1069, %v1077
          %v1109 = vadd.f32 %v1070, %v1077
          %v1110 = vadd.f32 %v1071, %v1077
          %v1111 = vmax.f32 %v1079, 0.0
          %v1112 = vmax.f32 %v1080, 0.0
          %v1113 = vmax.f32 %v1081, 0.0
          %v1114 = vmax.f32 %v1082, 0.0
          %v1115 = vmax.f32 %v1083, 0.0
          %v1116 = vmax.f32 %v1084, 0.0
          %v1117 = vmax.f32 %v1085, 0.0
          %v1118 = vmax.f32 %v1086, 0.0
          %v1119 = vmax.f32 %v1087, 0.0
          %v1120 = vmax.f32 %v1088, 0.0
          %v1121 = vmax.f32 %v1089, 0.0
          %v1122 = vmax.f32 %v1090, 0.0
          %v1123 = vmax.f32 %v1091, 0.0
          %v1124 = vmax.f32 %v1092, 0.0
          %v1125 = vmax.f32 %v1093, 0.0
          %v1126 = vmax.f32 %v1094, 0.0
          %v1127 = vmax.f32 %v1095, 0.0
          %v1128 = vmax.f32 %v1096, 0.0
          %v1129 = vmax.f32 %v1097, 0.0
          %v1130 = vmax.f32 %v1098, 0.0
          %v1131 = vmax.f32 %v1099, 0.0
          %v1132 = vmax.f32 %v1100, 0.0
          %v1133 = vmax.f32 %v1101, 0.0
          %v1134 = vmax.f32 %v1102, 0.0
          %v1135 = vmax.f32 %v1103, 0.0
          %v1136 = vmax.f32 %v1104, 0.0
          %v1137 = vmax.f32 %v1105, 0.0
          %v1138 = vmax.f32 %v1106, 0.0
          %v1139 = vmax.f32 %v1107, 0.0
          %v1140 = vmax.f32 %v1108, 0.0
          %v1141 = vmax.f32 %v1109, 0.0
          %v1142 = vmax.f32 %v1110, 0.0
          %v1143 = vmin.f32 %v1111, 6.0
          %v1144 = vmin.f32 %v1112, 6.0
          %v1145 = vmin.f32 %v1113, 6.0
          %v1146 = vmin.f32 %v1114, 6.0
          %v1147 = vmin.f32 %v1115, 6.0
          %v1148 = vmin.f32 %v1116, 6.0
          %v1149 = vmin.f32 %v1117, 6.0
          %v1150 = vmin.f32 %v1118, 6.0
          %v1151 = vmin.f32 %v1119, 6.0
          %v1152 = vmin.f32 %v1120, 6.0
          %v1153 = vmin.f32 %v1121, 6.0
          %v1154 = vmin.f32 %v1122, 6.0
          %v1155 = vmin.f32 %v1123, 6.0
          %v1156 = vmin.f32 %v1124, 6.0
          %v1157 = vmin.f32 %v1125, 6.0
          %v1158 = vmin.f32 %v1126, 6.0
          %v1159 = vmin.f32 %v1127, 6.0
          %v1160 = vmin.f32 %v1128, 6.0
          %v1161 = vmin.f32 %v1129, 6.0
          %v1162 = vmin.f32 %v1130, 6.0
          %v1163 = vmin.f32 %v1131, 6.0
          %v1164 = vmin.f32 %v1132, 6.0
          %v1165 = vmin.f32 %v1133, 6.0
          %v1166 = vmin.f32 %v1134, 6.0
          %v1167 = vmin.f32 %v1135, 6.0
          %v1168 = vmin.f32 %v1136, 6.0
          %v1169 = vmin.f32 %v1137, 6.0
          %v1170 = vmin.f32 %v1138, 6.0
          %v1171 = vmin.f32 %v1139, 6.0
          %v1172 = vmin.f32 %v1140, 6.0
          %v1173 = vmin.f32 %v1141, 6.0
          %v1174 = vmin.f32 %v1142, 6.0
          %1175 = vst [vmem:[#allocation2] sm:$0xff] %v1143
          %1176 = vst [vmem:[#allocation2 + $0x8] sm:$0xff] %v1144
          %1177 = vst [vmem:[#allocation2 + $0x10] sm:$0xff] %v1145
          %1178 = vst [vmem:[#allocation2 + $0x18] sm:$0xff] %v1146
          %1179 = vst [vmem:[#allocation2 + $0x20] sm:$0xff] %v1147
          %1180 = vst [vmem:[#allocation2 + $0x28] sm:$0xff] %v1148
          %1181 = vst [vmem:[#allocation2 + $0x30] sm:$0xff] %v1149
          %1182 = vst [vmem:[#allocation2 + $0x38] sm:$0xff] %v1150
          %1183 = vst [vmem:[#allocation2 + $0x40] sm:$0xff] %v1151
          %1184 = vst [vmem:[#allocation2 + $0x48] sm:$0xff] %v1152
          %1185 = vst [vmem:[#allocation2 + $0x50] sm:$0xff] %v1153
          %1186 = vst [vmem:[#allocation2 + $0x58] sm:$0xff] %v1154
          %1187 = vst [vmem:[#allocation2 + $0x60] sm:$0xff] %v1155
          %1188 = vst [vmem:[#allocation2 + $0x68] sm:$0xff] %v1156
          %1189 = vst [vmem:[#allocation2 + $0x70] sm:$0xff] %v1157
          %1190 = vst [vmem:[#allocation2 + $0x78] sm:$0xff] %v1158
          %1191 = vst [vmem:[#allocation2 + $0x80] sm:$0xff] %v1159
          %1192 = vst [vmem:[#allocation2 + $0x88] sm:$0xff] %v1160
          %1193 = vst [vmem:[#allocation2 + $0x90] sm:$0xff] %v1161
          %1194 = vst [vmem:[#allocation2 + $0x98] sm:$0xff] %v1162
          %1195 = vst [vmem:[#allocation2 + $0xa0] sm:$0xff] %v1163
          %1196 = vst [vmem:[#allocation2 + $0xa8] sm:$0xff] %v1164
          %1197 = vst [vmem:[#allocation2 + $0xb0] sm:$0xff] %v1165
          %1198 = vst [vmem:[#allocation2 + $0xb8] sm:$0xff] %v1166
          %1199 = vst [vmem:[#allocation2 + $0xc0] sm:$0xff] %v1167
          %1200 = vst [vmem:[#allocation2 + $0xc8] sm:$0xff] %v1168
          %1201 = vst [vmem:[#allocation2 + $0xd0] sm:$0xff] %v1169
          %1202 = vst [vmem:[#allocation2 + $0xd8] sm:$0xff] %v1170
          %1203 = vst [vmem:[#allocation2 + $0xe0] sm:$0xff] %v1171
          %1204 = vst [vmem:[#allocation2 + $0xe8] sm:$0xff] %v1172
          %1205 = vst [vmem:[#allocation2 + $0xf0] sm:$0xff] %v1173
          %1206 = vst [vmem:[#allocation2 + $0xf8] sm:$0xff] %v1174
          %s1207 = scalar_lea.vmem %s0, 8
          %v1208 = vld [vmem:[%s1207] sm:$0x77]
          %v1209 = vld [vmem:[%s742] sm:$0xff]
          %v1210 = vld [vmem:[%s742 + $0x8] sm:$0xff]
          %v1211 = vld [vmem:[%s742 + $0x10] sm:$0xff]
          %v1212 = vld [vmem:[%s742 + $0x18] sm:$0xff]
          %v1213 = vld [vmem:[%s742 + $0x20] sm:$0xff]
          %v1214 = vld [vmem:[%s742 + $0x28] sm:$0xff]
          %v1215 = vld [vmem:[%s742 + $0x30] sm:$0xff]
          %v1216 = vld [vmem:[%s742 + $0x38] sm:$0xff]
          %v1217 = vld [vmem:[%s742 + $0x40] sm:$0xff]
          %v1218 = vld [vmem:[%s742 + $0x48] sm:$0xff]
          %v1219 = vld [vmem:[%s742 + $0x50] sm:$0xff]
          %v1220 = vld [vmem:[%s742 + $0x58] sm:$0xff]
          %v1221 = vld [vmem:[%s742 + $0x60] sm:$0xff]
          %v1222 = vld [vmem:[%s742 + $0x68] sm:$0xff]
          %v1223 = vld [vmem:[%s742 + $0x70] sm:$0xff]
          %v1224 = vld [vmem:[%s742 + $0x78] sm:$0xff]
          %v1226 = vcombine.high %v1208, %v1208
          %v1228 = vsel %vm793, %v1209, 0
          %v1231 = vsel %vm793, %v1210, 0
          %v1234 = vsel %vm793, %v1211, 0
          %v1237 = vsel %vm793, %v1212, 0
          %v1240 = vsel %vm793, %v1213, 0
          %v1243 = vsel %vm793, %v1214, 0
          %v1246 = vsel %vm793, %v1215, 0
          %v1249 = vsel %vm793, %v1216, 0
          %v1252 = vsel %vm793, %v1217, 0
          %v1255 = vsel %vm793, %v1218, 0
          %v1258 = vsel %vm793, %v1219, 0
          %v1261 = vsel %vm793, %v1220, 0
          %v1264 = vsel %vm793, %v1221, 0
          %v1267 = vsel %vm793, %v1222, 0
          %v1270 = vsel %vm793, %v1223, 0
          %v1273 = vsel %vm793, %v1224, 0
          %v1275 = vsel %vm842, %v1208, 0
          %v1277 = vsel %vm842, %v1226, 0
          %1279 = vmatprep.subr.mxu0 0.0
          %1280 = vmatpush1.msra.mxu0 0.0
          %1281 = vmatprep.subr.mxu0 0.0
          %1282 = vmatpush1.msra.mxu0 0.0
          %1283 = vmatprep.subr.mxu0 0.0
          %1284 = vmatpush1.msra.mxu0 0.0
          %1285 = vmatprep.subr.mxu0 0.0
          %1286 = vmatpush1.msra.mxu0 0.0
          %1287 = vmatprep.subr.mxu0 0.0
          %1288 = vmatpush1.msra.mxu0 0.0
          %1289 = vmatprep.subr.mxu0 0.0
          %1290 = vmatpush1.msra.mxu0 0.0
          %1291 = vmatprep.subr.mxu0 0.0
          %1292 = vmatpush1.msra.mxu0 0.0
          %1293 = vmatprep.subr.mxu0 0.0
          %1294 = vmatpush1.msra.mxu0 0.0
          %1295 = vmatprep.subr.mxu0 0.0
          %1296 = vmatpush1.msra.mxu0 0.0
          %1297 = vmatprep.subr.mxu0 0.0
          %1298 = vmatpush1.msra.mxu0 0.0
          %1299 = vmatprep.subr.mxu0 0.0
          %1300 = vmatpush1.msra.mxu0 0.0
          %1301 = vmatprep.subr.mxu0 0.0
          %1302 = vmatpush1.msra.mxu0 0.0
          %1303 = vmatprep.subr.mxu0 0.0
          %1304 = vmatpush1.msra.mxu0 0.0
          %1305 = vmatprep.subr.mxu0 0.0
          %1306 = vmatpush1.msra.mxu0 0.0
          %1307 = vmatprep.subr.mxu0 0.0
          %1308 = vmatpush1.msra.mxu0 0.0
          %1309 = vmatprep.subr.mxu0 %v1277
          %1310 = vmatpush1.msra.mxu0 %v1275
          %1311 = vmatprep.subr.mxu0 0.0
          %1312 = vmatpush2.msra.mxu0 0.0
          %1313 = vmatprep.subr.mxu0 0.0
          %1314 = vmatpush2.msra.mxu0 0.0
          %1315 = vmatprep.subr.mxu0 0.0
          %1316 = vmatpush2.msra.mxu0 0.0
          %1317 = vmatprep.subr.mxu0 0.0
          %1318 = vmatpush2.msra.mxu0 0.0
          %1319 = vmatprep.subr.mxu0 0.0
          %1320 = vmatpush2.msra.mxu0 0.0
          %1321 = vmatprep.subr.mxu0 0.0
          %1322 = vmatpush2.msra.mxu0 0.0
          %1323 = vmatprep.subr.mxu0 0.0
          %1324 = vmatpush2.msra.mxu0 0.0
          %1325 = vmatprep.subr.mxu0 0.0
          %1326 = vmatpush2.msra.mxu0 0.0
          %1327 = vmatprep.subr.mxu0 0.0
          %1328 = vmatpush2.msra.mxu0 0.0
          %1329 = vmatprep.subr.mxu0 0.0
          %1330 = vmatpush2.msra.mxu0 0.0
          %1331 = vmatprep.subr.mxu0 0.0
          %1332 = vmatpush2.msra.mxu0 0.0
          %1333 = vmatprep.subr.mxu0 0.0
          %1334 = vmatpush2.msra.mxu0 0.0
          %1335 = vmatprep.subr.mxu0 0.0
          %1336 = vmatpush2.msra.mxu0 0.0
          %1337 = vmatprep.subr.mxu0 0.0
          %1338 = vmatpush2.msra.mxu0 0.0
          %1339 = vmatprep.subr.mxu0 0.0
          %1340 = vmatpush2.msra.mxu0 0.0
          %1341 = vmatprep.subr.mxu0 0.0
          %1342 = vmatpush2.msra.mxu0 0.0
          %1343 = vmatprep.mubr.f32.mxu0 0.0
          %1344 = vmatmul.mubr.f32.gmra.mxu0 %v1228
          %v1345 = vpop.f32.mrf.mxu0
          %v1346 = vadd.f32 0.0, %v1345
          %v1347 = vpop.f32.mrf.mxu0
          %v1348 = vadd.f32 0.0, %v1347
          %1349 = vmatprep.mubr.f32.mxu0 0.0
          %1350 = vmatmul.mubr.f32.gmra.mxu0 %v1231
          %v1351 = vpop.f32.mrf.mxu0
          %v1352 = vadd.f32 0.0, %v1351
          %v1353 = vpop.f32.mrf.mxu0
          %v1354 = vadd.f32 0.0, %v1353
          %1355 = vmatprep.mubr.f32.mxu0 0.0
          %1356 = vmatmul.mubr.f32.gmra.mxu0 %v1234
          %v1357 = vpop.f32.mrf.mxu0
          %v1358 = vadd.f32 0.0, %v1357
          %v1359 = vpop.f32.mrf.mxu0
          %v1360 = vadd.f32 0.0, %v1359
          %1361 = vmatprep.mubr.f32.mxu0 0.0
          %1362 = vmatmul.mubr.f32.gmra.mxu0 %v1237
          %v1363 = vpop.f32.mrf.mxu0
          %v1364 = vadd.f32 0.0, %v1363
          %v1365 = vpop.f32.mrf.mxu0
          %v1366 = vadd.f32 0.0, %v1365
          %1367 = vmatprep.mubr.f32.mxu0 0.0
          %1368 = vmatmul.mubr.f32.gmra.mxu0 %v1240
          %v1369 = vpop.f32.mrf.mxu0
          %v1370 = vadd.f32 0.0, %v1369
          %v1371 = vpop.f32.mrf.mxu0
          %v1372 = vadd.f32 0.0, %v1371
          %1373 = vmatprep.mubr.f32.mxu0 0.0
          %1374 = vmatmul.mubr.f32.gmra.mxu0 %v1243
          %v1375 = vpop.f32.mrf.mxu0
          %v1376 = vadd.f32 0.0, %v1375
          %v1377 = vpop.f32.mrf.mxu0
          %v1378 = vadd.f32 0.0, %v1377
          %1379 = vmatprep.mubr.f32.mxu0 0.0
          %1380 = vmatmul.mubr.f32.gmra.mxu0 %v1246
          %v1381 = vpop.f32.mrf.mxu0
          %v1382 = vadd.f32 0.0, %v1381
          %v1383 = vpop.f32.mrf.mxu0
          %v1384 = vadd.f32 0.0, %v1383
          %1385 = vmatprep.mubr.f32.mxu0 0.0
          %1386 = vmatmul.mubr.f32.gmra.mxu0 %v1249
          %v1387 = vpop.f32.mrf.mxu0
          %v1388 = vadd.f32 0.0, %v1387
          %v1389 = vpop.f32.mrf.mxu0
          %v1390 = vadd.f32 0.0, %v1389
          %1391 = vmatprep.mubr.f32.mxu0 0.0
          %1392 = vmatmul.mubr.f32.gmra.mxu0 %v1252
          %v1393 = vpop.f32.mrf.mxu0
          %v1394 = vadd.f32 0.0, %v1393
          %v1395 = vpop.f32.mrf.mxu0
          %v1396 = vadd.f32 0.0, %v1395
          %1397 = vmatprep.mubr.f32.mxu0 0.0
          %1398 = vmatmul.mubr.f32.gmra.mxu0 %v1255
          %v1399 = vpop.f32.mrf.mxu0
          %v1400 = vadd.f32 0.0, %v1399
          %v1401 = vpop.f32.mrf.mxu0
          %v1402 = vadd.f32 0.0, %v1401
          %1403 = vmatprep.mubr.f32.mxu0 0.0
          %1404 = vmatmul.mubr.f32.gmra.mxu0 %v1258
          %v1405 = vpop.f32.mrf.mxu0
          %v1406 = vadd.f32 0.0, %v1405
          %v1407 = vpop.f32.mrf.mxu0
          %v1408 = vadd.f32 0.0, %v1407
          %1409 = vmatprep.mubr.f32.mxu0 0.0
          %1410 = vmatmul.mubr.f32.gmra.mxu0 %v1261
          %v1411 = vpop.f32.mrf.mxu0
          %v1412 = vadd.f32 0.0, %v1411
          %v1413 = vpop.f32.mrf.mxu0
          %v1414 = vadd.f32 0.0, %v1413
          %1415 = vmatprep.mubr.f32.mxu0 0.0
          %1416 = vmatmul.mubr.f32.gmra.mxu0 %v1264
          %v1417 = vpop.f32.mrf.mxu0
          %v1418 = vadd.f32 0.0, %v1417
          %v1419 = vpop.f32.mrf.mxu0
          %v1420 = vadd.f32 0.0, %v1419
          %1421 = vmatprep.mubr.f32.mxu0 0.0
          %1422 = vmatmul.mubr.f32.gmra.mxu0 %v1267
          %v1423 = vpop.f32.mrf.mxu0
          %v1424 = vadd.f32 0.0, %v1423
          %v1425 = vpop.f32.mrf.mxu0
          %v1426 = vadd.f32 0.0, %v1425
          %1427 = vmatprep.mubr.f32.mxu0 0.0
          %1428 = vmatmul.mubr.f32.gmra.mxu0 %v1270
          %v1429 = vpop.f32.mrf.mxu0
          %v1430 = vadd.f32 0.0, %v1429
          %v1431 = vpop.f32.mrf.mxu0
          %v1432 = vadd.f32 0.0, %v1431
          %1433 = vmatprep.mubr.f32.mxu0 0.0
          %1434 = vmatmul.mubr.f32.gmra.mxu0 %v1273
          %v1435 = vpop.f32.mrf.mxu0
          %v1436 = vadd.f32 0.0, %v1435
          %v1437 = vpop.f32.mrf.mxu0
          %v1438 = vadd.f32 0.0, %v1437
          %1439 = vdwg.mxu0
          %1440 = vxpose.xlu0.b32.start [1/16] %v1346, 128
          %1441 = vxpose.xlu0.b32.cont [2/16] %v1352, 128
          %1442 = vxpose.xlu0.b32.cont [3/16] %v1358, 128
          %1443 = vxpose.xlu0.b32.cont [4/16] %v1364, 128
          %1444 = vxpose.xlu0.b32.cont [5/16] %v1370, 128
          %1445 = vxpose.xlu0.b32.cont [6/16] %v1376, 128
          %1446 = vxpose.xlu0.b32.cont [7/16] %v1382, 128
          %1447 = vxpose.xlu0.b32.cont [8/16] %v1388, 128
          %1448 = vxpose.xlu0.b32.cont [9/16] %v1394, 128
          %1449 = vxpose.xlu0.b32.cont [10/16] %v1400, 128
          %1450 = vxpose.xlu0.b32.cont [11/16] %v1406, 128
          %1451 = vxpose.xlu0.b32.cont [12/16] %v1412, 128
          %1452 = vxpose.xlu0.b32.cont [13/16] %v1418, 128
          %1453 = vxpose.xlu0.b32.cont [14/16] %v1424, 128
          %1454 = vxpose.xlu0.b32.cont [15/16] %v1430, 128
          %1455 = vxpose.xlu0.b32.end [16/16] %v1436, 128
          %v1456 = vpop.trf.xlu0
          %v1457 = vpop.trf.xlu0
          %v1458 = vpop.trf.xlu0
          %v1459 = vpop.trf.xlu0
          %v1460 = vpop.trf.xlu0
          %v1461 = vpop.trf.xlu0
          %v1462 = vpop.trf.xlu0
          %v1463 = vpop.trf.xlu0
          %v1464 = vpop.trf.xlu0
          %v1465 = vpop.trf.xlu0
          %v1466 = vpop.trf.xlu0
          %v1467 = vpop.trf.xlu0
          %v1468 = vpop.trf.xlu0
          %v1469 = vpop.trf.xlu0
          %v1470 = vpop.trf.xlu0
          %v1471 = vpop.trf.xlu0
          %1472 = vxpose.xlu0.b32.start [1/16] %v1348, 128
          %1473 = vxpose.xlu0.b32.cont [2/16] %v1354, 128
          %1474 = vxpose.xlu0.b32.cont [3/16] %v1360, 128
          %1475 = vxpose.xlu0.b32.cont [4/16] %v1366, 128
          %1476 = vxpose.xlu0.b32.cont [5/16] %v1372, 128
          %1477 = vxpose.xlu0.b32.cont [6/16] %v1378, 128
          %1478 = vxpose.xlu0.b32.cont [7/16] %v1384, 128
          %1479 = vxpose.xlu0.b32.cont [8/16] %v1390, 128
          %1480 = vxpose.xlu0.b32.cont [9/16] %v1396, 128
          %1481 = vxpose.xlu0.b32.cont [10/16] %v1402, 128
          %1482 = vxpose.xlu0.b32.cont [11/16] %v1408, 128
          %1483 = vxpose.xlu0.b32.cont [12/16] %v1414, 128
          %1484 = vxpose.xlu0.b32.cont [13/16] %v1420, 128
          %1485 = vxpose.xlu0.b32.cont [14/16] %v1426, 128
          %1486 = vxpose.xlu0.b32.cont [15/16] %v1432, 128
          %1487 = vxpose.xlu0.b32.end [16/16] %v1438, 128
          %v1488 = vpop.trf.xlu0
          %v1489 = vpop.trf.xlu0
          %v1490 = vpop.trf.xlu0
          %v1491 = vpop.trf.xlu0
          %v1492 = vpop.trf.xlu0
          %v1493 = vpop.trf.xlu0
          %v1494 = vpop.trf.xlu0
          %v1495 = vpop.trf.xlu0
          %v1496 = vpop.trf.xlu0
          %v1497 = vpop.trf.xlu0
          %v1498 = vpop.trf.xlu0
          %v1499 = vpop.trf.xlu0
          %v1500 = vpop.trf.xlu0
          %v1501 = vpop.trf.xlu0
          %v1502 = vpop.trf.xlu0
          %v1503 = vpop.trf.xlu0
          %v1504 = vld [vmem:[%s745] sm:$0x1]
          %v1506 = vlaneseq
          %v1507 = vshrl.u32 %v1506, 7
          %v1508 = vsub.s32 0, %v1507
          %v1509 = vrot.slane %v1504, %v1508
          %v1511 = vadd.f32 %v1456, %v1509
          %v1512 = vadd.f32 %v1457, %v1509
          %v1513 = vadd.f32 %v1458, %v1509
          %v1514 = vadd.f32 %v1459, %v1509
          %v1515 = vadd.f32 %v1460, %v1509
          %v1516 = vadd.f32 %v1461, %v1509
          %v1517 = vadd.f32 %v1462, %v1509
          %v1518 = vadd.f32 %v1463, %v1509
          %v1519 = vadd.f32 %v1464, %v1509
          %v1520 = vadd.f32 %v1465, %v1509
          %v1521 = vadd.f32 %v1466, %v1509
          %v1522 = vadd.f32 %v1467, %v1509
          %v1523 = vadd.f32 %v1468, %v1509
          %v1524 = vadd.f32 %v1469, %v1509
          %v1525 = vadd.f32 %v1470, %v1509
          %v1526 = vadd.f32 %v1471, %v1509
          %v1527 = vadd.f32 %v1488, %v1509
          %v1528 = vadd.f32 %v1489, %v1509
          %v1529 = vadd.f32 %v1490, %v1509
          %v1530 = vadd.f32 %v1491, %v1509
          %v1531 = vadd.f32 %v1492, %v1509
          %v1532 = vadd.f32 %v1493, %v1509
          %v1533 = vadd.f32 %v1494, %v1509
          %v1534 = vadd.f32 %v1495, %v1509
          %v1535 = vadd.f32 %v1496, %v1509
          %v1536 = vadd.f32 %v1497, %v1509
          %v1537 = vadd.f32 %v1498, %v1509
          %v1538 = vadd.f32 %v1499, %v1509
          %v1539 = vadd.f32 %v1500, %v1509
          %v1540 = vadd.f32 %v1501, %v1509
          %v1541 = vadd.f32 %v1502, %v1509
          %v1542 = vadd.f32 %v1503, %v1509
          %v1543 = vmax.f32 %v1511, 0.0
          %v1544 = vmax.f32 %v1512, 0.0
          %v1545 = vmax.f32 %v1513, 0.0
          %v1546 = vmax.f32 %v1514, 0.0
          %v1547 = vmax.f32 %v1515, 0.0
          %v1548 = vmax.f32 %v1516, 0.0
          %v1549 = vmax.f32 %v1517, 0.0
          %v1550 = vmax.f32 %v1518, 0.0
          %v1551 = vmax.f32 %v1519, 0.0
          %v1552 = vmax.f32 %v1520, 0.0
          %v1553 = vmax.f32 %v1521, 0.0
          %v1554 = vmax.f32 %v1522, 0.0
          %v1555 = vmax.f32 %v1523, 0.0
          %v1556 = vmax.f32 %v1524, 0.0
          %v1557 = vmax.f32 %v1525, 0.0
          %v1558 = vmax.f32 %v1526, 0.0
          %v1559 = vmax.f32 %v1527, 0.0
          %v1560 = vmax.f32 %v1528, 0.0
          %v1561 = vmax.f32 %v1529, 0.0
          %v1562 = vmax.f32 %v1530, 0.0
          %v1563 = vmax.f32 %v1531, 0.0
          %v1564 = vmax.f32 %v1532, 0.0
          %v1565 = vmax.f32 %v1533, 0.0
          %v1566 = vmax.f32 %v1534, 0.0
          %v1567 = vmax.f32 %v1535, 0.0
          %v1568 = vmax.f32 %v1536, 0.0
          %v1569 = vmax.f32 %v1537, 0.0
          %v1570 = vmax.f32 %v1538, 0.0
          %v1571 = vmax.f32 %v1539, 0.0
          %v1572 = vmax.f32 %v1540, 0.0
          %v1573 = vmax.f32 %v1541, 0.0
          %v1574 = vmax.f32 %v1542, 0.0
          %v1575 = vmin.f32 %v1543, 6.0
          %v1576 = vmin.f32 %v1544, 6.0
          %v1577 = vmin.f32 %v1545, 6.0
          %v1578 = vmin.f32 %v1546, 6.0
          %v1579 = vmin.f32 %v1547, 6.0
          %v1580 = vmin.f32 %v1548, 6.0
          %v1581 = vmin.f32 %v1549, 6.0
          %v1582 = vmin.f32 %v1550, 6.0
          %v1583 = vmin.f32 %v1551, 6.0
          %v1584 = vmin.f32 %v1552, 6.0
          %v1585 = vmin.f32 %v1553, 6.0
          %v1586 = vmin.f32 %v1554, 6.0
          %v1587 = vmin.f32 %v1555, 6.0
          %v1588 = vmin.f32 %v1556, 6.0
          %v1589 = vmin.f32 %v1557, 6.0
          %v1590 = vmin.f32 %v1558, 6.0
          %v1591 = vmin.f32 %v1559, 6.0
          %v1592 = vmin.f32 %v1560, 6.0
          %v1593 = vmin.f32 %v1561, 6.0
          %v1594 = vmin.f32 %v1562, 6.0
          %v1595 = vmin.f32 %v1563, 6.0
          %v1596 = vmin.f32 %v1564, 6.0
          %v1597 = vmin.f32 %v1565, 6.0
          %v1598 = vmin.f32 %v1566, 6.0
          %v1599 = vmin.f32 %v1567, 6.0
          %v1600 = vmin.f32 %v1568, 6.0
          %v1601 = vmin.f32 %v1569, 6.0
          %v1602 = vmin.f32 %v1570, 6.0
          %v1603 = vmin.f32 %v1571, 6.0
          %v1604 = vmin.f32 %v1572, 6.0
          %v1605 = vmin.f32 %v1573, 6.0
          %v1606 = vmin.f32 %v1574, 6.0
          %1607 = vst [vmem:[#allocation2 + $0x100] sm:$0xff] %v1575
          %1608 = vst [vmem:[#allocation2 + $0x108] sm:$0xff] %v1576
          %1609 = vst [vmem:[#allocation2 + $0x110] sm:$0xff] %v1577
          %1610 = vst [vmem:[#allocation2 + $0x118] sm:$0xff] %v1578
          %1611 = vst [vmem:[#allocation2 + $0x120] sm:$0xff] %v1579
          %1612 = vst [vmem:[#allocation2 + $0x128] sm:$0xff] %v1580
          %1613 = vst [vmem:[#allocation2 + $0x130] sm:$0xff] %v1581
          %1614 = vst [vmem:[#allocation2 + $0x138] sm:$0xff] %v1582
          %1615 = vst [vmem:[#allocation2 + $0x140] sm:$0xff] %v1583
          %1616 = vst [vmem:[#allocation2 + $0x148] sm:$0xff] %v1584
          %1617 = vst [vmem:[#allocation2 + $0x150] sm:$0xff] %v1585
          %1618 = vst [vmem:[#allocation2 + $0x158] sm:$0xff] %v1586
          %1619 = vst [vmem:[#allocation2 + $0x160] sm:$0xff] %v1587
          %1620 = vst [vmem:[#allocation2 + $0x168] sm:$0xff] %v1588
          %1621 = vst [vmem:[#allocation2 + $0x170] sm:$0xff] %v1589
          %1622 = vst [vmem:[#allocation2 + $0x178] sm:$0xff] %v1590
          %1623 = vst [vmem:[#allocation2 + $0x180] sm:$0xff] %v1591
          %1624 = vst [vmem:[#allocation2 + $0x188] sm:$0xff] %v1592
          %1625 = vst [vmem:[#allocation2 + $0x190] sm:$0xff] %v1593
          %1626 = vst [vmem:[#allocation2 + $0x198] sm:$0xff] %v1594
          %1627 = vst [vmem:[#allocation2 + $0x1a0] sm:$0xff] %v1595
          %1628 = vst [vmem:[#allocation2 + $0x1a8] sm:$0xff] %v1596
          %1629 = vst [vmem:[#allocation2 + $0x1b0] sm:$0xff] %v1597
          %1630 = vst [vmem:[#allocation2 + $0x1b8] sm:$0xff] %v1598
          %1631 = vst [vmem:[#allocation2 + $0x1c0] sm:$0xff] %v1599
          %1632 = vst [vmem:[#allocation2 + $0x1c8] sm:$0xff] %v1600
          %1633 = vst [vmem:[#allocation2 + $0x1d0] sm:$0xff] %v1601
          %1634 = vst [vmem:[#allocation2 + $0x1d8] sm:$0xff] %v1602
          %1635 = vst [vmem:[#allocation2 + $0x1e0] sm:$0xff] %v1603
          %1636 = vst [vmem:[#allocation2 + $0x1e8] sm:$0xff] %v1604
          %1637 = vst [vmem:[#allocation2 + $0x1f0] sm:$0xff] %v1605
          %1638 = vst [vmem:[#allocation2 + $0x1f8] sm:$0xff] %v1606
        $region104: #{siamese_forward.1} parent=83 // pred_fallthru
          _
        %p1639 = scmp.eq.s32.totalorder %s38, 1
        // Predicated region
        $region105: #{siamese_forward.1} parent=83 // pred_check
          %p1640 = pneg %p1639
        $region106: #{siamese_forward.1} parent=83 // pred_check_branch
          %1642 = sbr.rel (%p1640) target = $region108
        $region107: #{siamese_forward.1} parent=83 // pred_region
          %v1643 = vld [vmem:[%s1] sm:$0x77]
          %v1644 = vld [vmem:[%s742] sm:$0xff]
          %v1645 = vld [vmem:[%s742 + $0x8] sm:$0xff]
          %v1646 = vld [vmem:[%s742 + $0x10] sm:$0xff]
          %v1647 = vld [vmem:[%s742 + $0x18] sm:$0xff]
          %v1648 = vld [vmem:[%s742 + $0x20] sm:$0xff]
          %v1649 = vld [vmem:[%s742 + $0x28] sm:$0xff]
          %v1650 = vld [vmem:[%s742 + $0x30] sm:$0xff]
          %v1651 = vld [vmem:[%s742 + $0x38] sm:$0xff]
          %v1652 = vld [vmem:[%s742 + $0x40] sm:$0xff]
          %v1653 = vld [vmem:[%s742 + $0x48] sm:$0xff]
          %v1654 = vld [vmem:[%s742 + $0x50] sm:$0xff]
          %v1655 = vld [vmem:[%s742 + $0x58] sm:$0xff]
          %v1656 = vld [vmem:[%s742 + $0x60] sm:$0xff]
          %v1657 = vld [vmem:[%s742 + $0x68] sm:$0xff]
          %v1658 = vld [vmem:[%s742 + $0x70] sm:$0xff]
          %v1659 = vld [vmem:[%s742 + $0x78] sm:$0xff]
          %v1661 = vcombine.high %v1643, %v1643
          %vm1662 = vcmask 23552
          %v1664 = vsel %vm1662, %v1644, 0
          %v1667 = vsel %vm1662, %v1645, 0
          %v1670 = vsel %vm1662, %v1646, 0
          %v1673 = vsel %vm1662, %v1647, 0
          %v1676 = vsel %vm1662, %v1648, 0
          %v1679 = vsel %vm1662, %v1649, 0
          %v1682 = vsel %vm1662, %v1650, 0
          %v1685 = vsel %vm1662, %v1651, 0
          %v1688 = vsel %vm1662, %v1652, 0
          %v1691 = vsel %vm1662, %v1653, 0
          %v1694 = vsel %vm1662, %v1654, 0
          %v1697 = vsel %vm1662, %v1655, 0
          %v1700 = vsel %vm1662, %v1656, 0
          %v1703 = vsel %vm1662, %v1657, 0
          %v1706 = vsel %vm1662, %v1658, 0
          %v1709 = vsel %vm1662, %v1659, 0
          %vm1711 = vcmask 1042432
          %v1712 = vsel %vm1711, %v1643, 0
          %v1714 = vsel %vm1711, %v1661, 0
          %1716 = vmatprep.subr.mxu0 0.0
          %1717 = vmatpush1.msra.mxu0 0.0
          %1718 = vmatprep.subr.mxu0 0.0
          %1719 = vmatpush1.msra.mxu0 0.0
          %1720 = vmatprep.subr.mxu0 0.0
          %1721 = vmatpush1.msra.mxu0 0.0
          %1722 = vmatprep.subr.mxu0 0.0
          %1723 = vmatpush1.msra.mxu0 0.0
          %1724 = vmatprep.subr.mxu0 0.0
          %1725 = vmatpush1.msra.mxu0 0.0
          %1726 = vmatprep.subr.mxu0 0.0
          %1727 = vmatpush1.msra.mxu0 0.0
          %1728 = vmatprep.subr.mxu0 0.0
          %1729 = vmatpush1.msra.mxu0 0.0
          %1730 = vmatprep.subr.mxu0 0.0
          %1731 = vmatpush1.msra.mxu0 0.0
          %1732 = vmatprep.subr.mxu0 0.0
          %1733 = vmatpush1.msra.mxu0 0.0
          %1734 = vmatprep.subr.mxu0 0.0
          %1735 = vmatpush1.msra.mxu0 0.0
          %1736 = vmatprep.subr.mxu0 0.0
          %1737 = vmatpush1.msra.mxu0 0.0
          %1738 = vmatprep.subr.mxu0 0.0
          %1739 = vmatpush1.msra.mxu0 0.0
          %1740 = vmatprep.subr.mxu0 0.0
          %1741 = vmatpush1.msra.mxu0 0.0
          %1742 = vmatprep.subr.mxu0 0.0
          %1743 = vmatpush1.msra.mxu0 0.0
          %1744 = vmatprep.subr.mxu0 0.0
          %1745 = vmatpush1.msra.mxu0 0.0
          %1746 = vmatprep.subr.mxu0 %v1714
          %1747 = vmatpush1.msra.mxu0 %v1712
          %1748 = vmatprep.subr.mxu0 0.0
          %1749 = vmatpush2.msra.mxu0 0.0
          %1750 = vmatprep.subr.mxu0 0.0
          %1751 = vmatpush2.msra.mxu0 0.0
          %1752 = vmatprep.subr.mxu0 0.0
          %1753 = vmatpush2.msra.mxu0 0.0
          %1754 = vmatprep.subr.mxu0 0.0
          %1755 = vmatpush2.msra.mxu0 0.0
          %1756 = vmatprep.subr.mxu0 0.0
          %1757 = vmatpush2.msra.mxu0 0.0
          %1758 = vmatprep.subr.mxu0 0.0
          %1759 = vmatpush2.msra.mxu0 0.0
          %1760 = vmatprep.subr.mxu0 0.0
          %1761 = vmatpush2.msra.mxu0 0.0
          %1762 = vmatprep.subr.mxu0 0.0
          %1763 = vmatpush2.msra.mxu0 0.0
          %1764 = vmatprep.subr.mxu0 0.0
          %1765 = vmatpush2.msra.mxu0 0.0
          %1766 = vmatprep.subr.mxu0 0.0
          %1767 = vmatpush2.msra.mxu0 0.0
          %1768 = vmatprep.subr.mxu0 0.0
          %1769 = vmatpush2.msra.mxu0 0.0
          %1770 = vmatprep.subr.mxu0 0.0
          %1771 = vmatpush2.msra.mxu0 0.0
          %1772 = vmatprep.subr.mxu0 0.0
          %1773 = vmatpush2.msra.mxu0 0.0
          %1774 = vmatprep.subr.mxu0 0.0
          %1775 = vmatpush2.msra.mxu0 0.0
          %1776 = vmatprep.subr.mxu0 0.0
          %1777 = vmatpush2.msra.mxu0 0.0
          %1778 = vmatprep.subr.mxu0 0.0
          %1779 = vmatpush2.msra.mxu0 0.0
          %1780 = vmatprep.mubr.f32.mxu0 0.0
          %1781 = vmatmul.mubr.f32.gmra.mxu0 %v1664
          %v1782 = vpop.f32.mrf.mxu0
          %v1783 = vadd.f32 0.0, %v1782
          %v1784 = vpop.f32.mrf.mxu0
          %v1785 = vadd.f32 0.0, %v1784
          %1786 = vmatprep.mubr.f32.mxu0 0.0
          %1787 = vmatmul.mubr.f32.gmra.mxu0 %v1667
          %v1788 = vpop.f32.mrf.mxu0
          %v1789 = vadd.f32 0.0, %v1788
          %v1790 = vpop.f32.mrf.mxu0
          %v1791 = vadd.f32 0.0, %v1790
          %1792 = vmatprep.mubr.f32.mxu0 0.0
          %1793 = vmatmul.mubr.f32.gmra.mxu0 %v1670
          %v1794 = vpop.f32.mrf.mxu0
          %v1795 = vadd.f32 0.0, %v1794
          %v1796 = vpop.f32.mrf.mxu0
          %v1797 = vadd.f32 0.0, %v1796
          %1798 = vmatprep.mubr.f32.mxu0 0.0
          %1799 = vmatmul.mubr.f32.gmra.mxu0 %v1673
          %v1800 = vpop.f32.mrf.mxu0
          %v1801 = vadd.f32 0.0, %v1800
          %v1802 = vpop.f32.mrf.mxu0
          %v1803 = vadd.f32 0.0, %v1802
          %1804 = vmatprep.mubr.f32.mxu0 0.0
          %1805 = vmatmul.mubr.f32.gmra.mxu0 %v1676
          %v1806 = vpop.f32.mrf.mxu0
          %v1807 = vadd.f32 0.0, %v1806
          %v1808 = vpop.f32.mrf.mxu0
          %v1809 = vadd.f32 0.0, %v1808
          %1810 = vmatprep.mubr.f32.mxu0 0.0
          %1811 = vmatmul.mubr.f32.gmra.mxu0 %v1679
          %v1812 = vpop.f32.mrf.mxu0
          %v1813 = vadd.f32 0.0, %v1812
          %v1814 = vpop.f32.mrf.mxu0
          %v1815 = vadd.f32 0.0, %v1814
          %1816 = vmatprep.mubr.f32.mxu0 0.0
          %1817 = vmatmul.mubr.f32.gmra.mxu0 %v1682
          %v1818 = vpop.f32.mrf.mxu0
          %v1819 = vadd.f32 0.0, %v1818
          %v1820 = vpop.f32.mrf.mxu0
          %v1821 = vadd.f32 0.0, %v1820
          %1822 = vmatprep.mubr.f32.mxu0 0.0
          %1823 = vmatmul.mubr.f32.gmra.mxu0 %v1685
          %v1824 = vpop.f32.mrf.mxu0
          %v1825 = vadd.f32 0.0, %v1824
          %v1826 = vpop.f32.mrf.mxu0
          %v1827 = vadd.f32 0.0, %v1826
          %1828 = vmatprep.mubr.f32.mxu0 0.0
          %1829 = vmatmul.mubr.f32.gmra.mxu0 %v1688
          %v1830 = vpop.f32.mrf.mxu0
          %v1831 = vadd.f32 0.0, %v1830
          %v1832 = vpop.f32.mrf.mxu0
          %v1833 = vadd.f32 0.0, %v1832
          %1834 = vmatprep.mubr.f32.mxu0 0.0
          %1835 = vmatmul.mubr.f32.gmra.mxu0 %v1691
          %v1836 = vpop.f32.mrf.mxu0
          %v1837 = vadd.f32 0.0, %v1836
          %v1838 = vpop.f32.mrf.mxu0
          %v1839 = vadd.f32 0.0, %v1838
          %1840 = vmatprep.mubr.f32.mxu0 0.0
          %1841 = vmatmul.mubr.f32.gmra.mxu0 %v1694
          %v1842 = vpop.f32.mrf.mxu0
          %v1843 = vadd.f32 0.0, %v1842
          %v1844 = vpop.f32.mrf.mxu0
          %v1845 = vadd.f32 0.0, %v1844
          %1846 = vmatprep.mubr.f32.mxu0 0.0
          %1847 = vmatmul.mubr.f32.gmra.mxu0 %v1697
          %v1848 = vpop.f32.mrf.mxu0
          %v1849 = vadd.f32 0.0, %v1848
          %v1850 = vpop.f32.mrf.mxu0
          %v1851 = vadd.f32 0.0, %v1850
          %1852 = vmatprep.mubr.f32.mxu0 0.0
          %1853 = vmatmul.mubr.f32.gmra.mxu0 %v1700
          %v1854 = vpop.f32.mrf.mxu0
          %v1855 = vadd.f32 0.0, %v1854
          %v1856 = vpop.f32.mrf.mxu0
          %v1857 = vadd.f32 0.0, %v1856
          %1858 = vmatprep.mubr.f32.mxu0 0.0
          %1859 = vmatmul.mubr.f32.gmra.mxu0 %v1703
          %v1860 = vpop.f32.mrf.mxu0
          %v1861 = vadd.f32 0.0, %v1860
          %v1862 = vpop.f32.mrf.mxu0
          %v1863 = vadd.f32 0.0, %v1862
          %1864 = vmatprep.mubr.f32.mxu0 0.0
          %1865 = vmatmul.mubr.f32.gmra.mxu0 %v1706
          %v1866 = vpop.f32.mrf.mxu0
          %v1867 = vadd.f32 0.0, %v1866
          %v1868 = vpop.f32.mrf.mxu0
          %v1869 = vadd.f32 0.0, %v1868
          %1870 = vmatprep.mubr.f32.mxu0 0.0
          %1871 = vmatmul.mubr.f32.gmra.mxu0 %v1709
          %v1872 = vpop.f32.mrf.mxu0
          %v1873 = vadd.f32 0.0, %v1872
          %v1874 = vpop.f32.mrf.mxu0
          %v1875 = vadd.f32 0.0, %v1874
          %1876 = vdwg.mxu0
          %1877 = vxpose.xlu0.b32.start [1/16] %v1783, 128
          %1878 = vxpose.xlu0.b32.cont [2/16] %v1789, 128
          %1879 = vxpose.xlu0.b32.cont [3/16] %v1795, 128
          %1880 = vxpose.xlu0.b32.cont [4/16] %v1801, 128
          %1881 = vxpose.xlu0.b32.cont [5/16] %v1807, 128
          %1882 = vxpose.xlu0.b32.cont [6/16] %v1813, 128
          %1883 = vxpose.xlu0.b32.cont [7/16] %v1819, 128
          %1884 = vxpose.xlu0.b32.cont [8/16] %v1825, 128
          %1885 = vxpose.xlu0.b32.cont [9/16] %v1831, 128
          %1886 = vxpose.xlu0.b32.cont [10/16] %v1837, 128
          %1887 = vxpose.xlu0.b32.cont [11/16] %v1843, 128
          %1888 = vxpose.xlu0.b32.cont [12/16] %v1849, 128
          %1889 = vxpose.xlu0.b32.cont [13/16] %v1855, 128
          %1890 = vxpose.xlu0.b32.cont [14/16] %v1861, 128
          %1891 = vxpose.xlu0.b32.cont [15/16] %v1867, 128
          %1892 = vxpose.xlu0.b32.end [16/16] %v1873, 128
          %v1893 = vpop.trf.xlu0
          %v1894 = vpop.trf.xlu0
          %v1895 = vpop.trf.xlu0
          %v1896 = vpop.trf.xlu0
          %v1897 = vpop.trf.xlu0
          %v1898 = vpop.trf.xlu0
          %v1899 = vpop.trf.xlu0
          %v1900 = vpop.trf.xlu0
          %v1901 = vpop.trf.xlu0
          %v1902 = vpop.trf.xlu0
          %v1903 = vpop.trf.xlu0
          %v1904 = vpop.trf.xlu0
          %v1905 = vpop.trf.xlu0
          %v1906 = vpop.trf.xlu0
          %v1907 = vpop.trf.xlu0
          %v1908 = vpop.trf.xlu0
          %1909 = vxpose.xlu0.b32.start [1/16] %v1785, 128
          %1910 = vxpose.xlu0.b32.cont [2/16] %v1791, 128
          %1911 = vxpose.xlu0.b32.cont [3/16] %v1797, 128
          %1912 = vxpose.xlu0.b32.cont [4/16] %v1803, 128
          %1913 = vxpose.xlu0.b32.cont [5/16] %v1809, 128
          %1914 = vxpose.xlu0.b32.cont [6/16] %v1815, 128
          %1915 = vxpose.xlu0.b32.cont [7/16] %v1821, 128
          %1916 = vxpose.xlu0.b32.cont [8/16] %v1827, 128
          %1917 = vxpose.xlu0.b32.cont [9/16] %v1833, 128
          %1918 = vxpose.xlu0.b32.cont [10/16] %v1839, 128
          %1919 = vxpose.xlu0.b32.cont [11/16] %v1845, 128
          %1920 = vxpose.xlu0.b32.cont [12/16] %v1851, 128
          %1921 = vxpose.xlu0.b32.cont [13/16] %v1857, 128
          %1922 = vxpose.xlu0.b32.cont [14/16] %v1863, 128
          %1923 = vxpose.xlu0.b32.cont [15/16] %v1869, 128
          %1924 = vxpose.xlu0.b32.end [16/16] %v1875, 128
          %v1925 = vpop.trf.xlu0
          %v1926 = vpop.trf.xlu0
          %v1927 = vpop.trf.xlu0
          %v1928 = vpop.trf.xlu0
          %v1929 = vpop.trf.xlu0
          %v1930 = vpop.trf.xlu0
          %v1931 = vpop.trf.xlu0
          %v1932 = vpop.trf.xlu0
          %v1933 = vpop.trf.xlu0
          %v1934 = vpop.trf.xlu0
          %v1935 = vpop.trf.xlu0
          %v1936 = vpop.trf.xlu0
          %v1937 = vpop.trf.xlu0
          %v1938 = vpop.trf.xlu0
          %v1939 = vpop.trf.xlu0
          %v1940 = vpop.trf.xlu0
          %v1941 = vld [vmem:[%s745] sm:$0x1]
          %v1943 = vlaneseq
          %v1944 = vshrl.u32 %v1943, 7
          %v1945 = vsub.s32 0, %v1944
          %v1946 = vrot.slane %v1941, %v1945
          %v1948 = vadd.f32 %v1893, %v1946
          %v1949 = vadd.f32 %v1894, %v1946
          %v1950 = vadd.f32 %v1895, %v1946
          %v1951 = vadd.f32 %v1896, %v1946
          %v1952 = vadd.f32 %v1897, %v1946
          %v1953 = vadd.f32 %v1898, %v1946
          %v1954 = vadd.f32 %v1899, %v1946
          %v1955 = vadd.f32 %v1900, %v1946
          %v1956 = vadd.f32 %v1901, %v1946
          %v1957 = vadd.f32 %v1902, %v1946
          %v1958 = vadd.f32 %v1903, %v1946
          %v1959 = vadd.f32 %v1904, %v1946
          %v1960 = vadd.f32 %v1905, %v1946
          %v1961 = vadd.f32 %v1906, %v1946
          %v1962 = vadd.f32 %v1907, %v1946
          %v1963 = vadd.f32 %v1908, %v1946
          %v1964 = vadd.f32 %v1925, %v1946
          %v1965 = vadd.f32 %v1926, %v1946
          %v1966 = vadd.f32 %v1927, %v1946
          %v1967 = vadd.f32 %v1928, %v1946
          %v1968 = vadd.f32 %v1929, %v1946
          %v1969 = vadd.f32 %v1930, %v1946
          %v1970 = vadd.f32 %v1931, %v1946
          %v1971 = vadd.f32 %v1932, %v1946
          %v1972 = vadd.f32 %v1933, %v1946
          %v1973 = vadd.f32 %v1934, %v1946
          %v1974 = vadd.f32 %v1935, %v1946
          %v1975 = vadd.f32 %v1936, %v1946
          %v1976 = vadd.f32 %v1937, %v1946
          %v1977 = vadd.f32 %v1938, %v1946
          %v1978 = vadd.f32 %v1939, %v1946
          %v1979 = vadd.f32 %v1940, %v1946
          %v1980 = vmax.f32 %v1948, 0.0
          %v1981 = vmax.f32 %v1949, 0.0
          %v1982 = vmax.f32 %v1950, 0.0
          %v1983 = vmax.f32 %v1951, 0.0
          %v1984 = vmax.f32 %v1952, 0.0
          %v1985 = vmax.f32 %v1953, 0.0
          %v1986 = vmax.f32 %v1954, 0.0
          %v1987 = vmax.f32 %v1955, 0.0
          %v1988 = vmax.f32 %v1956, 0.0
          %v1989 = vmax.f32 %v1957, 0.0
          %v1990 = vmax.f32 %v1958, 0.0
          %v1991 = vmax.f32 %v1959, 0.0
          %v1992 = vmax.f32 %v1960, 0.0
          %v1993 = vmax.f32 %v1961, 0.0
          %v1994 = vmax.f32 %v1962, 0.0
          %v1995 = vmax.f32 %v1963, 0.0
          %v1996 = vmax.f32 %v1964, 0.0
          %v1997 = vmax.f32 %v1965, 0.0
          %v1998 = vmax.f32 %v1966, 0.0
          %v1999 = vmax.f32 %v1967, 0.0
          %v2000 = vmax.f32 %v1968, 0.0
          %v2001 = vmax.f32 %v1969, 0.0
          %v2002 = vmax.f32 %v1970, 0.0
          %v2003 = vmax.f32 %v1971, 0.0
          %v2004 = vmax.f32 %v1972, 0.0
          %v2005 = vmax.f32 %v1973, 0.0
          %v2006 = vmax.f32 %v1974, 0.0
          %v2007 = vmax.f32 %v1975, 0.0
          %v2008 = vmax.f32 %v1976, 0.0
          %v2009 = vmax.f32 %v1977, 0.0
          %v2010 = vmax.f32 %v1978, 0.0
          %v2011 = vmax.f32 %v1979, 0.0
          %v2012 = vmin.f32 %v1980, 6.0
          %v2013 = vmin.f32 %v1981, 6.0
          %v2014 = vmin.f32 %v1982, 6.0
          %v2015 = vmin.f32 %v1983, 6.0
          %v2016 = vmin.f32 %v1984, 6.0
          %v2017 = vmin.f32 %v1985, 6.0
          %v2018 = vmin.f32 %v1986, 6.0
          %v2019 = vmin.f32 %v1987, 6.0
          %v2020 = vmin.f32 %v1988, 6.0
          %v2021 = vmin.f32 %v1989, 6.0
          %v2022 = vmin.f32 %v1990, 6.0
          %v2023 = vmin.f32 %v1991, 6.0
          %v2024 = vmin.f32 %v1992, 6.0
          %v2025 = vmin.f32 %v1993, 6.0
          %v2026 = vmin.f32 %v1994, 6.0
          %v2027 = vmin.f32 %v1995, 6.0
          %v2028 = vmin.f32 %v1996, 6.0
          %v2029 = vmin.f32 %v1997, 6.0
          %v2030 = vmin.f32 %v1998, 6.0
          %v2031 = vmin.f32 %v1999, 6.0
          %v2032 = vmin.f32 %v2000, 6.0
          %v2033 = vmin.f32 %v2001, 6.0
          %v2034 = vmin.f32 %v2002, 6.0
          %v2035 = vmin.f32 %v2003, 6.0
          %v2036 = vmin.f32 %v2004, 6.0
          %v2037 = vmin.f32 %v2005, 6.0
          %v2038 = vmin.f32 %v2006, 6.0
          %v2039 = vmin.f32 %v2007, 6.0
          %v2040 = vmin.f32 %v2008, 6.0
          %v2041 = vmin.f32 %v2009, 6.0
          %v2042 = vmin.f32 %v2010, 6.0
          %v2043 = vmin.f32 %v2011, 6.0
          %2044 = vst [vmem:[#allocation2] sm:$0xff] %v2012
          %2045 = vst [vmem:[#allocation2 + $0x8] sm:$0xff] %v2013
          %2046 = vst [vmem:[#allocation2 + $0x10] sm:$0xff] %v2014
          %2047 = vst [vmem:[#allocation2 + $0x18] sm:$0xff] %v2015
          %2048 = vst [vmem:[#allocation2 + $0x20] sm:$0xff] %v2016
          %2049 = vst [vmem:[#allocation2 + $0x28] sm:$0xff] %v2017
          %2050 = vst [vmem:[#allocation2 + $0x30] sm:$0xff] %v2018
          %2051 = vst [vmem:[#allocation2 + $0x38] sm:$0xff] %v2019
          %2052 = vst [vmem:[#allocation2 + $0x40] sm:$0xff] %v2020
          %2053 = vst [vmem:[#allocation2 + $0x48] sm:$0xff] %v2021
          %2054 = vst [vmem:[#allocation2 + $0x50] sm:$0xff] %v2022
          %2055 = vst [vmem:[#allocation2 + $0x58] sm:$0xff] %v2023
          %2056 = vst [vmem:[#allocation2 + $0x60] sm:$0xff] %v2024
          %2057 = vst [vmem:[#allocation2 + $0x68] sm:$0xff] %v2025
          %2058 = vst [vmem:[#allocation2 + $0x70] sm:$0xff] %v2026
          %2059 = vst [vmem:[#allocation2 + $0x78] sm:$0xff] %v2027
          %2060 = vst [vmem:[#allocation2 + $0x80] sm:$0xff] %v2028
          %2061 = vst [vmem:[#allocation2 + $0x88] sm:$0xff] %v2029
          %2062 = vst [vmem:[#allocation2 + $0x90] sm:$0xff] %v2030
          %2063 = vst [vmem:[#allocation2 + $0x98] sm:$0xff] %v2031
          %2064 = vst [vmem:[#allocation2 + $0xa0] sm:$0xff] %v2032
          %2065 = vst [vmem:[#allocation2 + $0xa8] sm:$0xff] %v2033
          %2066 = vst [vmem:[#allocation2 + $0xb0] sm:$0xff] %v2034
          %2067 = vst [vmem:[#allocation2 + $0xb8] sm:$0xff] %v2035
          %2068 = vst [vmem:[#allocation2 + $0xc0] sm:$0xff] %v2036
          %2069 = vst [vmem:[#allocation2 + $0xc8] sm:$0xff] %v2037
          %2070 = vst [vmem:[#allocation2 + $0xd0] sm:$0xff] %v2038
          %2071 = vst [vmem:[#allocation2 + $0xd8] sm:$0xff] %v2039
          %2072 = vst [vmem:[#allocation2 + $0xe0] sm:$0xff] %v2040
          %2073 = vst [vmem:[#allocation2 + $0xe8] sm:$0xff] %v2041
          %2074 = vst [vmem:[#allocation2 + $0xf0] sm:$0xff] %v2042
          %2075 = vst [vmem:[#allocation2 + $0xf8] sm:$0xff] %v2043
          %s2076 = scalar_lea.vmem %s1, 8
          %v2077 = vld [vmem:[%s2076] sm:$0x77]
          %v2078 = vld [vmem:[%s742] sm:$0xff]
          %v2079 = vld [vmem:[%s742 + $0x8] sm:$0xff]
          %v2080 = vld [vmem:[%s742 + $0x10] sm:$0xff]
          %v2081 = vld [vmem:[%s742 + $0x18] sm:$0xff]
          %v2082 = vld [vmem:[%s742 + $0x20] sm:$0xff]
          %v2083 = vld [vmem:[%s742 + $0x28] sm:$0xff]
          %v2084 = vld [vmem:[%s742 + $0x30] sm:$0xff]
          %v2085 = vld [vmem:[%s742 + $0x38] sm:$0xff]
          %v2086 = vld [vmem:[%s742 + $0x40] sm:$0xff]
          %v2087 = vld [vmem:[%s742 + $0x48] sm:$0xff]
          %v2088 = vld [vmem:[%s742 + $0x50] sm:$0xff]
          %v2089 = vld [vmem:[%s742 + $0x58] sm:$0xff]
          %v2090 = vld [vmem:[%s742 + $0x60] sm:$0xff]
          %v2091 = vld [vmem:[%s742 + $0x68] sm:$0xff]
          %v2092 = vld [vmem:[%s742 + $0x70] sm:$0xff]
          %v2093 = vld [vmem:[%s742 + $0x78] sm:$0xff]
          %v2095 = vcombine.high %v2077, %v2077
          %v2097 = vsel %vm1662, %v2078, 0
          %v2100 = vsel %vm1662, %v2079, 0
          %v2103 = vsel %vm1662, %v2080, 0
          %v2106 = vsel %vm1662, %v2081, 0
          %v2109 = vsel %vm1662, %v2082, 0
          %v2112 = vsel %vm1662, %v2083, 0
          %v2115 = vsel %vm1662, %v2084, 0
          %v2118 = vsel %vm1662, %v2085, 0
          %v2121 = vsel %vm1662, %v2086, 0
          %v2124 = vsel %vm1662, %v2087, 0
          %v2127 = vsel %vm1662, %v2088, 0
          %v2130 = vsel %vm1662, %v2089, 0
          %v2133 = vsel %vm1662, %v2090, 0
          %v2136 = vsel %vm1662, %v2091, 0
          %v2139 = vsel %vm1662, %v2092, 0
          %v2142 = vsel %vm1662, %v2093, 0
          %v2144 = vsel %vm1711, %v2077, 0
          %v2146 = vsel %vm1711, %v2095, 0
          %2148 = vmatprep.subr.mxu0 0.0
          %2149 = vmatpush1.msra.mxu0 0.0
          %2150 = vmatprep.subr.mxu0 0.0
          %2151 = vmatpush1.msra.mxu0 0.0
          %2152 = vmatprep.subr.mxu0 0.0
          %2153 = vmatpush1.msra.mxu0 0.0
          %2154 = vmatprep.subr.mxu0 0.0
          %2155 = vmatpush1.msra.mxu0 0.0
          %2156 = vmatprep.subr.mxu0 0.0
          %2157 = vmatpush1.msra.mxu0 0.0
          %2158 = vmatprep.subr.mxu0 0.0
          %2159 = vmatpush1.msra.mxu0 0.0
          %2160 = vmatprep.subr.mxu0 0.0
          %2161 = vmatpush1.msra.mxu0 0.0
          %2162 = vmatprep.subr.mxu0 0.0
          %2163 = vmatpush1.msra.mxu0 0.0
          %2164 = vmatprep.subr.mxu0 0.0
          %2165 = vmatpush1.msra.mxu0 0.0
          %2166 = vmatprep.subr.mxu0 0.0
          %2167 = vmatpush1.msra.mxu0 0.0
          %2168 = vmatprep.subr.mxu0 0.0
          %2169 = vmatpush1.msra.mxu0 0.0
          %2170 = vmatprep.subr.mxu0 0.0
          %2171 = vmatpush1.msra.mxu0 0.0
          %2172 = vmatprep.subr.mxu0 0.0
          %2173 = vmatpush1.msra.mxu0 0.0
          %2174 = vmatprep.subr.mxu0 0.0
          %2175 = vmatpush1.msra.mxu0 0.0
          %2176 = vmatprep.subr.mxu0 0.0
          %2177 = vmatpush1.msra.mxu0 0.0
          %2178 = vmatprep.subr.mxu0 %v2146
          %2179 = vmatpush1.msra.mxu0 %v2144
          %2180 = vmatprep.subr.mxu0 0.0
          %2181 = vmatpush2.msra.mxu0 0.0
          %2182 = vmatprep.subr.mxu0 0.0
          %2183 = vmatpush2.msra.mxu0 0.0
          %2184 = vmatprep.subr.mxu0 0.0
          %2185 = vmatpush2.msra.mxu0 0.0
          %2186 = vmatprep.subr.mxu0 0.0
          %2187 = vmatpush2.msra.mxu0 0.0
          %2188 = vmatprep.subr.mxu0 0.0
          %2189 = vmatpush2.msra.mxu0 0.0
          %2190 = vmatprep.subr.mxu0 0.0
          %2191 = vmatpush2.msra.mxu0 0.0
          %2192 = vmatprep.subr.mxu0 0.0
          %2193 = vmatpush2.msra.mxu0 0.0
          %2194 = vmatprep.subr.mxu0 0.0
          %2195 = vmatpush2.msra.mxu0 0.0
          %2196 = vmatprep.subr.mxu0 0.0
          %2197 = vmatpush2.msra.mxu0 0.0
          %2198 = vmatprep.subr.mxu0 0.0
          %2199 = vmatpush2.msra.mxu0 0.0
          %2200 = vmatprep.subr.mxu0 0.0
          %2201 = vmatpush2.msra.mxu0 0.0
          %2202 = vmatprep.subr.mxu0 0.0
          %2203 = vmatpush2.msra.mxu0 0.0
          %2204 = vmatprep.subr.mxu0 0.0
          %2205 = vmatpush2.msra.mxu0 0.0
          %2206 = vmatprep.subr.mxu0 0.0
          %2207 = vmatpush2.msra.mxu0 0.0
          %2208 = vmatprep.subr.mxu0 0.0
          %2209 = vmatpush2.msra.mxu0 0.0
          %2210 = vmatprep.subr.mxu0 0.0
          %2211 = vmatpush2.msra.mxu0 0.0
          %2212 = vmatprep.mubr.f32.mxu0 0.0
          %2213 = vmatmul.mubr.f32.gmra.mxu0 %v2097
          %v2214 = vpop.f32.mrf.mxu0
          %v2215 = vadd.f32 0.0, %v2214
          %v2216 = vpop.f32.mrf.mxu0
          %v2217 = vadd.f32 0.0, %v2216
          %2218 = vmatprep.mubr.f32.mxu0 0.0
          %2219 = vmatmul.mubr.f32.gmra.mxu0 %v2100
          %v2220 = vpop.f32.mrf.mxu0
          %v2221 = vadd.f32 0.0, %v2220
          %v2222 = vpop.f32.mrf.mxu0
          %v2223 = vadd.f32 0.0, %v2222
          %2224 = vmatprep.mubr.f32.mxu0 0.0
          %2225 = vmatmul.mubr.f32.gmra.mxu0 %v2103
          %v2226 = vpop.f32.mrf.mxu0
          %v2227 = vadd.f32 0.0, %v2226
          %v2228 = vpop.f32.mrf.mxu0
          %v2229 = vadd.f32 0.0, %v2228
          %2230 = vmatprep.mubr.f32.mxu0 0.0
          %2231 = vmatmul.mubr.f32.gmra.mxu0 %v2106
          %v2232 = vpop.f32.mrf.mxu0
          %v2233 = vadd.f32 0.0, %v2232
          %v2234 = vpop.f32.mrf.mxu0
          %v2235 = vadd.f32 0.0, %v2234
          %2236 = vmatprep.mubr.f32.mxu0 0.0
          %2237 = vmatmul.mubr.f32.gmra.mxu0 %v2109
          %v2238 = vpop.f32.mrf.mxu0
          %v2239 = vadd.f32 0.0, %v2238
          %v2240 = vpop.f32.mrf.mxu0
          %v2241 = vadd.f32 0.0, %v2240
          %2242 = vmatprep.mubr.f32.mxu0 0.0
          %2243 = vmatmul.mubr.f32.gmra.mxu0 %v2112
          %v2244 = vpop.f32.mrf.mxu0
          %v2245 = vadd.f32 0.0, %v2244
          %v2246 = vpop.f32.mrf.mxu0
          %v2247 = vadd.f32 0.0, %v2246
          %2248 = vmatprep.mubr.f32.mxu0 0.0
          %2249 = vmatmul.mubr.f32.gmra.mxu0 %v2115
          %v2250 = vpop.f32.mrf.mxu0
          %v2251 = vadd.f32 0.0, %v2250
          %v2252 = vpop.f32.mrf.mxu0
          %v2253 = vadd.f32 0.0, %v2252
          %2254 = vmatprep.mubr.f32.mxu0 0.0
          %2255 = vmatmul.mubr.f32.gmra.mxu0 %v2118
          %v2256 = vpop.f32.mrf.mxu0
          %v2257 = vadd.f32 0.0, %v2256
          %v2258 = vpop.f32.mrf.mxu0
          %v2259 = vadd.f32 0.0, %v2258
          %2260 = vmatprep.mubr.f32.mxu0 0.0
          %2261 = vmatmul.mubr.f32.gmra.mxu0 %v2121
          %v2262 = vpop.f32.mrf.mxu0
          %v2263 = vadd.f32 0.0, %v2262
          %v2264 = vpop.f32.mrf.mxu0
          %v2265 = vadd.f32 0.0, %v2264
          %2266 = vmatprep.mubr.f32.mxu0 0.0
          %2267 = vmatmul.mubr.f32.gmra.mxu0 %v2124
          %v2268 = vpop.f32.mrf.mxu0
          %v2269 = vadd.f32 0.0, %v2268
          %v2270 = vpop.f32.mrf.mxu0
          %v2271 = vadd.f32 0.0, %v2270
          %2272 = vmatprep.mubr.f32.mxu0 0.0
          %2273 = vmatmul.mubr.f32.gmra.mxu0 %v2127
          %v2274 = vpop.f32.mrf.mxu0
          %v2275 = vadd.f32 0.0, %v2274
          %v2276 = vpop.f32.mrf.mxu0
          %v2277 = vadd.f32 0.0, %v2276
          %2278 = vmatprep.mubr.f32.mxu0 0.0
          %2279 = vmatmul.mubr.f32.gmra.mxu0 %v2130
          %v2280 = vpop.f32.mrf.mxu0
          %v2281 = vadd.f32 0.0, %v2280
          %v2282 = vpop.f32.mrf.mxu0
          %v2283 = vadd.f32 0.0, %v2282
          %2284 = vmatprep.mubr.f32.mxu0 0.0
          %2285 = vmatmul.mubr.f32.gmra.mxu0 %v2133
          %v2286 = vpop.f32.mrf.mxu0
          %v2287 = vadd.f32 0.0, %v2286
          %v2288 = vpop.f32.mrf.mxu0
          %v2289 = vadd.f32 0.0, %v2288
          %2290 = vmatprep.mubr.f32.mxu0 0.0
          %2291 = vmatmul.mubr.f32.gmra.mxu0 %v2136
          %v2292 = vpop.f32.mrf.mxu0
          %v2293 = vadd.f32 0.0, %v2292
          %v2294 = vpop.f32.mrf.mxu0
          %v2295 = vadd.f32 0.0, %v2294
          %2296 = vmatprep.mubr.f32.mxu0 0.0
          %2297 = vmatmul.mubr.f32.gmra.mxu0 %v2139
          %v2298 = vpop.f32.mrf.mxu0
          %v2299 = vadd.f32 0.0, %v2298
          %v2300 = vpop.f32.mrf.mxu0
          %v2301 = vadd.f32 0.0, %v2300
          %2302 = vmatprep.mubr.f32.mxu0 0.0
          %2303 = vmatmul.mubr.f32.gmra.mxu0 %v2142
          %v2304 = vpop.f32.mrf.mxu0
          %v2305 = vadd.f32 0.0, %v2304
          %v2306 = vpop.f32.mrf.mxu0
          %v2307 = vadd.f32 0.0, %v2306
          %2308 = vdwg.mxu0
          %2309 = vxpose.xlu0.b32.start [1/16] %v2215, 128
          %2310 = vxpose.xlu0.b32.cont [2/16] %v2221, 128
          %2311 = vxpose.xlu0.b32.cont [3/16] %v2227, 128
          %2312 = vxpose.xlu0.b32.cont [4/16] %v2233, 128
          %2313 = vxpose.xlu0.b32.cont [5/16] %v2239, 128
          %2314 = vxpose.xlu0.b32.cont [6/16] %v2245, 128
          %2315 = vxpose.xlu0.b32.cont [7/16] %v2251, 128
          %2316 = vxpose.xlu0.b32.cont [8/16] %v2257, 128
          %2317 = vxpose.xlu0.b32.cont [9/16] %v2263, 128
          %2318 = vxpose.xlu0.b32.cont [10/16] %v2269, 128
          %2319 = vxpose.xlu0.b32.cont [11/16] %v2275, 128
          %2320 = vxpose.xlu0.b32.cont [12/16] %v2281, 128
          %2321 = vxpose.xlu0.b32.cont [13/16] %v2287, 128
          %2322 = vxpose.xlu0.b32.cont [14/16] %v2293, 128
          %2323 = vxpose.xlu0.b32.cont [15/16] %v2299, 128
          %2324 = vxpose.xlu0.b32.end [16/16] %v2305, 128
          %v2325 = vpop.trf.xlu0
          %v2326 = vpop.trf.xlu0
          %v2327 = vpop.trf.xlu0
          %v2328 = vpop.trf.xlu0
          %v2329 = vpop.trf.xlu0
          %v2330 = vpop.trf.xlu0
          %v2331 = vpop.trf.xlu0
          %v2332 = vpop.trf.xlu0
          %v2333 = vpop.trf.xlu0
          %v2334 = vpop.trf.xlu0
          %v2335 = vpop.trf.xlu0
          %v2336 = vpop.trf.xlu0
          %v2337 = vpop.trf.xlu0
          %v2338 = vpop.trf.xlu0
          %v2339 = vpop.trf.xlu0
          %v2340 = vpop.trf.xlu0
          %2341 = vxpose.xlu0.b32.start [1/16] %v2217, 128
          %2342 = vxpose.xlu0.b32.cont [2/16] %v2223, 128
          %2343 = vxpose.xlu0.b32.cont [3/16] %v2229, 128
          %2344 = vxpose.xlu0.b32.cont [4/16] %v2235, 128
          %2345 = vxpose.xlu0.b32.cont [5/16] %v2241, 128
          %2346 = vxpose.xlu0.b32.cont [6/16] %v2247, 128
          %2347 = vxpose.xlu0.b32.cont [7/16] %v2253, 128
          %2348 = vxpose.xlu0.b32.cont [8/16] %v2259, 128
          %2349 = vxpose.xlu0.b32.cont [9/16] %v2265, 128
          %2350 = vxpose.xlu0.b32.cont [10/16] %v2271, 128
          %2351 = vxpose.xlu0.b32.cont [11/16] %v2277, 128
          %2352 = vxpose.xlu0.b32.cont [12/16] %v2283, 128
          %2353 = vxpose.xlu0.b32.cont [13/16] %v2289, 128
          %2354 = vxpose.xlu0.b32.cont [14/16] %v2295, 128
          %2355 = vxpose.xlu0.b32.cont [15/16] %v2301, 128
          %2356 = vxpose.xlu0.b32.end [16/16] %v2307, 128
          %v2357 = vpop.trf.xlu0
          %v2358 = vpop.trf.xlu0
          %v2359 = vpop.trf.xlu0
          %v2360 = vpop.trf.xlu0
          %v2361 = vpop.trf.xlu0
          %v2362 = vpop.trf.xlu0
          %v2363 = vpop.trf.xlu0
          %v2364 = vpop.trf.xlu0
          %v2365 = vpop.trf.xlu0
          %v2366 = vpop.trf.xlu0
          %v2367 = vpop.trf.xlu0
          %v2368 = vpop.trf.xlu0
          %v2369 = vpop.trf.xlu0
          %v2370 = vpop.trf.xlu0
          %v2371 = vpop.trf.xlu0
          %v2372 = vpop.trf.xlu0
          %v2373 = vld [vmem:[%s745] sm:$0x1]
          %v2375 = vlaneseq
          %v2376 = vshrl.u32 %v2375, 7
          %v2377 = vsub.s32 0, %v2376
          %v2378 = vrot.slane %v2373, %v2377
          %v2380 = vadd.f32 %v2325, %v2378
          %v2381 = vadd.f32 %v2326, %v2378
          %v2382 = vadd.f32 %v2327, %v2378
          %v2383 = vadd.f32 %v2328, %v2378
          %v2384 = vadd.f32 %v2329, %v2378
          %v2385 = vadd.f32 %v2330, %v2378
          %v2386 = vadd.f32 %v2331, %v2378
          %v2387 = vadd.f32 %v2332, %v2378
          %v2388 = vadd.f32 %v2333, %v2378
          %v2389 = vadd.f32 %v2334, %v2378
          %v2390 = vadd.f32 %v2335, %v2378
          %v2391 = vadd.f32 %v2336, %v2378
          %v2392 = vadd.f32 %v2337, %v2378
          %v2393 = vadd.f32 %v2338, %v2378
          %v2394 = vadd.f32 %v2339, %v2378
          %v2395 = vadd.f32 %v2340, %v2378
          %v2396 = vadd.f32 %v2357, %v2378
          %v2397 = vadd.f32 %v2358, %v2378
          %v2398 = vadd.f32 %v2359, %v2378
          %v2399 = vadd.f32 %v2360, %v2378
          %v2400 = vadd.f32 %v2361, %v2378
          %v2401 = vadd.f32 %v2362, %v2378
          %v2402 = vadd.f32 %v2363, %v2378
          %v2403 = vadd.f32 %v2364, %v2378
          %v2404 = vadd.f32 %v2365, %v2378
          %v2405 = vadd.f32 %v2366, %v2378
          %v2406 = vadd.f32 %v2367, %v2378
          %v2407 = vadd.f32 %v2368, %v2378
          %v2408 = vadd.f32 %v2369, %v2378
          %v2409 = vadd.f32 %v2370, %v2378
          %v2410 = vadd.f32 %v2371, %v2378
          %v2411 = vadd.f32 %v2372, %v2378
          %v2412 = vmax.f32 %v2380, 0.0
          %v2413 = vmax.f32 %v2381, 0.0
          %v2414 = vmax.f32 %v2382, 0.0
          %v2415 = vmax.f32 %v2383, 0.0
          %v2416 = vmax.f32 %v2384, 0.0
          %v2417 = vmax.f32 %v2385, 0.0
          %v2418 = vmax.f32 %v2386, 0.0
          %v2419 = vmax.f32 %v2387, 0.0
          %v2420 = vmax.f32 %v2388, 0.0
          %v2421 = vmax.f32 %v2389, 0.0
          %v2422 = vmax.f32 %v2390, 0.0
          %v2423 = vmax.f32 %v2391, 0.0
          %v2424 = vmax.f32 %v2392, 0.0
          %v2425 = vmax.f32 %v2393, 0.0
          %v2426 = vmax.f32 %v2394, 0.0
          %v2427 = vmax.f32 %v2395, 0.0
          %v2428 = vmax.f32 %v2396, 0.0
          %v2429 = vmax.f32 %v2397, 0.0
          %v2430 = vmax.f32 %v2398, 0.0
          %v2431 = vmax.f32 %v2399, 0.0
          %v2432 = vmax.f32 %v2400, 0.0
          %v2433 = vmax.f32 %v2401, 0.0
          %v2434 = vmax.f32 %v2402, 0.0
          %v2435 = vmax.f32 %v2403, 0.0
          %v2436 = vmax.f32 %v2404, 0.0
          %v2437 = vmax.f32 %v2405, 0.0
          %v2438 = vmax.f32 %v2406, 0.0
          %v2439 = vmax.f32 %v2407, 0.0
          %v2440 = vmax.f32 %v2408, 0.0
          %v2441 = vmax.f32 %v2409, 0.0
          %v2442 = vmax.f32 %v2410, 0.0
          %v2443 = vmax.f32 %v2411, 0.0
          %v2444 = vmin.f32 %v2412, 6.0
          %v2445 = vmin.f32 %v2413, 6.0
          %v2446 = vmin.f32 %v2414, 6.0
          %v2447 = vmin.f32 %v2415, 6.0
          %v2448 = vmin.f32 %v2416, 6.0
          %v2449 = vmin.f32 %v2417, 6.0
          %v2450 = vmin.f32 %v2418, 6.0
          %v2451 = vmin.f32 %v2419, 6.0
          %v2452 = vmin.f32 %v2420, 6.0
          %v2453 = vmin.f32 %v2421, 6.0
          %v2454 = vmin.f32 %v2422, 6.0
          %v2455 = vmin.f32 %v2423, 6.0
          %v2456 = vmin.f32 %v2424, 6.0
          %v2457 = vmin.f32 %v2425, 6.0
          %v2458 = vmin.f32 %v2426, 6.0
          %v2459 = vmin.f32 %v2427, 6.0
          %v2460 = vmin.f32 %v2428, 6.0
          %v2461 = vmin.f32 %v2429, 6.0
          %v2462 = vmin.f32 %v2430, 6.0
          %v2463 = vmin.f32 %v2431, 6.0
          %v2464 = vmin.f32 %v2432, 6.0
          %v2465 = vmin.f32 %v2433, 6.0
          %v2466 = vmin.f32 %v2434, 6.0
          %v2467 = vmin.f32 %v2435, 6.0
          %v2468 = vmin.f32 %v2436, 6.0
          %v2469 = vmin.f32 %v2437, 6.0
          %v2470 = vmin.f32 %v2438, 6.0
          %v2471 = vmin.f32 %v2439, 6.0
          %v2472 = vmin.f32 %v2440, 6.0
          %v2473 = vmin.f32 %v2441, 6.0
          %v2474 = vmin.f32 %v2442, 6.0
          %v2475 = vmin.f32 %v2443, 6.0
          %2476 = vst [vmem:[#allocation2 + $0x100] sm:$0xff] %v2444
          %2477 = vst [vmem:[#allocation2 + $0x108] sm:$0xff] %v2445
          %2478 = vst [vmem:[#allocation2 + $0x110] sm:$0xff] %v2446
          %2479 = vst [vmem:[#allocation2 + $0x118] sm:$0xff] %v2447
          %2480 = vst [vmem:[#allocation2 + $0x120] sm:$0xff] %v2448
          %2481 = vst [vmem:[#allocation2 + $0x128] sm:$0xff] %v2449
          %2482 = vst [vmem:[#allocation2 + $0x130] sm:$0xff] %v2450
          %2483 = vst [vmem:[#allocation2 + $0x138] sm:$0xff] %v2451
          %2484 = vst [vmem:[#allocation2 + $0x140] sm:$0xff] %v2452
          %2485 = vst [vmem:[#allocation2 + $0x148] sm:$0xff] %v2453
          %2486 = vst [vmem:[#allocation2 + $0x150] sm:$0xff] %v2454
          %2487 = vst [vmem:[#allocation2 + $0x158] sm:$0xff] %v2455
          %2488 = vst [vmem:[#allocation2 + $0x160] sm:$0xff] %v2456
          %2489 = vst [vmem:[#allocation2 + $0x168] sm:$0xff] %v2457
          %2490 = vst [vmem:[#allocation2 + $0x170] sm:$0xff] %v2458
          %2491 = vst [vmem:[#allocation2 + $0x178] sm:$0xff] %v2459
          %2492 = vst [vmem:[#allocation2 + $0x180] sm:$0xff] %v2460
          %2493 = vst [vmem:[#allocation2 + $0x188] sm:$0xff] %v2461
          %2494 = vst [vmem:[#allocation2 + $0x190] sm:$0xff] %v2462
          %2495 = vst [vmem:[#allocation2 + $0x198] sm:$0xff] %v2463
          %2496 = vst [vmem:[#allocation2 + $0x1a0] sm:$0xff] %v2464
          %2497 = vst [vmem:[#allocation2 + $0x1a8] sm:$0xff] %v2465
          %2498 = vst [vmem:[#allocation2 + $0x1b0] sm:$0xff] %v2466
          %2499 = vst [vmem:[#allocation2 + $0x1b8] sm:$0xff] %v2467
          %2500 = vst [vmem:[#allocation2 + $0x1c0] sm:$0xff] %v2468
          %2501 = vst [vmem:[#allocation2 + $0x1c8] sm:$0xff] %v2469
          %2502 = vst [vmem:[#allocation2 + $0x1d0] sm:$0xff] %v2470
          %2503 = vst [vmem:[#allocation2 + $0x1d8] sm:$0xff] %v2471
          %2504 = vst [vmem:[#allocation2 + $0x1e0] sm:$0xff] %v2472
          %2505 = vst [vmem:[#allocation2 + $0x1e8] sm:$0xff] %v2473
          %2506 = vst [vmem:[#allocation2 + $0x1f0] sm:$0xff] %v2474
          %2507 = vst [vmem:[#allocation2 + $0x1f8] sm:$0xff] %v2475
        $region108: #{siamese_forward.1} parent=83 // pred_fallthru
          _
        %v2508 = vld [vmem:[#allocation2] sm:$0xff]
        %v2509 = vld [vmem:[#allocation2 + $0x8] sm:$0xff]
        %v2510 = vld [vmem:[#allocation2 + $0x10] sm:$0xff]
        %v2511 = vld [vmem:[#allocation2 + $0x18] sm:$0xff]
        %v2512 = vld [vmem:[#allocation2 + $0x20] sm:$0xff]
        %v2513 = vld [vmem:[#allocation2 + $0x28] sm:$0xff]
        %v2514 = vld [vmem:[#allocation2 + $0x30] sm:$0xff]
        %v2515 = vld [vmem:[#allocation2 + $0x38] sm:$0xff]
        %v2516 = vld [vmem:[#allocation2 + $0x40] sm:$0xff]
        %v2517 = vld [vmem:[#allocation2 + $0x48] sm:$0xff]
        %v2518 = vld [vmem:[#allocation2 + $0x50] sm:$0xff]
        %v2519 = vld [vmem:[#allocation2 + $0x58] sm:$0xff]
        %v2520 = vld [vmem:[#allocation2 + $0x60] sm:$0xff]
        %v2521 = vld [vmem:[#allocation2 + $0x68] sm:$0xff]
        %v2522 = vld [vmem:[#allocation2 + $0x70] sm:$0xff]
        %v2523 = vld [vmem:[#allocation2 + $0x78] sm:$0xff]
        %v2524 = vld [vmem:[#allocation2 + $0x80] sm:$0xff]
        %v2525 = vld [vmem:[#allocation2 + $0x88] sm:$0xff]
        %v2526 = vld [vmem:[#allocation2 + $0x90] sm:$0xff]
        %v2527 = vld [vmem:[#allocation2 + $0x98] sm:$0xff]
        %v2528 = vld [vmem:[#allocation2 + $0xa0] sm:$0xff]
        %v2529 = vld [vmem:[#allocation2 + $0xa8] sm:$0xff]
        %v2530 = vld [vmem:[#allocation2 + $0xb0] sm:$0xff]
        %v2531 = vld [vmem:[#allocation2 + $0xb8] sm:$0xff]
        %v2532 = vld [vmem:[#allocation2 + $0xc0] sm:$0xff]
        %v2533 = vld [vmem:[#allocation2 + $0xc8] sm:$0xff]
        %v2534 = vld [vmem:[#allocation2 + $0xd0] sm:$0xff]
        %v2535 = vld [vmem:[#allocation2 + $0xd8] sm:$0xff]
        %v2536 = vld [vmem:[#allocation2 + $0xe0] sm:$0xff]
        %v2537 = vld [vmem:[#allocation2 + $0xe8] sm:$0xff]
        %v2538 = vld [vmem:[#allocation2 + $0xf0] sm:$0xff]
        %v2539 = vld [vmem:[#allocation2 + $0xf8] sm:$0xff]
        %v2540 = vld [vmem:[#allocation2 + $0x100] sm:$0xff]
        %v2541 = vld [vmem:[#allocation2 + $0x108] sm:$0xff]
        %v2542 = vld [vmem:[#allocation2 + $0x110] sm:$0xff]
        %v2543 = vld [vmem:[#allocation2 + $0x118] sm:$0xff]
        %v2544 = vld [vmem:[#allocation2 + $0x120] sm:$0xff]
        %v2545 = vld [vmem:[#allocation2 + $0x128] sm:$0xff]
        %v2546 = vld [vmem:[#allocation2 + $0x130] sm:$0xff]
        %v2547 = vld [vmem:[#allocation2 + $0x138] sm:$0xff]
        %v2548 = vld [vmem:[#allocation2 + $0x140] sm:$0xff]
        %v2549 = vld [vmem:[#allocation2 + $0x148] sm:$0xff]
        %v2550 = vld [vmem:[#allocation2 + $0x150] sm:$0xff]
        %v2551 = vld [vmem:[#allocation2 + $0x158] sm:$0xff]
        %v2552 = vld [vmem:[#allocation2 + $0x160] sm:$0xff]
        %v2553 = vld [vmem:[#allocation2 + $0x168] sm:$0xff]
        %v2554 = vld [vmem:[#allocation2 + $0x170] sm:$0xff]
        %v2555 = vld [vmem:[#allocation2 + $0x178] sm:$0xff]
        %v2556 = vld [vmem:[#allocation2 + $0x180] sm:$0xff]
        %v2557 = vld [vmem:[#allocation2 + $0x188] sm:$0xff]
        %v2558 = vld [vmem:[#allocation2 + $0x190] sm:$0xff]
        %v2559 = vld [vmem:[#allocation2 + $0x198] sm:$0xff]
        %v2560 = vld [vmem:[#allocation2 + $0x1a0] sm:$0xff]
        %v2561 = vld [vmem:[#allocation2 + $0x1a8] sm:$0xff]
        %v2562 = vld [vmem:[#allocation2 + $0x1b0] sm:$0xff]
        %v2563 = vld [vmem:[#allocation2 + $0x1b8] sm:$0xff]
        %v2564 = vld [vmem:[#allocation2 + $0x1c0] sm:$0xff]
        %v2565 = vld [vmem:[#allocation2 + $0x1c8] sm:$0xff]
        %v2566 = vld [vmem:[#allocation2 + $0x1d0] sm:$0xff]
        %v2567 = vld [vmem:[#allocation2 + $0x1d8] sm:$0xff]
        %v2568 = vld [vmem:[#allocation2 + $0x1e0] sm:$0xff]
        %v2569 = vld [vmem:[#allocation2 + $0x1e8] sm:$0xff]
        %v2570 = vld [vmem:[#allocation2 + $0x1f0] sm:$0xff]
        %v2571 = vld [vmem:[#allocation2 + $0x1f8] sm:$0xff]
        %v2572 = vld [vmem:[%s750] sm:$0xff]
        %v2573 = vld [vmem:[%s750 + $0x8] sm:$0xff]
        %v2574 = vld [vmem:[%s750 + $0x10] sm:$0xff]
        %v2575 = vld [vmem:[%s750 + $0x18] sm:$0xff]
        %v2576 = vld [vmem:[%s750 + $0x20] sm:$0xff]
        %v2577 = vld [vmem:[%s750 + $0x28] sm:$0xff]
        %v2578 = vld [vmem:[%s750 + $0x30] sm:$0xff]
        %v2579 = vld [vmem:[%s750 + $0x38] sm:$0xff]
        %v2580 = vld [vmem:[%s750 + $0x40] sm:$0xff]
        %v2581 = vld [vmem:[%s750 + $0x48] sm:$0xff]
        %v2582 = vld [vmem:[%s750 + $0x50] sm:$0xff]
        %v2583 = vld [vmem:[%s750 + $0x58] sm:$0xff]
        %v2584 = vld [vmem:[%s750 + $0x60] sm:$0xff]
        %v2585 = vld [vmem:[%s750 + $0x68] sm:$0xff]
        %v2586 = vld [vmem:[%s750 + $0x70] sm:$0xff]
        %v2587 = vld [vmem:[%s750 + $0x78] sm:$0xff]
        %v2588 = vld [vmem:[%s753] sm:$0x1]
        %v2590 = vlaneseq
        %v2591 = vshrl.u32 %v2590, 7
        %v2592 = vsub.s32 0, %v2591
        %v2593 = vrot.slane %v2588, %v2592
        %2595 = vmatprep.subr.mxu0 0.0
        %2596 = vmatpush1.msra.mxu0 %v2587
        %2597 = vmatprep.subr.mxu0 0.0
        %2598 = vmatpush1.msra.mxu0 %v2586
        %2599 = vmatprep.subr.mxu0 0.0
        %2600 = vmatpush1.msra.mxu0 %v2585
        %2601 = vmatprep.subr.mxu0 0.0
        %2602 = vmatpush1.msra.mxu0 %v2584
        %2603 = vmatprep.subr.mxu0 0.0
        %2604 = vmatpush1.msra.mxu0 %v2583
        %2605 = vmatprep.subr.mxu0 0.0
        %2606 = vmatpush1.msra.mxu0 %v2582
        %2607 = vmatprep.subr.mxu0 0.0
        %2608 = vmatpush1.msra.mxu0 %v2581
        %2609 = vmatprep.subr.mxu0 0.0
        %2610 = vmatpush1.msra.mxu0 %v2580
        %2611 = vmatprep.subr.mxu0 0.0
        %2612 = vmatpush1.msra.mxu0 %v2579
        %2613 = vmatprep.subr.mxu0 0.0
        %2614 = vmatpush1.msra.mxu0 %v2578
        %2615 = vmatprep.subr.mxu0 0.0
        %2616 = vmatpush1.msra.mxu0 %v2577
        %2617 = vmatprep.subr.mxu0 0.0
        %2618 = vmatpush1.msra.mxu0 %v2576
        %2619 = vmatprep.subr.mxu0 0.0
        %2620 = vmatpush1.msra.mxu0 %v2575
        %2621 = vmatprep.subr.mxu0 0.0
        %2622 = vmatpush1.msra.mxu0 %v2574
        %2623 = vmatprep.subr.mxu0 0.0
        %2624 = vmatpush1.msra.mxu0 %v2573
        %2625 = vmatprep.subr.mxu0 0.0
        %2626 = vmatpush1.msra.mxu0 %v2572
        %2627 = vmatprep.subr.mxu0 0.0
        %2628 = vmatpush2.msra.mxu0 0.0
        %2629 = vmatprep.subr.mxu0 0.0
        %2630 = vmatpush2.msra.mxu0 0.0
        %2631 = vmatprep.subr.mxu0 0.0
        %2632 = vmatpush2.msra.mxu0 0.0
        %2633 = vmatprep.subr.mxu0 0.0
        %2634 = vmatpush2.msra.mxu0 0.0
        %2635 = vmatprep.subr.mxu0 0.0
        %2636 = vmatpush2.msra.mxu0 0.0
        %2637 = vmatprep.subr.mxu0 0.0
        %2638 = vmatpush2.msra.mxu0 0.0
        %2639 = vmatprep.subr.mxu0 0.0
        %2640 = vmatpush2.msra.mxu0 0.0
        %2641 = vmatprep.subr.mxu0 0.0
        %2642 = vmatpush2.msra.mxu0 0.0
        %2643 = vmatprep.subr.mxu0 0.0
        %2644 = vmatpush2.msra.mxu0 0.0
        %2645 = vmatprep.subr.mxu0 0.0
        %2646 = vmatpush2.msra.mxu0 0.0
        %2647 = vmatprep.subr.mxu0 0.0
        %2648 = vmatpush2.msra.mxu0 0.0
        %2649 = vmatprep.subr.mxu0 0.0
        %2650 = vmatpush2.msra.mxu0 0.0
        %2651 = vmatprep.subr.mxu0 0.0
        %2652 = vmatpush2.msra.mxu0 0.0
        %2653 = vmatprep.subr.mxu0 0.0
        %2654 = vmatpush2.msra.mxu0 0.0
        %2655 = vmatprep.subr.mxu0 0.0
        %2656 = vmatpush2.msra.mxu0 0.0
        %2657 = vmatprep.subr.mxu0 0.0
        %2658 = vmatpush2.msra.mxu0 0.0
        %2659 = vmatprep.mubr.f32.mxu0 0.0
        %2660 = vmatmul.mubr.f32.gmra.mxu0 %v2508
        %v2661 = vpop.f32.mrf.mxu0
        %v2662 = vadd.f32 %v2593, %v2661
        %v2663 = vpop.f32.mrf.mxu0
        %2664 = vmatprep.mubr.f32.mxu0 0.0
        %2665 = vmatmul.mubr.f32.gmra.mxu0 %v2509
        %v2666 = vpop.f32.mrf.mxu0
        %v2667 = vadd.f32 %v2593, %v2666
        %v2668 = vpop.f32.mrf.mxu0
        %2669 = vmatprep.mubr.f32.mxu0 0.0
        %2670 = vmatmul.mubr.f32.gmra.mxu0 %v2510
        %v2671 = vpop.f32.mrf.mxu0
        %v2672 = vadd.f32 %v2593, %v2671
        %v2673 = vpop.f32.mrf.mxu0
        %2674 = vmatprep.mubr.f32.mxu0 0.0
        %2675 = vmatmul.mubr.f32.gmra.mxu0 %v2511
        %v2676 = vpop.f32.mrf.mxu0
        %v2677 = vadd.f32 %v2593, %v2676
        %v2678 = vpop.f32.mrf.mxu0
        %2679 = vmatprep.mubr.f32.mxu0 0.0
        %2680 = vmatmul.mubr.f32.gmra.mxu0 %v2512
        %v2681 = vpop.f32.mrf.mxu0
        %v2682 = vadd.f32 %v2593, %v2681
        %v2683 = vpop.f32.mrf.mxu0
        %2684 = vmatprep.mubr.f32.mxu0 0.0
        %2685 = vmatmul.mubr.f32.gmra.mxu0 %v2513
        %v2686 = vpop.f32.mrf.mxu0
        %v2687 = vadd.f32 %v2593, %v2686
        %v2688 = vpop.f32.mrf.mxu0
        %2689 = vmatprep.mubr.f32.mxu0 0.0
        %2690 = vmatmul.mubr.f32.gmra.mxu0 %v2514
        %v2691 = vpop.f32.mrf.mxu0
        %v2692 = vadd.f32 %v2593, %v2691
        %v2693 = vpop.f32.mrf.mxu0
        %2694 = vmatprep.mubr.f32.mxu0 0.0
        %2695 = vmatmul.mubr.f32.gmra.mxu0 %v2515
        %v2696 = vpop.f32.mrf.mxu0
        %v2697 = vadd.f32 %v2593, %v2696
        %v2698 = vpop.f32.mrf.mxu0
        %2699 = vmatprep.mubr.f32.mxu0 0.0
        %2700 = vmatmul.mubr.f32.gmra.mxu0 %v2516
        %v2701 = vpop.f32.mrf.mxu0
        %v2702 = vadd.f32 %v2593, %v2701
        %v2703 = vpop.f32.mrf.mxu0
        %2704 = vmatprep.mubr.f32.mxu0 0.0
        %2705 = vmatmul.mubr.f32.gmra.mxu0 %v2517
        %v2706 = vpop.f32.mrf.mxu0
        %v2707 = vadd.f32 %v2593, %v2706
        %v2708 = vpop.f32.mrf.mxu0
        %2709 = vmatprep.mubr.f32.mxu0 0.0
        %2710 = vmatmul.mubr.f32.gmra.mxu0 %v2518
        %v2711 = vpop.f32.mrf.mxu0
        %v2712 = vadd.f32 %v2593, %v2711
        %v2713 = vpop.f32.mrf.mxu0
        %2714 = vmatprep.mubr.f32.mxu0 0.0
        %2715 = vmatmul.mubr.f32.gmra.mxu0 %v2519
        %v2716 = vpop.f32.mrf.mxu0
        %v2717 = vadd.f32 %v2593, %v2716
        %v2718 = vpop.f32.mrf.mxu0
        %2719 = vmatprep.mubr.f32.mxu0 0.0
        %2720 = vmatmul.mubr.f32.gmra.mxu0 %v2520
        %v2721 = vpop.f32.mrf.mxu0
        %v2722 = vadd.f32 %v2593, %v2721
        %v2723 = vpop.f32.mrf.mxu0
        %2724 = vmatprep.mubr.f32.mxu0 0.0
        %2725 = vmatmul.mubr.f32.gmra.mxu0 %v2521
        %v2726 = vpop.f32.mrf.mxu0
        %v2727 = vadd.f32 %v2593, %v2726
        %v2728 = vpop.f32.mrf.mxu0
        %2729 = vmatprep.mubr.f32.mxu0 0.0
        %2730 = vmatmul.mubr.f32.gmra.mxu0 %v2522
        %v2731 = vpop.f32.mrf.mxu0
        %v2732 = vadd.f32 %v2593, %v2731
        %v2733 = vpop.f32.mrf.mxu0
        %2734 = vmatprep.mubr.f32.mxu0 0.0
        %2735 = vmatmul.mubr.f32.gmra.mxu0 %v2523
        %v2736 = vpop.f32.mrf.mxu0
        %v2737 = vadd.f32 %v2593, %v2736
        %v2738 = vpop.f32.mrf.mxu0
        %2739 = vmatprep.mubr.f32.mxu0 0.0
        %2740 = vmatmul.mubr.f32.gmra.mxu0 %v2524
        %v2741 = vpop.f32.mrf.mxu0
        %v2742 = vadd.f32 %v2593, %v2741
        %v2743 = vpop.f32.mrf.mxu0
        %2744 = vmatprep.mubr.f32.mxu0 0.0
        %2745 = vmatmul.mubr.f32.gmra.mxu0 %v2525
        %v2746 = vpop.f32.mrf.mxu0
        %v2747 = vadd.f32 %v2593, %v2746
        %v2748 = vpop.f32.mrf.mxu0
        %2749 = vmatprep.mubr.f32.mxu0 0.0
        %2750 = vmatmul.mubr.f32.gmra.mxu0 %v2526
        %v2751 = vpop.f32.mrf.mxu0
        %v2752 = vadd.f32 %v2593, %v2751
        %v2753 = vpop.f32.mrf.mxu0
        %2754 = vmatprep.mubr.f32.mxu0 0.0
        %2755 = vmatmul.mubr.f32.gmra.mxu0 %v2527
        %v2756 = vpop.f32.mrf.mxu0
        %v2757 = vadd.f32 %v2593, %v2756
        %v2758 = vpop.f32.mrf.mxu0
        %2759 = vmatprep.mubr.f32.mxu0 0.0
        %2760 = vmatmul.mubr.f32.gmra.mxu0 %v2528
        %v2761 = vpop.f32.mrf.mxu0
        %v2762 = vadd.f32 %v2593, %v2761
        %v2763 = vpop.f32.mrf.mxu0
        %2764 = vmatprep.mubr.f32.mxu0 0.0
        %2765 = vmatmul.mubr.f32.gmra.mxu0 %v2529
        %v2766 = vpop.f32.mrf.mxu0
        %v2767 = vadd.f32 %v2593, %v2766
        %v2768 = vpop.f32.mrf.mxu0
        %2769 = vmatprep.mubr.f32.mxu0 0.0
        %2770 = vmatmul.mubr.f32.gmra.mxu0 %v2530
        %v2771 = vpop.f32.mrf.mxu0
        %v2772 = vadd.f32 %v2593, %v2771
        %v2773 = vpop.f32.mrf.mxu0
        %2774 = vmatprep.mubr.f32.mxu0 0.0
        %2775 = vmatmul.mubr.f32.gmra.mxu0 %v2531
        %v2776 = vpop.f32.mrf.mxu0
        %v2777 = vadd.f32 %v2593, %v2776
        %v2778 = vpop.f32.mrf.mxu0
        %2779 = vmatprep.mubr.f32.mxu0 0.0
        %2780 = vmatmul.mubr.f32.gmra.mxu0 %v2532
        %v2781 = vpop.f32.mrf.mxu0
        %v2782 = vadd.f32 %v2593, %v2781
        %v2783 = vpop.f32.mrf.mxu0
        %2784 = vmatprep.mubr.f32.mxu0 0.0
        %2785 = vmatmul.mubr.f32.gmra.mxu0 %v2533
        %v2786 = vpop.f32.mrf.mxu0
        %v2787 = vadd.f32 %v2593, %v2786
        %v2788 = vpop.f32.mrf.mxu0
        %2789 = vmatprep.mubr.f32.mxu0 0.0
        %2790 = vmatmul.mubr.f32.gmra.mxu0 %v2534
        %v2791 = vpop.f32.mrf.mxu0
        %v2792 = vadd.f32 %v2593, %v2791
        %v2793 = vpop.f32.mrf.mxu0
        %2794 = vmatprep.mubr.f32.mxu0 0.0
        %2795 = vmatmul.mubr.f32.gmra.mxu0 %v2535
        %v2796 = vpop.f32.mrf.mxu0
        %v2797 = vadd.f32 %v2593, %v2796
        %v2798 = vpop.f32.mrf.mxu0
        %2799 = vmatprep.mubr.f32.mxu0 0.0
        %2800 = vmatmul.mubr.f32.gmra.mxu0 %v2536
        %v2801 = vpop.f32.mrf.mxu0
        %v2802 = vadd.f32 %v2593, %v2801
        %v2803 = vpop.f32.mrf.mxu0
        %2804 = vmatprep.mubr.f32.mxu0 0.0
        %2805 = vmatmul.mubr.f32.gmra.mxu0 %v2537
        %v2806 = vpop.f32.mrf.mxu0
        %v2807 = vadd.f32 %v2593, %v2806
        %v2808 = vpop.f32.mrf.mxu0
        %2809 = vmatprep.mubr.f32.mxu0 0.0
        %2810 = vmatmul.mubr.f32.gmra.mxu0 %v2538
        %v2811 = vpop.f32.mrf.mxu0
        %v2812 = vadd.f32 %v2593, %v2811
        %v2813 = vpop.f32.mrf.mxu0
        %2814 = vmatprep.mubr.f32.mxu0 0.0
        %2815 = vmatmul.mubr.f32.gmra.mxu0 %v2539
        %v2816 = vpop.f32.mrf.mxu0
        %v2817 = vadd.f32 %v2593, %v2816
        %v2818 = vpop.f32.mrf.mxu0
        %2819 = vmatprep.mubr.f32.mxu0 0.0
        %2820 = vmatmul.mubr.f32.gmra.mxu0 %v2540
        %v2821 = vpop.f32.mrf.mxu0
        %v2822 = vadd.f32 %v2593, %v2821
        %v2823 = vpop.f32.mrf.mxu0
        %2824 = vmatprep.mubr.f32.mxu0 0.0
        %2825 = vmatmul.mubr.f32.gmra.mxu0 %v2541
        %v2826 = vpop.f32.mrf.mxu0
        %v2827 = vadd.f32 %v2593, %v2826
        %v2828 = vpop.f32.mrf.mxu0
        %2829 = vmatprep.mubr.f32.mxu0 0.0
        %2830 = vmatmul.mubr.f32.gmra.mxu0 %v2542
        %v2831 = vpop.f32.mrf.mxu0
        %v2832 = vadd.f32 %v2593, %v2831
        %v2833 = vpop.f32.mrf.mxu0
        %2834 = vmatprep.mubr.f32.mxu0 0.0
        %2835 = vmatmul.mubr.f32.gmra.mxu0 %v2543
        %v2836 = vpop.f32.mrf.mxu0
        %v2837 = vadd.f32 %v2593, %v2836
        %v2838 = vpop.f32.mrf.mxu0
        %2839 = vmatprep.mubr.f32.mxu0 0.0
        %2840 = vmatmul.mubr.f32.gmra.mxu0 %v2544
        %v2841 = vpop.f32.mrf.mxu0
        %v2842 = vadd.f32 %v2593, %v2841
        %v2843 = vpop.f32.mrf.mxu0
        %2844 = vmatprep.mubr.f32.mxu0 0.0
        %2845 = vmatmul.mubr.f32.gmra.mxu0 %v2545
        %v2846 = vpop.f32.mrf.mxu0
        %v2847 = vadd.f32 %v2593, %v2846
        %v2848 = vpop.f32.mrf.mxu0
        %2849 = vmatprep.mubr.f32.mxu0 0.0
        %2850 = vmatmul.mubr.f32.gmra.mxu0 %v2546
        %v2851 = vpop.f32.mrf.mxu0
        %v2852 = vadd.f32 %v2593, %v2851
        %v2853 = vpop.f32.mrf.mxu0
        %2854 = vmatprep.mubr.f32.mxu0 0.0
        %2855 = vmatmul.mubr.f32.gmra.mxu0 %v2547
        %v2856 = vpop.f32.mrf.mxu0
        %v2857 = vadd.f32 %v2593, %v2856
        %v2858 = vpop.f32.mrf.mxu0
        %2859 = vmatprep.mubr.f32.mxu0 0.0
        %2860 = vmatmul.mubr.f32.gmra.mxu0 %v2548
        %v2861 = vpop.f32.mrf.mxu0
        %v2862 = vadd.f32 %v2593, %v2861
        %v2863 = vpop.f32.mrf.mxu0
        %2864 = vmatprep.mubr.f32.mxu0 0.0
        %2865 = vmatmul.mubr.f32.gmra.mxu0 %v2549
        %v2866 = vpop.f32.mrf.mxu0
        %v2867 = vadd.f32 %v2593, %v2866
        %v2868 = vpop.f32.mrf.mxu0
        %2869 = vmatprep.mubr.f32.mxu0 0.0
        %2870 = vmatmul.mubr.f32.gmra.mxu0 %v2550
        %v2871 = vpop.f32.mrf.mxu0
        %v2872 = vadd.f32 %v2593, %v2871
        %v2873 = vpop.f32.mrf.mxu0
        %2874 = vmatprep.mubr.f32.mxu0 0.0
        %2875 = vmatmul.mubr.f32.gmra.mxu0 %v2551
        %v2876 = vpop.f32.mrf.mxu0
        %v2877 = vadd.f32 %v2593, %v2876
        %v2878 = vpop.f32.mrf.mxu0
        %2879 = vmatprep.mubr.f32.mxu0 0.0
        %2880 = vmatmul.mubr.f32.gmra.mxu0 %v2552
        %v2881 = vpop.f32.mrf.mxu0
        %v2882 = vadd.f32 %v2593, %v2881
        %v2883 = vpop.f32.mrf.mxu0
        %2884 = vmatprep.mubr.f32.mxu0 0.0
        %2885 = vmatmul.mubr.f32.gmra.mxu0 %v2553
        %v2886 = vpop.f32.mrf.mxu0
        %v2887 = vadd.f32 %v2593, %v2886
        %v2888 = vpop.f32.mrf.mxu0
        %2889 = vmatprep.mubr.f32.mxu0 0.0
        %2890 = vmatmul.mubr.f32.gmra.mxu0 %v2554
        %v2891 = vpop.f32.mrf.mxu0
        %v2892 = vadd.f32 %v2593, %v2891
        %v2893 = vpop.f32.mrf.mxu0
        %2894 = vmatprep.mubr.f32.mxu0 0.0
        %2895 = vmatmul.mubr.f32.gmra.mxu0 %v2555
        %v2896 = vpop.f32.mrf.mxu0
        %v2897 = vadd.f32 %v2593, %v2896
        %v2898 = vpop.f32.mrf.mxu0
        %2899 = vmatprep.mubr.f32.mxu0 0.0
        %2900 = vmatmul.mubr.f32.gmra.mxu0 %v2556
        %v2901 = vpop.f32.mrf.mxu0
        %v2902 = vadd.f32 %v2593, %v2901
        %v2903 = vpop.f32.mrf.mxu0
        %2904 = vmatprep.mubr.f32.mxu0 0.0
        %2905 = vmatmul.mubr.f32.gmra.mxu0 %v2557
        %v2906 = vpop.f32.mrf.mxu0
        %v2907 = vadd.f32 %v2593, %v2906
        %v2908 = vpop.f32.mrf.mxu0
        %2909 = vmatprep.mubr.f32.mxu0 0.0
        %2910 = vmatmul.mubr.f32.gmra.mxu0 %v2558
        %v2911 = vpop.f32.mrf.mxu0
        %v2912 = vadd.f32 %v2593, %v2911
        %v2913 = vpop.f32.mrf.mxu0
        %2914 = vmatprep.mubr.f32.mxu0 0.0
        %2915 = vmatmul.mubr.f32.gmra.mxu0 %v2559
        %v2916 = vpop.f32.mrf.mxu0
        %v2917 = vadd.f32 %v2593, %v2916
        %v2918 = vpop.f32.mrf.mxu0
        %2919 = vmatprep.mubr.f32.mxu0 0.0
        %2920 = vmatmul.mubr.f32.gmra.mxu0 %v2560
        %v2921 = vpop.f32.mrf.mxu0
        %v2922 = vadd.f32 %v2593, %v2921
        %v2923 = vpop.f32.mrf.mxu0
        %2924 = vmatprep.mubr.f32.mxu0 0.0
        %2925 = vmatmul.mubr.f32.gmra.mxu0 %v2561
        %v2926 = vpop.f32.mrf.mxu0
        %v2927 = vadd.f32 %v2593, %v2926
        %v2928 = vpop.f32.mrf.mxu0
        %2929 = vmatprep.mubr.f32.mxu0 0.0
        %2930 = vmatmul.mubr.f32.gmra.mxu0 %v2562
        %v2931 = vpop.f32.mrf.mxu0
        %v2932 = vadd.f32 %v2593, %v2931
        %v2933 = vpop.f32.mrf.mxu0
        %2934 = vmatprep.mubr.f32.mxu0 0.0
        %2935 = vmatmul.mubr.f32.gmra.mxu0 %v2563
        %v2936 = vpop.f32.mrf.mxu0
        %v2937 = vadd.f32 %v2593, %v2936
        %v2938 = vpop.f32.mrf.mxu0
        %2939 = vmatprep.mubr.f32.mxu0 0.0
        %2940 = vmatmul.mubr.f32.gmra.mxu0 %v2564
        %v2941 = vpop.f32.mrf.mxu0
        %v2942 = vadd.f32 %v2593, %v2941
        %v2943 = vpop.f32.mrf.mxu0
        %2944 = vmatprep.mubr.f32.mxu0 0.0
        %2945 = vmatmul.mubr.f32.gmra.mxu0 %v2565
        %v2946 = vpop.f32.mrf.mxu0
        %v2947 = vadd.f32 %v2593, %v2946
        %v2948 = vpop.f32.mrf.mxu0
        %2949 = vmatprep.mubr.f32.mxu0 0.0
        %2950 = vmatmul.mubr.f32.gmra.mxu0 %v2566
        %v2951 = vpop.f32.mrf.mxu0
        %v2952 = vadd.f32 %v2593, %v2951
        %v2953 = vpop.f32.mrf.mxu0
        %2954 = vmatprep.mubr.f32.mxu0 0.0
        %2955 = vmatmul.mubr.f32.gmra.mxu0 %v2567
        %v2956 = vpop.f32.mrf.mxu0
        %v2957 = vadd.f32 %v2593, %v2956
        %v2958 = vpop.f32.mrf.mxu0
        %2959 = vmatprep.mubr.f32.mxu0 0.0
        %2960 = vmatmul.mubr.f32.gmra.mxu0 %v2568
        %v2961 = vpop.f32.mrf.mxu0
        %v2962 = vadd.f32 %v2593, %v2961
        %v2963 = vpop.f32.mrf.mxu0
        %2964 = vmatprep.mubr.f32.mxu0 0.0
        %2965 = vmatmul.mubr.f32.gmra.mxu0 %v2569
        %v2966 = vpop.f32.mrf.mxu0
        %v2967 = vadd.f32 %v2593, %v2966
        %v2968 = vpop.f32.mrf.mxu0
        %2969 = vmatprep.mubr.f32.mxu0 0.0
        %2970 = vmatmul.mubr.f32.gmra.mxu0 %v2570
        %v2971 = vpop.f32.mrf.mxu0
        %v2972 = vadd.f32 %v2593, %v2971
        %v2973 = vpop.f32.mrf.mxu0
        %2974 = vmatprep.mubr.f32.mxu0 0.0
        %2975 = vmatmul.mubr.f32.gmra.mxu0 %v2571
        %v2976 = vpop.f32.mrf.mxu0
        %v2977 = vadd.f32 %v2593, %v2976
        %v2978 = vpop.f32.mrf.mxu0
        %2979 = vdwg.mxu0
        %v2980 = vmax.f32 %v2662, 0.0
        %v2981 = vmax.f32 %v2667, 0.0
        %v2982 = vmax.f32 %v2672, 0.0
        %v2983 = vmax.f32 %v2677, 0.0
        %v2984 = vmax.f32 %v2682, 0.0
        %v2985 = vmax.f32 %v2687, 0.0
        %v2986 = vmax.f32 %v2692, 0.0
        %v2987 = vmax.f32 %v2697, 0.0
        %v2988 = vmax.f32 %v2702, 0.0
        %v2989 = vmax.f32 %v2707, 0.0
        %v2990 = vmax.f32 %v2712, 0.0
        %v2991 = vmax.f32 %v2717, 0.0
        %v2992 = vmax.f32 %v2722, 0.0
        %v2993 = vmax.f32 %v2727, 0.0
        %v2994 = vmax.f32 %v2732, 0.0
        %v2995 = vmax.f32 %v2737, 0.0
        %v2996 = vmax.f32 %v2742, 0.0
        %v2997 = vmax.f32 %v2747, 0.0
        %v2998 = vmax.f32 %v2752, 0.0
        %v2999 = vmax.f32 %v2757, 0.0
        %v3000 = vmax.f32 %v2762, 0.0
        %v3001 = vmax.f32 %v2767, 0.0
        %v3002 = vmax.f32 %v2772, 0.0
        %v3003 = vmax.f32 %v2777, 0.0
        %v3004 = vmax.f32 %v2782, 0.0
        %v3005 = vmax.f32 %v2787, 0.0
        %v3006 = vmax.f32 %v2792, 0.0
        %v3007 = vmax.f32 %v2797, 0.0
        %v3008 = vmax.f32 %v2802, 0.0
        %v3009 = vmax.f32 %v2807, 0.0
        %v3010 = vmax.f32 %v2812, 0.0
        %v3011 = vmax.f32 %v2817, 0.0
        %v3012 = vmax.f32 %v2822, 0.0
        %v3013 = vmax.f32 %v2827, 0.0
        %v3014 = vmax.f32 %v2832, 0.0
        %v3015 = vmax.f32 %v2837, 0.0
        %v3016 = vmax.f32 %v2842, 0.0
        %v3017 = vmax.f32 %v2847, 0.0
        %v3018 = vmax.f32 %v2852, 0.0
        %v3019 = vmax.f32 %v2857, 0.0
        %v3020 = vmax.f32 %v2862, 0.0
        %v3021 = vmax.f32 %v2867, 0.0
        %v3022 = vmax.f32 %v2872, 0.0
        %v3023 = vmax.f32 %v2877, 0.0
        %v3024 = vmax.f32 %v2882, 0.0
        %v3025 = vmax.f32 %v2887, 0.0
        %v3026 = vmax.f32 %v2892, 0.0
        %v3027 = vmax.f32 %v2897, 0.0
        %v3028 = vmax.f32 %v2902, 0.0
        %v3029 = vmax.f32 %v2907, 0.0
        %v3030 = vmax.f32 %v2912, 0.0
        %v3031 = vmax.f32 %v2917, 0.0
        %v3032 = vmax.f32 %v2922, 0.0
        %v3033 = vmax.f32 %v2927, 0.0
        %v3034 = vmax.f32 %v2932, 0.0
        %v3035 = vmax.f32 %v2937, 0.0
        %v3036 = vmax.f32 %v2942, 0.0
        %v3037 = vmax.f32 %v2947, 0.0
        %v3038 = vmax.f32 %v2952, 0.0
        %v3039 = vmax.f32 %v2957, 0.0
        %v3040 = vmax.f32 %v2962, 0.0
        %v3041 = vmax.f32 %v2967, 0.0
        %v3042 = vmax.f32 %v2972, 0.0
        %v3043 = vmax.f32 %v2977, 0.0
        %v3044 = vmin.f32 %v2980, 6.0
        %v3045 = vmin.f32 %v2981, 6.0
        %v3046 = vmin.f32 %v2982, 6.0
        %v3047 = vmin.f32 %v2983, 6.0
        %v3048 = vmin.f32 %v2984, 6.0
        %v3049 = vmin.f32 %v2985, 6.0
        %v3050 = vmin.f32 %v2986, 6.0
        %v3051 = vmin.f32 %v2987, 6.0
        %v3052 = vmin.f32 %v2988, 6.0
        %v3053 = vmin.f32 %v2989, 6.0
        %v3054 = vmin.f32 %v2990, 6.0
        %v3055 = vmin.f32 %v2991, 6.0
        %v3056 = vmin.f32 %v2992, 6.0
        %v3057 = vmin.f32 %v2993, 6.0
        %v3058 = vmin.f32 %v2994, 6.0
        %v3059 = vmin.f32 %v2995, 6.0
        %v3060 = vmin.f32 %v2996, 6.0
        %v3061 = vmin.f32 %v2997, 6.0
        %v3062 = vmin.f32 %v2998, 6.0
        %v3063 = vmin.f32 %v2999, 6.0
        %v3064 = vmin.f32 %v3000, 6.0
        %v3065 = vmin.f32 %v3001, 6.0
        %v3066 = vmin.f32 %v3002, 6.0
        %v3067 = vmin.f32 %v3003, 6.0
        %v3068 = vmin.f32 %v3004, 6.0
        %v3069 = vmin.f32 %v3005, 6.0
        %v3070 = vmin.f32 %v3006, 6.0
        %v3071 = vmin.f32 %v3007, 6.0
        %v3072 = vmin.f32 %v3008, 6.0
        %v3073 = vmin.f32 %v3009, 6.0
        %v3074 = vmin.f32 %v3010, 6.0
        %v3075 = vmin.f32 %v3011, 6.0
        %v3076 = vmin.f32 %v3012, 6.0
        %v3077 = vmin.f32 %v3013, 6.0
        %v3078 = vmin.f32 %v3014, 6.0
        %v3079 = vmin.f32 %v3015, 6.0
        %v3080 = vmin.f32 %v3016, 6.0
        %v3081 = vmin.f32 %v3017, 6.0
        %v3082 = vmin.f32 %v3018, 6.0
        %v3083 = vmin.f32 %v3019, 6.0
        %v3084 = vmin.f32 %v3020, 6.0
        %v3085 = vmin.f32 %v3021, 6.0
        %v3086 = vmin.f32 %v3022, 6.0
        %v3087 = vmin.f32 %v3023, 6.0
        %v3088 = vmin.f32 %v3024, 6.0
        %v3089 = vmin.f32 %v3025, 6.0
        %v3090 = vmin.f32 %v3026, 6.0
        %v3091 = vmin.f32 %v3027, 6.0
        %v3092 = vmin.f32 %v3028, 6.0
        %v3093 = vmin.f32 %v3029, 6.0
        %v3094 = vmin.f32 %v3030, 6.0
        %v3095 = vmin.f32 %v3031, 6.0
        %v3096 = vmin.f32 %v3032, 6.0
        %v3097 = vmin.f32 %v3033, 6.0
        %v3098 = vmin.f32 %v3034, 6.0
        %v3099 = vmin.f32 %v3035, 6.0
        %v3100 = vmin.f32 %v3036, 6.0
        %v3101 = vmin.f32 %v3037, 6.0
        %v3102 = vmin.f32 %v3038, 6.0
        %v3103 = vmin.f32 %v3039, 6.0
        %v3104 = vmin.f32 %v3040, 6.0
        %v3105 = vmin.f32 %v3041, 6.0
        %v3106 = vmin.f32 %v3042, 6.0
        %v3107 = vmin.f32 %v3043, 6.0
        // Predicated region
        $region109: #{siamese_forward.1} parent=83 // pred_check
          %p3108 = pneg %p770
        $region110: #{siamese_forward.1} parent=83 // pred_check_branch
          %3110 = sbr.rel (%p3108) target = $region112
        $region111: #{siamese_forward.1} parent=83 // pred_region
          %3111 = vst [vmem:[#allocation3] sm:$0xff] 0.0
          %3112 = vst [vmem:[#allocation3 + $0x8] sm:$0xff] 0.0
          %3113 = vst [vmem:[#allocation3 + $0x10] sm:$0x3] 0.0
          %3114 = vst [vmem:[#allocation3 + $0x1b0] sm:$0xff] 0.0
          %3115 = vst [vmem:[#allocation3 + $0x1b8] sm:$0xff] 0.0
          %3116 = vst [vmem:[#allocation3 + $0x1c0] sm:$0x3] 0.0
          %s3117 = scalar_lea.vmem [#allocation3], 408
          %3118 = vst [vmem:[%s3117] sm:$0xff] 0.0
          %3119 = vst [vmem:[%s3117 + $0x8] sm:$0xff] 0.0
          %3120 = vst [vmem:[%s3117 + $0x10] sm:$0x3] 0.0
          %3121 = vst [vmem:[%s3117 + $0x1b0] sm:$0xff] 0.0
          %3122 = vst [vmem:[%s3117 + $0x1b8] sm:$0xff] 0.0
          %3123 = vst [vmem:[%s3117 + $0x1c0] sm:$0x3] 0.0
          %s3124 = scalar_lea.vmem [#allocation3], 24
          %3125 = vst [vmem:[%s3124] sm:$0x1] 0.0
          %3126 = vst [vmem:[%s3124 + $0x18] sm:$0x1] 0.0
          %3127 = vst [vmem:[%s3124 + $0x30] sm:$0x1] 0.0
          %3128 = vst [vmem:[%s3124 + $0x48] sm:$0x1] 0.0
          %3129 = vst [vmem:[%s3124 + $0x60] sm:$0x1] 0.0
          %3130 = vst [vmem:[%s3124 + $0x78] sm:$0x1] 0.0
          %3131 = vst [vmem:[%s3124 + $0x90] sm:$0x1] 0.0
          %3132 = vst [vmem:[%s3124 + $0xa8] sm:$0x1] 0.0
          %3133 = vst [vmem:[%s3124 + $0xc0] sm:$0x1] 0.0
          %3134 = vst [vmem:[%s3124 + $0xd8] sm:$0x1] 0.0
          %3135 = vst [vmem:[%s3124 + $0xf0] sm:$0x1] 0.0
          %3136 = vst [vmem:[%s3124 + $0x108] sm:$0x1] 0.0
          %3137 = vst [vmem:[%s3124 + $0x120] sm:$0x1] 0.0
          %3138 = vst [vmem:[%s3124 + $0x138] sm:$0x1] 0.0
          %3139 = vst [vmem:[%s3124 + $0x150] sm:$0x1] 0.0
          %3140 = vst [vmem:[%s3124 + $0x168] sm:$0x1] 0.0
          %3141 = vst [vmem:[%s3124 + $0x1b0] sm:$0x1] 0.0
          %3142 = vst [vmem:[%s3124 + $0x1c8] sm:$0x1] 0.0
          %3143 = vst [vmem:[%s3124 + $0x1e0] sm:$0x1] 0.0
          %3144 = vst [vmem:[%s3124 + $0x1f8] sm:$0x1] 0.0
          %3145 = vst [vmem:[%s3124 + $0x210] sm:$0x1] 0.0
          %3146 = vst [vmem:[%s3124 + $0x228] sm:$0x1] 0.0
          %3147 = vst [vmem:[%s3124 + $0x240] sm:$0x1] 0.0
          %3148 = vst [vmem:[%s3124 + $0x258] sm:$0x1] 0.0
          %3149 = vst [vmem:[%s3124 + $0x270] sm:$0x1] 0.0
          %3150 = vst [vmem:[%s3124 + $0x288] sm:$0x1] 0.0
          %3151 = vst [vmem:[%s3124 + $0x2a0] sm:$0x1] 0.0
          %3152 = vst [vmem:[%s3124 + $0x2b8] sm:$0x1] 0.0
          %3153 = vst [vmem:[%s3124 + $0x2d0] sm:$0x1] 0.0
          %3154 = vst [vmem:[%s3124 + $0x2e8] sm:$0x1] 0.0
          %3155 = vst [vmem:[%s3124 + $0x300] sm:$0x1] 0.0
          %3156 = vst [vmem:[%s3124 + $0x318] sm:$0x1] 0.0
          %3157 = vst [vmem:[%s3124 + $0x11] sm:$0x1] 0.0
          %3158 = vst [vmem:[%s3124 + $0x29] sm:$0x1] 0.0
          %3159 = vst [vmem:[%s3124 + $0x41] sm:$0x1] 0.0
          %3160 = vst [vmem:[%s3124 + $0x59] sm:$0x1] 0.0
          %3161 = vst [vmem:[%s3124 + $0x71] sm:$0x1] 0.0
          %3162 = vst [vmem:[%s3124 + $0x89] sm:$0x1] 0.0
          %3163 = vst [vmem:[%s3124 + $0xa1] sm:$0x1] 0.0
          %3164 = vst [vmem:[%s3124 + $0xb9] sm:$0x1] 0.0
          %3165 = vst [vmem:[%s3124 + $0xd1] sm:$0x1] 0.0
          %3166 = vst [vmem:[%s3124 + $0xe9] sm:$0x1] 0.0
          %3167 = vst [vmem:[%s3124 + $0x101] sm:$0x1] 0.0
          %3168 = vst [vmem:[%s3124 + $0x119] sm:$0x1] 0.0
          %3169 = vst [vmem:[%s3124 + $0x131] sm:$0x1] 0.0
          %3170 = vst [vmem:[%s3124 + $0x149] sm:$0x1] 0.0
          %3171 = vst [vmem:[%s3124 + $0x161] sm:$0x1] 0.0
          %3172 = vst [vmem:[%s3124 + $0x179] sm:$0x1] 0.0
          %3173 = vst [vmem:[%s3124 + $0x1c1] sm:$0x1] 0.0
          %3174 = vst [vmem:[%s3124 + $0x1d9] sm:$0x1] 0.0
          %3175 = vst [vmem:[%s3124 + $0x1f1] sm:$0x1] 0.0
          %3176 = vst [vmem:[%s3124 + $0x209] sm:$0x1] 0.0
          %3177 = vst [vmem:[%s3124 + $0x221] sm:$0x1] 0.0
          %3178 = vst [vmem:[%s3124 + $0x239] sm:$0x1] 0.0
          %3179 = vst [vmem:[%s3124 + $0x251] sm:$0x1] 0.0
          %3180 = vst [vmem:[%s3124 + $0x269] sm:$0x1] 0.0
          %3181 = vst [vmem:[%s3124 + $0x281] sm:$0x1] 0.0
          %3182 = vst [vmem:[%s3124 + $0x299] sm:$0x1] 0.0
          %3183 = vst [vmem:[%s3124 + $0x2b1] sm:$0x1] 0.0
          %3184 = vst [vmem:[%s3124 + $0x2c9] sm:$0x1] 0.0
          %3185 = vst [vmem:[%s3124 + $0x2e1] sm:$0x1] 0.0
          %3186 = vst [vmem:[%s3124 + $0x2f9] sm:$0x1] 0.0
          %3187 = vst [vmem:[%s3124 + $0x311] sm:$0x1] 0.0
          %3188 = vst [vmem:[%s3124 + $0x329] sm:$0x1] 0.0
        $region112: #{siamese_forward.1} parent=83 // pred_fallthru
          _
        %s3189 = scalar_lea.vmem [#allocation3], 24
        %3190 = vst [vmem:[%s3189 + $0x1] sm:$0xff] %v3044
        %3191 = vst [vmem:[%s3189 + $0x9] sm:$0xff] %v3045
        %3192 = vst [vmem:[%s3189 + $0x19] sm:$0xff] %v3046
        %3193 = vst [vmem:[%s3189 + $0x21] sm:$0xff] %v3047
        %3194 = vst [vmem:[%s3189 + $0x31] sm:$0xff] %v3048
        %3195 = vst [vmem:[%s3189 + $0x39] sm:$0xff] %v3049
        %3196 = vst [vmem:[%s3189 + $0x49] sm:$0xff] %v3050
        %3197 = vst [vmem:[%s3189 + $0x51] sm:$0xff] %v3051
        %3198 = vst [vmem:[%s3189 + $0x61] sm:$0xff] %v3052
        %3199 = vst [vmem:[%s3189 + $0x69] sm:$0xff] %v3053
        %3200 = vst [vmem:[%s3189 + $0x79] sm:$0xff] %v3054
        %3201 = vst [vmem:[%s3189 + $0x81] sm:$0xff] %v3055
        %3202 = vst [vmem:[%s3189 + $0x91] sm:$0xff] %v3056
        %3203 = vst [vmem:[%s3189 + $0x99] sm:$0xff] %v3057
        %3204 = vst [vmem:[%s3189 + $0xa9] sm:$0xff] %v3058
        %3205 = vst [vmem:[%s3189 + $0xb1] sm:$0xff] %v3059
        %3206 = vst [vmem:[%s3189 + $0xc1] sm:$0xff] %v3060
        %3207 = vst [vmem:[%s3189 + $0xc9] sm:$0xff] %v3061
        %3208 = vst [vmem:[%s3189 + $0xd9] sm:$0xff] %v3062
        %3209 = vst [vmem:[%s3189 + $0xe1] sm:$0xff] %v3063
        %3210 = vst [vmem:[%s3189 + $0xf1] sm:$0xff] %v3064
        %3211 = vst [vmem:[%s3189 + $0xf9] sm:$0xff] %v3065
        %3212 = vst [vmem:[%s3189 + $0x109] sm:$0xff] %v3066
        %3213 = vst [vmem:[%s3189 + $0x111] sm:$0xff] %v3067
        %3214 = vst [vmem:[%s3189 + $0x121] sm:$0xff] %v3068
        %3215 = vst [vmem:[%s3189 + $0x129] sm:$0xff] %v3069
        %3216 = vst [vmem:[%s3189 + $0x139] sm:$0xff] %v3070
        %3217 = vst [vmem:[%s3189 + $0x141] sm:$0xff] %v3071
        %3218 = vst [vmem:[%s3189 + $0x151] sm:$0xff] %v3072
        %3219 = vst [vmem:[%s3189 + $0x159] sm:$0xff] %v3073
        %3220 = vst [vmem:[%s3189 + $0x169] sm:$0xff] %v3074
        %3221 = vst [vmem:[%s3189 + $0x171] sm:$0xff] %v3075
        %3222 = vst [vmem:[%s3189 + $0x1b1] sm:$0xff] %v3076
        %3223 = vst [vmem:[%s3189 + $0x1b9] sm:$0xff] %v3077
        %3224 = vst [vmem:[%s3189 + $0x1c9] sm:$0xff] %v3078
        %3225 = vst [vmem:[%s3189 + $0x1d1] sm:$0xff] %v3079
        %3226 = vst [vmem:[%s3189 + $0x1e1] sm:$0xff] %v3080
        %3227 = vst [vmem:[%s3189 + $0x1e9] sm:$0xff] %v3081
        %3228 = vst [vmem:[%s3189 + $0x1f9] sm:$0xff] %v3082
        %3229 = vst [vmem:[%s3189 + $0x201] sm:$0xff] %v3083
        %3230 = vst [vmem:[%s3189 + $0x211] sm:$0xff] %v3084
        %3231 = vst [vmem:[%s3189 + $0x219] sm:$0xff] %v3085
        %3232 = vst [vmem:[%s3189 + $0x229] sm:$0xff] %v3086
        %3233 = vst [vmem:[%s3189 + $0x231] sm:$0xff] %v3087
        %3234 = vst [vmem:[%s3189 + $0x241] sm:$0xff] %v3088
        %3235 = vst [vmem:[%s3189 + $0x249] sm:$0xff] %v3089
        %3236 = vst [vmem:[%s3189 + $0x259] sm:$0xff] %v3090
        %3237 = vst [vmem:[%s3189 + $0x261] sm:$0xff] %v3091
        %3238 = vst [vmem:[%s3189 + $0x271] sm:$0xff] %v3092
        %3239 = vst [vmem:[%s3189 + $0x279] sm:$0xff] %v3093
        %3240 = vst [vmem:[%s3189 + $0x289] sm:$0xff] %v3094
        %3241 = vst [vmem:[%s3189 + $0x291] sm:$0xff] %v3095
        %3242 = vst [vmem:[%s3189 + $0x2a1] sm:$0xff] %v3096
        %3243 = vst [vmem:[%s3189 + $0x2a9] sm:$0xff] %v3097
        %3244 = vst [vmem:[%s3189 + $0x2b9] sm:$0xff] %v3098
        %3245 = vst [vmem:[%s3189 + $0x2c1] sm:$0xff] %v3099
        %3246 = vst [vmem:[%s3189 + $0x2d1] sm:$0xff] %v3100
        %3247 = vst [vmem:[%s3189 + $0x2d9] sm:$0xff] %v3101
        %3248 = vst [vmem:[%s3189 + $0x2e9] sm:$0xff] %v3102
        %3249 = vst [vmem:[%s3189 + $0x2f1] sm:$0xff] %v3103
        %3250 = vst [vmem:[%s3189 + $0x301] sm:$0xff] %v3104
        %3251 = vst [vmem:[%s3189 + $0x309] sm:$0xff] %v3105
        %3252 = vst [vmem:[%s3189 + $0x319] sm:$0xff] %v3106
        %3253 = vst [vmem:[%s3189 + $0x321] sm:$0xff] %v3107
        %v3254 = vld [vmem:[%s758] sm:$0xff]
        %v3255 = vld [vmem:[%s758 + $0x8] sm:$0x1]
        %v3256 = vld [vmem:[#allocation3] sm:$0xff]
        %v3257 = vld [vmem:[#allocation3 + $0x8] sm:$0xff]
        %v3258 = vld [vmem:[#allocation3 + $0x18] sm:$0xff]
        %v3259 = vld [vmem:[#allocation3 + $0x20] sm:$0xff]
        %v3260 = vld [vmem:[#allocation3 + $0x30] sm:$0xff]
        %v3261 = vld [vmem:[#allocation3 + $0x38] sm:$0xff]
        %v3262 = vld [vmem:[#allocation3 + $0x48] sm:$0xff]
        %v3263 = vld [vmem:[#allocation3 + $0x50] sm:$0xff]
        %v3264 = vld [vmem:[#allocation3 + $0x60] sm:$0xff]
        %v3265 = vld [vmem:[#allocation3 + $0x68] sm:$0xff]
        %v3266 = vld [vmem:[#allocation3 + $0x78] sm:$0xff]
        %v3267 = vld [vmem:[#allocation3 + $0x80] sm:$0xff]
        %v3268 = vld [vmem:[#allocation3 + $0x90] sm:$0xff]
        %v3269 = vld [vmem:[#allocation3 + $0x98] sm:$0xff]
        %v3270 = vld [vmem:[#allocation3 + $0xa8] sm:$0xff]
        %v3271 = vld [vmem:[#allocation3 + $0xb0] sm:$0xff]
        %v3272 = vld [vmem:[#allocation3 + $0xc0] sm:$0xff]
        %v3273 = vld [vmem:[#allocation3 + $0xc8] sm:$0xff]
        %v3274 = vld [vmem:[#allocation3 + $0xd8] sm:$0xff]
        %v3275 = vld [vmem:[#allocation3 + $0xe0] sm:$0xff]
        %v3276 = vld [vmem:[#allocation3 + $0xf0] sm:$0xff]
        %v3277 = vld [vmem:[#allocation3 + $0xf8] sm:$0xff]
        %v3278 = vld [vmem:[#allocation3 + $0x108] sm:$0xff]
        %v3279 = vld [vmem:[#allocation3 + $0x110] sm:$0xff]
        %v3280 = vld [vmem:[#allocation3 + $0x120] sm:$0xff]
        %v3281 = vld [vmem:[#allocation3 + $0x128] sm:$0xff]
        %v3282 = vld [vmem:[#allocation3 + $0x138] sm:$0xff]
        %v3283 = vld [vmem:[#allocation3 + $0x140] sm:$0xff]
        %v3284 = vld [vmem:[#allocation3 + $0x150] sm:$0xff]
        %v3285 = vld [vmem:[#allocation3 + $0x158] sm:$0xff]
        %v3286 = vld [vmem:[#allocation3 + $0x168] sm:$0xff]
        %v3287 = vld [vmem:[#allocation3 + $0x170] sm:$0xff]
        %v3288 = vld [vmem:[#allocation3 + $0x1b0] sm:$0xff]
        %v3289 = vld [vmem:[#allocation3 + $0x1b8] sm:$0xff]
        %v3290 = vld [vmem:[#allocation3 + $0x1c8] sm:$0xff]
        %v3291 = vld [vmem:[#allocation3 + $0x1d0] sm:$0xff]
        %v3292 = vld [vmem:[#allocation3 + $0x1e0] sm:$0xff]
        %v3293 = vld [vmem:[#allocation3 + $0x1e8] sm:$0xff]
        %v3294 = vld [vmem:[#allocation3 + $0x1f8] sm:$0xff]
        %v3295 = vld [vmem:[#allocation3 + $0x200] sm:$0xff]
        %v3296 = vld [vmem:[#allocation3 + $0x210] sm:$0xff]
        %v3297 = vld [vmem:[#allocation3 + $0x218] sm:$0xff]
        %v3298 = vld [vmem:[#allocation3 + $0x228] sm:$0xff]
        %v3299 = vld [vmem:[#allocation3 + $0x230] sm:$0xff]
        %v3300 = vld [vmem:[#allocation3 + $0x240] sm:$0xff]
        %v3301 = vld [vmem:[#allocation3 + $0x248] sm:$0xff]
        %v3302 = vld [vmem:[#allocation3 + $0x258] sm:$0xff]
        %v3303 = vld [vmem:[#allocation3 + $0x260] sm:$0xff]
        %v3304 = vld [vmem:[#allocation3 + $0x270] sm:$0xff]
        %v3305 = vld [vmem:[#allocation3 + $0x278] sm:$0xff]
        %v3306 = vld [vmem:[#allocation3 + $0x288] sm:$0xff]
        %v3307 = vld [vmem:[#allocation3 + $0x290] sm:$0xff]
        %v3308 = vld [vmem:[#allocation3 + $0x2a0] sm:$0xff]
        %v3309 = vld [vmem:[#allocation3 + $0x2a8] sm:$0xff]
        %v3310 = vld [vmem:[#allocation3 + $0x2b8] sm:$0xff]
        %v3311 = vld [vmem:[#allocation3 + $0x2c0] sm:$0xff]
        %v3312 = vld [vmem:[#allocation3 + $0x2d0] sm:$0xff]
        %v3313 = vld [vmem:[#allocation3 + $0x2d8] sm:$0xff]
        %v3314 = vld [vmem:[#allocation3 + $0x2e8] sm:$0xff]
        %v3315 = vld [vmem:[#allocation3 + $0x2f0] sm:$0xff]
        %v3316 = vld [vmem:[#allocation3 + $0x300] sm:$0xff]
        %v3317 = vld [vmem:[#allocation3 + $0x308] sm:$0xff]
        %v3318 = vld [vmem:[#allocation3 + $0x318] sm:$0xff]
        %v3319 = vld [vmem:[#allocation3 + $0x320] sm:$0xff]
        %v3320 = vlaneseq
        %v3321 = vshrl.u32 %v3320, 7
        %v3322 = vsub.s32 0, %v3321
        %v3323 = vrot.slane %v3254, %v3322
        %v3324 = vmul.f32 %v3256, %v3323
        %v3325 = vmul.f32 %v3257, %v3323
        %v3326 = vmul.f32 %v3258, %v3323
        %v3327 = vmul.f32 %v3259, %v3323
        %v3328 = vmul.f32 %v3260, %v3323
        %v3329 = vmul.f32 %v3261, %v3323
        %v3330 = vmul.f32 %v3262, %v3323
        %v3331 = vmul.f32 %v3263, %v3323
        %v3332 = vmul.f32 %v3264, %v3323
        %v3333 = vmul.f32 %v3265, %v3323
        %v3334 = vmul.f32 %v3266, %v3323
        %v3335 = vmul.f32 %v3267, %v3323
        %v3336 = vmul.f32 %v3268, %v3323
        %v3337 = vmul.f32 %v3269, %v3323
        %v3338 = vmul.f32 %v3270, %v3323
        %v3339 = vmul.f32 %v3271, %v3323
        %v3340 = vmul.f32 %v3272, %v3323
        %v3341 = vmul.f32 %v3273, %v3323
        %v3342 = vmul.f32 %v3274, %v3323
        %v3343 = vmul.f32 %v3275, %v3323
        %v3344 = vmul.f32 %v3276, %v3323
        %v3345 = vmul.f32 %v3277, %v3323
        %v3346 = vmul.f32 %v3278, %v3323
        %v3347 = vmul.f32 %v3279, %v3323
        %v3348 = vmul.f32 %v3280, %v3323
        %v3349 = vmul.f32 %v3281, %v3323
        %v3350 = vmul.f32 %v3282, %v3323
        %v3351 = vmul.f32 %v3283, %v3323
        %v3352 = vmul.f32 %v3284, %v3323
        %v3353 = vmul.f32 %v3285, %v3323
        %v3354 = vmul.f32 %v3286, %v3323
        %v3355 = vmul.f32 %v3287, %v3323
        %v3356 = vmul.f32 %v3288, %v3323
        %v3357 = vmul.f32 %v3289, %v3323
        %v3358 = vmul.f32 %v3290, %v3323
        %v3359 = vmul.f32 %v3291, %v3323
        %v3360 = vmul.f32 %v3292, %v3323
        %v3361 = vmul.f32 %v3293, %v3323
        %v3362 = vmul.f32 %v3294, %v3323
        %v3363 = vmul.f32 %v3295, %v3323
        %v3364 = vmul.f32 %v3296, %v3323
        %v3365 = vmul.f32 %v3297, %v3323
        %v3366 = vmul.f32 %v3298, %v3323
        %v3367 = vmul.f32 %v3299, %v3323
        %v3368 = vmul.f32 %v3300, %v3323
        %v3369 = vmul.f32 %v3301, %v3323
        %v3370 = vmul.f32 %v3302, %v3323
        %v3371 = vmul.f32 %v3303, %v3323
        %v3372 = vmul.f32 %v3304, %v3323
        %v3373 = vmul.f32 %v3305, %v3323
        %v3374 = vmul.f32 %v3306, %v3323
        %v3375 = vmul.f32 %v3307, %v3323
        %v3376 = vmul.f32 %v3308, %v3323
        %v3377 = vmul.f32 %v3309, %v3323
        %v3378 = vmul.f32 %v3310, %v3323
        %v3379 = vmul.f32 %v3311, %v3323
        %v3380 = vmul.f32 %v3312, %v3323
        %v3381 = vmul.f32 %v3313, %v3323
        %v3382 = vmul.f32 %v3314, %v3323
        %v3383 = vmul.f32 %v3315, %v3323
        %v3384 = vmul.f32 %v3316, %v3323
        %v3385 = vmul.f32 %v3317, %v3323
        %v3386 = vmul.f32 %v3318, %v3323
        %v3387 = vmul.f32 %v3319, %v3323
        %v3388 = vadd.f32 %v3324, 0.0
        %v3389 = vadd.f32 %v3325, 0.0
        %v3390 = vadd.f32 %v3326, 0.0
        %v3391 = vadd.f32 %v3327, 0.0
        %v3392 = vadd.f32 %v3328, 0.0
        %v3393 = vadd.f32 %v3329, 0.0
        %v3394 = vadd.f32 %v3330, 0.0
        %v3395 = vadd.f32 %v3331, 0.0
        %v3396 = vadd.f32 %v3332, 0.0
        %v3397 = vadd.f32 %v3333, 0.0
        %v3398 = vadd.f32 %v3334, 0.0
        %v3399 = vadd.f32 %v3335, 0.0
        %v3400 = vadd.f32 %v3336, 0.0
        %v3401 = vadd.f32 %v3337, 0.0
        %v3402 = vadd.f32 %v3338, 0.0
        %v3403 = vadd.f32 %v3339, 0.0
        %v3404 = vadd.f32 %v3340, 0.0
        %v3405 = vadd.f32 %v3341, 0.0
        %v3406 = vadd.f32 %v3342, 0.0
        %v3407 = vadd.f32 %v3343, 0.0
        %v3408 = vadd.f32 %v3344, 0.0
        %v3409 = vadd.f32 %v3345, 0.0
        %v3410 = vadd.f32 %v3346, 0.0
        %v3411 = vadd.f32 %v3347, 0.0
        %v3412 = vadd.f32 %v3348, 0.0
        %v3413 = vadd.f32 %v3349, 0.0
        %v3414 = vadd.f32 %v3350, 0.0
        %v3415 = vadd.f32 %v3351, 0.0
        %v3416 = vadd.f32 %v3352, 0.0
        %v3417 = vadd.f32 %v3353, 0.0
        %v3418 = vadd.f32 %v3354, 0.0
        %v3419 = vadd.f32 %v3355, 0.0
        %v3420 = vadd.f32 %v3356, 0.0
        %v3421 = vadd.f32 %v3357, 0.0
        %v3422 = vadd.f32 %v3358, 0.0
        %v3423 = vadd.f32 %v3359, 0.0
        %v3424 = vadd.f32 %v3360, 0.0
        %v3425 = vadd.f32 %v3361, 0.0
        %v3426 = vadd.f32 %v3362, 0.0
        %v3427 = vadd.f32 %v3363, 0.0
        %v3428 = vadd.f32 %v3364, 0.0
        %v3429 = vadd.f32 %v3365, 0.0
        %v3430 = vadd.f32 %v3366, 0.0
        %v3431 = vadd.f32 %v3367, 0.0
        %v3432 = vadd.f32 %v3368, 0.0
        %v3433 = vadd.f32 %v3369, 0.0
        %v3434 = vadd.f32 %v3370, 0.0
        %v3435 = vadd.f32 %v3371, 0.0
        %v3436 = vadd.f32 %v3372, 0.0
        %v3437 = vadd.f32 %v3373, 0.0
        %v3438 = vadd.f32 %v3374, 0.0
        %v3439 = vadd.f32 %v3375, 0.0
        %v3440 = vadd.f32 %v3376, 0.0
        %v3441 = vadd.f32 %v3377, 0.0
        %v3442 = vadd.f32 %v3378, 0.0
        %v3443 = vadd.f32 %v3379, 0.0
        %v3444 = vadd.f32 %v3380, 0.0
        %v3445 = vadd.f32 %v3381, 0.0
        %v3446 = vadd.f32 %v3382, 0.0
        %v3447 = vadd.f32 %v3383, 0.0
        %v3448 = vadd.f32 %v3384, 0.0
        %v3449 = vadd.f32 %v3385, 0.0
        %v3450 = vadd.f32 %v3386, 0.0
        %v3451 = vadd.f32 %v3387, 0.0
        %v3452 = vld [vmem:[#allocation3 + $0x1] sm:$0xff]
        %v3453 = vld [vmem:[#allocation3 + $0x9] sm:$0xff]
        %v3454 = vld [vmem:[#allocation3 + $0x19] sm:$0xff]
        %v3455 = vld [vmem:[#allocation3 + $0x21] sm:$0xff]
        %v3456 = vld [vmem:[#allocation3 + $0x31] sm:$0xff]
        %v3457 = vld [vmem:[#allocation3 + $0x39] sm:$0xff]
        %v3458 = vld [vmem:[#allocation3 + $0x49] sm:$0xff]
        %v3459 = vld [vmem:[#allocation3 + $0x51] sm:$0xff]
        %v3460 = vld [vmem:[#allocation3 + $0x61] sm:$0xff]
        %v3461 = vld [vmem:[#allocation3 + $0x69] sm:$0xff]
        %v3462 = vld [vmem:[#allocation3 + $0x79] sm:$0xff]
        %v3463 = vld [vmem:[#allocation3 + $0x81] sm:$0xff]
        %v3464 = vld [vmem:[#allocation3 + $0x91] sm:$0xff]
        %v3465 = vld [vmem:[#allocation3 + $0x99] sm:$0xff]
        %v3466 = vld [vmem:[#allocation3 + $0xa9] sm:$0xff]
        %v3467 = vld [vmem:[#allocation3 + $0xb1] sm:$0xff]
        %v3468 = vld [vmem:[#allocation3 + $0xc1] sm:$0xff]
        %v3469 = vld [vmem:[#allocation3 + $0xc9] sm:$0xff]
        %v3470 = vld [vmem:[#allocation3 + $0xd9] sm:$0xff]
        %v3471 = vld [vmem:[#allocation3 + $0xe1] sm:$0xff]
        %v3472 = vld [vmem:[#allocation3 + $0xf1] sm:$0xff]
        %v3473 = vld [vmem:[#allocation3 + $0xf9] sm:$0xff]
        %v3474 = vld [vmem:[#allocation3 + $0x109] sm:$0xff]
        %v3475 = vld [vmem:[#allocation3 + $0x111] sm:$0xff]
        %v3476 = vld [vmem:[#allocation3 + $0x121] sm:$0xff]
        %v3477 = vld [vmem:[#allocation3 + $0x129] sm:$0xff]
        %v3478 = vld [vmem:[#allocation3 + $0x139] sm:$0xff]
        %v3479 = vld [vmem:[#allocation3 + $0x141] sm:$0xff]
        %v3480 = vld [vmem:[#allocation3 + $0x151] sm:$0xff]
        %v3481 = vld [vmem:[#allocation3 + $0x159] sm:$0xff]
        %v3482 = vld [vmem:[#allocation3 + $0x169] sm:$0xff]
        %v3483 = vld [vmem:[#allocation3 + $0x171] sm:$0xff]
        %v3484 = vld [vmem:[#allocation3 + $0x1b1] sm:$0xff]
        %v3485 = vld [vmem:[#allocation3 + $0x1b9] sm:$0xff]
        %v3486 = vld [vmem:[#allocation3 + $0x1c9] sm:$0xff]
        %v3487 = vld [vmem:[#allocation3 + $0x1d1] sm:$0xff]
        %v3488 = vld [vmem:[#allocation3 + $0x1e1] sm:$0xff]
        %v3489 = vld [vmem:[#allocation3 + $0x1e9] sm:$0xff]
        %v3490 = vld [vmem:[#allocation3 + $0x1f9] sm:$0xff]
        %v3491 = vld [vmem:[#allocation3 + $0x201] sm:$0xff]
        %v3492 = vld [vmem:[#allocation3 + $0x211] sm:$0xff]
        %v3493 = vld [vmem:[#allocation3 + $0x219] sm:$0xff]
        %v3494 = vld [vmem:[#allocation3 + $0x229] sm:$0xff]
        %v3495 = vld [vmem:[#allocation3 + $0x231] sm:$0xff]
        %v3496 = vld [vmem:[#allocation3 + $0x241] sm:$0xff]
        %v3497 = vld [vmem:[#allocation3 + $0x249] sm:$0xff]
        %v3498 = vld [vmem:[#allocation3 + $0x259] sm:$0xff]
        %v3499 = vld [vmem:[#allocation3 + $0x261] sm:$0xff]
        %v3500 = vld [vmem:[#allocation3 + $0x271] sm:$0xff]
        %v3501 = vld [vmem:[#allocation3 + $0x279] sm:$0xff]
        %v3502 = vld [vmem:[#allocation3 + $0x289] sm:$0xff]
        %v3503 = vld [vmem:[#allocation3 + $0x291] sm:$0xff]
        %v3504 = vld [vmem:[#allocation3 + $0x2a1] sm:$0xff]
        %v3505 = vld [vmem:[#allocation3 + $0x2a9] sm:$0xff]
        %v3506 = vld [vmem:[#allocation3 + $0x2b9] sm:$0xff]
        %v3507 = vld [vmem:[#allocation3 + $0x2c1] sm:$0xff]
        %v3508 = vld [vmem:[#allocation3 + $0x2d1] sm:$0xff]
        %v3509 = vld [vmem:[#allocation3 + $0x2d9] sm:$0xff]
        %v3510 = vld [vmem:[#allocation3 + $0x2e9] sm:$0xff]
        %v3511 = vld [vmem:[#allocation3 + $0x2f1] sm:$0xff]
        %v3512 = vld [vmem:[#allocation3 + $0x301] sm:$0xff]
        %v3513 = vld [vmem:[#allocation3 + $0x309] sm:$0xff]
        %v3514 = vld [vmem:[#allocation3 + $0x319] sm:$0xff]
        %v3515 = vld [vmem:[#allocation3 + $0x321] sm:$0xff]
        %v3516 = vlaneseq
        %v3517 = vshrl.u32 %v3516, 7
        %v3518 = vsub.s32 1, %v3517
        %v3519 = vrot.slane %v3254, %v3518
        %v3520 = vmul.f32 %v3452, %v3519
        %v3521 = vmul.f32 %v3453, %v3519
        %v3522 = vmul.f32 %v3454, %v3519
        %v3523 = vmul.f32 %v3455, %v3519
        %v3524 = vmul.f32 %v3456, %v3519
        %v3525 = vmul.f32 %v3457, %v3519
        %v3526 = vmul.f32 %v3458, %v3519
        %v3527 = vmul.f32 %v3459, %v3519
        %v3528 = vmul.f32 %v3460, %v3519
        %v3529 = vmul.f32 %v3461, %v3519
        %v3530 = vmul.f32 %v3462, %v3519
        %v3531 = vmul.f32 %v3463, %v3519
        %v3532 = vmul.f32 %v3464, %v3519
        %v3533 = vmul.f32 %v3465, %v3519
        %v3534 = vmul.f32 %v3466, %v3519
        %v3535 = vmul.f32 %v3467, %v3519
        %v3536 = vmul.f32 %v3468, %v3519
        %v3537 = vmul.f32 %v3469, %v3519
        %v3538 = vmul.f32 %v3470, %v3519
        %v3539 = vmul.f32 %v3471, %v3519
        %v3540 = vmul.f32 %v3472, %v3519
        %v3541 = vmul.f32 %v3473, %v3519
        %v3542 = vmul.f32 %v3474, %v3519
        %v3543 = vmul.f32 %v3475, %v3519
        %v3544 = vmul.f32 %v3476, %v3519
        %v3545 = vmul.f32 %v3477, %v3519
        %v3546 = vmul.f32 %v3478, %v3519
        %v3547 = vmul.f32 %v3479, %v3519
        %v3548 = vmul.f32 %v3480, %v3519
        %v3549 = vmul.f32 %v3481, %v3519
        %v3550 = vmul.f32 %v3482, %v3519
        %v3551 = vmul.f32 %v3483, %v3519
        %v3552 = vmul.f32 %v3484, %v3519
        %v3553 = vmul.f32 %v3485, %v3519
        %v3554 = vmul.f32 %v3486, %v3519
        %v3555 = vmul.f32 %v3487, %v3519
        %v3556 = vmul.f32 %v3488, %v3519
        %v3557 = vmul.f32 %v3489, %v3519
        %v3558 = vmul.f32 %v3490, %v3519
        %v3559 = vmul.f32 %v3491, %v3519
        %v3560 = vmul.f32 %v3492, %v3519
        %v3561 = vmul.f32 %v3493, %v3519
        %v3562 = vmul.f32 %v3494, %v3519
        %v3563 = vmul.f32 %v3495, %v3519
        %v3564 = vmul.f32 %v3496, %v3519
        %v3565 = vmul.f32 %v3497, %v3519
        %v3566 = vmul.f32 %v3498, %v3519
        %v3567 = vmul.f32 %v3499, %v3519
        %v3568 = vmul.f32 %v3500, %v3519
        %v3569 = vmul.f32 %v3501, %v3519
        %v3570 = vmul.f32 %v3502, %v3519
        %v3571 = vmul.f32 %v3503, %v3519
        %v3572 = vmul.f32 %v3504, %v3519
        %v3573 = vmul.f32 %v3505, %v3519
        %v3574 = vmul.f32 %v3506, %v3519
        %v3575 = vmul.f32 %v3507, %v3519
        %v3576 = vmul.f32 %v3508, %v3519
        %v3577 = vmul.f32 %v3509, %v3519
        %v3578 = vmul.f32 %v3510, %v3519
        %v3579 = vmul.f32 %v3511, %v3519
        %v3580 = vmul.f32 %v3512, %v3519
        %v3581 = vmul.f32 %v3513, %v3519
        %v3582 = vmul.f32 %v3514, %v3519
        %v3583 = vmul.f32 %v3515, %v3519
        %v3584 = vadd.f32 %v3388, %v3520
        %v3585 = vadd.f32 %v3389, %v3521
        %v3586 = vadd.f32 %v3390, %v3522
        %v3587 = vadd.f32 %v3391, %v3523
        %v3588 = vadd.f32 %v3392, %v3524
        %v3589 = vadd.f32 %v3393, %v3525
        %v3590 = vadd.f32 %v3394, %v3526
        %v3591 = vadd.f32 %v3395, %v3527
        %v3592 = vadd.f32 %v3396, %v3528
        %v3593 = vadd.f32 %v3397, %v3529
        %v3594 = vadd.f32 %v3398, %v3530
        %v3595 = vadd.f32 %v3399, %v3531
        %v3596 = vadd.f32 %v3400, %v3532
        %v3597 = vadd.f32 %v3401, %v3533
        %v3598 = vadd.f32 %v3402, %v3534
        %v3599 = vadd.f32 %v3403, %v3535
        %v3600 = vadd.f32 %v3404, %v3536
        %v3601 = vadd.f32 %v3405, %v3537
        %v3602 = vadd.f32 %v3406, %v3538
        %v3603 = vadd.f32 %v3407, %v3539
        %v3604 = vadd.f32 %v3408, %v3540
        %v3605 = vadd.f32 %v3409, %v3541
        %v3606 = vadd.f32 %v3410, %v3542
        %v3607 = vadd.f32 %v3411, %v3543
        %v3608 = vadd.f32 %v3412, %v3544
        %v3609 = vadd.f32 %v3413, %v3545
        %v3610 = vadd.f32 %v3414, %v3546
        %v3611 = vadd.f32 %v3415, %v3547
        %v3612 = vadd.f32 %v3416, %v3548
        %v3613 = vadd.f32 %v3417, %v3549
        %v3614 = vadd.f32 %v3418, %v3550
        %v3615 = vadd.f32 %v3419, %v3551
        %v3616 = vadd.f32 %v3420, %v3552
        %v3617 = vadd.f32 %v3421, %v3553
        %v3618 = vadd.f32 %v3422, %v3554
        %v3619 = vadd.f32 %v3423, %v3555
        %v3620 = vadd.f32 %v3424, %v3556
        %v3621 = vadd.f32 %v3425, %v3557
        %v3622 = vadd.f32 %v3426, %v3558
        %v3623 = vadd.f32 %v3427, %v3559
        %v3624 = vadd.f32 %v3428, %v3560
        %v3625 = vadd.f32 %v3429, %v3561
        %v3626 = vadd.f32 %v3430, %v3562
        %v3627 = vadd.f32 %v3431, %v3563
        %v3628 = vadd.f32 %v3432, %v3564
        %v3629 = vadd.f32 %v3433, %v3565
        %v3630 = vadd.f32 %v3434, %v3566
        %v3631 = vadd.f32 %v3435, %v3567
        %v3632 = vadd.f32 %v3436, %v3568
        %v3633 = vadd.f32 %v3437, %v3569
        %v3634 = vadd.f32 %v3438, %v3570
        %v3635 = vadd.f32 %v3439, %v3571
        %v3636 = vadd.f32 %v3440, %v3572
        %v3637 = vadd.f32 %v3441, %v3573
        %v3638 = vadd.f32 %v3442, %v3574
        %v3639 = vadd.f32 %v3443, %v3575
        %v3640 = vadd.f32 %v3444, %v3576
        %v3641 = vadd.f32 %v3445, %v3577
        %v3642 = vadd.f32 %v3446, %v3578
        %v3643 = vadd.f32 %v3447, %v3579
        %v3644 = vadd.f32 %v3448, %v3580
        %v3645 = vadd.f32 %v3449, %v3581
        %v3646 = vadd.f32 %v3450, %v3582
        %v3647 = vadd.f32 %v3451, %v3583
        %v3648 = vld [vmem:[#allocation3 + $0x2] sm:$0xff]
        %v3649 = vld [vmem:[#allocation3 + $0xa] sm:$0xff]
        %v3650 = vld [vmem:[#allocation3 + $0x1a] sm:$0xff]
        %v3651 = vld [vmem:[#allocation3 + $0x22] sm:$0xff]
        %v3652 = vld [vmem:[#allocation3 + $0x32] sm:$0xff]
        %v3653 = vld [vmem:[#allocation3 + $0x3a] sm:$0xff]
        %v3654 = vld [vmem:[#allocation3 + $0x4a] sm:$0xff]
        %v3655 = vld [vmem:[#allocation3 + $0x52] sm:$0xff]
        %v3656 = vld [vmem:[#allocation3 + $0x62] sm:$0xff]
        %v3657 = vld [vmem:[#allocation3 + $0x6a] sm:$0xff]
        %v3658 = vld [vmem:[#allocation3 + $0x7a] sm:$0xff]
        %v3659 = vld [vmem:[#allocation3 + $0x82] sm:$0xff]
        %v3660 = vld [vmem:[#allocation3 + $0x92] sm:$0xff]
        %v3661 = vld [vmem:[#allocation3 + $0x9a] sm:$0xff]
        %v3662 = vld [vmem:[#allocation3 + $0xaa] sm:$0xff]
        %v3663 = vld [vmem:[#allocation3 + $0xb2] sm:$0xff]
        %v3664 = vld [vmem:[#allocation3 + $0xc2] sm:$0xff]
        %v3665 = vld [vmem:[#allocation3 + $0xca] sm:$0xff]
        %v3666 = vld [vmem:[#allocation3 + $0xda] sm:$0xff]
        %v3667 = vld [vmem:[#allocation3 + $0xe2] sm:$0xff]
        %v3668 = vld [vmem:[#allocation3 + $0xf2] sm:$0xff]
        %v3669 = vld [vmem:[#allocation3 + $0xfa] sm:$0xff]
        %v3670 = vld [vmem:[#allocation3 + $0x10a] sm:$0xff]
        %v3671 = vld [vmem:[#allocation3 + $0x112] sm:$0xff]
        %v3672 = vld [vmem:[#allocation3 + $0x122] sm:$0xff]
        %v3673 = vld [vmem:[#allocation3 + $0x12a] sm:$0xff]
        %v3674 = vld [vmem:[#allocation3 + $0x13a] sm:$0xff]
        %v3675 = vld [vmem:[#allocation3 + $0x142] sm:$0xff]
        %v3676 = vld [vmem:[#allocation3 + $0x152] sm:$0xff]
        %v3677 = vld [vmem:[#allocation3 + $0x15a] sm:$0xff]
        %v3678 = vld [vmem:[#allocation3 + $0x16a] sm:$0xff]
        %v3679 = vld [vmem:[#allocation3 + $0x172] sm:$0xff]
        %v3680 = vld [vmem:[#allocation3 + $0x1b2] sm:$0xff]
        %v3681 = vld [vmem:[#allocation3 + $0x1ba] sm:$0xff]
        %v3682 = vld [vmem:[#allocation3 + $0x1ca] sm:$0xff]
        %v3683 = vld [vmem:[#allocation3 + $0x1d2] sm:$0xff]
        %v3684 = vld [vmem:[#allocation3 + $0x1e2] sm:$0xff]
        %v3685 = vld [vmem:[#allocation3 + $0x1ea] sm:$0xff]
        %v3686 = vld [vmem:[#allocation3 + $0x1fa] sm:$0xff]
        %v3687 = vld [vmem:[#allocation3 + $0x202] sm:$0xff]
        %v3688 = vld [vmem:[#allocation3 + $0x212] sm:$0xff]
        %v3689 = vld [vmem:[#allocation3 + $0x21a] sm:$0xff]
        %v3690 = vld [vmem:[#allocation3 + $0x22a] sm:$0xff]
        %v3691 = vld [vmem:[#allocation3 + $0x232] sm:$0xff]
        %v3692 = vld [vmem:[#allocation3 + $0x242] sm:$0xff]
        %v3693 = vld [vmem:[#allocation3 + $0x24a] sm:$0xff]
        %v3694 = vld [vmem:[#allocation3 + $0x25a] sm:$0xff]
        %v3695 = vld [vmem:[#allocation3 + $0x262] sm:$0xff]
        %v3696 = vld [vmem:[#allocation3 + $0x272] sm:$0xff]
        %v3697 = vld [vmem:[#allocation3 + $0x27a] sm:$0xff]
        %v3698 = vld [vmem:[#allocation3 + $0x28a] sm:$0xff]
        %v3699 = vld [vmem:[#allocation3 + $0x292] sm:$0xff]
        %v3700 = vld [vmem:[#allocation3 + $0x2a2] sm:$0xff]
        %v3701 = vld [vmem:[#allocation3 + $0x2aa] sm:$0xff]
        %v3702 = vld [vmem:[#allocation3 + $0x2ba] sm:$0xff]
        %v3703 = vld [vmem:[#allocation3 + $0x2c2] sm:$0xff]
        %v3704 = vld [vmem:[#allocation3 + $0x2d2] sm:$0xff]
        %v3705 = vld [vmem:[#allocation3 + $0x2da] sm:$0xff]
        %v3706 = vld [vmem:[#allocation3 + $0x2ea] sm:$0xff]
        %v3707 = vld [vmem:[#allocation3 + $0x2f2] sm:$0xff]
        %v3708 = vld [vmem:[#allocation3 + $0x302] sm:$0xff]
        %v3709 = vld [vmem:[#allocation3 + $0x30a] sm:$0xff]
        %v3710 = vld [vmem:[#allocation3 + $0x31a] sm:$0xff]
        %v3711 = vld [vmem:[#allocation3 + $0x322] sm:$0xff]
        %v3712 = vlaneseq
        %v3713 = vshrl.u32 %v3712, 7
        %v3714 = vsub.s32 2, %v3713
        %v3715 = vrot.slane %v3254, %v3714
        %v3716 = vmul.f32 %v3648, %v3715
        %v3717 = vmul.f32 %v3649, %v3715
        %v3718 = vmul.f32 %v3650, %v3715
        %v3719 = vmul.f32 %v3651, %v3715
        %v3720 = vmul.f32 %v3652, %v3715
        %v3721 = vmul.f32 %v3653, %v3715
        %v3722 = vmul.f32 %v3654, %v3715
        %v3723 = vmul.f32 %v3655, %v3715
        %v3724 = vmul.f32 %v3656, %v3715
        %v3725 = vmul.f32 %v3657, %v3715
        %v3726 = vmul.f32 %v3658, %v3715
        %v3727 = vmul.f32 %v3659, %v3715
        %v3728 = vmul.f32 %v3660, %v3715
        %v3729 = vmul.f32 %v3661, %v3715
        %v3730 = vmul.f32 %v3662, %v3715
        %v3731 = vmul.f32 %v3663, %v3715
        %v3732 = vmul.f32 %v3664, %v3715
        %v3733 = vmul.f32 %v3665, %v3715
        %v3734 = vmul.f32 %v3666, %v3715
        %v3735 = vmul.f32 %v3667, %v3715
        %v3736 = vmul.f32 %v3668, %v3715
        %v3737 = vmul.f32 %v3669, %v3715
        %v3738 = vmul.f32 %v3670, %v3715
        %v3739 = vmul.f32 %v3671, %v3715
        %v3740 = vmul.f32 %v3672, %v3715
        %v3741 = vmul.f32 %v3673, %v3715
        %v3742 = vmul.f32 %v3674, %v3715
        %v3743 = vmul.f32 %v3675, %v3715
        %v3744 = vmul.f32 %v3676, %v3715
        %v3745 = vmul.f32 %v3677, %v3715
        %v3746 = vmul.f32 %v3678, %v3715
        %v3747 = vmul.f32 %v3679, %v3715
        %v3748 = vmul.f32 %v3680, %v3715
        %v3749 = vmul.f32 %v3681, %v3715
        %v3750 = vmul.f32 %v3682, %v3715
        %v3751 = vmul.f32 %v3683, %v3715
        %v3752 = vmul.f32 %v3684, %v3715
        %v3753 = vmul.f32 %v3685, %v3715
        %v3754 = vmul.f32 %v3686, %v3715
        %v3755 = vmul.f32 %v3687, %v3715
        %v3756 = vmul.f32 %v3688, %v3715
        %v3757 = vmul.f32 %v3689, %v3715
        %v3758 = vmul.f32 %v3690, %v3715
        %v3759 = vmul.f32 %v3691, %v3715
        %v3760 = vmul.f32 %v3692, %v3715
        %v3761 = vmul.f32 %v3693, %v3715
        %v3762 = vmul.f32 %v3694, %v3715
        %v3763 = vmul.f32 %v3695, %v3715
        %v3764 = vmul.f32 %v3696, %v3715
        %v3765 = vmul.f32 %v3697, %v3715
        %v3766 = vmul.f32 %v3698, %v3715
        %v3767 = vmul.f32 %v3699, %v3715
        %v3768 = vmul.f32 %v3700, %v3715
        %v3769 = vmul.f32 %v3701, %v3715
        %v3770 = vmul.f32 %v3702, %v3715
        %v3771 = vmul.f32 %v3703, %v3715
        %v3772 = vmul.f32 %v3704, %v3715
        %v3773 = vmul.f32 %v3705, %v3715
        %v3774 = vmul.f32 %v3706, %v3715
        %v3775 = vmul.f32 %v3707, %v3715
        %v3776 = vmul.f32 %v3708, %v3715
        %v3777 = vmul.f32 %v3709, %v3715
        %v3778 = vmul.f32 %v3710, %v3715
        %v3779 = vmul.f32 %v3711, %v3715
        %v3780 = vadd.f32 %v3584, %v3716
        %v3781 = vadd.f32 %v3585, %v3717
        %v3782 = vadd.f32 %v3586, %v3718
        %v3783 = vadd.f32 %v3587, %v3719
        %v3784 = vadd.f32 %v3588, %v3720
        %v3785 = vadd.f32 %v3589, %v3721
        %v3786 = vadd.f32 %v3590, %v3722
        %v3787 = vadd.f32 %v3591, %v3723
        %v3788 = vadd.f32 %v3592, %v3724
        %v3789 = vadd.f32 %v3593, %v3725
        %v3790 = vadd.f32 %v3594, %v3726
        %v3791 = vadd.f32 %v3595, %v3727
        %v3792 = vadd.f32 %v3596, %v3728
        %v3793 = vadd.f32 %v3597, %v3729
        %v3794 = vadd.f32 %v3598, %v3730
        %v3795 = vadd.f32 %v3599, %v3731
        %v3796 = vadd.f32 %v3600, %v3732
        %v3797 = vadd.f32 %v3601, %v3733
        %v3798 = vadd.f32 %v3602, %v3734
        %v3799 = vadd.f32 %v3603, %v3735
        %v3800 = vadd.f32 %v3604, %v3736
        %v3801 = vadd.f32 %v3605, %v3737
        %v3802 = vadd.f32 %v3606, %v3738
        %v3803 = vadd.f32 %v3607, %v3739
        %v3804 = vadd.f32 %v3608, %v3740
        %v3805 = vadd.f32 %v3609, %v3741
        %v3806 = vadd.f32 %v3610, %v3742
        %v3807 = vadd.f32 %v3611, %v3743
        %v3808 = vadd.f32 %v3612, %v3744
        %v3809 = vadd.f32 %v3613, %v3745
        %v3810 = vadd.f32 %v3614, %v3746
        %v3811 = vadd.f32 %v3615, %v3747
        %v3812 = vadd.f32 %v3616, %v3748
        %v3813 = vadd.f32 %v3617, %v3749
        %v3814 = vadd.f32 %v3618, %v3750
        %v3815 = vadd.f32 %v3619, %v3751
        %v3816 = vadd.f32 %v3620, %v3752
        %v3817 = vadd.f32 %v3621, %v3753
        %v3818 = vadd.f32 %v3622, %v3754
        %v3819 = vadd.f32 %v3623, %v3755
        %v3820 = vadd.f32 %v3624, %v3756
        %v3821 = vadd.f32 %v3625, %v3757
        %v3822 = vadd.f32 %v3626, %v3758
        %v3823 = vadd.f32 %v3627, %v3759
        %v3824 = vadd.f32 %v3628, %v3760
        %v3825 = vadd.f32 %v3629, %v3761
        %v3826 = vadd.f32 %v3630, %v3762
        %v3827 = vadd.f32 %v3631, %v3763
        %v3828 = vadd.f32 %v3632, %v3764
        %v3829 = vadd.f32 %v3633, %v3765
        %v3830 = vadd.f32 %v3634, %v3766
        %v3831 = vadd.f32 %v3635, %v3767
        %v3832 = vadd.f32 %v3636, %v3768
        %v3833 = vadd.f32 %v3637, %v3769
        %v3834 = vadd.f32 %v3638, %v3770
        %v3835 = vadd.f32 %v3639, %v3771
        %v3836 = vadd.f32 %v3640, %v3772
        %v3837 = vadd.f32 %v3641, %v3773
        %v3838 = vadd.f32 %v3642, %v3774
        %v3839 = vadd.f32 %v3643, %v3775
        %v3840 = vadd.f32 %v3644, %v3776
        %v3841 = vadd.f32 %v3645, %v3777
        %v3842 = vadd.f32 %v3646, %v3778
        %v3843 = vadd.f32 %v3647, %v3779
        %v3844 = vld [vmem:[%s3189] sm:$0xff]
        %v3845 = vld [vmem:[%s3189 + $0x8] sm:$0xff]
        %v3846 = vld [vmem:[%s3189 + $0x18] sm:$0xff]
        %v3847 = vld [vmem:[%s3189 + $0x20] sm:$0xff]
        %v3848 = vld [vmem:[%s3189 + $0x30] sm:$0xff]
        %v3849 = vld [vmem:[%s3189 + $0x38] sm:$0xff]
        %v3850 = vld [vmem:[%s3189 + $0x48] sm:$0xff]
        %v3851 = vld [vmem:[%s3189 + $0x50] sm:$0xff]
        %v3852 = vld [vmem:[%s3189 + $0x60] sm:$0xff]
        %v3853 = vld [vmem:[%s3189 + $0x68] sm:$0xff]
        %v3854 = vld [vmem:[%s3189 + $0x78] sm:$0xff]
        %v3855 = vld [vmem:[%s3189 + $0x80] sm:$0xff]
        %v3856 = vld [vmem:[%s3189 + $0x90] sm:$0xff]
        %v3857 = vld [vmem:[%s3189 + $0x98] sm:$0xff]
        %v3858 = vld [vmem:[%s3189 + $0xa8] sm:$0xff]
        %v3859 = vld [vmem:[%s3189 + $0xb0] sm:$0xff]
        %v3860 = vld [vmem:[%s3189 + $0xc0] sm:$0xff]
        %v3861 = vld [vmem:[%s3189 + $0xc8] sm:$0xff]
        %v3862 = vld [vmem:[%s3189 + $0xd8] sm:$0xff]
        %v3863 = vld [vmem:[%s3189 + $0xe0] sm:$0xff]
        %v3864 = vld [vmem:[%s3189 + $0xf0] sm:$0xff]
        %v3865 = vld [vmem:[%s3189 + $0xf8] sm:$0xff]
        %v3866 = vld [vmem:[%s3189 + $0x108] sm:$0xff]
        %v3867 = vld [vmem:[%s3189 + $0x110] sm:$0xff]
        %v3868 = vld [vmem:[%s3189 + $0x120] sm:$0xff]
        %v3869 = vld [vmem:[%s3189 + $0x128] sm:$0xff]
        %v3870 = vld [vmem:[%s3189 + $0x138] sm:$0xff]
        %v3871 = vld [vmem:[%s3189 + $0x140] sm:$0xff]
        %v3872 = vld [vmem:[%s3189 + $0x150] sm:$0xff]
        %v3873 = vld [vmem:[%s3189 + $0x158] sm:$0xff]
        %v3874 = vld [vmem:[%s3189 + $0x168] sm:$0xff]
        %v3875 = vld [vmem:[%s3189 + $0x170] sm:$0xff]
        %v3876 = vld [vmem:[%s3189 + $0x1b0] sm:$0xff]
        %v3877 = vld [vmem:[%s3189 + $0x1b8] sm:$0xff]
        %v3878 = vld [vmem:[%s3189 + $0x1c8] sm:$0xff]
        %v3879 = vld [vmem:[%s3189 + $0x1d0] sm:$0xff]
        %v3880 = vld [vmem:[%s3189 + $0x1e0] sm:$0xff]
        %v3881 = vld [vmem:[%s3189 + $0x1e8] sm:$0xff]
        %v3882 = vld [vmem:[%s3189 + $0x1f8] sm:$0xff]
        %v3883 = vld [vmem:[%s3189 + $0x200] sm:$0xff]
        %v3884 = vld [vmem:[%s3189 + $0x210] sm:$0xff]
        %v3885 = vld [vmem:[%s3189 + $0x218] sm:$0xff]
        %v3886 = vld [vmem:[%s3189 + $0x228] sm:$0xff]
        %v3887 = vld [vmem:[%s3189 + $0x230] sm:$0xff]
        %v3888 = vld [vmem:[%s3189 + $0x240] sm:$0xff]
        %v3889 = vld [vmem:[%s3189 + $0x248] sm:$0xff]
        %v3890 = vld [vmem:[%s3189 + $0x258] sm:$0xff]
        %v3891 = vld [vmem:[%s3189 + $0x260] sm:$0xff]
        %v3892 = vld [vmem:[%s3189 + $0x270] sm:$0xff]
        %v3893 = vld [vmem:[%s3189 + $0x278] sm:$0xff]
        %v3894 = vld [vmem:[%s3189 + $0x288] sm:$0xff]
        %v3895 = vld [vmem:[%s3189 + $0x290] sm:$0xff]
        %v3896 = vld [vmem:[%s3189 + $0x2a0] sm:$0xff]
        %v3897 = vld [vmem:[%s3189 + $0x2a8] sm:$0xff]
        %v3898 = vld [vmem:[%s3189 + $0x2b8] sm:$0xff]
        %v3899 = vld [vmem:[%s3189 + $0x2c0] sm:$0xff]
        %v3900 = vld [vmem:[%s3189 + $0x2d0] sm:$0xff]
        %v3901 = vld [vmem:[%s3189 + $0x2d8] sm:$0xff]
        %v3902 = vld [vmem:[%s3189 + $0x2e8] sm:$0xff]
        %v3903 = vld [vmem:[%s3189 + $0x2f0] sm:$0xff]
        %v3904 = vld [vmem:[%s3189 + $0x300] sm:$0xff]
        %v3905 = vld [vmem:[%s3189 + $0x308] sm:$0xff]
        %v3906 = vld [vmem:[%s3189 + $0x318] sm:$0xff]
        %v3907 = vld [vmem:[%s3189 + $0x320] sm:$0xff]
        %v3908 = vlaneseq
        %v3909 = vshrl.u32 %v3908, 7
        %v3910 = vsub.s32 3, %v3909
        %v3911 = vrot.slane %v3254, %v3910
        %v3912 = vmul.f32 %v3844, %v3911
        %v3913 = vmul.f32 %v3845, %v3911
        %v3914 = vmul.f32 %v3846, %v3911
        %v3915 = vmul.f32 %v3847, %v3911
        %v3916 = vmul.f32 %v3848, %v3911
        %v3917 = vmul.f32 %v3849, %v3911
        %v3918 = vmul.f32 %v3850, %v3911
        %v3919 = vmul.f32 %v3851, %v3911
        %v3920 = vmul.f32 %v3852, %v3911
        %v3921 = vmul.f32 %v3853, %v3911
        %v3922 = vmul.f32 %v3854, %v3911
        %v3923 = vmul.f32 %v3855, %v3911
        %v3924 = vmul.f32 %v3856, %v3911
        %v3925 = vmul.f32 %v3857, %v3911
        %v3926 = vmul.f32 %v3858, %v3911
        %v3927 = vmul.f32 %v3859, %v3911
        %v3928 = vmul.f32 %v3860, %v3911
        %v3929 = vmul.f32 %v3861, %v3911
        %v3930 = vmul.f32 %v3862, %v3911
        %v3931 = vmul.f32 %v3863, %v3911
        %v3932 = vmul.f32 %v3864, %v3911
        %v3933 = vmul.f32 %v3865, %v3911
        %v3934 = vmul.f32 %v3866, %v3911
        %v3935 = vmul.f32 %v3867, %v3911
        %v3936 = vmul.f32 %v3868, %v3911
        %v3937 = vmul.f32 %v3869, %v3911
        %v3938 = vmul.f32 %v3870, %v3911
        %v3939 = vmul.f32 %v3871, %v3911
        %v3940 = vmul.f32 %v3872, %v3911
        %v3941 = vmul.f32 %v3873, %v3911
        %v3942 = vmul.f32 %v3874, %v3911
        %v3943 = vmul.f32 %v3875, %v3911
        %v3944 = vmul.f32 %v3876, %v3911
        %v3945 = vmul.f32 %v3877, %v3911
        %v3946 = vmul.f32 %v3878, %v3911
        %v3947 = vmul.f32 %v3879, %v3911
        %v3948 = vmul.f32 %v3880, %v3911
        %v3949 = vmul.f32 %v3881, %v3911
        %v3950 = vmul.f32 %v3882, %v3911
        %v3951 = vmul.f32 %v3883, %v3911
        %v3952 = vmul.f32 %v3884, %v3911
        %v3953 = vmul.f32 %v3885, %v3911
        %v3954 = vmul.f32 %v3886, %v3911
        %v3955 = vmul.f32 %v3887, %v3911
        %v3956 = vmul.f32 %v3888, %v3911
        %v3957 = vmul.f32 %v3889, %v3911
        %v3958 = vmul.f32 %v3890, %v3911
        %v3959 = vmul.f32 %v3891, %v3911
        %v3960 = vmul.f32 %v3892, %v3911
        %v3961 = vmul.f32 %v3893, %v3911
        %v3962 = vmul.f32 %v3894, %v3911
        %v3963 = vmul.f32 %v3895, %v3911
        %v3964 = vmul.f32 %v3896, %v3911
        %v3965 = vmul.f32 %v3897, %v3911
        %v3966 = vmul.f32 %v3898, %v3911
        %v3967 = vmul.f32 %v3899, %v3911
        %v3968 = vmul.f32 %v3900, %v3911
        %v3969 = vmul.f32 %v3901, %v3911
        %v3970 = vmul.f32 %v3902, %v3911
        %v3971 = vmul.f32 %v3903, %v3911
        %v3972 = vmul.f32 %v3904, %v3911
        %v3973 = vmul.f32 %v3905, %v3911
        %v3974 = vmul.f32 %v3906, %v3911
        %v3975 = vmul.f32 %v3907, %v3911
        %v3976 = vadd.f32 %v3780, %v3912
        %v3977 = vadd.f32 %v3781, %v3913
        %v3978 = vadd.f32 %v3782, %v3914
        %v3979 = vadd.f32 %v3783, %v3915
        %v3980 = vadd.f32 %v3784, %v3916
        %v3981 = vadd.f32 %v3785, %v3917
        %v3982 = vadd.f32 %v3786, %v3918
        %v3983 = vadd.f32 %v3787, %v3919
        %v3984 = vadd.f32 %v3788, %v3920
        %v3985 = vadd.f32 %v3789, %v3921
        %v3986 = vadd.f32 %v3790, %v3922
        %v3987 = vadd.f32 %v3791, %v3923
        %v3988 = vadd.f32 %v3792, %v3924
        %v3989 = vadd.f32 %v3793, %v3925
        %v3990 = vadd.f32 %v3794, %v3926
        %v3991 = vadd.f32 %v3795, %v3927
        %v3992 = vadd.f32 %v3796, %v3928
        %v3993 = vadd.f32 %v3797, %v3929
        %v3994 = vadd.f32 %v3798, %v3930
        %v3995 = vadd.f32 %v3799, %v3931
        %v3996 = vadd.f32 %v3800, %v3932
        %v3997 = vadd.f32 %v3801, %v3933
        %v3998 = vadd.f32 %v3802, %v3934
        %v3999 = vadd.f32 %v3803, %v3935
        %v4000 = vadd.f32 %v3804, %v3936
        %v4001 = vadd.f32 %v3805, %v3937
        %v4002 = vadd.f32 %v3806, %v3938
        %v4003 = vadd.f32 %v3807, %v3939
        %v4004 = vadd.f32 %v3808, %v3940
        %v4005 = vadd.f32 %v3809, %v3941
        %v4006 = vadd.f32 %v3810, %v3942
        %v4007 = vadd.f32 %v3811, %v3943
        %v4008 = vadd.f32 %v3812, %v3944
        %v4009 = vadd.f32 %v3813, %v3945
        %v4010 = vadd.f32 %v3814, %v3946
        %v4011 = vadd.f32 %v3815, %v3947
        %v4012 = vadd.f32 %v3816, %v3948
        %v4013 = vadd.f32 %v3817, %v3949
        %v4014 = vadd.f32 %v3818, %v3950
        %v4015 = vadd.f32 %v3819, %v3951
        %v4016 = vadd.f32 %v3820, %v3952
        %v4017 = vadd.f32 %v3821, %v3953
        %v4018 = vadd.f32 %v3822, %v3954
        %v4019 = vadd.f32 %v3823, %v3955
        %v4020 = vadd.f32 %v3824, %v3956
        %v4021 = vadd.f32 %v3825, %v3957
        %v4022 = vadd.f32 %v3826, %v3958
        %v4023 = vadd.f32 %v3827, %v3959
        %v4024 = vadd.f32 %v3828, %v3960
        %v4025 = vadd.f32 %v3829, %v3961
        %v4026 = vadd.f32 %v3830, %v3962
        %v4027 = vadd.f32 %v3831, %v3963
        %v4028 = vadd.f32 %v3832, %v3964
        %v4029 = vadd.f32 %v3833, %v3965
        %v4030 = vadd.f32 %v3834, %v3966
        %v4031 = vadd.f32 %v3835, %v3967
        %v4032 = vadd.f32 %v3836, %v3968
        %v4033 = vadd.f32 %v3837, %v3969
        %v4034 = vadd.f32 %v3838, %v3970
        %v4035 = vadd.f32 %v3839, %v3971
        %v4036 = vadd.f32 %v3840, %v3972
        %v4037 = vadd.f32 %v3841, %v3973
        %v4038 = vadd.f32 %v3842, %v3974
        %v4039 = vadd.f32 %v3843, %v3975
        %v4040 = vld [vmem:[%s3189 + $0x1] sm:$0xff]
        %v4041 = vld [vmem:[%s3189 + $0x9] sm:$0xff]
        %v4042 = vld [vmem:[%s3189 + $0x19] sm:$0xff]
        %v4043 = vld [vmem:[%s3189 + $0x21] sm:$0xff]
        %v4044 = vld [vmem:[%s3189 + $0x31] sm:$0xff]
        %v4045 = vld [vmem:[%s3189 + $0x39] sm:$0xff]
        %v4046 = vld [vmem:[%s3189 + $0x49] sm:$0xff]
        %v4047 = vld [vmem:[%s3189 + $0x51] sm:$0xff]
        %v4048 = vld [vmem:[%s3189 + $0x61] sm:$0xff]
        %v4049 = vld [vmem:[%s3189 + $0x69] sm:$0xff]
        %v4050 = vld [vmem:[%s3189 + $0x79] sm:$0xff]
        %v4051 = vld [vmem:[%s3189 + $0x81] sm:$0xff]
        %v4052 = vld [vmem:[%s3189 + $0x91] sm:$0xff]
        %v4053 = vld [vmem:[%s3189 + $0x99] sm:$0xff]
        %v4054 = vld [vmem:[%s3189 + $0xa9] sm:$0xff]
        %v4055 = vld [vmem:[%s3189 + $0xb1] sm:$0xff]
        %v4056 = vld [vmem:[%s3189 + $0xc1] sm:$0xff]
        %v4057 = vld [vmem:[%s3189 + $0xc9] sm:$0xff]
        %v4058 = vld [vmem:[%s3189 + $0xd9] sm:$0xff]
        %v4059 = vld [vmem:[%s3189 + $0xe1] sm:$0xff]
        %v4060 = vld [vmem:[%s3189 + $0xf1] sm:$0xff]
        %v4061 = vld [vmem:[%s3189 + $0xf9] sm:$0xff]
        %v4062 = vld [vmem:[%s3189 + $0x109] sm:$0xff]
        %v4063 = vld [vmem:[%s3189 + $0x111] sm:$0xff]
        %v4064 = vld [vmem:[%s3189 + $0x121] sm:$0xff]
        %v4065 = vld [vmem:[%s3189 + $0x129] sm:$0xff]
        %v4066 = vld [vmem:[%s3189 + $0x139] sm:$0xff]
        %v4067 = vld [vmem:[%s3189 + $0x141] sm:$0xff]
        %v4068 = vld [vmem:[%s3189 + $0x151] sm:$0xff]
        %v4069 = vld [vmem:[%s3189 + $0x159] sm:$0xff]
        %v4070 = vld [vmem:[%s3189 + $0x169] sm:$0xff]
        %v4071 = vld [vmem:[%s3189 + $0x171] sm:$0xff]
        %v4072 = vld [vmem:[%s3189 + $0x1b1] sm:$0xff]
        %v4073 = vld [vmem:[%s3189 + $0x1b9] sm:$0xff]
        %v4074 = vld [vmem:[%s3189 + $0x1c9] sm:$0xff]
        %v4075 = vld [vmem:[%s3189 + $0x1d1] sm:$0xff]
        %v4076 = vld [vmem:[%s3189 + $0x1e1] sm:$0xff]
        %v4077 = vld [vmem:[%s3189 + $0x1e9] sm:$0xff]
        %v4078 = vld [vmem:[%s3189 + $0x1f9] sm:$0xff]
        %v4079 = vld [vmem:[%s3189 + $0x201] sm:$0xff]
        %v4080 = vld [vmem:[%s3189 + $0x211] sm:$0xff]
        %v4081 = vld [vmem:[%s3189 + $0x219] sm:$0xff]
        %v4082 = vld [vmem:[%s3189 + $0x229] sm:$0xff]
        %v4083 = vld [vmem:[%s3189 + $0x231] sm:$0xff]
        %v4084 = vld [vmem:[%s3189 + $0x241] sm:$0xff]
        %v4085 = vld [vmem:[%s3189 + $0x249] sm:$0xff]
        %v4086 = vld [vmem:[%s3189 + $0x259] sm:$0xff]
        %v4087 = vld [vmem:[%s3189 + $0x261] sm:$0xff]
        %v4088 = vld [vmem:[%s3189 + $0x271] sm:$0xff]
        %v4089 = vld [vmem:[%s3189 + $0x279] sm:$0xff]
        %v4090 = vld [vmem:[%s3189 + $0x289] sm:$0xff]
        %v4091 = vld [vmem:[%s3189 + $0x291] sm:$0xff]
        %v4092 = vld [vmem:[%s3189 + $0x2a1] sm:$0xff]
        %v4093 = vld [vmem:[%s3189 + $0x2a9] sm:$0xff]
        %v4094 = vld [vmem:[%s3189 + $0x2b9] sm:$0xff]
        %v4095 = vld [vmem:[%s3189 + $0x2c1] sm:$0xff]
        %v4096 = vld [vmem:[%s3189 + $0x2d1] sm:$0xff]
        %v4097 = vld [vmem:[%s3189 + $0x2d9] sm:$0xff]
        %v4098 = vld [vmem:[%s3189 + $0x2e9] sm:$0xff]
        %v4099 = vld [vmem:[%s3189 + $0x2f1] sm:$0xff]
        %v4100 = vld [vmem:[%s3189 + $0x301] sm:$0xff]
        %v4101 = vld [vmem:[%s3189 + $0x309] sm:$0xff]
        %v4102 = vld [vmem:[%s3189 + $0x319] sm:$0xff]
        %v4103 = vld [vmem:[%s3189 + $0x321] sm:$0xff]
        %v4104 = vlaneseq
        %v4105 = vshrl.u32 %v4104, 7
        %v4106 = vsub.s32 4, %v4105
        %v4107 = vrot.slane %v3254, %v4106
        %v4108 = vmul.f32 %v4040, %v4107
        %v4109 = vmul.f32 %v4041, %v4107
        %v4110 = vmul.f32 %v4042, %v4107
        %v4111 = vmul.f32 %v4043, %v4107
        %v4112 = vmul.f32 %v4044, %v4107
        %v4113 = vmul.f32 %v4045, %v4107
        %v4114 = vmul.f32 %v4046, %v4107
        %v4115 = vmul.f32 %v4047, %v4107
        %v4116 = vmul.f32 %v4048, %v4107
        %v4117 = vmul.f32 %v4049, %v4107
        %v4118 = vmul.f32 %v4050, %v4107
        %v4119 = vmul.f32 %v4051, %v4107
        %v4120 = vmul.f32 %v4052, %v4107
        %v4121 = vmul.f32 %v4053, %v4107
        %v4122 = vmul.f32 %v4054, %v4107
        %v4123 = vmul.f32 %v4055, %v4107
        %v4124 = vmul.f32 %v4056, %v4107
        %v4125 = vmul.f32 %v4057, %v4107
        %v4126 = vmul.f32 %v4058, %v4107
        %v4127 = vmul.f32 %v4059, %v4107
        %v4128 = vmul.f32 %v4060, %v4107
        %v4129 = vmul.f32 %v4061, %v4107
        %v4130 = vmul.f32 %v4062, %v4107
        %v4131 = vmul.f32 %v4063, %v4107
        %v4132 = vmul.f32 %v4064, %v4107
        %v4133 = vmul.f32 %v4065, %v4107
        %v4134 = vmul.f32 %v4066, %v4107
        %v4135 = vmul.f32 %v4067, %v4107
        %v4136 = vmul.f32 %v4068, %v4107
        %v4137 = vmul.f32 %v4069, %v4107
        %v4138 = vmul.f32 %v4070, %v4107
        %v4139 = vmul.f32 %v4071, %v4107
        %v4140 = vmul.f32 %v4072, %v4107
        %v4141 = vmul.f32 %v4073, %v4107
        %v4142 = vmul.f32 %v4074, %v4107
        %v4143 = vmul.f32 %v4075, %v4107
        %v4144 = vmul.f32 %v4076, %v4107
        %v4145 = vmul.f32 %v4077, %v4107
        %v4146 = vmul.f32 %v4078, %v4107
        %v4147 = vmul.f32 %v4079, %v4107
        %v4148 = vmul.f32 %v4080, %v4107
        %v4149 = vmul.f32 %v4081, %v4107
        %v4150 = vmul.f32 %v4082, %v4107
        %v4151 = vmul.f32 %v4083, %v4107
        %v4152 = vmul.f32 %v4084, %v4107
        %v4153 = vmul.f32 %v4085, %v4107
        %v4154 = vmul.f32 %v4086, %v4107
        %v4155 = vmul.f32 %v4087, %v4107
        %v4156 = vmul.f32 %v4088, %v4107
        %v4157 = vmul.f32 %v4089, %v4107
        %v4158 = vmul.f32 %v4090, %v4107
        %v4159 = vmul.f32 %v4091, %v4107
        %v4160 = vmul.f32 %v4092, %v4107
        %v4161 = vmul.f32 %v4093, %v4107
        %v4162 = vmul.f32 %v4094, %v4107
        %v4163 = vmul.f32 %v4095, %v4107
        %v4164 = vmul.f32 %v4096, %v4107
        %v4165 = vmul.f32 %v4097, %v4107
        %v4166 = vmul.f32 %v4098, %v4107
        %v4167 = vmul.f32 %v4099, %v4107
        %v4168 = vmul.f32 %v4100, %v4107
        %v4169 = vmul.f32 %v4101, %v4107
        %v4170 = vmul.f32 %v4102, %v4107
        %v4171 = vmul.f32 %v4103, %v4107
        %v4172 = vadd.f32 %v3976, %v4108
        %v4173 = vadd.f32 %v3977, %v4109
        %v4174 = vadd.f32 %v3978, %v4110
        %v4175 = vadd.f32 %v3979, %v4111
        %v4176 = vadd.f32 %v3980, %v4112
        %v4177 = vadd.f32 %v3981, %v4113
        %v4178 = vadd.f32 %v3982, %v4114
        %v4179 = vadd.f32 %v3983, %v4115
        %v4180 = vadd.f32 %v3984, %v4116
        %v4181 = vadd.f32 %v3985, %v4117
        %v4182 = vadd.f32 %v3986, %v4118
        %v4183 = vadd.f32 %v3987, %v4119
        %v4184 = vadd.f32 %v3988, %v4120
        %v4185 = vadd.f32 %v3989, %v4121
        %v4186 = vadd.f32 %v3990, %v4122
        %v4187 = vadd.f32 %v3991, %v4123
        %v4188 = vadd.f32 %v3992, %v4124
        %v4189 = vadd.f32 %v3993, %v4125
        %v4190 = vadd.f32 %v3994, %v4126
        %v4191 = vadd.f32 %v3995, %v4127
        %v4192 = vadd.f32 %v3996, %v4128
        %v4193 = vadd.f32 %v3997, %v4129
        %v4194 = vadd.f32 %v3998, %v4130
        %v4195 = vadd.f32 %v3999, %v4131
        %v4196 = vadd.f32 %v4000, %v4132
        %v4197 = vadd.f32 %v4001, %v4133
        %v4198 = vadd.f32 %v4002, %v4134
        %v4199 = vadd.f32 %v4003, %v4135
        %v4200 = vadd.f32 %v4004, %v4136
        %v4201 = vadd.f32 %v4005, %v4137
        %v4202 = vadd.f32 %v4006, %v4138
        %v4203 = vadd.f32 %v4007, %v4139
        %v4204 = vadd.f32 %v4008, %v4140
        %v4205 = vadd.f32 %v4009, %v4141
        %v4206 = vadd.f32 %v4010, %v4142
        %v4207 = vadd.f32 %v4011, %v4143
        %v4208 = vadd.f32 %v4012, %v4144
        %v4209 = vadd.f32 %v4013, %v4145
        %v4210 = vadd.f32 %v4014, %v4146
        %v4211 = vadd.f32 %v4015, %v4147
        %v4212 = vadd.f32 %v4016, %v4148
        %v4213 = vadd.f32 %v4017, %v4149
        %v4214 = vadd.f32 %v4018, %v4150
        %v4215 = vadd.f32 %v4019, %v4151
        %v4216 = vadd.f32 %v4020, %v4152
        %v4217 = vadd.f32 %v4021, %v4153
        %v4218 = vadd.f32 %v4022, %v4154
        %v4219 = vadd.f32 %v4023, %v4155
        %v4220 = vadd.f32 %v4024, %v4156
        %v4221 = vadd.f32 %v4025, %v4157
        %v4222 = vadd.f32 %v4026, %v4158
        %v4223 = vadd.f32 %v4027, %v4159
        %v4224 = vadd.f32 %v4028, %v4160
        %v4225 = vadd.f32 %v4029, %v4161
        %v4226 = vadd.f32 %v4030, %v4162
        %v4227 = vadd.f32 %v4031, %v4163
        %v4228 = vadd.f32 %v4032, %v4164
        %v4229 = vadd.f32 %v4033, %v4165
        %v4230 = vadd.f32 %v4034, %v4166
        %v4231 = vadd.f32 %v4035, %v4167
        %v4232 = vadd.f32 %v4036, %v4168
        %v4233 = vadd.f32 %v4037, %v4169
        %v4234 = vadd.f32 %v4038, %v4170
        %v4235 = vadd.f32 %v4039, %v4171
        %v4236 = vld [vmem:[%s3189 + $0x2] sm:$0xff]
        %v4237 = vld [vmem:[%s3189 + $0xa] sm:$0xff]
        %v4238 = vld [vmem:[%s3189 + $0x1a] sm:$0xff]
        %v4239 = vld [vmem:[%s3189 + $0x22] sm:$0xff]
        %v4240 = vld [vmem:[%s3189 + $0x32] sm:$0xff]
        %v4241 = vld [vmem:[%s3189 + $0x3a] sm:$0xff]
        %v4242 = vld [vmem:[%s3189 + $0x4a] sm:$0xff]
        %v4243 = vld [vmem:[%s3189 + $0x52] sm:$0xff]
        %v4244 = vld [vmem:[%s3189 + $0x62] sm:$0xff]
        %v4245 = vld [vmem:[%s3189 + $0x6a] sm:$0xff]
        %v4246 = vld [vmem:[%s3189 + $0x7a] sm:$0xff]
        %v4247 = vld [vmem:[%s3189 + $0x82] sm:$0xff]
        %v4248 = vld [vmem:[%s3189 + $0x92] sm:$0xff]
        %v4249 = vld [vmem:[%s3189 + $0x9a] sm:$0xff]
        %v4250 = vld [vmem:[%s3189 + $0xaa] sm:$0xff]
        %v4251 = vld [vmem:[%s3189 + $0xb2] sm:$0xff]
        %v4252 = vld [vmem:[%s3189 + $0xc2] sm:$0xff]
        %v4253 = vld [vmem:[%s3189 + $0xca] sm:$0xff]
        %v4254 = vld [vmem:[%s3189 + $0xda] sm:$0xff]
        %v4255 = vld [vmem:[%s3189 + $0xe2] sm:$0xff]
        %v4256 = vld [vmem:[%s3189 + $0xf2] sm:$0xff]
        %v4257 = vld [vmem:[%s3189 + $0xfa] sm:$0xff]
        %v4258 = vld [vmem:[%s3189 + $0x10a] sm:$0xff]
        %v4259 = vld [vmem:[%s3189 + $0x112] sm:$0xff]
        %v4260 = vld [vmem:[%s3189 + $0x122] sm:$0xff]
        %v4261 = vld [vmem:[%s3189 + $0x12a] sm:$0xff]
        %v4262 = vld [vmem:[%s3189 + $0x13a] sm:$0xff]
        %v4263 = vld [vmem:[%s3189 + $0x142] sm:$0xff]
        %v4264 = vld [vmem:[%s3189 + $0x152] sm:$0xff]
        %v4265 = vld [vmem:[%s3189 + $0x15a] sm:$0xff]
        %v4266 = vld [vmem:[%s3189 + $0x16a] sm:$0xff]
        %v4267 = vld [vmem:[%s3189 + $0x172] sm:$0xff]
        %v4268 = vld [vmem:[%s3189 + $0x1b2] sm:$0xff]
        %v4269 = vld [vmem:[%s3189 + $0x1ba] sm:$0xff]
        %v4270 = vld [vmem:[%s3189 + $0x1ca] sm:$0xff]
        %v4271 = vld [vmem:[%s3189 + $0x1d2] sm:$0xff]
        %v4272 = vld [vmem:[%s3189 + $0x1e2] sm:$0xff]
        %v4273 = vld [vmem:[%s3189 + $0x1ea] sm:$0xff]
        %v4274 = vld [vmem:[%s3189 + $0x1fa] sm:$0xff]
        %v4275 = vld [vmem:[%s3189 + $0x202] sm:$0xff]
        %v4276 = vld [vmem:[%s3189 + $0x212] sm:$0xff]
        %v4277 = vld [vmem:[%s3189 + $0x21a] sm:$0xff]
        %v4278 = vld [vmem:[%s3189 + $0x22a] sm:$0xff]
        %v4279 = vld [vmem:[%s3189 + $0x232] sm:$0xff]
        %v4280 = vld [vmem:[%s3189 + $0x242] sm:$0xff]
        %v4281 = vld [vmem:[%s3189 + $0x24a] sm:$0xff]
        %v4282 = vld [vmem:[%s3189 + $0x25a] sm:$0xff]
        %v4283 = vld [vmem:[%s3189 + $0x262] sm:$0xff]
        %v4284 = vld [vmem:[%s3189 + $0x272] sm:$0xff]
        %v4285 = vld [vmem:[%s3189 + $0x27a] sm:$0xff]
        %v4286 = vld [vmem:[%s3189 + $0x28a] sm:$0xff]
        %v4287 = vld [vmem:[%s3189 + $0x292] sm:$0xff]
        %v4288 = vld [vmem:[%s3189 + $0x2a2] sm:$0xff]
        %v4289 = vld [vmem:[%s3189 + $0x2aa] sm:$0xff]
        %v4290 = vld [vmem:[%s3189 + $0x2ba] sm:$0xff]
        %v4291 = vld [vmem:[%s3189 + $0x2c2] sm:$0xff]
        %v4292 = vld [vmem:[%s3189 + $0x2d2] sm:$0xff]
        %v4293 = vld [vmem:[%s3189 + $0x2da] sm:$0xff]
        %v4294 = vld [vmem:[%s3189 + $0x2ea] sm:$0xff]
        %v4295 = vld [vmem:[%s3189 + $0x2f2] sm:$0xff]
        %v4296 = vld [vmem:[%s3189 + $0x302] sm:$0xff]
        %v4297 = vld [vmem:[%s3189 + $0x30a] sm:$0xff]
        %v4298 = vld [vmem:[%s3189 + $0x31a] sm:$0xff]
        %v4299 = vld [vmem:[%s3189 + $0x322] sm:$0xff]
        %v4300 = vlaneseq
        %v4301 = vshrl.u32 %v4300, 7
        %v4302 = vsub.s32 5, %v4301
        %v4303 = vrot.slane %v3254, %v4302
        %v4304 = vmul.f32 %v4236, %v4303
        %v4305 = vmul.f32 %v4237, %v4303
        %v4306 = vmul.f32 %v4238, %v4303
        %v4307 = vmul.f32 %v4239, %v4303
        %v4308 = vmul.f32 %v4240, %v4303
        %v4309 = vmul.f32 %v4241, %v4303
        %v4310 = vmul.f32 %v4242, %v4303
        %v4311 = vmul.f32 %v4243, %v4303
        %v4312 = vmul.f32 %v4244, %v4303
        %v4313 = vmul.f32 %v4245, %v4303
        %v4314 = vmul.f32 %v4246, %v4303
        %v4315 = vmul.f32 %v4247, %v4303
        %v4316 = vmul.f32 %v4248, %v4303
        %v4317 = vmul.f32 %v4249, %v4303
        %v4318 = vmul.f32 %v4250, %v4303
        %v4319 = vmul.f32 %v4251, %v4303
        %v4320 = vmul.f32 %v4252, %v4303
        %v4321 = vmul.f32 %v4253, %v4303
        %v4322 = vmul.f32 %v4254, %v4303
        %v4323 = vmul.f32 %v4255, %v4303
        %v4324 = vmul.f32 %v4256, %v4303
        %v4325 = vmul.f32 %v4257, %v4303
        %v4326 = vmul.f32 %v4258, %v4303
        %v4327 = vmul.f32 %v4259, %v4303
        %v4328 = vmul.f32 %v4260, %v4303
        %v4329 = vmul.f32 %v4261, %v4303
        %v4330 = vmul.f32 %v4262, %v4303
        %v4331 = vmul.f32 %v4263, %v4303
        %v4332 = vmul.f32 %v4264, %v4303
        %v4333 = vmul.f32 %v4265, %v4303
        %v4334 = vmul.f32 %v4266, %v4303
        %v4335 = vmul.f32 %v4267, %v4303
        %v4336 = vmul.f32 %v4268, %v4303
        %v4337 = vmul.f32 %v4269, %v4303
        %v4338 = vmul.f32 %v4270, %v4303
        %v4339 = vmul.f32 %v4271, %v4303
        %v4340 = vmul.f32 %v4272, %v4303
        %v4341 = vmul.f32 %v4273, %v4303
        %v4342 = vmul.f32 %v4274, %v4303
        %v4343 = vmul.f32 %v4275, %v4303
        %v4344 = vmul.f32 %v4276, %v4303
        %v4345 = vmul.f32 %v4277, %v4303
        %v4346 = vmul.f32 %v4278, %v4303
        %v4347 = vmul.f32 %v4279, %v4303
        %v4348 = vmul.f32 %v4280, %v4303
        %v4349 = vmul.f32 %v4281, %v4303
        %v4350 = vmul.f32 %v4282, %v4303
        %v4351 = vmul.f32 %v4283, %v4303
        %v4352 = vmul.f32 %v4284, %v4303
        %v4353 = vmul.f32 %v4285, %v4303
        %v4354 = vmul.f32 %v4286, %v4303
        %v4355 = vmul.f32 %v4287, %v4303
        %v4356 = vmul.f32 %v4288, %v4303
        %v4357 = vmul.f32 %v4289, %v4303
        %v4358 = vmul.f32 %v4290, %v4303
        %v4359 = vmul.f32 %v4291, %v4303
        %v4360 = vmul.f32 %v4292, %v4303
        %v4361 = vmul.f32 %v4293, %v4303
        %v4362 = vmul.f32 %v4294, %v4303
        %v4363 = vmul.f32 %v4295, %v4303
        %v4364 = vmul.f32 %v4296, %v4303
        %v4365 = vmul.f32 %v4297, %v4303
        %v4366 = vmul.f32 %v4298, %v4303
        %v4367 = vmul.f32 %v4299, %v4303
        %v4368 = vadd.f32 %v4172, %v4304
        %v4369 = vadd.f32 %v4173, %v4305
        %v4370 = vadd.f32 %v4174, %v4306
        %v4371 = vadd.f32 %v4175, %v4307
        %v4372 = vadd.f32 %v4176, %v4308
        %v4373 = vadd.f32 %v4177, %v4309
        %v4374 = vadd.f32 %v4178, %v4310
        %v4375 = vadd.f32 %v4179, %v4311
        %v4376 = vadd.f32 %v4180, %v4312
        %v4377 = vadd.f32 %v4181, %v4313
        %v4378 = vadd.f32 %v4182, %v4314
        %v4379 = vadd.f32 %v4183, %v4315
        %v4380 = vadd.f32 %v4184, %v4316
        %v4381 = vadd.f32 %v4185, %v4317
        %v4382 = vadd.f32 %v4186, %v4318
        %v4383 = vadd.f32 %v4187, %v4319
        %v4384 = vadd.f32 %v4188, %v4320
        %v4385 = vadd.f32 %v4189, %v4321
        %v4386 = vadd.f32 %v4190, %v4322
        %v4387 = vadd.f32 %v4191, %v4323
        %v4388 = vadd.f32 %v4192, %v4324
        %v4389 = vadd.f32 %v4193, %v4325
        %v4390 = vadd.f32 %v4194, %v4326
        %v4391 = vadd.f32 %v4195, %v4327
        %v4392 = vadd.f32 %v4196, %v4328
        %v4393 = vadd.f32 %v4197, %v4329
        %v4394 = vadd.f32 %v4198, %v4330
        %v4395 = vadd.f32 %v4199, %v4331
        %v4396 = vadd.f32 %v4200, %v4332
        %v4397 = vadd.f32 %v4201, %v4333
        %v4398 = vadd.f32 %v4202, %v4334
        %v4399 = vadd.f32 %v4203, %v4335
        %v4400 = vadd.f32 %v4204, %v4336
        %v4401 = vadd.f32 %v4205, %v4337
        %v4402 = vadd.f32 %v4206, %v4338
        %v4403 = vadd.f32 %v4207, %v4339
        %v4404 = vadd.f32 %v4208, %v4340
        %v4405 = vadd.f32 %v4209, %v4341
        %v4406 = vadd.f32 %v4210, %v4342
        %v4407 = vadd.f32 %v4211, %v4343
        %v4408 = vadd.f32 %v4212, %v4344
        %v4409 = vadd.f32 %v4213, %v4345
        %v4410 = vadd.f32 %v4214, %v4346
        %v4411 = vadd.f32 %v4215, %v4347
        %v4412 = vadd.f32 %v4216, %v4348
        %v4413 = vadd.f32 %v4217, %v4349
        %v4414 = vadd.f32 %v4218, %v4350
        %v4415 = vadd.f32 %v4219, %v4351
        %v4416 = vadd.f32 %v4220, %v4352
        %v4417 = vadd.f32 %v4221, %v4353
        %v4418 = vadd.f32 %v4222, %v4354
        %v4419 = vadd.f32 %v4223, %v4355
        %v4420 = vadd.f32 %v4224, %v4356
        %v4421 = vadd.f32 %v4225, %v4357
        %v4422 = vadd.f32 %v4226, %v4358
        %v4423 = vadd.f32 %v4227, %v4359
        %v4424 = vadd.f32 %v4228, %v4360
        %v4425 = vadd.f32 %v4229, %v4361
        %v4426 = vadd.f32 %v4230, %v4362
        %v4427 = vadd.f32 %v4231, %v4363
        %v4428 = vadd.f32 %v4232, %v4364
        %v4429 = vadd.f32 %v4233, %v4365
        %v4430 = vadd.f32 %v4234, %v4366
        %v4431 = vadd.f32 %v4235, %v4367
        %s4432 = scalar_lea.vmem [#allocation3], 48
        %v4433 = vld [vmem:[%s4432] sm:$0xff]
        %v4434 = vld [vmem:[%s4432 + $0x8] sm:$0xff]
        %v4435 = vld [vmem:[%s4432 + $0x18] sm:$0xff]
        %v4436 = vld [vmem:[%s4432 + $0x20] sm:$0xff]
        %v4437 = vld [vmem:[%s4432 + $0x30] sm:$0xff]
        %v4438 = vld [vmem:[%s4432 + $0x38] sm:$0xff]
        %v4439 = vld [vmem:[%s4432 + $0x48] sm:$0xff]
        %v4440 = vld [vmem:[%s4432 + $0x50] sm:$0xff]
        %v4441 = vld [vmem:[%s4432 + $0x60] sm:$0xff]
        %v4442 = vld [vmem:[%s4432 + $0x68] sm:$0xff]
        %v4443 = vld [vmem:[%s4432 + $0x78] sm:$0xff]
        %v4444 = vld [vmem:[%s4432 + $0x80] sm:$0xff]
        %v4445 = vld [vmem:[%s4432 + $0x90] sm:$0xff]
        %v4446 = vld [vmem:[%s4432 + $0x98] sm:$0xff]
        %v4447 = vld [vmem:[%s4432 + $0xa8] sm:$0xff]
        %v4448 = vld [vmem:[%s4432 + $0xb0] sm:$0xff]
        %v4449 = vld [vmem:[%s4432 + $0xc0] sm:$0xff]
        %v4450 = vld [vmem:[%s4432 + $0xc8] sm:$0xff]
        %v4451 = vld [vmem:[%s4432 + $0xd8] sm:$0xff]
        %v4452 = vld [vmem:[%s4432 + $0xe0] sm:$0xff]
        %v4453 = vld [vmem:[%s4432 + $0xf0] sm:$0xff]
        %v4454 = vld [vmem:[%s4432 + $0xf8] sm:$0xff]
        %v4455 = vld [vmem:[%s4432 + $0x108] sm:$0xff]
        %v4456 = vld [vmem:[%s4432 + $0x110] sm:$0xff]
        %v4457 = vld [vmem:[%s4432 + $0x120] sm:$0xff]
        %v4458 = vld [vmem:[%s4432 + $0x128] sm:$0xff]
        %v4459 = vld [vmem:[%s4432 + $0x138] sm:$0xff]
        %v4460 = vld [vmem:[%s4432 + $0x140] sm:$0xff]
        %v4461 = vld [vmem:[%s4432 + $0x150] sm:$0xff]
        %v4462 = vld [vmem:[%s4432 + $0x158] sm:$0xff]
        %v4463 = vld [vmem:[%s4432 + $0x168] sm:$0xff]
        %v4464 = vld [vmem:[%s4432 + $0x170] sm:$0xff]
        %v4465 = vld [vmem:[%s4432 + $0x1b0] sm:$0xff]
        %v4466 = vld [vmem:[%s4432 + $0x1b8] sm:$0xff]
        %v4467 = vld [vmem:[%s4432 + $0x1c8] sm:$0xff]
        %v4468 = vld [vmem:[%s4432 + $0x1d0] sm:$0xff]
        %v4469 = vld [vmem:[%s4432 + $0x1e0] sm:$0xff]
        %v4470 = vld [vmem:[%s4432 + $0x1e8] sm:$0xff]
        %v4471 = vld [vmem:[%s4432 + $0x1f8] sm:$0xff]
        %v4472 = vld [vmem:[%s4432 + $0x200] sm:$0xff]
        %v4473 = vld [vmem:[%s4432 + $0x210] sm:$0xff]
        %v4474 = vld [vmem:[%s4432 + $0x218] sm:$0xff]
        %v4475 = vld [vmem:[%s4432 + $0x228] sm:$0xff]
        %v4476 = vld [vmem:[%s4432 + $0x230] sm:$0xff]
        %v4477 = vld [vmem:[%s4432 + $0x240] sm:$0xff]
        %v4478 = vld [vmem:[%s4432 + $0x248] sm:$0xff]
        %v4479 = vld [vmem:[%s4432 + $0x258] sm:$0xff]
        %v4480 = vld [vmem:[%s4432 + $0x260] sm:$0xff]
        %v4481 = vld [vmem:[%s4432 + $0x270] sm:$0xff]
        %v4482 = vld [vmem:[%s4432 + $0x278] sm:$0xff]
        %v4483 = vld [vmem:[%s4432 + $0x288] sm:$0xff]
        %v4484 = vld [vmem:[%s4432 + $0x290] sm:$0xff]
        %v4485 = vld [vmem:[%s4432 + $0x2a0] sm:$0xff]
        %v4486 = vld [vmem:[%s4432 + $0x2a8] sm:$0xff]
        %v4487 = vld [vmem:[%s4432 + $0x2b8] sm:$0xff]
        %v4488 = vld [vmem:[%s4432 + $0x2c0] sm:$0xff]
        %v4489 = vld [vmem:[%s4432 + $0x2d0] sm:$0xff]
        %v4490 = vld [vmem:[%s4432 + $0x2d8] sm:$0xff]
        %v4491 = vld [vmem:[%s4432 + $0x2e8] sm:$0xff]
        %v4492 = vld [vmem:[%s4432 + $0x2f0] sm:$0xff]
        %v4493 = vld [vmem:[%s4432 + $0x300] sm:$0xff]
        %v4494 = vld [vmem:[%s4432 + $0x308] sm:$0xff]
        %v4495 = vld [vmem:[%s4432 + $0x318] sm:$0xff]
        %v4496 = vld [vmem:[%s4432 + $0x320] sm:$0xff]
        %v4497 = vlaneseq
        %v4498 = vshrl.u32 %v4497, 7
        %v4499 = vsub.s32 6, %v4498
        %v4500 = vrot.slane %v3254, %v4499
        %v4501 = vmul.f32 %v4433, %v4500
        %v4502 = vmul.f32 %v4434, %v4500
        %v4503 = vmul.f32 %v4435, %v4500
        %v4504 = vmul.f32 %v4436, %v4500
        %v4505 = vmul.f32 %v4437, %v4500
        %v4506 = vmul.f32 %v4438, %v4500
        %v4507 = vmul.f32 %v4439, %v4500
        %v4508 = vmul.f32 %v4440, %v4500
        %v4509 = vmul.f32 %v4441, %v4500
        %v4510 = vmul.f32 %v4442, %v4500
        %v4511 = vmul.f32 %v4443, %v4500
        %v4512 = vmul.f32 %v4444, %v4500
        %v4513 = vmul.f32 %v4445, %v4500
        %v4514 = vmul.f32 %v4446, %v4500
        %v4515 = vmul.f32 %v4447, %v4500
        %v4516 = vmul.f32 %v4448, %v4500
        %v4517 = vmul.f32 %v4449, %v4500
        %v4518 = vmul.f32 %v4450, %v4500
        %v4519 = vmul.f32 %v4451, %v4500
        %v4520 = vmul.f32 %v4452, %v4500
        %v4521 = vmul.f32 %v4453, %v4500
        %v4522 = vmul.f32 %v4454, %v4500
        %v4523 = vmul.f32 %v4455, %v4500
        %v4524 = vmul.f32 %v4456, %v4500
        %v4525 = vmul.f32 %v4457, %v4500
        %v4526 = vmul.f32 %v4458, %v4500
        %v4527 = vmul.f32 %v4459, %v4500
        %v4528 = vmul.f32 %v4460, %v4500
        %v4529 = vmul.f32 %v4461, %v4500
        %v4530 = vmul.f32 %v4462, %v4500
        %v4531 = vmul.f32 %v4463, %v4500
        %v4532 = vmul.f32 %v4464, %v4500
        %v4533 = vmul.f32 %v4465, %v4500
        %v4534 = vmul.f32 %v4466, %v4500
        %v4535 = vmul.f32 %v4467, %v4500
        %v4536 = vmul.f32 %v4468, %v4500
        %v4537 = vmul.f32 %v4469, %v4500
        %v4538 = vmul.f32 %v4470, %v4500
        %v4539 = vmul.f32 %v4471, %v4500
        %v4540 = vmul.f32 %v4472, %v4500
        %v4541 = vmul.f32 %v4473, %v4500
        %v4542 = vmul.f32 %v4474, %v4500
        %v4543 = vmul.f32 %v4475, %v4500
        %v4544 = vmul.f32 %v4476, %v4500
        %v4545 = vmul.f32 %v4477, %v4500
        %v4546 = vmul.f32 %v4478, %v4500
        %v4547 = vmul.f32 %v4479, %v4500
        %v4548 = vmul.f32 %v4480, %v4500
        %v4549 = vmul.f32 %v4481, %v4500
        %v4550 = vmul.f32 %v4482, %v4500
        %v4551 = vmul.f32 %v4483, %v4500
        %v4552 = vmul.f32 %v4484, %v4500
        %v4553 = vmul.f32 %v4485, %v4500
        %v4554 = vmul.f32 %v4486, %v4500
        %v4555 = vmul.f32 %v4487, %v4500
        %v4556 = vmul.f32 %v4488, %v4500
        %v4557 = vmul.f32 %v4489, %v4500
        %v4558 = vmul.f32 %v4490, %v4500
        %v4559 = vmul.f32 %v4491, %v4500
        %v4560 = vmul.f32 %v4492, %v4500
        %v4561 = vmul.f32 %v4493, %v4500
        %v4562 = vmul.f32 %v4494, %v4500
        %v4563 = vmul.f32 %v4495, %v4500
        %v4564 = vmul.f32 %v4496, %v4500
        %v4565 = vadd.f32 %v4368, %v4501
        %v4566 = vadd.f32 %v4369, %v4502
        %v4567 = vadd.f32 %v4370, %v4503
        %v4568 = vadd.f32 %v4371, %v4504
        %v4569 = vadd.f32 %v4372, %v4505
        %v4570 = vadd.f32 %v4373, %v4506
        %v4571 = vadd.f32 %v4374, %v4507
        %v4572 = vadd.f32 %v4375, %v4508
        %v4573 = vadd.f32 %v4376, %v4509
        %v4574 = vadd.f32 %v4377, %v4510
        %v4575 = vadd.f32 %v4378, %v4511
        %v4576 = vadd.f32 %v4379, %v4512
        %v4577 = vadd.f32 %v4380, %v4513
        %v4578 = vadd.f32 %v4381, %v4514
        %v4579 = vadd.f32 %v4382, %v4515
        %v4580 = vadd.f32 %v4383, %v4516
        %v4581 = vadd.f32 %v4384, %v4517
        %v4582 = vadd.f32 %v4385, %v4518
        %v4583 = vadd.f32 %v4386, %v4519
        %v4584 = vadd.f32 %v4387, %v4520
        %v4585 = vadd.f32 %v4388, %v4521
        %v4586 = vadd.f32 %v4389, %v4522
        %v4587 = vadd.f32 %v4390, %v4523
        %v4588 = vadd.f32 %v4391, %v4524
        %v4589 = vadd.f32 %v4392, %v4525
        %v4590 = vadd.f32 %v4393, %v4526
        %v4591 = vadd.f32 %v4394, %v4527
        %v4592 = vadd.f32 %v4395, %v4528
        %v4593 = vadd.f32 %v4396, %v4529
        %v4594 = vadd.f32 %v4397, %v4530
        %v4595 = vadd.f32 %v4398, %v4531
        %v4596 = vadd.f32 %v4399, %v4532
        %v4597 = vadd.f32 %v4400, %v4533
        %v4598 = vadd.f32 %v4401, %v4534
        %v4599 = vadd.f32 %v4402, %v4535
        %v4600 = vadd.f32 %v4403, %v4536
        %v4601 = vadd.f32 %v4404, %v4537
        %v4602 = vadd.f32 %v4405, %v4538
        %v4603 = vadd.f32 %v4406, %v4539
        %v4604 = vadd.f32 %v4407, %v4540
        %v4605 = vadd.f32 %v4408, %v4541
        %v4606 = vadd.f32 %v4409, %v4542
        %v4607 = vadd.f32 %v4410, %v4543
        %v4608 = vadd.f32 %v4411, %v4544
        %v4609 = vadd.f32 %v4412, %v4545
        %v4610 = vadd.f32 %v4413, %v4546
        %v4611 = vadd.f32 %v4414, %v4547
        %v4612 = vadd.f32 %v4415, %v4548
        %v4613 = vadd.f32 %v4416, %v4549
        %v4614 = vadd.f32 %v4417, %v4550
        %v4615 = vadd.f32 %v4418, %v4551
        %v4616 = vadd.f32 %v4419, %v4552
        %v4617 = vadd.f32 %v4420, %v4553
        %v4618 = vadd.f32 %v4421, %v4554
        %v4619 = vadd.f32 %v4422, %v4555
        %v4620 = vadd.f32 %v4423, %v4556
        %v4621 = vadd.f32 %v4424, %v4557
        %v4622 = vadd.f32 %v4425, %v4558
        %v4623 = vadd.f32 %v4426, %v4559
        %v4624 = vadd.f32 %v4427, %v4560
        %v4625 = vadd.f32 %v4428, %v4561
        %v4626 = vadd.f32 %v4429, %v4562
        %v4627 = vadd.f32 %v4430, %v4563
        %v4628 = vadd.f32 %v4431, %v4564
        %v4629 = vld [vmem:[%s4432 + $0x1] sm:$0xff]
        %v4630 = vld [vmem:[%s4432 + $0x9] sm:$0xff]
        %v4631 = vld [vmem:[%s4432 + $0x19] sm:$0xff]
        %v4632 = vld [vmem:[%s4432 + $0x21] sm:$0xff]
        %v4633 = vld [vmem:[%s4432 + $0x31] sm:$0xff]
        %v4634 = vld [vmem:[%s4432 + $0x39] sm:$0xff]
        %v4635 = vld [vmem:[%s4432 + $0x49] sm:$0xff]
        %v4636 = vld [vmem:[%s4432 + $0x51] sm:$0xff]
        %v4637 = vld [vmem:[%s4432 + $0x61] sm:$0xff]
        %v4638 = vld [vmem:[%s4432 + $0x69] sm:$0xff]
        %v4639 = vld [vmem:[%s4432 + $0x79] sm:$0xff]
        %v4640 = vld [vmem:[%s4432 + $0x81] sm:$0xff]
        %v4641 = vld [vmem:[%s4432 + $0x91] sm:$0xff]
        %v4642 = vld [vmem:[%s4432 + $0x99] sm:$0xff]
        %v4643 = vld [vmem:[%s4432 + $0xa9] sm:$0xff]
        %v4644 = vld [vmem:[%s4432 + $0xb1] sm:$0xff]
        %v4645 = vld [vmem:[%s4432 + $0xc1] sm:$0xff]
        %v4646 = vld [vmem:[%s4432 + $0xc9] sm:$0xff]
        %v4647 = vld [vmem:[%s4432 + $0xd9] sm:$0xff]
        %v4648 = vld [vmem:[%s4432 + $0xe1] sm:$0xff]
        %v4649 = vld [vmem:[%s4432 + $0xf1] sm:$0xff]
        %v4650 = vld [vmem:[%s4432 + $0xf9] sm:$0xff]
        %v4651 = vld [vmem:[%s4432 + $0x109] sm:$0xff]
        %v4652 = vld [vmem:[%s4432 + $0x111] sm:$0xff]
        %v4653 = vld [vmem:[%s4432 + $0x121] sm:$0xff]
        %v4654 = vld [vmem:[%s4432 + $0x129] sm:$0xff]
        %v4655 = vld [vmem:[%s4432 + $0x139] sm:$0xff]
        %v4656 = vld [vmem:[%s4432 + $0x141] sm:$0xff]
        %v4657 = vld [vmem:[%s4432 + $0x151] sm:$0xff]
        %v4658 = vld [vmem:[%s4432 + $0x159] sm:$0xff]
        %v4659 = vld [vmem:[%s4432 + $0x169] sm:$0xff]
        %v4660 = vld [vmem:[%s4432 + $0x171] sm:$0xff]
        %v4661 = vld [vmem:[%s4432 + $0x1b1] sm:$0xff]
        %v4662 = vld [vmem:[%s4432 + $0x1b9] sm:$0xff]
        %v4663 = vld [vmem:[%s4432 + $0x1c9] sm:$0xff]
        %v4664 = vld [vmem:[%s4432 + $0x1d1] sm:$0xff]
        %v4665 = vld [vmem:[%s4432 + $0x1e1] sm:$0xff]
        %v4666 = vld [vmem:[%s4432 + $0x1e9] sm:$0xff]
        %v4667 = vld [vmem:[%s4432 + $0x1f9] sm:$0xff]
        %v4668 = vld [vmem:[%s4432 + $0x201] sm:$0xff]
        %v4669 = vld [vmem:[%s4432 + $0x211] sm:$0xff]
        %v4670 = vld [vmem:[%s4432 + $0x219] sm:$0xff]
        %v4671 = vld [vmem:[%s4432 + $0x229] sm:$0xff]
        %v4672 = vld [vmem:[%s4432 + $0x231] sm:$0xff]
        %v4673 = vld [vmem:[%s4432 + $0x241] sm:$0xff]
        %v4674 = vld [vmem:[%s4432 + $0x249] sm:$0xff]
        %v4675 = vld [vmem:[%s4432 + $0x259] sm:$0xff]
        %v4676 = vld [vmem:[%s4432 + $0x261] sm:$0xff]
        %v4677 = vld [vmem:[%s4432 + $0x271] sm:$0xff]
        %v4678 = vld [vmem:[%s4432 + $0x279] sm:$0xff]
        %v4679 = vld [vmem:[%s4432 + $0x289] sm:$0xff]
        %v4680 = vld [vmem:[%s4432 + $0x291] sm:$0xff]
        %v4681 = vld [vmem:[%s4432 + $0x2a1] sm:$0xff]
        %v4682 = vld [vmem:[%s4432 + $0x2a9] sm:$0xff]
        %v4683 = vld [vmem:[%s4432 + $0x2b9] sm:$0xff]
        %v4684 = vld [vmem:[%s4432 + $0x2c1] sm:$0xff]
        %v4685 = vld [vmem:[%s4432 + $0x2d1] sm:$0xff]
        %v4686 = vld [vmem:[%s4432 + $0x2d9] sm:$0xff]
        %v4687 = vld [vmem:[%s4432 + $0x2e9] sm:$0xff]
        %v4688 = vld [vmem:[%s4432 + $0x2f1] sm:$0xff]
        %v4689 = vld [vmem:[%s4432 + $0x301] sm:$0xff]
        %v4690 = vld [vmem:[%s4432 + $0x309] sm:$0xff]
        %v4691 = vld [vmem:[%s4432 + $0x319] sm:$0xff]
        %v4692 = vld [vmem:[%s4432 + $0x321] sm:$0xff]
        %v4693 = vlaneseq
        %v4694 = vshrl.u32 %v4693, 7
        %v4695 = vsub.s32 7, %v4694
        %v4696 = vrot.slane %v3254, %v4695
        %v4697 = vmul.f32 %v4629, %v4696
        %v4698 = vmul.f32 %v4630, %v4696
        %v4699 = vmul.f32 %v4631, %v4696
        %v4700 = vmul.f32 %v4632, %v4696
        %v4701 = vmul.f32 %v4633, %v4696
        %v4702 = vmul.f32 %v4634, %v4696
        %v4703 = vmul.f32 %v4635, %v4696
        %v4704 = vmul.f32 %v4636, %v4696
        %v4705 = vmul.f32 %v4637, %v4696
        %v4706 = vmul.f32 %v4638, %v4696
        %v4707 = vmul.f32 %v4639, %v4696
        %v4708 = vmul.f32 %v4640, %v4696
        %v4709 = vmul.f32 %v4641, %v4696
        %v4710 = vmul.f32 %v4642, %v4696
        %v4711 = vmul.f32 %v4643, %v4696
        %v4712 = vmul.f32 %v4644, %v4696
        %v4713 = vmul.f32 %v4645, %v4696
        %v4714 = vmul.f32 %v4646, %v4696
        %v4715 = vmul.f32 %v4647, %v4696
        %v4716 = vmul.f32 %v4648, %v4696
        %v4717 = vmul.f32 %v4649, %v4696
        %v4718 = vmul.f32 %v4650, %v4696
        %v4719 = vmul.f32 %v4651, %v4696
        %v4720 = vmul.f32 %v4652, %v4696
        %v4721 = vmul.f32 %v4653, %v4696
        %v4722 = vmul.f32 %v4654, %v4696
        %v4723 = vmul.f32 %v4655, %v4696
        %v4724 = vmul.f32 %v4656, %v4696
        %v4725 = vmul.f32 %v4657, %v4696
        %v4726 = vmul.f32 %v4658, %v4696
        %v4727 = vmul.f32 %v4659, %v4696
        %v4728 = vmul.f32 %v4660, %v4696
        %v4729 = vmul.f32 %v4661, %v4696
        %v4730 = vmul.f32 %v4662, %v4696
        %v4731 = vmul.f32 %v4663, %v4696
        %v4732 = vmul.f32 %v4664, %v4696
        %v4733 = vmul.f32 %v4665, %v4696
        %v4734 = vmul.f32 %v4666, %v4696
        %v4735 = vmul.f32 %v4667, %v4696
        %v4736 = vmul.f32 %v4668, %v4696
        %v4737 = vmul.f32 %v4669, %v4696
        %v4738 = vmul.f32 %v4670, %v4696
        %v4739 = vmul.f32 %v4671, %v4696
        %v4740 = vmul.f32 %v4672, %v4696
        %v4741 = vmul.f32 %v4673, %v4696
        %v4742 = vmul.f32 %v4674, %v4696
        %v4743 = vmul.f32 %v4675, %v4696
        %v4744 = vmul.f32 %v4676, %v4696
        %v4745 = vmul.f32 %v4677, %v4696
        %v4746 = vmul.f32 %v4678, %v4696
        %v4747 = vmul.f32 %v4679, %v4696
        %v4748 = vmul.f32 %v4680, %v4696
        %v4749 = vmul.f32 %v4681, %v4696
        %v4750 = vmul.f32 %v4682, %v4696
        %v4751 = vmul.f32 %v4683, %v4696
        %v4752 = vmul.f32 %v4684, %v4696
        %v4753 = vmul.f32 %v4685, %v4696
        %v4754 = vmul.f32 %v4686, %v4696
        %v4755 = vmul.f32 %v4687, %v4696
        %v4756 = vmul.f32 %v4688, %v4696
        %v4757 = vmul.f32 %v4689, %v4696
        %v4758 = vmul.f32 %v4690, %v4696
        %v4759 = vmul.f32 %v4691, %v4696
        %v4760 = vmul.f32 %v4692, %v4696
        %v4761 = vadd.f32 %v4565, %v4697
        %v4762 = vadd.f32 %v4566, %v4698
        %v4763 = vadd.f32 %v4567, %v4699
        %v4764 = vadd.f32 %v4568, %v4700
        %v4765 = vadd.f32 %v4569, %v4701
        %v4766 = vadd.f32 %v4570, %v4702
        %v4767 = vadd.f32 %v4571, %v4703
        %v4768 = vadd.f32 %v4572, %v4704
        %v4769 = vadd.f32 %v4573, %v4705
        %v4770 = vadd.f32 %v4574, %v4706
        %v4771 = vadd.f32 %v4575, %v4707
        %v4772 = vadd.f32 %v4576, %v4708
        %v4773 = vadd.f32 %v4577, %v4709
        %v4774 = vadd.f32 %v4578, %v4710
        %v4775 = vadd.f32 %v4579, %v4711
        %v4776 = vadd.f32 %v4580, %v4712
        %v4777 = vadd.f32 %v4581, %v4713
        %v4778 = vadd.f32 %v4582, %v4714
        %v4779 = vadd.f32 %v4583, %v4715
        %v4780 = vadd.f32 %v4584, %v4716
        %v4781 = vadd.f32 %v4585, %v4717
        %v4782 = vadd.f32 %v4586, %v4718
        %v4783 = vadd.f32 %v4587, %v4719
        %v4784 = vadd.f32 %v4588, %v4720
        %v4785 = vadd.f32 %v4589, %v4721
        %v4786 = vadd.f32 %v4590, %v4722
        %v4787 = vadd.f32 %v4591, %v4723
        %v4788 = vadd.f32 %v4592, %v4724
        %v4789 = vadd.f32 %v4593, %v4725
        %v4790 = vadd.f32 %v4594, %v4726
        %v4791 = vadd.f32 %v4595, %v4727
        %v4792 = vadd.f32 %v4596, %v4728
        %v4793 = vadd.f32 %v4597, %v4729
        %v4794 = vadd.f32 %v4598, %v4730
        %v4795 = vadd.f32 %v4599, %v4731
        %v4796 = vadd.f32 %v4600, %v4732
        %v4797 = vadd.f32 %v4601, %v4733
        %v4798 = vadd.f32 %v4602, %v4734
        %v4799 = vadd.f32 %v4603, %v4735
        %v4800 = vadd.f32 %v4604, %v4736
        %v4801 = vadd.f32 %v4605, %v4737
        %v4802 = vadd.f32 %v4606, %v4738
        %v4803 = vadd.f32 %v4607, %v4739
        %v4804 = vadd.f32 %v4608, %v4740
        %v4805 = vadd.f32 %v4609, %v4741
        %v4806 = vadd.f32 %v4610, %v4742
        %v4807 = vadd.f32 %v4611, %v4743
        %v4808 = vadd.f32 %v4612, %v4744
        %v4809 = vadd.f32 %v4613, %v4745
        %v4810 = vadd.f32 %v4614, %v4746
        %v4811 = vadd.f32 %v4615, %v4747
        %v4812 = vadd.f32 %v4616, %v4748
        %v4813 = vadd.f32 %v4617, %v4749
        %v4814 = vadd.f32 %v4618, %v4750
        %v4815 = vadd.f32 %v4619, %v4751
        %v4816 = vadd.f32 %v4620, %v4752
        %v4817 = vadd.f32 %v4621, %v4753
        %v4818 = vadd.f32 %v4622, %v4754
        %v4819 = vadd.f32 %v4623, %v4755
        %v4820 = vadd.f32 %v4624, %v4756
        %v4821 = vadd.f32 %v4625, %v4757
        %v4822 = vadd.f32 %v4626, %v4758
        %v4823 = vadd.f32 %v4627, %v4759
        %v4824 = vadd.f32 %v4628, %v4760
        %v4825 = vld [vmem:[%s4432 + $0x2] sm:$0xff]
        %v4826 = vld [vmem:[%s4432 + $0xa] sm:$0xff]
        %v4827 = vld [vmem:[%s4432 + $0x1a] sm:$0xff]
        %v4828 = vld [vmem:[%s4432 + $0x22] sm:$0xff]
        %v4829 = vld [vmem:[%s4432 + $0x32] sm:$0xff]
        %v4830 = vld [vmem:[%s4432 + $0x3a] sm:$0xff]
        %v4831 = vld [vmem:[%s4432 + $0x4a] sm:$0xff]
        %v4832 = vld [vmem:[%s4432 + $0x52] sm:$0xff]
        %v4833 = vld [vmem:[%s4432 + $0x62] sm:$0xff]
        %v4834 = vld [vmem:[%s4432 + $0x6a] sm:$0xff]
        %v4835 = vld [vmem:[%s4432 + $0x7a] sm:$0xff]
        %v4836 = vld [vmem:[%s4432 + $0x82] sm:$0xff]
        %v4837 = vld [vmem:[%s4432 + $0x92] sm:$0xff]
        %v4838 = vld [vmem:[%s4432 + $0x9a] sm:$0xff]
        %v4839 = vld [vmem:[%s4432 + $0xaa] sm:$0xff]
        %v4840 = vld [vmem:[%s4432 + $0xb2] sm:$0xff]
        %v4841 = vld [vmem:[%s4432 + $0xc2] sm:$0xff]
        %v4842 = vld [vmem:[%s4432 + $0xca] sm:$0xff]
        %v4843 = vld [vmem:[%s4432 + $0xda] sm:$0xff]
        %v4844 = vld [vmem:[%s4432 + $0xe2] sm:$0xff]
        %v4845 = vld [vmem:[%s4432 + $0xf2] sm:$0xff]
        %v4846 = vld [vmem:[%s4432 + $0xfa] sm:$0xff]
        %v4847 = vld [vmem:[%s4432 + $0x10a] sm:$0xff]
        %v4848 = vld [vmem:[%s4432 + $0x112] sm:$0xff]
        %v4849 = vld [vmem:[%s4432 + $0x122] sm:$0xff]
        %v4850 = vld [vmem:[%s4432 + $0x12a] sm:$0xff]
        %v4851 = vld [vmem:[%s4432 + $0x13a] sm:$0xff]
        %v4852 = vld [vmem:[%s4432 + $0x142] sm:$0xff]
        %v4853 = vld [vmem:[%s4432 + $0x152] sm:$0xff]
        %v4854 = vld [vmem:[%s4432 + $0x15a] sm:$0xff]
        %v4855 = vld [vmem:[%s4432 + $0x16a] sm:$0xff]
        %v4856 = vld [vmem:[%s4432 + $0x172] sm:$0xff]
        %v4857 = vld [vmem:[%s4432 + $0x1b2] sm:$0xff]
        %v4858 = vld [vmem:[%s4432 + $0x1ba] sm:$0xff]
        %v4859 = vld [vmem:[%s4432 + $0x1ca] sm:$0xff]
        %v4860 = vld [vmem:[%s4432 + $0x1d2] sm:$0xff]
        %v4861 = vld [vmem:[%s4432 + $0x1e2] sm:$0xff]
        %v4862 = vld [vmem:[%s4432 + $0x1ea] sm:$0xff]
        %v4863 = vld [vmem:[%s4432 + $0x1fa] sm:$0xff]
        %v4864 = vld [vmem:[%s4432 + $0x202] sm:$0xff]
        %v4865 = vld [vmem:[%s4432 + $0x212] sm:$0xff]
        %v4866 = vld [vmem:[%s4432 + $0x21a] sm:$0xff]
        %v4867 = vld [vmem:[%s4432 + $0x22a] sm:$0xff]
        %v4868 = vld [vmem:[%s4432 + $0x232] sm:$0xff]
        %v4869 = vld [vmem:[%s4432 + $0x242] sm:$0xff]
        %v4870 = vld [vmem:[%s4432 + $0x24a] sm:$0xff]
        %v4871 = vld [vmem:[%s4432 + $0x25a] sm:$0xff]
        %v4872 = vld [vmem:[%s4432 + $0x262] sm:$0xff]
        %v4873 = vld [vmem:[%s4432 + $0x272] sm:$0xff]
        %v4874 = vld [vmem:[%s4432 + $0x27a] sm:$0xff]
        %v4875 = vld [vmem:[%s4432 + $0x28a] sm:$0xff]
        %v4876 = vld [vmem:[%s4432 + $0x292] sm:$0xff]
        %v4877 = vld [vmem:[%s4432 + $0x2a2] sm:$0xff]
        %v4878 = vld [vmem:[%s4432 + $0x2aa] sm:$0xff]
        %v4879 = vld [vmem:[%s4432 + $0x2ba] sm:$0xff]
        %v4880 = vld [vmem:[%s4432 + $0x2c2] sm:$0xff]
        %v4881 = vld [vmem:[%s4432 + $0x2d2] sm:$0xff]
        %v4882 = vld [vmem:[%s4432 + $0x2da] sm:$0xff]
        %v4883 = vld [vmem:[%s4432 + $0x2ea] sm:$0xff]
        %v4884 = vld [vmem:[%s4432 + $0x2f2] sm:$0xff]
        %v4885 = vld [vmem:[%s4432 + $0x302] sm:$0xff]
        %v4886 = vld [vmem:[%s4432 + $0x30a] sm:$0xff]
        %v4887 = vld [vmem:[%s4432 + $0x31a] sm:$0xff]
        %v4888 = vld [vmem:[%s4432 + $0x322] sm:$0xff]
        %v4889 = vlaneseq
        %v4890 = vshrl.u32 %v4889, 7
        %v4891 = vsub.s32 0, %v4890
        %v4892 = vrot.slane %v3255, %v4891
        %v4893 = vmul.f32 %v4825, %v4892
        %v4894 = vmul.f32 %v4826, %v4892
        %v4895 = vmul.f32 %v4827, %v4892
        %v4896 = vmul.f32 %v4828, %v4892
        %v4897 = vmul.f32 %v4829, %v4892
        %v4898 = vmul.f32 %v4830, %v4892
        %v4899 = vmul.f32 %v4831, %v4892
        %v4900 = vmul.f32 %v4832, %v4892
        %v4901 = vmul.f32 %v4833, %v4892
        %v4902 = vmul.f32 %v4834, %v4892
        %v4903 = vmul.f32 %v4835, %v4892
        %v4904 = vmul.f32 %v4836, %v4892
        %v4905 = vmul.f32 %v4837, %v4892
        %v4906 = vmul.f32 %v4838, %v4892
        %v4907 = vmul.f32 %v4839, %v4892
        %v4908 = vmul.f32 %v4840, %v4892
        %v4909 = vmul.f32 %v4841, %v4892
        %v4910 = vmul.f32 %v4842, %v4892
        %v4911 = vmul.f32 %v4843, %v4892
        %v4912 = vmul.f32 %v4844, %v4892
        %v4913 = vmul.f32 %v4845, %v4892
        %v4914 = vmul.f32 %v4846, %v4892
        %v4915 = vmul.f32 %v4847, %v4892
        %v4916 = vmul.f32 %v4848, %v4892
        %v4917 = vmul.f32 %v4849, %v4892
        %v4918 = vmul.f32 %v4850, %v4892
        %v4919 = vmul.f32 %v4851, %v4892
        %v4920 = vmul.f32 %v4852, %v4892
        %v4921 = vmul.f32 %v4853, %v4892
        %v4922 = vmul.f32 %v4854, %v4892
        %v4923 = vmul.f32 %v4855, %v4892
        %v4924 = vmul.f32 %v4856, %v4892
        %v4925 = vmul.f32 %v4857, %v4892
        %v4926 = vmul.f32 %v4858, %v4892
        %v4927 = vmul.f32 %v4859, %v4892
        %v4928 = vmul.f32 %v4860, %v4892
        %v4929 = vmul.f32 %v4861, %v4892
        %v4930 = vmul.f32 %v4862, %v4892
        %v4931 = vmul.f32 %v4863, %v4892
        %v4932 = vmul.f32 %v4864, %v4892
        %v4933 = vmul.f32 %v4865, %v4892
        %v4934 = vmul.f32 %v4866, %v4892
        %v4935 = vmul.f32 %v4867, %v4892
        %v4936 = vmul.f32 %v4868, %v4892
        %v4937 = vmul.f32 %v4869, %v4892
        %v4938 = vmul.f32 %v4870, %v4892
        %v4939 = vmul.f32 %v4871, %v4892
        %v4940 = vmul.f32 %v4872, %v4892
        %v4941 = vmul.f32 %v4873, %v4892
        %v4942 = vmul.f32 %v4874, %v4892
        %v4943 = vmul.f32 %v4875, %v4892
        %v4944 = vmul.f32 %v4876, %v4892
        %v4945 = vmul.f32 %v4877, %v4892
        %v4946 = vmul.f32 %v4878, %v4892
        %v4947 = vmul.f32 %v4879, %v4892
        %v4948 = vmul.f32 %v4880, %v4892
        %v4949 = vmul.f32 %v4881, %v4892
        %v4950 = vmul.f32 %v4882, %v4892
        %v4951 = vmul.f32 %v4883, %v4892
        %v4952 = vmul.f32 %v4884, %v4892
        %v4953 = vmul.f32 %v4885, %v4892
        %v4954 = vmul.f32 %v4886, %v4892
        %v4955 = vmul.f32 %v4887, %v4892
        %v4956 = vmul.f32 %v4888, %v4892
        %v4957 = vadd.f32 %v4761, %v4893
        %v4958 = vadd.f32 %v4762, %v4894
        %v4959 = vadd.f32 %v4763, %v4895
        %v4960 = vadd.f32 %v4764, %v4896
        %v4961 = vadd.f32 %v4765, %v4897
        %v4962 = vadd.f32 %v4766, %v4898
        %v4963 = vadd.f32 %v4767, %v4899
        %v4964 = vadd.f32 %v4768, %v4900
        %v4965 = vadd.f32 %v4769, %v4901
        %v4966 = vadd.f32 %v4770, %v4902
        %v4967 = vadd.f32 %v4771, %v4903
        %v4968 = vadd.f32 %v4772, %v4904
        %v4969 = vadd.f32 %v4773, %v4905
        %v4970 = vadd.f32 %v4774, %v4906
        %v4971 = vadd.f32 %v4775, %v4907
        %v4972 = vadd.f32 %v4776, %v4908
        %v4973 = vadd.f32 %v4777, %v4909
        %v4974 = vadd.f32 %v4778, %v4910
        %v4975 = vadd.f32 %v4779, %v4911
        %v4976 = vadd.f32 %v4780, %v4912
        %v4977 = vadd.f32 %v4781, %v4913
        %v4978 = vadd.f32 %v4782, %v4914
        %v4979 = vadd.f32 %v4783, %v4915
        %v4980 = vadd.f32 %v4784, %v4916
        %v4981 = vadd.f32 %v4785, %v4917
        %v4982 = vadd.f32 %v4786, %v4918
        %v4983 = vadd.f32 %v4787, %v4919
        %v4984 = vadd.f32 %v4788, %v4920
        %v4985 = vadd.f32 %v4789, %v4921
        %v4986 = vadd.f32 %v4790, %v4922
        %v4987 = vadd.f32 %v4791, %v4923
        %v4988 = vadd.f32 %v4792, %v4924
        %v4989 = vadd.f32 %v4793, %v4925
        %v4990 = vadd.f32 %v4794, %v4926
        %v4991 = vadd.f32 %v4795, %v4927
        %v4992 = vadd.f32 %v4796, %v4928
        %v4993 = vadd.f32 %v4797, %v4929
        %v4994 = vadd.f32 %v4798, %v4930
        %v4995 = vadd.f32 %v4799, %v4931
        %v4996 = vadd.f32 %v4800, %v4932
        %v4997 = vadd.f32 %v4801, %v4933
        %v4998 = vadd.f32 %v4802, %v4934
        %v4999 = vadd.f32 %v4803, %v4935
        %v5000 = vadd.f32 %v4804, %v4936
        %v5001 = vadd.f32 %v4805, %v4937
        %v5002 = vadd.f32 %v4806, %v4938
        %v5003 = vadd.f32 %v4807, %v4939
        %v5004 = vadd.f32 %v4808, %v4940
        %v5005 = vadd.f32 %v4809, %v4941
        %v5006 = vadd.f32 %v4810, %v4942
        %v5007 = vadd.f32 %v4811, %v4943
        %v5008 = vadd.f32 %v4812, %v4944
        %v5009 = vadd.f32 %v4813, %v4945
        %v5010 = vadd.f32 %v4814, %v4946
        %v5011 = vadd.f32 %v4815, %v4947
        %v5012 = vadd.f32 %v4816, %v4948
        %v5013 = vadd.f32 %v4817, %v4949
        %v5014 = vadd.f32 %v4818, %v4950
        %v5015 = vadd.f32 %v4819, %v4951
        %v5016 = vadd.f32 %v4820, %v4952
        %v5017 = vadd.f32 %v4821, %v4953
        %v5018 = vadd.f32 %v4822, %v4954
        %v5019 = vadd.f32 %v4823, %v4955
        %v5020 = vadd.f32 %v4824, %v4956
        %v5021 = vld [vmem:[%s623] sm:$0x1]
        %v5023 = vlaneseq
        %v5024 = vshrl.u32 %v5023, 7
        %v5025 = vsub.s32 0, %v5024
        %v5026 = vrot.slane %v5021, %v5025
        %v5028 = vadd.f32 %v4957, %v5026
        %v5029 = vadd.f32 %v4958, %v5026
        %v5030 = vadd.f32 %v4959, %v5026
        %v5031 = vadd.f32 %v4960, %v5026
        %v5032 = vadd.f32 %v4961, %v5026
        %v5033 = vadd.f32 %v4962, %v5026
        %v5034 = vadd.f32 %v4963, %v5026
        %v5035 = vadd.f32 %v4964, %v5026
        %v5036 = vadd.f32 %v4965, %v5026
        %v5037 = vadd.f32 %v4966, %v5026
        %v5038 = vadd.f32 %v4967, %v5026
        %v5039 = vadd.f32 %v4968, %v5026
        %v5040 = vadd.f32 %v4969, %v5026
        %v5041 = vadd.f32 %v4970, %v5026
        %v5042 = vadd.f32 %v4971, %v5026
        %v5043 = vadd.f32 %v4972, %v5026
        %v5044 = vadd.f32 %v4973, %v5026
        %v5045 = vadd.f32 %v4974, %v5026
        %v5046 = vadd.f32 %v4975, %v5026
        %v5047 = vadd.f32 %v4976, %v5026
        %v5048 = vadd.f32 %v4977, %v5026
        %v5049 = vadd.f32 %v4978, %v5026
        %v5050 = vadd.f32 %v4979, %v5026
        %v5051 = vadd.f32 %v4980, %v5026
        %v5052 = vadd.f32 %v4981, %v5026
        %v5053 = vadd.f32 %v4982, %v5026
        %v5054 = vadd.f32 %v4983, %v5026
        %v5055 = vadd.f32 %v4984, %v5026
        %v5056 = vadd.f32 %v4985, %v5026
        %v5057 = vadd.f32 %v4986, %v5026
        %v5058 = vadd.f32 %v4987, %v5026
        %v5059 = vadd.f32 %v4988, %v5026
        %v5060 = vadd.f32 %v4989, %v5026
        %v5061 = vadd.f32 %v4990, %v5026
        %v5062 = vadd.f32 %v4991, %v5026
        %v5063 = vadd.f32 %v4992, %v5026
        %v5064 = vadd.f32 %v4993, %v5026
        %v5065 = vadd.f32 %v4994, %v5026
        %v5066 = vadd.f32 %v4995, %v5026
        %v5067 = vadd.f32 %v4996, %v5026
        %v5068 = vadd.f32 %v4997, %v5026
        %v5069 = vadd.f32 %v4998, %v5026
        %v5070 = vadd.f32 %v4999, %v5026
        %v5071 = vadd.f32 %v5000, %v5026
        %v5072 = vadd.f32 %v5001, %v5026
        %v5073 = vadd.f32 %v5002, %v5026
        %v5074 = vadd.f32 %v5003, %v5026
        %v5075 = vadd.f32 %v5004, %v5026
        %v5076 = vadd.f32 %v5005, %v5026
        %v5077 = vadd.f32 %v5006, %v5026
        %v5078 = vadd.f32 %v5007, %v5026
        %v5079 = vadd.f32 %v5008, %v5026
        %v5080 = vadd.f32 %v5009, %v5026
        %v5081 = vadd.f32 %v5010, %v5026
        %v5082 = vadd.f32 %v5011, %v5026
        %v5083 = vadd.f32 %v5012, %v5026
        %v5084 = vadd.f32 %v5013, %v5026
        %v5085 = vadd.f32 %v5014, %v5026
        %v5086 = vadd.f32 %v5015, %v5026
        %v5087 = vadd.f32 %v5016, %v5026
        %v5088 = vadd.f32 %v5017, %v5026
        %v5089 = vadd.f32 %v5018, %v5026
        %v5090 = vadd.f32 %v5019, %v5026
        %v5091 = vadd.f32 %v5020, %v5026
        %v5092 = vmax.f32 %v5028, 0.0
        %v5093 = vmax.f32 %v5029, 0.0
        %v5094 = vmax.f32 %v5030, 0.0
        %v5095 = vmax.f32 %v5031, 0.0
        %v5096 = vmax.f32 %v5032, 0.0
        %v5097 = vmax.f32 %v5033, 0.0
        %v5098 = vmax.f32 %v5034, 0.0
        %v5099 = vmax.f32 %v5035, 0.0
        %v5100 = vmax.f32 %v5036, 0.0
        %v5101 = vmax.f32 %v5037, 0.0
        %v5102 = vmax.f32 %v5038, 0.0
        %v5103 = vmax.f32 %v5039, 0.0
        %v5104 = vmax.f32 %v5040, 0.0
        %v5105 = vmax.f32 %v5041, 0.0
        %v5106 = vmax.f32 %v5042, 0.0
        %v5107 = vmax.f32 %v5043, 0.0
        %v5108 = vmax.f32 %v5044, 0.0
        %v5109 = vmax.f32 %v5045, 0.0
        %v5110 = vmax.f32 %v5046, 0.0
        %v5111 = vmax.f32 %v5047, 0.0
        %v5112 = vmax.f32 %v5048, 0.0
        %v5113 = vmax.f32 %v5049, 0.0
        %v5114 = vmax.f32 %v5050, 0.0
        %v5115 = vmax.f32 %v5051, 0.0
        %v5116 = vmax.f32 %v5052, 0.0
        %v5117 = vmax.f32 %v5053, 0.0
        %v5118 = vmax.f32 %v5054, 0.0
        %v5119 = vmax.f32 %v5055, 0.0
        %v5120 = vmax.f32 %v5056, 0.0
        %v5121 = vmax.f32 %v5057, 0.0
        %v5122 = vmax.f32 %v5058, 0.0
        %v5123 = vmax.f32 %v5059, 0.0
        %v5124 = vmax.f32 %v5060, 0.0
        %v5125 = vmax.f32 %v5061, 0.0
        %v5126 = vmax.f32 %v5062, 0.0
        %v5127 = vmax.f32 %v5063, 0.0
        %v5128 = vmax.f32 %v5064, 0.0
        %v5129 = vmax.f32 %v5065, 0.0
        %v5130 = vmax.f32 %v5066, 0.0
        %v5131 = vmax.f32 %v5067, 0.0
        %v5132 = vmax.f32 %v5068, 0.0
        %v5133 = vmax.f32 %v5069, 0.0
        %v5134 = vmax.f32 %v5070, 0.0
        %v5135 = vmax.f32 %v5071, 0.0
        %v5136 = vmax.f32 %v5072, 0.0
        %v5137 = vmax.f32 %v5073, 0.0
        %v5138 = vmax.f32 %v5074, 0.0
        %v5139 = vmax.f32 %v5075, 0.0
        %v5140 = vmax.f32 %v5076, 0.0
        %v5141 = vmax.f32 %v5077, 0.0
        %v5142 = vmax.f32 %v5078, 0.0
        %v5143 = vmax.f32 %v5079, 0.0
        %v5144 = vmax.f32 %v5080, 0.0
        %v5145 = vmax.f32 %v5081, 0.0
        %v5146 = vmax.f32 %v5082, 0.0
        %v5147 = vmax.f32 %v5083, 0.0
        %v5148 = vmax.f32 %v5084, 0.0
        %v5149 = vmax.f32 %v5085, 0.0
        %v5150 = vmax.f32 %v5086, 0.0
        %v5151 = vmax.f32 %v5087, 0.0
        %v5152 = vmax.f32 %v5088, 0.0
        %v5153 = vmax.f32 %v5089, 0.0
        %v5154 = vmax.f32 %v5090, 0.0
        %v5155 = vmax.f32 %v5091, 0.0
        %v5156 = vmin.f32 %v5092, 6.0
        %v5157 = vmin.f32 %v5093, 6.0
        %v5158 = vmin.f32 %v5094, 6.0
        %v5159 = vmin.f32 %v5095, 6.0
        %v5160 = vmin.f32 %v5096, 6.0
        %v5161 = vmin.f32 %v5097, 6.0
        %v5162 = vmin.f32 %v5098, 6.0
        %v5163 = vmin.f32 %v5099, 6.0
        %v5164 = vmin.f32 %v5100, 6.0
        %v5165 = vmin.f32 %v5101, 6.0
        %v5166 = vmin.f32 %v5102, 6.0
        %v5167 = vmin.f32 %v5103, 6.0
        %v5168 = vmin.f32 %v5104, 6.0
        %v5169 = vmin.f32 %v5105, 6.0
        %v5170 = vmin.f32 %v5106, 6.0
        %v5171 = vmin.f32 %v5107, 6.0
        %v5172 = vmin.f32 %v5108, 6.0
        %v5173 = vmin.f32 %v5109, 6.0
        %v5174 = vmin.f32 %v5110, 6.0
        %v5175 = vmin.f32 %v5111, 6.0
        %v5176 = vmin.f32 %v5112, 6.0
        %v5177 = vmin.f32 %v5113, 6.0
        %v5178 = vmin.f32 %v5114, 6.0
        %v5179 = vmin.f32 %v5115, 6.0
        %v5180 = vmin.f32 %v5116, 6.0
        %v5181 = vmin.f32 %v5117, 6.0
        %v5182 = vmin.f32 %v5118, 6.0
        %v5183 = vmin.f32 %v5119, 6.0
        %v5184 = vmin.f32 %v5120, 6.0
        %v5185 = vmin.f32 %v5121, 6.0
        %v5186 = vmin.f32 %v5122, 6.0
        %v5187 = vmin.f32 %v5123, 6.0
        %v5188 = vmin.f32 %v5124, 6.0
        %v5189 = vmin.f32 %v5125, 6.0
        %v5190 = vmin.f32 %v5126, 6.0
        %v5191 = vmin.f32 %v5127, 6.0
        %v5192 = vmin.f32 %v5128, 6.0
        %v5193 = vmin.f32 %v5129, 6.0
        %v5194 = vmin.f32 %v5130, 6.0
        %v5195 = vmin.f32 %v5131, 6.0
        %v5196 = vmin.f32 %v5132, 6.0
        %v5197 = vmin.f32 %v5133, 6.0
        %v5198 = vmin.f32 %v5134, 6.0
        %v5199 = vmin.f32 %v5135, 6.0
        %v5200 = vmin.f32 %v5136, 6.0
        %v5201 = vmin.f32 %v5137, 6.0
        %v5202 = vmin.f32 %v5138, 6.0
        %v5203 = vmin.f32 %v5139, 6.0
        %v5204 = vmin.f32 %v5140, 6.0
        %v5205 = vmin.f32 %v5141, 6.0
        %v5206 = vmin.f32 %v5142, 6.0
        %v5207 = vmin.f32 %v5143, 6.0
        %v5208 = vmin.f32 %v5144, 6.0
        %v5209 = vmin.f32 %v5145, 6.0
        %v5210 = vmin.f32 %v5146, 6.0
        %v5211 = vmin.f32 %v5147, 6.0
        %v5212 = vmin.f32 %v5148, 6.0
        %v5213 = vmin.f32 %v5149, 6.0
        %v5214 = vmin.f32 %v5150, 6.0
        %v5215 = vmin.f32 %v5151, 6.0
        %v5216 = vmin.f32 %v5152, 6.0
        %v5217 = vmin.f32 %v5153, 6.0
        %v5218 = vmin.f32 %v5154, 6.0
        %v5219 = vmin.f32 %v5155, 6.0
        %v5220 = vld [vmem:[%s763] sm:$0xff]
        %v5221 = vld [vmem:[%s763 + $0x8] sm:$0xff]
        %v5222 = vld [vmem:[%s763 + $0x10] sm:$0xff]
        %v5223 = vld [vmem:[%s763 + $0x18] sm:$0xff]
        %v5224 = vld [vmem:[%s763 + $0x20] sm:$0xff]
        %v5225 = vld [vmem:[%s763 + $0x28] sm:$0xff]
        %v5226 = vld [vmem:[%s763 + $0x30] sm:$0xff]
        %v5227 = vld [vmem:[%s763 + $0x38] sm:$0xff]
        %v5228 = vld [vmem:[%s763 + $0x40] sm:$0xff]
        %v5229 = vld [vmem:[%s763 + $0x48] sm:$0xff]
        %v5230 = vld [vmem:[%s763 + $0x50] sm:$0xff]
        %v5231 = vld [vmem:[%s763 + $0x58] sm:$0xff]
        %v5232 = vld [vmem:[%s763 + $0x60] sm:$0xff]
        %v5233 = vld [vmem:[%s763 + $0x68] sm:$0xff]
        %v5234 = vld [vmem:[%s763 + $0x70] sm:$0xff]
        %v5235 = vld [vmem:[%s763 + $0x78] sm:$0xff]
        %v5236 = vld [vmem:[%s766] sm:$0x1]
        %v5238 = vlaneseq
        %v5239 = vshrl.u32 %v5238, 7
        %v5240 = vsub.s32 0, %v5239
        %v5241 = vrot.slane %v5236, %v5240
        %5243 = vmatprep.subr.mxu0 0.0
        %5244 = vmatpush1.msra.mxu0 %v5235
        %5245 = vmatprep.subr.mxu0 0.0
        %5246 = vmatpush1.msra.mxu0 %v5234
        %5247 = vmatprep.subr.mxu0 0.0
        %5248 = vmatpush1.msra.mxu0 %v5233
        %5249 = vmatprep.subr.mxu0 0.0
        %5250 = vmatpush1.msra.mxu0 %v5232
        %5251 = vmatprep.subr.mxu0 0.0
        %5252 = vmatpush1.msra.mxu0 %v5231
        %5253 = vmatprep.subr.mxu0 0.0
        %5254 = vmatpush1.msra.mxu0 %v5230
        %5255 = vmatprep.subr.mxu0 0.0
        %5256 = vmatpush1.msra.mxu0 %v5229
        %5257 = vmatprep.subr.mxu0 0.0
        %5258 = vmatpush1.msra.mxu0 %v5228
        %5259 = vmatprep.subr.mxu0 0.0
        %5260 = vmatpush1.msra.mxu0 %v5227
        %5261 = vmatprep.subr.mxu0 0.0
        %5262 = vmatpush1.msra.mxu0 %v5226
        %5263 = vmatprep.subr.mxu0 0.0
        %5264 = vmatpush1.msra.mxu0 %v5225
        %5265 = vmatprep.subr.mxu0 0.0
        %5266 = vmatpush1.msra.mxu0 %v5224
        %5267 = vmatprep.subr.mxu0 0.0
        %5268 = vmatpush1.msra.mxu0 %v5223
        %5269 = vmatprep.subr.mxu0 0.0
        %5270 = vmatpush1.msra.mxu0 %v5222
        %5271 = vmatprep.subr.mxu0 0.0
        %5272 = vmatpush1.msra.mxu0 %v5221
        %5273 = vmatprep.subr.mxu0 0.0
        %5274 = vmatpush1.msra.mxu0 %v5220
        %5275 = vmatprep.subr.mxu0 0.0
        %5276 = vmatpush2.msra.mxu0 0.0
        %5277 = vmatprep.subr.mxu0 0.0
        %5278 = vmatpush2.msra.mxu0 0.0
        %5279 = vmatprep.subr.mxu0 0.0
        %5280 = vmatpush2.msra.mxu0 0.0
        %5281 = vmatprep.subr.mxu0 0.0
        %5282 = vmatpush2.msra.mxu0 0.0
        %5283 = vmatprep.subr.mxu0 0.0
        %5284 = vmatpush2.msra.mxu0 0.0
        %5285 = vmatprep.subr.mxu0 0.0
        %5286 = vmatpush2.msra.mxu0 0.0
        %5287 = vmatprep.subr.mxu0 0.0
        %5288 = vmatpush2.msra.mxu0 0.0
        %5289 = vmatprep.subr.mxu0 0.0
        %5290 = vmatpush2.msra.mxu0 0.0
        %5291 = vmatprep.subr.mxu0 0.0
        %5292 = vmatpush2.msra.mxu0 0.0
        %5293 = vmatprep.subr.mxu0 0.0
        %5294 = vmatpush2.msra.mxu0 0.0
        %5295 = vmatprep.subr.mxu0 0.0
        %5296 = vmatpush2.msra.mxu0 0.0
        %5297 = vmatprep.subr.mxu0 0.0
        %5298 = vmatpush2.msra.mxu0 0.0
        %5299 = vmatprep.subr.mxu0 0.0
        %5300 = vmatpush2.msra.mxu0 0.0
        %5301 = vmatprep.subr.mxu0 0.0
        %5302 = vmatpush2.msra.mxu0 0.0
        %5303 = vmatprep.subr.mxu0 0.0
        %5304 = vmatpush2.msra.mxu0 0.0
        %5305 = vmatprep.subr.mxu0 0.0
        %5306 = vmatpush2.msra.mxu0 0.0
        %5307 = vmatprep.mubr.f32.mxu0 0.0
        %5308 = vmatmul.mubr.f32.gmra.mxu0 %v5156
        %v5309 = vpop.f32.mrf.mxu0
        %v5310 = vadd.f32 %v5241, %v5309
        %v5311 = vpop.f32.mrf.mxu0
        %5312 = vmatprep.mubr.f32.mxu0 0.0
        %5313 = vmatmul.mubr.f32.gmra.mxu0 %v5157
        %v5314 = vpop.f32.mrf.mxu0
        %v5315 = vadd.f32 %v5241, %v5314
        %v5316 = vpop.f32.mrf.mxu0
        %5317 = vmatprep.mubr.f32.mxu0 0.0
        %5318 = vmatmul.mubr.f32.gmra.mxu0 %v5158
        %v5319 = vpop.f32.mrf.mxu0
        %v5320 = vadd.f32 %v5241, %v5319
        %v5321 = vpop.f32.mrf.mxu0
        %5322 = vmatprep.mubr.f32.mxu0 0.0
        %5323 = vmatmul.mubr.f32.gmra.mxu0 %v5159
        %v5324 = vpop.f32.mrf.mxu0
        %v5325 = vadd.f32 %v5241, %v5324
        %v5326 = vpop.f32.mrf.mxu0
        %5327 = vmatprep.mubr.f32.mxu0 0.0
        %5328 = vmatmul.mubr.f32.gmra.mxu0 %v5160
        %v5329 = vpop.f32.mrf.mxu0
        %v5330 = vadd.f32 %v5241, %v5329
        %v5331 = vpop.f32.mrf.mxu0
        %5332 = vmatprep.mubr.f32.mxu0 0.0
        %5333 = vmatmul.mubr.f32.gmra.mxu0 %v5161
        %v5334 = vpop.f32.mrf.mxu0
        %v5335 = vadd.f32 %v5241, %v5334
        %v5336 = vpop.f32.mrf.mxu0
        %5337 = vmatprep.mubr.f32.mxu0 0.0
        %5338 = vmatmul.mubr.f32.gmra.mxu0 %v5162
        %v5339 = vpop.f32.mrf.mxu0
        %v5340 = vadd.f32 %v5241, %v5339
        %v5341 = vpop.f32.mrf.mxu0
        %5342 = vmatprep.mubr.f32.mxu0 0.0
        %5343 = vmatmul.mubr.f32.gmra.mxu0 %v5163
        %v5344 = vpop.f32.mrf.mxu0
        %v5345 = vadd.f32 %v5241, %v5344
        %v5346 = vpop.f32.mrf.mxu0
        %5347 = vmatprep.mubr.f32.mxu0 0.0
        %5348 = vmatmul.mubr.f32.gmra.mxu0 %v5164
        %v5349 = vpop.f32.mrf.mxu0
        %v5350 = vadd.f32 %v5241, %v5349
        %v5351 = vpop.f32.mrf.mxu0
        %5352 = vmatprep.mubr.f32.mxu0 0.0
        %5353 = vmatmul.mubr.f32.gmra.mxu0 %v5165
        %v5354 = vpop.f32.mrf.mxu0
        %v5355 = vadd.f32 %v5241, %v5354
        %v5356 = vpop.f32.mrf.mxu0
        %5357 = vmatprep.mubr.f32.mxu0 0.0
        %5358 = vmatmul.mubr.f32.gmra.mxu0 %v5166
        %v5359 = vpop.f32.mrf.mxu0
        %v5360 = vadd.f32 %v5241, %v5359
        %v5361 = vpop.f32.mrf.mxu0
        %5362 = vmatprep.mubr.f32.mxu0 0.0
        %5363 = vmatmul.mubr.f32.gmra.mxu0 %v5167
        %v5364 = vpop.f32.mrf.mxu0
        %v5365 = vadd.f32 %v5241, %v5364
        %v5366 = vpop.f32.mrf.mxu0
        %5367 = vmatprep.mubr.f32.mxu0 0.0
        %5368 = vmatmul.mubr.f32.gmra.mxu0 %v5168
        %v5369 = vpop.f32.mrf.mxu0
        %v5370 = vadd.f32 %v5241, %v5369
        %v5371 = vpop.f32.mrf.mxu0
        %5372 = vmatprep.mubr.f32.mxu0 0.0
        %5373 = vmatmul.mubr.f32.gmra.mxu0 %v5169
        %v5374 = vpop.f32.mrf.mxu0
        %v5375 = vadd.f32 %v5241, %v5374
        %v5376 = vpop.f32.mrf.mxu0
        %5377 = vmatprep.mubr.f32.mxu0 0.0
        %5378 = vmatmul.mubr.f32.gmra.mxu0 %v5170
        %v5379 = vpop.f32.mrf.mxu0
        %v5380 = vadd.f32 %v5241, %v5379
        %v5381 = vpop.f32.mrf.mxu0
        %5382 = vmatprep.mubr.f32.mxu0 0.0
        %5383 = vmatmul.mubr.f32.gmra.mxu0 %v5171
        %v5384 = vpop.f32.mrf.mxu0
        %v5385 = vadd.f32 %v5241, %v5384
        %v5386 = vpop.f32.mrf.mxu0
        %5387 = vmatprep.mubr.f32.mxu0 0.0
        %5388 = vmatmul.mubr.f32.gmra.mxu0 %v5172
        %v5389 = vpop.f32.mrf.mxu0
        %v5390 = vadd.f32 %v5241, %v5389
        %v5391 = vpop.f32.mrf.mxu0
        %5392 = vmatprep.mubr.f32.mxu0 0.0
        %5393 = vmatmul.mubr.f32.gmra.mxu0 %v5173
        %v5394 = vpop.f32.mrf.mxu0
        %v5395 = vadd.f32 %v5241, %v5394
        %v5396 = vpop.f32.mrf.mxu0
        %5397 = vmatprep.mubr.f32.mxu0 0.0
        %5398 = vmatmul.mubr.f32.gmra.mxu0 %v5174
        %v5399 = vpop.f32.mrf.mxu0
        %v5400 = vadd.f32 %v5241, %v5399
        %v5401 = vpop.f32.mrf.mxu0
        %5402 = vmatprep.mubr.f32.mxu0 0.0
        %5403 = vmatmul.mubr.f32.gmra.mxu0 %v5175
        %v5404 = vpop.f32.mrf.mxu0
        %v5405 = vadd.f32 %v5241, %v5404
        %v5406 = vpop.f32.mrf.mxu0
        %5407 = vmatprep.mubr.f32.mxu0 0.0
        %5408 = vmatmul.mubr.f32.gmra.mxu0 %v5176
        %v5409 = vpop.f32.mrf.mxu0
        %v5410 = vadd.f32 %v5241, %v5409
        %v5411 = vpop.f32.mrf.mxu0
        %5412 = vmatprep.mubr.f32.mxu0 0.0
        %5413 = vmatmul.mubr.f32.gmra.mxu0 %v5177
        %v5414 = vpop.f32.mrf.mxu0
        %v5415 = vadd.f32 %v5241, %v5414
        %v5416 = vpop.f32.mrf.mxu0
        %5417 = vmatprep.mubr.f32.mxu0 0.0
        %5418 = vmatmul.mubr.f32.gmra.mxu0 %v5178
        %v5419 = vpop.f32.mrf.mxu0
        %v5420 = vadd.f32 %v5241, %v5419
        %v5421 = vpop.f32.mrf.mxu0
        %5422 = vmatprep.mubr.f32.mxu0 0.0
        %5423 = vmatmul.mubr.f32.gmra.mxu0 %v5179
        %v5424 = vpop.f32.mrf.mxu0
        %v5425 = vadd.f32 %v5241, %v5424
        %v5426 = vpop.f32.mrf.mxu0
        %5427 = vmatprep.mubr.f32.mxu0 0.0
        %5428 = vmatmul.mubr.f32.gmra.mxu0 %v5180
        %v5429 = vpop.f32.mrf.mxu0
        %v5430 = vadd.f32 %v5241, %v5429
        %v5431 = vpop.f32.mrf.mxu0
        %5432 = vmatprep.mubr.f32.mxu0 0.0
        %5433 = vmatmul.mubr.f32.gmra.mxu0 %v5181
        %v5434 = vpop.f32.mrf.mxu0
        %v5435 = vadd.f32 %v5241, %v5434
        %v5436 = vpop.f32.mrf.mxu0
        %5437 = vmatprep.mubr.f32.mxu0 0.0
        %5438 = vmatmul.mubr.f32.gmra.mxu0 %v5182
        %v5439 = vpop.f32.mrf.mxu0
        %v5440 = vadd.f32 %v5241, %v5439
        %v5441 = vpop.f32.mrf.mxu0
        %5442 = vmatprep.mubr.f32.mxu0 0.0
        %5443 = vmatmul.mubr.f32.gmra.mxu0 %v5183
        %v5444 = vpop.f32.mrf.mxu0
        %v5445 = vadd.f32 %v5241, %v5444
        %v5446 = vpop.f32.mrf.mxu0
        %5447 = vmatprep.mubr.f32.mxu0 0.0
        %5448 = vmatmul.mubr.f32.gmra.mxu0 %v5184
        %v5449 = vpop.f32.mrf.mxu0
        %v5450 = vadd.f32 %v5241, %v5449
        %v5451 = vpop.f32.mrf.mxu0
        %5452 = vmatprep.mubr.f32.mxu0 0.0
        %5453 = vmatmul.mubr.f32.gmra.mxu0 %v5185
        %v5454 = vpop.f32.mrf.mxu0
        %v5455 = vadd.f32 %v5241, %v5454
        %v5456 = vpop.f32.mrf.mxu0
        %5457 = vmatprep.mubr.f32.mxu0 0.0
        %5458 = vmatmul.mubr.f32.gmra.mxu0 %v5186
        %v5459 = vpop.f32.mrf.mxu0
        %v5460 = vadd.f32 %v5241, %v5459
        %v5461 = vpop.f32.mrf.mxu0
        %5462 = vmatprep.mubr.f32.mxu0 0.0
        %5463 = vmatmul.mubr.f32.gmra.mxu0 %v5187
        %v5464 = vpop.f32.mrf.mxu0
        %v5465 = vadd.f32 %v5241, %v5464
        %v5466 = vpop.f32.mrf.mxu0
        %5467 = vmatprep.mubr.f32.mxu0 0.0
        %5468 = vmatmul.mubr.f32.gmra.mxu0 %v5188
        %v5469 = vpop.f32.mrf.mxu0
        %v5470 = vadd.f32 %v5241, %v5469
        %v5471 = vpop.f32.mrf.mxu0
        %5472 = vmatprep.mubr.f32.mxu0 0.0
        %5473 = vmatmul.mubr.f32.gmra.mxu0 %v5189
        %v5474 = vpop.f32.mrf.mxu0
        %v5475 = vadd.f32 %v5241, %v5474
        %v5476 = vpop.f32.mrf.mxu0
        %5477 = vmatprep.mubr.f32.mxu0 0.0
        %5478 = vmatmul.mubr.f32.gmra.mxu0 %v5190
        %v5479 = vpop.f32.mrf.mxu0
        %v5480 = vadd.f32 %v5241, %v5479
        %v5481 = vpop.f32.mrf.mxu0
        %5482 = vmatprep.mubr.f32.mxu0 0.0
        %5483 = vmatmul.mubr.f32.gmra.mxu0 %v5191
        %v5484 = vpop.f32.mrf.mxu0
        %v5485 = vadd.f32 %v5241, %v5484
        %v5486 = vpop.f32.mrf.mxu0
        %5487 = vmatprep.mubr.f32.mxu0 0.0
        %5488 = vmatmul.mubr.f32.gmra.mxu0 %v5192
        %v5489 = vpop.f32.mrf.mxu0
        %v5490 = vadd.f32 %v5241, %v5489
        %v5491 = vpop.f32.mrf.mxu0
        %5492 = vmatprep.mubr.f32.mxu0 0.0
        %5493 = vmatmul.mubr.f32.gmra.mxu0 %v5193
        %v5494 = vpop.f32.mrf.mxu0
        %v5495 = vadd.f32 %v5241, %v5494
        %v5496 = vpop.f32.mrf.mxu0
        %5497 = vmatprep.mubr.f32.mxu0 0.0
        %5498 = vmatmul.mubr.f32.gmra.mxu0 %v5194
        %v5499 = vpop.f32.mrf.mxu0
        %v5500 = vadd.f32 %v5241, %v5499
        %v5501 = vpop.f32.mrf.mxu0
        %5502 = vmatprep.mubr.f32.mxu0 0.0
        %5503 = vmatmul.mubr.f32.gmra.mxu0 %v5195
        %v5504 = vpop.f32.mrf.mxu0
        %v5505 = vadd.f32 %v5241, %v5504
        %v5506 = vpop.f32.mrf.mxu0
        %5507 = vmatprep.mubr.f32.mxu0 0.0
        %5508 = vmatmul.mubr.f32.gmra.mxu0 %v5196
        %v5509 = vpop.f32.mrf.mxu0
        %v5510 = vadd.f32 %v5241, %v5509
        %v5511 = vpop.f32.mrf.mxu0
        %5512 = vmatprep.mubr.f32.mxu0 0.0
        %5513 = vmatmul.mubr.f32.gmra.mxu0 %v5197
        %v5514 = vpop.f32.mrf.mxu0
        %v5515 = vadd.f32 %v5241, %v5514
        %v5516 = vpop.f32.mrf.mxu0
        %5517 = vmatprep.mubr.f32.mxu0 0.0
        %5518 = vmatmul.mubr.f32.gmra.mxu0 %v5198
        %v5519 = vpop.f32.mrf.mxu0
        %v5520 = vadd.f32 %v5241, %v5519
        %v5521 = vpop.f32.mrf.mxu0
        %5522 = vmatprep.mubr.f32.mxu0 0.0
        %5523 = vmatmul.mubr.f32.gmra.mxu0 %v5199
        %v5524 = vpop.f32.mrf.mxu0
        %v5525 = vadd.f32 %v5241, %v5524
        %v5526 = vpop.f32.mrf.mxu0
        %5527 = vmatprep.mubr.f32.mxu0 0.0
        %5528 = vmatmul.mubr.f32.gmra.mxu0 %v5200
        %v5529 = vpop.f32.mrf.mxu0
        %v5530 = vadd.f32 %v5241, %v5529
        %v5531 = vpop.f32.mrf.mxu0
        %5532 = vmatprep.mubr.f32.mxu0 0.0
        %5533 = vmatmul.mubr.f32.gmra.mxu0 %v5201
        %v5534 = vpop.f32.mrf.mxu0
        %v5535 = vadd.f32 %v5241, %v5534
        %v5536 = vpop.f32.mrf.mxu0
        %5537 = vmatprep.mubr.f32.mxu0 0.0
        %5538 = vmatmul.mubr.f32.gmra.mxu0 %v5202
        %v5539 = vpop.f32.mrf.mxu0
        %v5540 = vadd.f32 %v5241, %v5539
        %v5541 = vpop.f32.mrf.mxu0
        %5542 = vmatprep.mubr.f32.mxu0 0.0
        %5543 = vmatmul.mubr.f32.gmra.mxu0 %v5203
        %v5544 = vpop.f32.mrf.mxu0
        %v5545 = vadd.f32 %v5241, %v5544
        %v5546 = vpop.f32.mrf.mxu0
        %5547 = vmatprep.mubr.f32.mxu0 0.0
        %5548 = vmatmul.mubr.f32.gmra.mxu0 %v5204
        %v5549 = vpop.f32.mrf.mxu0
        %v5550 = vadd.f32 %v5241, %v5549
        %v5551 = vpop.f32.mrf.mxu0
        %5552 = vmatprep.mubr.f32.mxu0 0.0
        %5553 = vmatmul.mubr.f32.gmra.mxu0 %v5205
        %v5554 = vpop.f32.mrf.mxu0
        %v5555 = vadd.f32 %v5241, %v5554
        %v5556 = vpop.f32.mrf.mxu0
        %5557 = vmatprep.mubr.f32.mxu0 0.0
        %5558 = vmatmul.mubr.f32.gmra.mxu0 %v5206
        %v5559 = vpop.f32.mrf.mxu0
        %v5560 = vadd.f32 %v5241, %v5559
        %v5561 = vpop.f32.mrf.mxu0
        %5562 = vmatprep.mubr.f32.mxu0 0.0
        %5563 = vmatmul.mubr.f32.gmra.mxu0 %v5207
        %v5564 = vpop.f32.mrf.mxu0
        %v5565 = vadd.f32 %v5241, %v5564
        %v5566 = vpop.f32.mrf.mxu0
        %5567 = vmatprep.mubr.f32.mxu0 0.0
        %5568 = vmatmul.mubr.f32.gmra.mxu0 %v5208
        %v5569 = vpop.f32.mrf.mxu0
        %v5570 = vadd.f32 %v5241, %v5569
        %v5571 = vpop.f32.mrf.mxu0
        %5572 = vmatprep.mubr.f32.mxu0 0.0
        %5573 = vmatmul.mubr.f32.gmra.mxu0 %v5209
        %v5574 = vpop.f32.mrf.mxu0
        %v5575 = vadd.f32 %v5241, %v5574
        %v5576 = vpop.f32.mrf.mxu0
        %5577 = vmatprep.mubr.f32.mxu0 0.0
        %5578 = vmatmul.mubr.f32.gmra.mxu0 %v5210
        %v5579 = vpop.f32.mrf.mxu0
        %v5580 = vadd.f32 %v5241, %v5579
        %v5581 = vpop.f32.mrf.mxu0
        %5582 = vmatprep.mubr.f32.mxu0 0.0
        %5583 = vmatmul.mubr.f32.gmra.mxu0 %v5211
        %v5584 = vpop.f32.mrf.mxu0
        %v5585 = vadd.f32 %v5241, %v5584
        %v5586 = vpop.f32.mrf.mxu0
        %5587 = vmatprep.mubr.f32.mxu0 0.0
        %5588 = vmatmul.mubr.f32.gmra.mxu0 %v5212
        %v5589 = vpop.f32.mrf.mxu0
        %v5590 = vadd.f32 %v5241, %v5589
        %v5591 = vpop.f32.mrf.mxu0
        %5592 = vmatprep.mubr.f32.mxu0 0.0
        %5593 = vmatmul.mubr.f32.gmra.mxu0 %v5213
        %v5594 = vpop.f32.mrf.mxu0
        %v5595 = vadd.f32 %v5241, %v5594
        %v5596 = vpop.f32.mrf.mxu0
        %5597 = vmatprep.mubr.f32.mxu0 0.0
        %5598 = vmatmul.mubr.f32.gmra.mxu0 %v5214
        %v5599 = vpop.f32.mrf.mxu0
        %v5600 = vadd.f32 %v5241, %v5599
        %v5601 = vpop.f32.mrf.mxu0
        %5602 = vmatprep.mubr.f32.mxu0 0.0
        %5603 = vmatmul.mubr.f32.gmra.mxu0 %v5215
        %v5604 = vpop.f32.mrf.mxu0
        %v5605 = vadd.f32 %v5241, %v5604
        %v5606 = vpop.f32.mrf.mxu0
        %5607 = vmatprep.mubr.f32.mxu0 0.0
        %5608 = vmatmul.mubr.f32.gmra.mxu0 %v5216
        %v5609 = vpop.f32.mrf.mxu0
        %v5610 = vadd.f32 %v5241, %v5609
        %v5611 = vpop.f32.mrf.mxu0
        %5612 = vmatprep.mubr.f32.mxu0 0.0
        %5613 = vmatmul.mubr.f32.gmra.mxu0 %v5217
        %v5614 = vpop.f32.mrf.mxu0
        %v5615 = vadd.f32 %v5241, %v5614
        %v5616 = vpop.f32.mrf.mxu0
        %5617 = vmatprep.mubr.f32.mxu0 0.0
        %5618 = vmatmul.mubr.f32.gmra.mxu0 %v5218
        %v5619 = vpop.f32.mrf.mxu0
        %v5620 = vadd.f32 %v5241, %v5619
        %v5621 = vpop.f32.mrf.mxu0
        %5622 = vmatprep.mubr.f32.mxu0 0.0
        %5623 = vmatmul.mubr.f32.gmra.mxu0 %v5219
        %v5624 = vpop.f32.mrf.mxu0
        %v5625 = vadd.f32 %v5241, %v5624
        %v5626 = vpop.f32.mrf.mxu0
        %5627 = vdwg.mxu0
        %v5628 = vld [vmem:[#allocation2] sm:$0xff]
        %v5629 = vld [vmem:[#allocation2 + $0x8] sm:$0xff]
        %v5630 = vld [vmem:[#allocation2 + $0x10] sm:$0xff]
        %v5631 = vld [vmem:[#allocation2 + $0x18] sm:$0xff]
        %v5632 = vld [vmem:[#allocation2 + $0x20] sm:$0xff]
        %v5633 = vld [vmem:[#allocation2 + $0x28] sm:$0xff]
        %v5634 = vld [vmem:[#allocation2 + $0x30] sm:$0xff]
        %v5635 = vld [vmem:[#allocation2 + $0x38] sm:$0xff]
        %v5636 = vld [vmem:[#allocation2 + $0x40] sm:$0xff]
        %v5637 = vld [vmem:[#allocation2 + $0x48] sm:$0xff]
        %v5638 = vld [vmem:[#allocation2 + $0x50] sm:$0xff]
        %v5639 = vld [vmem:[#allocation2 + $0x58] sm:$0xff]
        %v5640 = vld [vmem:[#allocation2 + $0x60] sm:$0xff]
        %v5641 = vld [vmem:[#allocation2 + $0x68] sm:$0xff]
        %v5642 = vld [vmem:[#allocation2 + $0x70] sm:$0xff]
        %v5643 = vld [vmem:[#allocation2 + $0x78] sm:$0xff]
        %v5644 = vld [vmem:[#allocation2 + $0x80] sm:$0xff]
        %v5645 = vld [vmem:[#allocation2 + $0x88] sm:$0xff]
        %v5646 = vld [vmem:[#allocation2 + $0x90] sm:$0xff]
        %v5647 = vld [vmem:[#allocation2 + $0x98] sm:$0xff]
        %v5648 = vld [vmem:[#allocation2 + $0xa0] sm:$0xff]
        %v5649 = vld [vmem:[#allocation2 + $0xa8] sm:$0xff]
        %v5650 = vld [vmem:[#allocation2 + $0xb0] sm:$0xff]
        %v5651 = vld [vmem:[#allocation2 + $0xb8] sm:$0xff]
        %v5652 = vld [vmem:[#allocation2 + $0xc0] sm:$0xff]
        %v5653 = vld [vmem:[#allocation2 + $0xc8] sm:$0xff]
        %v5654 = vld [vmem:[#allocation2 + $0xd0] sm:$0xff]
        %v5655 = vld [vmem:[#allocation2 + $0xd8] sm:$0xff]
        %v5656 = vld [vmem:[#allocation2 + $0xe0] sm:$0xff]
        %v5657 = vld [vmem:[#allocation2 + $0xe8] sm:$0xff]
        %v5658 = vld [vmem:[#allocation2 + $0xf0] sm:$0xff]
        %v5659 = vld [vmem:[#allocation2 + $0xf8] sm:$0xff]
        %v5660 = vld [vmem:[#allocation2 + $0x100] sm:$0xff]
        %v5661 = vld [vmem:[#allocation2 + $0x108] sm:$0xff]
        %v5662 = vld [vmem:[#allocation2 + $0x110] sm:$0xff]
        %v5663 = vld [vmem:[#allocation2 + $0x118] sm:$0xff]
        %v5664 = vld [vmem:[#allocation2 + $0x120] sm:$0xff]
        %v5665 = vld [vmem:[#allocation2 + $0x128] sm:$0xff]
        %v5666 = vld [vmem:[#allocation2 + $0x130] sm:$0xff]
        %v5667 = vld [vmem:[#allocation2 + $0x138] sm:$0xff]
        %v5668 = vld [vmem:[#allocation2 + $0x140] sm:$0xff]
        %v5669 = vld [vmem:[#allocation2 + $0x148] sm:$0xff]
        %v5670 = vld [vmem:[#allocation2 + $0x150] sm:$0xff]
        %v5671 = vld [vmem:[#allocation2 + $0x158] sm:$0xff]
        %v5672 = vld [vmem:[#allocation2 + $0x160] sm:$0xff]
        %v5673 = vld [vmem:[#allocation2 + $0x168] sm:$0xff]
        %v5674 = vld [vmem:[#allocation2 + $0x170] sm:$0xff]
        %v5675 = vld [vmem:[#allocation2 + $0x178] sm:$0xff]
        %v5676 = vld [vmem:[#allocation2 + $0x180] sm:$0xff]
        %v5677 = vld [vmem:[#allocation2 + $0x188] sm:$0xff]
        %v5678 = vld [vmem:[#allocation2 + $0x190] sm:$0xff]
        %v5679 = vld [vmem:[#allocation2 + $0x198] sm:$0xff]
        %v5680 = vld [vmem:[#allocation2 + $0x1a0] sm:$0xff]
        %v5681 = vld [vmem:[#allocation2 + $0x1a8] sm:$0xff]
        %v5682 = vld [vmem:[#allocation2 + $0x1b0] sm:$0xff]
        %v5683 = vld [vmem:[#allocation2 + $0x1b8] sm:$0xff]
        %v5684 = vld [vmem:[#allocation2 + $0x1c0] sm:$0xff]
        %v5685 = vld [vmem:[#allocation2 + $0x1c8] sm:$0xff]
        %v5686 = vld [vmem:[#allocation2 + $0x1d0] sm:$0xff]
        %v5687 = vld [vmem:[#allocation2 + $0x1d8] sm:$0xff]
        %v5688 = vld [vmem:[#allocation2 + $0x1e0] sm:$0xff]
        %v5689 = vld [vmem:[#allocation2 + $0x1e8] sm:$0xff]
        %v5690 = vld [vmem:[#allocation2 + $0x1f0] sm:$0xff]
        %v5691 = vld [vmem:[#allocation2 + $0x1f8] sm:$0xff]
        %v5692 = vadd.f32 %v5628, %v5310
        %v5693 = vadd.f32 %v5629, %v5315
        %v5694 = vadd.f32 %v5630, %v5320
        %v5695 = vadd.f32 %v5631, %v5325
        %v5696 = vadd.f32 %v5632, %v5330
        %v5697 = vadd.f32 %v5633, %v5335
        %v5698 = vadd.f32 %v5634, %v5340
        %v5699 = vadd.f32 %v5635, %v5345
        %v5700 = vadd.f32 %v5636, %v5350
        %v5701 = vadd.f32 %v5637, %v5355
        %v5702 = vadd.f32 %v5638, %v5360
        %v5703 = vadd.f32 %v5639, %v5365
        %v5704 = vadd.f32 %v5640, %v5370
        %v5705 = vadd.f32 %v5641, %v5375
        %v5706 = vadd.f32 %v5642, %v5380
        %v5707 = vadd.f32 %v5643, %v5385
        %v5708 = vadd.f32 %v5644, %v5390
        %v5709 = vadd.f32 %v5645, %v5395
        %v5710 = vadd.f32 %v5646, %v5400
        %v5711 = vadd.f32 %v5647, %v5405
        %v5712 = vadd.f32 %v5648, %v5410
        %v5713 = vadd.f32 %v5649, %v5415
        %v5714 = vadd.f32 %v5650, %v5420
        %v5715 = vadd.f32 %v5651, %v5425
        %v5716 = vadd.f32 %v5652, %v5430
        %v5717 = vadd.f32 %v5653, %v5435
        %v5718 = vadd.f32 %v5654, %v5440
        %v5719 = vadd.f32 %v5655, %v5445
        %v5720 = vadd.f32 %v5656, %v5450
        %v5721 = vadd.f32 %v5657, %v5455
        %v5722 = vadd.f32 %v5658, %v5460
        %v5723 = vadd.f32 %v5659, %v5465
        %v5724 = vadd.f32 %v5660, %v5470
        %v5725 = vadd.f32 %v5661, %v5475
        %v5726 = vadd.f32 %v5662, %v5480
        %v5727 = vadd.f32 %v5663, %v5485
        %v5728 = vadd.f32 %v5664, %v5490
        %v5729 = vadd.f32 %v5665, %v5495
        %v5730 = vadd.f32 %v5666, %v5500
        %v5731 = vadd.f32 %v5667, %v5505
        %v5732 = vadd.f32 %v5668, %v5510
        %v5733 = vadd.f32 %v5669, %v5515
        %v5734 = vadd.f32 %v5670, %v5520
        %v5735 = vadd.f32 %v5671, %v5525
        %v5736 = vadd.f32 %v5672, %v5530
        %v5737 = vadd.f32 %v5673, %v5535
        %v5738 = vadd.f32 %v5674, %v5540
        %v5739 = vadd.f32 %v5675, %v5545
        %v5740 = vadd.f32 %v5676, %v5550
        %v5741 = vadd.f32 %v5677, %v5555
        %v5742 = vadd.f32 %v5678, %v5560
        %v5743 = vadd.f32 %v5679, %v5565
        %v5744 = vadd.f32 %v5680, %v5570
        %v5745 = vadd.f32 %v5681, %v5575
        %v5746 = vadd.f32 %v5682, %v5580
        %v5747 = vadd.f32 %v5683, %v5585
        %v5748 = vadd.f32 %v5684, %v5590
        %v5749 = vadd.f32 %v5685, %v5595
        %v5750 = vadd.f32 %v5686, %v5600
        %v5751 = vadd.f32 %v5687, %v5605
        %v5752 = vadd.f32 %v5688, %v5610
        %v5753 = vadd.f32 %v5689, %v5615
        %v5754 = vadd.f32 %v5690, %v5620
        %v5755 = vadd.f32 %v5691, %v5625
        %v5756 = vld [vmem:[%s632] sm:$0xff]
        %v5757 = vld [vmem:[%s632 + $0x8] sm:$0xff]
        %v5758 = vld [vmem:[%s632 + $0x10] sm:$0xff]
        %v5759 = vld [vmem:[%s632 + $0x18] sm:$0xff]
        %v5760 = vld [vmem:[%s632 + $0x20] sm:$0xff]
        %v5761 = vld [vmem:[%s632 + $0x28] sm:$0xff]
        %v5762 = vld [vmem:[%s632 + $0x30] sm:$0xff]
        %v5763 = vld [vmem:[%s632 + $0x38] sm:$0xff]
        %v5764 = vld [vmem:[%s632 + $0x40] sm:$0xff]
        %v5765 = vld [vmem:[%s632 + $0x48] sm:$0xff]
        %v5766 = vld [vmem:[%s632 + $0x50] sm:$0xff]
        %v5767 = vld [vmem:[%s632 + $0x58] sm:$0xff]
        %v5768 = vld [vmem:[%s632 + $0x60] sm:$0xff]
        %v5769 = vld [vmem:[%s632 + $0x68] sm:$0xff]
        %v5770 = vld [vmem:[%s632 + $0x70] sm:$0xff]
        %v5771 = vld [vmem:[%s632 + $0x78] sm:$0xff]
        %v5772 = vld [vmem:[%s769] sm:$0x1]
        %v5774 = vlaneseq
        %v5775 = vshrl.u32 %v5774, 7
        %v5776 = vsub.s32 0, %v5775
        %v5777 = vrot.slane %v5772, %v5776
        %5779 = vmatprep.subr.mxu0 0.0
        %5780 = vmatpush1.msra.mxu0 %v5771
        %5781 = vmatprep.subr.mxu0 0.0
        %5782 = vmatpush1.msra.mxu0 %v5770
        %5783 = vmatprep.subr.mxu0 0.0
        %5784 = vmatpush1.msra.mxu0 %v5769
        %5785 = vmatprep.subr.mxu0 0.0
        %5786 = vmatpush1.msra.mxu0 %v5768
        %5787 = vmatprep.subr.mxu0 0.0
        %5788 = vmatpush1.msra.mxu0 %v5767
        %5789 = vmatprep.subr.mxu0 0.0
        %5790 = vmatpush1.msra.mxu0 %v5766
        %5791 = vmatprep.subr.mxu0 0.0
        %5792 = vmatpush1.msra.mxu0 %v5765
        %5793 = vmatprep.subr.mxu0 0.0
        %5794 = vmatpush1.msra.mxu0 %v5764
        %5795 = vmatprep.subr.mxu0 0.0
        %5796 = vmatpush1.msra.mxu0 %v5763
        %5797 = vmatprep.subr.mxu0 0.0
        %5798 = vmatpush1.msra.mxu0 %v5762
        %5799 = vmatprep.subr.mxu0 0.0
        %5800 = vmatpush1.msra.mxu0 %v5761
        %5801 = vmatprep.subr.mxu0 0.0
        %5802 = vmatpush1.msra.mxu0 %v5760
        %5803 = vmatprep.subr.mxu0 0.0
        %5804 = vmatpush1.msra.mxu0 %v5759
        %5805 = vmatprep.subr.mxu0 0.0
        %5806 = vmatpush1.msra.mxu0 %v5758
        %5807 = vmatprep.subr.mxu0 0.0
        %5808 = vmatpush1.msra.mxu0 %v5757
        %5809 = vmatprep.subr.mxu0 0.0
        %5810 = vmatpush1.msra.mxu0 %v5756
        %5811 = vmatprep.subr.mxu0 0.0
        %5812 = vmatpush2.msra.mxu0 0.0
        %5813 = vmatprep.subr.mxu0 0.0
        %5814 = vmatpush2.msra.mxu0 0.0
        %5815 = vmatprep.subr.mxu0 0.0
        %5816 = vmatpush2.msra.mxu0 0.0
        %5817 = vmatprep.subr.mxu0 0.0
        %5818 = vmatpush2.msra.mxu0 0.0
        %5819 = vmatprep.subr.mxu0 0.0
        %5820 = vmatpush2.msra.mxu0 0.0
        %5821 = vmatprep.subr.mxu0 0.0
        %5822 = vmatpush2.msra.mxu0 0.0
        %5823 = vmatprep.subr.mxu0 0.0
        %5824 = vmatpush2.msra.mxu0 0.0
        %5825 = vmatprep.subr.mxu0 0.0
        %5826 = vmatpush2.msra.mxu0 0.0
        %5827 = vmatprep.subr.mxu0 0.0
        %5828 = vmatpush2.msra.mxu0 0.0
        %5829 = vmatprep.subr.mxu0 0.0
        %5830 = vmatpush2.msra.mxu0 0.0
        %5831 = vmatprep.subr.mxu0 0.0
        %5832 = vmatpush2.msra.mxu0 0.0
        %5833 = vmatprep.subr.mxu0 0.0
        %5834 = vmatpush2.msra.mxu0 0.0
        %5835 = vmatprep.subr.mxu0 0.0
        %5836 = vmatpush2.msra.mxu0 0.0
        %5837 = vmatprep.subr.mxu0 0.0
        %5838 = vmatpush2.msra.mxu0 0.0
        %5839 = vmatprep.subr.mxu0 0.0
        %5840 = vmatpush2.msra.mxu0 0.0
        %5841 = vmatprep.subr.mxu0 0.0
        %5842 = vmatpush2.msra.mxu0 0.0
        %5843 = vmatprep.mubr.f32.mxu0 0.0
        %5844 = vmatmul.mubr.f32.gmra.mxu0 %v5692
        %v5845 = vpop.f32.mrf.mxu0
        %v5846 = vadd.f32 %v5777, %v5845
        %v5847 = vpop.f32.mrf.mxu0
        %5848 = vmatprep.mubr.f32.mxu0 0.0
        %5849 = vmatmul.mubr.f32.gmra.mxu0 %v5693
        %v5850 = vpop.f32.mrf.mxu0
        %v5851 = vadd.f32 %v5777, %v5850
        %v5852 = vpop.f32.mrf.mxu0
        %5853 = vmatprep.mubr.f32.mxu0 0.0
        %5854 = vmatmul.mubr.f32.gmra.mxu0 %v5694
        %v5855 = vpop.f32.mrf.mxu0
        %v5856 = vadd.f32 %v5777, %v5855
        %v5857 = vpop.f32.mrf.mxu0
        %5858 = vmatprep.mubr.f32.mxu0 0.0
        %5859 = vmatmul.mubr.f32.gmra.mxu0 %v5695
        %v5860 = vpop.f32.mrf.mxu0
        %v5861 = vadd.f32 %v5777, %v5860
        %v5862 = vpop.f32.mrf.mxu0
        %5863 = vmatprep.mubr.f32.mxu0 0.0
        %5864 = vmatmul.mubr.f32.gmra.mxu0 %v5696
        %v5865 = vpop.f32.mrf.mxu0
        %v5866 = vadd.f32 %v5777, %v5865
        %v5867 = vpop.f32.mrf.mxu0
        %5868 = vmatprep.mubr.f32.mxu0 0.0
        %5869 = vmatmul.mubr.f32.gmra.mxu0 %v5697
        %v5870 = vpop.f32.mrf.mxu0
        %v5871 = vadd.f32 %v5777, %v5870
        %v5872 = vpop.f32.mrf.mxu0
        %5873 = vmatprep.mubr.f32.mxu0 0.0
        %5874 = vmatmul.mubr.f32.gmra.mxu0 %v5698
        %v5875 = vpop.f32.mrf.mxu0
        %v5876 = vadd.f32 %v5777, %v5875
        %v5877 = vpop.f32.mrf.mxu0
        %5878 = vmatprep.mubr.f32.mxu0 0.0
        %5879 = vmatmul.mubr.f32.gmra.mxu0 %v5699
        %v5880 = vpop.f32.mrf.mxu0
        %v5881 = vadd.f32 %v5777, %v5880
        %v5882 = vpop.f32.mrf.mxu0
        %5883 = vmatprep.mubr.f32.mxu0 0.0
        %5884 = vmatmul.mubr.f32.gmra.mxu0 %v5700
        %v5885 = vpop.f32.mrf.mxu0
        %v5886 = vadd.f32 %v5777, %v5885
        %v5887 = vpop.f32.mrf.mxu0
        %5888 = vmatprep.mubr.f32.mxu0 0.0
        %5889 = vmatmul.mubr.f32.gmra.mxu0 %v5701
        %v5890 = vpop.f32.mrf.mxu0
        %v5891 = vadd.f32 %v5777, %v5890
        %v5892 = vpop.f32.mrf.mxu0
        %5893 = vmatprep.mubr.f32.mxu0 0.0
        %5894 = vmatmul.mubr.f32.gmra.mxu0 %v5702
        %v5895 = vpop.f32.mrf.mxu0
        %v5896 = vadd.f32 %v5777, %v5895
        %v5897 = vpop.f32.mrf.mxu0
        %5898 = vmatprep.mubr.f32.mxu0 0.0
        %5899 = vmatmul.mubr.f32.gmra.mxu0 %v5703
        %v5900 = vpop.f32.mrf.mxu0
        %v5901 = vadd.f32 %v5777, %v5900
        %v5902 = vpop.f32.mrf.mxu0
        %5903 = vmatprep.mubr.f32.mxu0 0.0
        %5904 = vmatmul.mubr.f32.gmra.mxu0 %v5704
        %v5905 = vpop.f32.mrf.mxu0
        %v5906 = vadd.f32 %v5777, %v5905
        %v5907 = vpop.f32.mrf.mxu0
        %5908 = vmatprep.mubr.f32.mxu0 0.0
        %5909 = vmatmul.mubr.f32.gmra.mxu0 %v5705
        %v5910 = vpop.f32.mrf.mxu0
        %v5911 = vadd.f32 %v5777, %v5910
        %v5912 = vpop.f32.mrf.mxu0
        %5913 = vmatprep.mubr.f32.mxu0 0.0
        %5914 = vmatmul.mubr.f32.gmra.mxu0 %v5706
        %v5915 = vpop.f32.mrf.mxu0
        %v5916 = vadd.f32 %v5777, %v5915
        %v5917 = vpop.f32.mrf.mxu0
        %5918 = vmatprep.mubr.f32.mxu0 0.0
        %5919 = vmatmul.mubr.f32.gmra.mxu0 %v5707
        %v5920 = vpop.f32.mrf.mxu0
        %v5921 = vadd.f32 %v5777, %v5920
        %v5922 = vpop.f32.mrf.mxu0
        %5923 = vmatprep.mubr.f32.mxu0 0.0
        %5924 = vmatmul.mubr.f32.gmra.mxu0 %v5708
        %v5925 = vpop.f32.mrf.mxu0
        %v5926 = vadd.f32 %v5777, %v5925
        %v5927 = vpop.f32.mrf.mxu0
        %5928 = vmatprep.mubr.f32.mxu0 0.0
        %5929 = vmatmul.mubr.f32.gmra.mxu0 %v5709
        %v5930 = vpop.f32.mrf.mxu0
        %v5931 = vadd.f32 %v5777, %v5930
        %v5932 = vpop.f32.mrf.mxu0
        %5933 = vmatprep.mubr.f32.mxu0 0.0
        %5934 = vmatmul.mubr.f32.gmra.mxu0 %v5710
        %v5935 = vpop.f32.mrf.mxu0
        %v5936 = vadd.f32 %v5777, %v5935
        %v5937 = vpop.f32.mrf.mxu0
        %5938 = vmatprep.mubr.f32.mxu0 0.0
        %5939 = vmatmul.mubr.f32.gmra.mxu0 %v5711
        %v5940 = vpop.f32.mrf.mxu0
        %v5941 = vadd.f32 %v5777, %v5940
        %v5942 = vpop.f32.mrf.mxu0
        %5943 = vmatprep.mubr.f32.mxu0 0.0
        %5944 = vmatmul.mubr.f32.gmra.mxu0 %v5712
        %v5945 = vpop.f32.mrf.mxu0
        %v5946 = vadd.f32 %v5777, %v5945
        %v5947 = vpop.f32.mrf.mxu0
        %5948 = vmatprep.mubr.f32.mxu0 0.0
        %5949 = vmatmul.mubr.f32.gmra.mxu0 %v5713
        %v5950 = vpop.f32.mrf.mxu0
        %v5951 = vadd.f32 %v5777, %v5950
        %v5952 = vpop.f32.mrf.mxu0
        %5953 = vmatprep.mubr.f32.mxu0 0.0
        %5954 = vmatmul.mubr.f32.gmra.mxu0 %v5714
        %v5955 = vpop.f32.mrf.mxu0
        %v5956 = vadd.f32 %v5777, %v5955
        %v5957 = vpop.f32.mrf.mxu0
        %5958 = vmatprep.mubr.f32.mxu0 0.0
        %5959 = vmatmul.mubr.f32.gmra.mxu0 %v5715
        %v5960 = vpop.f32.mrf.mxu0
        %v5961 = vadd.f32 %v5777, %v5960
        %v5962 = vpop.f32.mrf.mxu0
        %5963 = vmatprep.mubr.f32.mxu0 0.0
        %5964 = vmatmul.mubr.f32.gmra.mxu0 %v5716
        %v5965 = vpop.f32.mrf.mxu0
        %v5966 = vadd.f32 %v5777, %v5965
        %v5967 = vpop.f32.mrf.mxu0
        %5968 = vmatprep.mubr.f32.mxu0 0.0
        %5969 = vmatmul.mubr.f32.gmra.mxu0 %v5717
        %v5970 = vpop.f32.mrf.mxu0
        %v5971 = vadd.f32 %v5777, %v5970
        %v5972 = vpop.f32.mrf.mxu0
        %5973 = vmatprep.mubr.f32.mxu0 0.0
        %5974 = vmatmul.mubr.f32.gmra.mxu0 %v5718
        %v5975 = vpop.f32.mrf.mxu0
        %v5976 = vadd.f32 %v5777, %v5975
        %v5977 = vpop.f32.mrf.mxu0
        %5978 = vmatprep.mubr.f32.mxu0 0.0
        %5979 = vmatmul.mubr.f32.gmra.mxu0 %v5719
        %v5980 = vpop.f32.mrf.mxu0
        %v5981 = vadd.f32 %v5777, %v5980
        %v5982 = vpop.f32.mrf.mxu0
        %5983 = vmatprep.mubr.f32.mxu0 0.0
        %5984 = vmatmul.mubr.f32.gmra.mxu0 %v5720
        %v5985 = vpop.f32.mrf.mxu0
        %v5986 = vadd.f32 %v5777, %v5985
        %v5987 = vpop.f32.mrf.mxu0
        %5988 = vmatprep.mubr.f32.mxu0 0.0
        %5989 = vmatmul.mubr.f32.gmra.mxu0 %v5721
        %v5990 = vpop.f32.mrf.mxu0
        %v5991 = vadd.f32 %v5777, %v5990
        %v5992 = vpop.f32.mrf.mxu0
        %5993 = vmatprep.mubr.f32.mxu0 0.0
        %5994 = vmatmul.mubr.f32.gmra.mxu0 %v5722
        %v5995 = vpop.f32.mrf.mxu0
        %v5996 = vadd.f32 %v5777, %v5995
        %v5997 = vpop.f32.mrf.mxu0
        %5998 = vmatprep.mubr.f32.mxu0 0.0
        %5999 = vmatmul.mubr.f32.gmra.mxu0 %v5723
        %v6000 = vpop.f32.mrf.mxu0
        %v6001 = vadd.f32 %v5777, %v6000
        %v6002 = vpop.f32.mrf.mxu0
        %6003 = vmatprep.mubr.f32.mxu0 0.0
        %6004 = vmatmul.mubr.f32.gmra.mxu0 %v5724
        %v6005 = vpop.f32.mrf.mxu0
        %v6006 = vadd.f32 %v5777, %v6005
        %v6007 = vpop.f32.mrf.mxu0
        %6008 = vmatprep.mubr.f32.mxu0 0.0
        %6009 = vmatmul.mubr.f32.gmra.mxu0 %v5725
        %v6010 = vpop.f32.mrf.mxu0
        %v6011 = vadd.f32 %v5777, %v6010
        %v6012 = vpop.f32.mrf.mxu0
        %6013 = vmatprep.mubr.f32.mxu0 0.0
        %6014 = vmatmul.mubr.f32.gmra.mxu0 %v5726
        %v6015 = vpop.f32.mrf.mxu0
        %v6016 = vadd.f32 %v5777, %v6015
        %v6017 = vpop.f32.mrf.mxu0
        %6018 = vmatprep.mubr.f32.mxu0 0.0
        %6019 = vmatmul.mubr.f32.gmra.mxu0 %v5727
        %v6020 = vpop.f32.mrf.mxu0
        %v6021 = vadd.f32 %v5777, %v6020
        %v6022 = vpop.f32.mrf.mxu0
        %6023 = vmatprep.mubr.f32.mxu0 0.0
        %6024 = vmatmul.mubr.f32.gmra.mxu0 %v5728
        %v6025 = vpop.f32.mrf.mxu0
        %v6026 = vadd.f32 %v5777, %v6025
        %v6027 = vpop.f32.mrf.mxu0
        %6028 = vmatprep.mubr.f32.mxu0 0.0
        %6029 = vmatmul.mubr.f32.gmra.mxu0 %v5729
        %v6030 = vpop.f32.mrf.mxu0
        %v6031 = vadd.f32 %v5777, %v6030
        %v6032 = vpop.f32.mrf.mxu0
        %6033 = vmatprep.mubr.f32.mxu0 0.0
        %6034 = vmatmul.mubr.f32.gmra.mxu0 %v5730
        %v6035 = vpop.f32.mrf.mxu0
        %v6036 = vadd.f32 %v5777, %v6035
        %v6037 = vpop.f32.mrf.mxu0
        %6038 = vmatprep.mubr.f32.mxu0 0.0
        %6039 = vmatmul.mubr.f32.gmra.mxu0 %v5731
        %v6040 = vpop.f32.mrf.mxu0
        %v6041 = vadd.f32 %v5777, %v6040
        %v6042 = vpop.f32.mrf.mxu0
        %6043 = vmatprep.mubr.f32.mxu0 0.0
        %6044 = vmatmul.mubr.f32.gmra.mxu0 %v5732
        %v6045 = vpop.f32.mrf.mxu0
        %v6046 = vadd.f32 %v5777, %v6045
        %v6047 = vpop.f32.mrf.mxu0
        %6048 = vmatprep.mubr.f32.mxu0 0.0
        %6049 = vmatmul.mubr.f32.gmra.mxu0 %v5733
        %v6050 = vpop.f32.mrf.mxu0
        %v6051 = vadd.f32 %v5777, %v6050
        %v6052 = vpop.f32.mrf.mxu0
        %6053 = vmatprep.mubr.f32.mxu0 0.0
        %6054 = vmatmul.mubr.f32.gmra.mxu0 %v5734
        %v6055 = vpop.f32.mrf.mxu0
        %v6056 = vadd.f32 %v5777, %v6055
        %v6057 = vpop.f32.mrf.mxu0
        %6058 = vmatprep.mubr.f32.mxu0 0.0
        %6059 = vmatmul.mubr.f32.gmra.mxu0 %v5735
        %v6060 = vpop.f32.mrf.mxu0
        %v6061 = vadd.f32 %v5777, %v6060
        %v6062 = vpop.f32.mrf.mxu0
        %6063 = vmatprep.mubr.f32.mxu0 0.0
        %6064 = vmatmul.mubr.f32.gmra.mxu0 %v5736
        %v6065 = vpop.f32.mrf.mxu0
        %v6066 = vadd.f32 %v5777, %v6065
        %v6067 = vpop.f32.mrf.mxu0
        %6068 = vmatprep.mubr.f32.mxu0 0.0
        %6069 = vmatmul.mubr.f32.gmra.mxu0 %v5737
        %v6070 = vpop.f32.mrf.mxu0
        %v6071 = vadd.f32 %v5777, %v6070
        %v6072 = vpop.f32.mrf.mxu0
        %6073 = vmatprep.mubr.f32.mxu0 0.0
        %6074 = vmatmul.mubr.f32.gmra.mxu0 %v5738
        %v6075 = vpop.f32.mrf.mxu0
        %v6076 = vadd.f32 %v5777, %v6075
        %v6077 = vpop.f32.mrf.mxu0
        %6078 = vmatprep.mubr.f32.mxu0 0.0
        %6079 = vmatmul.mubr.f32.gmra.mxu0 %v5739
        %v6080 = vpop.f32.mrf.mxu0
        %v6081 = vadd.f32 %v5777, %v6080
        %v6082 = vpop.f32.mrf.mxu0
        %6083 = vmatprep.mubr.f32.mxu0 0.0
        %6084 = vmatmul.mubr.f32.gmra.mxu0 %v5740
        %v6085 = vpop.f32.mrf.mxu0
        %v6086 = vadd.f32 %v5777, %v6085
        %v6087 = vpop.f32.mrf.mxu0
        %6088 = vmatprep.mubr.f32.mxu0 0.0
        %6089 = vmatmul.mubr.f32.gmra.mxu0 %v5741
        %v6090 = vpop.f32.mrf.mxu0
        %v6091 = vadd.f32 %v5777, %v6090
        %v6092 = vpop.f32.mrf.mxu0
        %6093 = vmatprep.mubr.f32.mxu0 0.0
        %6094 = vmatmul.mubr.f32.gmra.mxu0 %v5742
        %v6095 = vpop.f32.mrf.mxu0
        %v6096 = vadd.f32 %v5777, %v6095
        %v6097 = vpop.f32.mrf.mxu0
        %6098 = vmatprep.mubr.f32.mxu0 0.0
        %6099 = vmatmul.mubr.f32.gmra.mxu0 %v5743
        %v6100 = vpop.f32.mrf.mxu0
        %v6101 = vadd.f32 %v5777, %v6100
        %v6102 = vpop.f32.mrf.mxu0
        %6103 = vmatprep.mubr.f32.mxu0 0.0
        %6104 = vmatmul.mubr.f32.gmra.mxu0 %v5744
        %v6105 = vpop.f32.mrf.mxu0
        %v6106 = vadd.f32 %v5777, %v6105
        %v6107 = vpop.f32.mrf.mxu0
        %6108 = vmatprep.mubr.f32.mxu0 0.0
        %6109 = vmatmul.mubr.f32.gmra.mxu0 %v5745
        %v6110 = vpop.f32.mrf.mxu0
        %v6111 = vadd.f32 %v5777, %v6110
        %v6112 = vpop.f32.mrf.mxu0
        %6113 = vmatprep.mubr.f32.mxu0 0.0
        %6114 = vmatmul.mubr.f32.gmra.mxu0 %v5746
        %v6115 = vpop.f32.mrf.mxu0
        %v6116 = vadd.f32 %v5777, %v6115
        %v6117 = vpop.f32.mrf.mxu0
        %6118 = vmatprep.mubr.f32.mxu0 0.0
        %6119 = vmatmul.mubr.f32.gmra.mxu0 %v5747
        %v6120 = vpop.f32.mrf.mxu0
        %v6121 = vadd.f32 %v5777, %v6120
        %v6122 = vpop.f32.mrf.mxu0
        %6123 = vmatprep.mubr.f32.mxu0 0.0
        %6124 = vmatmul.mubr.f32.gmra.mxu0 %v5748
        %v6125 = vpop.f32.mrf.mxu0
        %v6126 = vadd.f32 %v5777, %v6125
        %v6127 = vpop.f32.mrf.mxu0
        %6128 = vmatprep.mubr.f32.mxu0 0.0
        %6129 = vmatmul.mubr.f32.gmra.mxu0 %v5749
        %v6130 = vpop.f32.mrf.mxu0
        %v6131 = vadd.f32 %v5777, %v6130
        %v6132 = vpop.f32.mrf.mxu0
        %6133 = vmatprep.mubr.f32.mxu0 0.0
        %6134 = vmatmul.mubr.f32.gmra.mxu0 %v5750
        %v6135 = vpop.f32.mrf.mxu0
        %v6136 = vadd.f32 %v5777, %v6135
        %v6137 = vpop.f32.mrf.mxu0
        %6138 = vmatprep.mubr.f32.mxu0 0.0
        %6139 = vmatmul.mubr.f32.gmra.mxu0 %v5751
        %v6140 = vpop.f32.mrf.mxu0
        %v6141 = vadd.f32 %v5777, %v6140
        %v6142 = vpop.f32.mrf.mxu0
        %6143 = vmatprep.mubr.f32.mxu0 0.0
        %6144 = vmatmul.mubr.f32.gmra.mxu0 %v5752
        %v6145 = vpop.f32.mrf.mxu0
        %v6146 = vadd.f32 %v5777, %v6145
        %v6147 = vpop.f32.mrf.mxu0
        %6148 = vmatprep.mubr.f32.mxu0 0.0
        %6149 = vmatmul.mubr.f32.gmra.mxu0 %v5753
        %v6150 = vpop.f32.mrf.mxu0
        %v6151 = vadd.f32 %v5777, %v6150
        %v6152 = vpop.f32.mrf.mxu0
        %6153 = vmatprep.mubr.f32.mxu0 0.0
        %6154 = vmatmul.mubr.f32.gmra.mxu0 %v5754
        %v6155 = vpop.f32.mrf.mxu0
        %v6156 = vadd.f32 %v5777, %v6155
        %v6157 = vpop.f32.mrf.mxu0
        %6158 = vmatprep.mubr.f32.mxu0 0.0
        %6159 = vmatmul.mubr.f32.gmra.mxu0 %v5755
        %v6160 = vpop.f32.mrf.mxu0
        %v6161 = vadd.f32 %v5777, %v6160
        %v6162 = vpop.f32.mrf.mxu0
        %6163 = vdwg.mxu0
        %v6164 = vmax.f32 %v5846, 0.0
        %v6165 = vmax.f32 %v5851, 0.0
        %v6166 = vmax.f32 %v5856, 0.0
        %v6167 = vmax.f32 %v5861, 0.0
        %v6168 = vmax.f32 %v5866, 0.0
        %v6169 = vmax.f32 %v5871, 0.0
        %v6170 = vmax.f32 %v5876, 0.0
        %v6171 = vmax.f32 %v5881, 0.0
        %v6172 = vmax.f32 %v5886, 0.0
        %v6173 = vmax.f32 %v5891, 0.0
        %v6174 = vmax.f32 %v5896, 0.0
        %v6175 = vmax.f32 %v5901, 0.0
        %v6176 = vmax.f32 %v5906, 0.0
        %v6177 = vmax.f32 %v5911, 0.0
        %v6178 = vmax.f32 %v5916, 0.0
        %v6179 = vmax.f32 %v5921, 0.0
        %v6180 = vmax.f32 %v5926, 0.0
        %v6181 = vmax.f32 %v5931, 0.0
        %v6182 = vmax.f32 %v5936, 0.0
        %v6183 = vmax.f32 %v5941, 0.0
        %v6184 = vmax.f32 %v5946, 0.0
        %v6185 = vmax.f32 %v5951, 0.0
        %v6186 = vmax.f32 %v5956, 0.0
        %v6187 = vmax.f32 %v5961, 0.0
        %v6188 = vmax.f32 %v5966, 0.0
        %v6189 = vmax.f32 %v5971, 0.0
        %v6190 = vmax.f32 %v5976, 0.0
        %v6191 = vmax.f32 %v5981, 0.0
        %v6192 = vmax.f32 %v5986, 0.0
        %v6193 = vmax.f32 %v5991, 0.0
        %v6194 = vmax.f32 %v5996, 0.0
        %v6195 = vmax.f32 %v6001, 0.0
        %v6196 = vmax.f32 %v6006, 0.0
        %v6197 = vmax.f32 %v6011, 0.0
        %v6198 = vmax.f32 %v6016, 0.0
        %v6199 = vmax.f32 %v6021, 0.0
        %v6200 = vmax.f32 %v6026, 0.0
        %v6201 = vmax.f32 %v6031, 0.0
        %v6202 = vmax.f32 %v6036, 0.0
        %v6203 = vmax.f32 %v6041, 0.0
        %v6204 = vmax.f32 %v6046, 0.0
        %v6205 = vmax.f32 %v6051, 0.0
        %v6206 = vmax.f32 %v6056, 0.0
        %v6207 = vmax.f32 %v6061, 0.0
        %v6208 = vmax.f32 %v6066, 0.0
        %v6209 = vmax.f32 %v6071, 0.0
        %v6210 = vmax.f32 %v6076, 0.0
        %v6211 = vmax.f32 %v6081, 0.0
        %v6212 = vmax.f32 %v6086, 0.0
        %v6213 = vmax.f32 %v6091, 0.0
        %v6214 = vmax.f32 %v6096, 0.0
        %v6215 = vmax.f32 %v6101, 0.0
        %v6216 = vmax.f32 %v6106, 0.0
        %v6217 = vmax.f32 %v6111, 0.0
        %v6218 = vmax.f32 %v6116, 0.0
        %v6219 = vmax.f32 %v6121, 0.0
        %v6220 = vmax.f32 %v6126, 0.0
        %v6221 = vmax.f32 %v6131, 0.0
        %v6222 = vmax.f32 %v6136, 0.0
        %v6223 = vmax.f32 %v6141, 0.0
        %v6224 = vmax.f32 %v6146, 0.0
        %v6225 = vmax.f32 %v6151, 0.0
        %v6226 = vmax.f32 %v6156, 0.0
        %v6227 = vmax.f32 %v6161, 0.0
        %v6228 = vmin.f32 %v6164, 6.0
        %v6229 = vmin.f32 %v6165, 6.0
        %v6230 = vmin.f32 %v6166, 6.0
        %v6231 = vmin.f32 %v6167, 6.0
        %v6232 = vmin.f32 %v6168, 6.0
        %v6233 = vmin.f32 %v6169, 6.0
        %v6234 = vmin.f32 %v6170, 6.0
        %v6235 = vmin.f32 %v6171, 6.0
        %v6236 = vmin.f32 %v6172, 6.0
        %v6237 = vmin.f32 %v6173, 6.0
        %v6238 = vmin.f32 %v6174, 6.0
        %v6239 = vmin.f32 %v6175, 6.0
        %v6240 = vmin.f32 %v6176, 6.0
        %v6241 = vmin.f32 %v6177, 6.0
        %v6242 = vmin.f32 %v6178, 6.0
        %v6243 = vmin.f32 %v6179, 6.0
        %v6244 = vmin.f32 %v6180, 6.0
        %v6245 = vmin.f32 %v6181, 6.0
        %v6246 = vmin.f32 %v6182, 6.0
        %v6247 = vmin.f32 %v6183, 6.0
        %v6248 = vmin.f32 %v6184, 6.0
        %v6249 = vmin.f32 %v6185, 6.0
        %v6250 = vmin.f32 %v6186, 6.0
        %v6251 = vmin.f32 %v6187, 6.0
        %v6252 = vmin.f32 %v6188, 6.0
        %v6253 = vmin.f32 %v6189, 6.0
        %v6254 = vmin.f32 %v6190, 6.0
        %v6255 = vmin.f32 %v6191, 6.0
        %v6256 = vmin.f32 %v6192, 6.0
        %v6257 = vmin.f32 %v6193, 6.0
        %v6258 = vmin.f32 %v6194, 6.0
        %v6259 = vmin.f32 %v6195, 6.0
        %v6260 = vmin.f32 %v6196, 6.0
        %v6261 = vmin.f32 %v6197, 6.0
        %v6262 = vmin.f32 %v6198, 6.0
        %v6263 = vmin.f32 %v6199, 6.0
        %v6264 = vmin.f32 %v6200, 6.0
        %v6265 = vmin.f32 %v6201, 6.0
        %v6266 = vmin.f32 %v6202, 6.0
        %v6267 = vmin.f32 %v6203, 6.0
        %v6268 = vmin.f32 %v6204, 6.0
        %v6269 = vmin.f32 %v6205, 6.0
        %v6270 = vmin.f32 %v6206, 6.0
        %v6271 = vmin.f32 %v6207, 6.0
        %v6272 = vmin.f32 %v6208, 6.0
        %v6273 = vmin.f32 %v6209, 6.0
        %v6274 = vmin.f32 %v6210, 6.0
        %v6275 = vmin.f32 %v6211, 6.0
        %v6276 = vmin.f32 %v6212, 6.0
        %v6277 = vmin.f32 %v6213, 6.0
        %v6278 = vmin.f32 %v6214, 6.0
        %v6279 = vmin.f32 %v6215, 6.0
        %v6280 = vmin.f32 %v6216, 6.0
        %v6281 = vmin.f32 %v6217, 6.0
        %v6282 = vmin.f32 %v6218, 6.0
        %v6283 = vmin.f32 %v6219, 6.0
        %v6284 = vmin.f32 %v6220, 6.0
        %v6285 = vmin.f32 %v6221, 6.0
        %v6286 = vmin.f32 %v6222, 6.0
        %v6287 = vmin.f32 %v6223, 6.0
        %v6288 = vmin.f32 %v6224, 6.0
        %v6289 = vmin.f32 %v6225, 6.0
        %v6290 = vmin.f32 %v6226, 6.0
        %v6291 = vmin.f32 %v6227, 6.0
        %v6292 = vadd.f32 %v6228, %v6229
        %v6293 = vadd.f32 %v6292, %v6230
        %v6294 = vadd.f32 %v6293, %v6231
        %v6295 = vadd.f32 %v6294, %v6232
        %v6296 = vadd.f32 %v6295, %v6233
        %v6297 = vadd.f32 %v6296, %v6234
        %v6298 = vadd.f32 %v6297, %v6235
        %v6299 = vadd.f32 %v6298, %v6236
        %v6300 = vadd.f32 %v6299, %v6237
        %v6301 = vadd.f32 %v6300, %v6238
        %v6302 = vadd.f32 %v6301, %v6239
        %v6303 = vadd.f32 %v6302, %v6240
        %v6304 = vadd.f32 %v6303, %v6241
        %v6305 = vadd.f32 %v6304, %v6242
        %v6306 = vadd.f32 %v6305, %v6243
        %v6307 = vadd.f32 %v6306, %v6244
        %v6308 = vadd.f32 %v6307, %v6245
        %v6309 = vadd.f32 %v6308, %v6246
        %v6310 = vadd.f32 %v6309, %v6247
        %v6311 = vadd.f32 %v6310, %v6248
        %v6312 = vadd.f32 %v6311, %v6249
        %v6313 = vadd.f32 %v6312, %v6250
        %v6314 = vadd.f32 %v6313, %v6251
        %v6315 = vadd.f32 %v6314, %v6252
        %v6316 = vadd.f32 %v6315, %v6253
        %v6317 = vadd.f32 %v6316, %v6254
        %v6318 = vadd.f32 %v6317, %v6255
        %v6319 = vadd.f32 %v6318, %v6256
        %v6320 = vadd.f32 %v6319, %v6257
        %v6321 = vadd.f32 %v6320, %v6258
        %v6322 = vadd.f32 %v6321, %v6259
        %v6323 = vrot.slane %v6322, 4
        %v6324 = vadd.f32 %v6322, %v6323
        %v6325 = vrot.slane %v6324, 2
        %v6326 = vadd.f32 %v6324, %v6325
        %v6327 = vrot.slane %v6326, 1
        %v6328 = vadd.f32 %v6326, %v6327
        %v6329 = vadd.f32 %v6260, %v6261
        %v6330 = vadd.f32 %v6329, %v6262
        %v6331 = vadd.f32 %v6330, %v6263
        %v6332 = vadd.f32 %v6331, %v6264
        %v6333 = vadd.f32 %v6332, %v6265
        %v6334 = vadd.f32 %v6333, %v6266
        %v6335 = vadd.f32 %v6334, %v6267
        %v6336 = vadd.f32 %v6335, %v6268
        %v6337 = vadd.f32 %v6336, %v6269
        %v6338 = vadd.f32 %v6337, %v6270
        %v6339 = vadd.f32 %v6338, %v6271
        %v6340 = vadd.f32 %v6339, %v6272
        %v6341 = vadd.f32 %v6340, %v6273
        %v6342 = vadd.f32 %v6341, %v6274
        %v6343 = vadd.f32 %v6342, %v6275
        %v6344 = vadd.f32 %v6343, %v6276
        %v6345 = vadd.f32 %v6344, %v6277
        %v6346 = vadd.f32 %v6345, %v6278
        %v6347 = vadd.f32 %v6346, %v6279
        %v6348 = vadd.f32 %v6347, %v6280
        %v6349 = vadd.f32 %v6348, %v6281
        %v6350 = vadd.f32 %v6349, %v6282
        %v6351 = vadd.f32 %v6350, %v6283
        %v6352 = vadd.f32 %v6351, %v6284
        %v6353 = vadd.f32 %v6352, %v6285
        %v6354 = vadd.f32 %v6353, %v6286
        %v6355 = vadd.f32 %v6354, %v6287
        %v6356 = vadd.f32 %v6355, %v6288
        %v6357 = vadd.f32 %v6356, %v6289
        %v6358 = vadd.f32 %v6357, %v6290
        %v6359 = vadd.f32 %v6358, %v6291
        %v6360 = vrot.slane %v6359, 4
        %v6361 = vadd.f32 %v6359, %v6360
        %v6362 = vrot.slane %v6361, 2
        %v6363 = vadd.f32 %v6361, %v6362
        %v6364 = vrot.slane %v6363, 1
        %v6365 = vadd.f32 %v6363, %v6364
        %v6366 = vrcp.pop 256.0
        %v6367 = vmul.f32 %v6328, %v6366
        %v6368 = vmul.f32 %v6365, %v6366
        %v6369 = vld [vmem:[%s641] sm:$0xff]
        %v6370 = vld [vmem:[%s641 + $0x8] sm:$0xff]
        %v6371 = vld [vmem:[%s641 + $0x10] sm:$0xff]
        %v6372 = vld [vmem:[%s641 + $0x18] sm:$0xff]
        %v6373 = vld [vmem:[%s641 + $0x20] sm:$0xff]
        %v6374 = vld [vmem:[%s641 + $0x28] sm:$0xff]
        %v6375 = vld [vmem:[%s641 + $0x30] sm:$0xff]
        %v6376 = vld [vmem:[%s641 + $0x38] sm:$0xff]
        %v6377 = vld [vmem:[%s641 + $0x40] sm:$0xff]
        %v6378 = vld [vmem:[%s641 + $0x48] sm:$0xff]
        %v6379 = vld [vmem:[%s641 + $0x50] sm:$0xff]
        %v6380 = vld [vmem:[%s641 + $0x58] sm:$0xff]
        %v6381 = vld [vmem:[%s641 + $0x60] sm:$0xff]
        %v6382 = vld [vmem:[%s641 + $0x68] sm:$0xff]
        %v6383 = vld [vmem:[%s641 + $0x70] sm:$0xff]
        %v6384 = vld [vmem:[%s641 + $0x78] sm:$0xff]
        %v6385 = vld [vmem:[%s649] sm:$0x1]
        %v6387 = vlaneseq
        %v6388 = vshrl.u32 %v6387, 7
        %v6389 = vsub.s32 0, %v6388
        %v6390 = vrot.slane %v6385, %v6389
        %vm6394 = vcmask 1041409
        %v6395 = vsel %vm6394, %v6368, %v6367
        %6397 = vmatprep.subr.mxu0 0.0
        %6398 = vmatpush1.msra.mxu0 %v6384
        %6399 = vmatprep.subr.mxu0 0.0
        %6400 = vmatpush1.msra.mxu0 %v6383
        %6401 = vmatprep.subr.mxu0 0.0
        %6402 = vmatpush1.msra.mxu0 %v6382
        %6403 = vmatprep.subr.mxu0 0.0
        %6404 = vmatpush1.msra.mxu0 %v6381
        %6405 = vmatprep.subr.mxu0 0.0
        %6406 = vmatpush1.msra.mxu0 %v6380
        %6407 = vmatprep.subr.mxu0 0.0
        %6408 = vmatpush1.msra.mxu0 %v6379
        %6409 = vmatprep.subr.mxu0 0.0
        %6410 = vmatpush1.msra.mxu0 %v6378
        %6411 = vmatprep.subr.mxu0 0.0
        %6412 = vmatpush1.msra.mxu0 %v6377
        %6413 = vmatprep.subr.mxu0 0.0
        %6414 = vmatpush1.msra.mxu0 %v6376
        %6415 = vmatprep.subr.mxu0 0.0
        %6416 = vmatpush1.msra.mxu0 %v6375
        %6417 = vmatprep.subr.mxu0 0.0
        %6418 = vmatpush1.msra.mxu0 %v6374
        %6419 = vmatprep.subr.mxu0 0.0
        %6420 = vmatpush1.msra.mxu0 %v6373
        %6421 = vmatprep.subr.mxu0 0.0
        %6422 = vmatpush1.msra.mxu0 %v6372
        %6423 = vmatprep.subr.mxu0 0.0
        %6424 = vmatpush1.msra.mxu0 %v6371
        %6425 = vmatprep.subr.mxu0 0.0
        %6426 = vmatpush1.msra.mxu0 %v6370
        %6427 = vmatprep.subr.mxu0 0.0
        %6428 = vmatpush1.msra.mxu0 %v6369
        %6429 = vmatprep.subr.mxu0 0.0
        %6430 = vmatpush2.msra.mxu0 0.0
        %6431 = vmatprep.subr.mxu0 0.0
        %6432 = vmatpush2.msra.mxu0 0.0
        %6433 = vmatprep.subr.mxu0 0.0
        %6434 = vmatpush2.msra.mxu0 0.0
        %6435 = vmatprep.subr.mxu0 0.0
        %6436 = vmatpush2.msra.mxu0 0.0
        %6437 = vmatprep.subr.mxu0 0.0
        %6438 = vmatpush2.msra.mxu0 0.0
        %6439 = vmatprep.subr.mxu0 0.0
        %6440 = vmatpush2.msra.mxu0 0.0
        %6441 = vmatprep.subr.mxu0 0.0
        %6442 = vmatpush2.msra.mxu0 0.0
        %6443 = vmatprep.subr.mxu0 0.0
        %6444 = vmatpush2.msra.mxu0 0.0
        %6445 = vmatprep.subr.mxu0 0.0
        %6446 = vmatpush2.msra.mxu0 0.0
        %6447 = vmatprep.subr.mxu0 0.0
        %6448 = vmatpush2.msra.mxu0 0.0
        %6449 = vmatprep.subr.mxu0 0.0
        %6450 = vmatpush2.msra.mxu0 0.0
        %6451 = vmatprep.subr.mxu0 0.0
        %6452 = vmatpush2.msra.mxu0 0.0
        %6453 = vmatprep.subr.mxu0 0.0
        %6454 = vmatpush2.msra.mxu0 0.0
        %6455 = vmatprep.subr.mxu0 0.0
        %6456 = vmatpush2.msra.mxu0 0.0
        %6457 = vmatprep.subr.mxu0 0.0
        %6458 = vmatpush2.msra.mxu0 0.0
        %6459 = vmatprep.subr.mxu0 0.0
        %6460 = vmatpush2.msra.mxu0 0.0
        %6461 = vmatprep.mubr.f32.mxu0 0.0
        %6462 = vmatmul.mubr.f32.gmra.mxu0 %v6395
        %v6463 = vpop.f32.mrf.mxu0
        %v6464 = vadd.f32 %v6390, %v6463
        %v6465 = vpop.f32.mrf.mxu0
        %6466 = vdwg.mxu0
        %s6467 = smul.u32 %s38, 2
        %s6468 = scalar_lea.vmem [#allocation4], %s6467
        %6469 = vst [vmem:[%s6468] sm:$0x3] %v6464
        // Predicated region
        $region113: #{siamese_forward.1} parent=83 // pred_check
          %p6470 = pneg %p1639
        $region114: #{siamese_forward.1} parent=83 // pred_check_branch
          %6472 = sbr.rel (%p6470) target = $region116
        $region115: #{siamese_forward.1} parent=83 // pred_region
          %v6473 = vld [vmem:[#allocation4] sm:$0x3]
          %s6474 = scalar_lea.vmem [#allocation4], 2
          %v6475 = vld [vmem:[%s6474] sm:$0x3]
          %v6476 = vsub.f32 %v6473, %v6475
          %v6477 = vadd.f32 %v6476, 1e-06
          %v6478 = vmul.f32 %v6477, %v6477
          %vm6479 = vcmask 1041408
          %v6480 = vsel %vm6479, %v6478, 0.0
          %6481 = vadd.xlane.f32.xlu0 %v6480
          %v6482 = vpop.xlane.xlu0 %6481
          %v6483 = vrsqrt.pop %v6482
          %v6484 = vmul.f32 %v6482, %v6483
          %vm6485 = vcmp.eq.f32.partialorder %v6482, inf
          %v6486 = vsel %vm6485, %v6482, %v6484
          %vm6487 = vcmp.eq.f32.partialorder %v6482, 0.0
          %v6488 = vand.u32 %v6482, 2147483648
          %v6489 = vsel %vm6487, %v6488, %v6486
          %v6490 = vsel %vm6479, %v6489, 0.0
          %v6491 = vrot.slane %v6490, 4
          %v6492 = vadd.f32 %v6490, %v6491
          %v6493 = vrot.slane %v6492, 2
          %v6494 = vadd.f32 %v6492, %v6493
          %v6495 = vrot.slane %v6494, 1
          %v6496 = vadd.f32 %v6494, %v6495
          %v6497 = vrcp.pop 2.0
          %v6498 = vmul.f32 %v6496, %v6497
          %v6499 = vsub.f32 %v6489, %v6498
          %v6500 = vmul.f32 %v6499, %v6499
          %v6501 = vsel %vm6479, %v6500, 0.0
          %v6502 = vrot.slane %v6501, 4
          %v6503 = vadd.f32 %v6501, %v6502
          %v6504 = vrot.slane %v6503, 2
          %v6505 = vadd.f32 %v6503, %v6504
          %v6506 = vrot.slane %v6505, 1
          %v6507 = vadd.f32 %v6505, %v6506
          %v6508 = vmul.f32 %v6507, %v6497
          %v6509 = vadd.f32 %v6508, 1e-05
          %v6510 = vrsqrt.pop %v6509
          %v6511 = vmul.f32 %v6499, %v6510
          %s6512 = sld [smem:[#allocation5]]
          %v6513 = vstv %s6512
          %v6514 = vmul.f32 %v6511, %v6513
          %s6515 = sld [smem:[#allocation6]]
          %v6516 = vstv %s6515
          %v6517 = vadd.f32 %v6514, %v6516
          %v6518 = vsub.f32 0.0, %v6517
          %v6519 = vmul.f32 %v6518, 1.442695
          %v6520 = vpow.pop %v6519
          %v6521 = vadd.f32 %v6520, 1.0
          %v6522 = vrcp.pop %v6521
          %v6523 = vmul.f32 1.0, %v6522
          %vm6524 = vcmask 1024
          %6525 = vst.msk [vmem:[%s16] sm:$0x3] %vm6524, %v6523
        $region116: #{siamese_forward.1} parent=83 // pred_fallthru
          _
        // Predicated region
        $region117: #{siamese_forward.1} parent=83 // pred_check
          %p6526 = pneg %p447
        $region118: #{siamese_forward.1} parent=83 // pred_check_branch
          %6528 = sbr.rel (%p6526) target = $region120
        $region119: #{siamese_forward.1} parent=83 // pred_region
          _
        $region120: #{siamese_forward.1} parent=83 // pred_fallthru
          _
        // Predicated region
        $region121: #{siamese_forward.1} parent=83 // pred_check
          %p6529 = pneg %p447
        $region122: #{siamese_forward.1} parent=83 // pred_check_branch
          %6531 = sbr.rel (%p6529) target = $region124
        $region123: #{siamese_forward.1} parent=83 // pred_region
          _
        $region124: #{siamese_forward.1} parent=83 // pred_fallthru
          _
      $region84: #{siamese_forward.1} parent=5 // pred_fallthru
        _
      %p6532 = scmp.le.s32.totalorder 2, %s33
      // Predicated region
      $region125: #{siamese_forward.1} parent=5 // pred_check
        %p6533 = pneg %p6532
      $region126: #{siamese_forward.1} parent=5 // pred_check_branch
        %6535 = sbr.rel (%p6533) target = $region128
      $region127: #{siamese_forward.1} parent=5 // pred_region
        %s6536 = ssub.s32 %s33, 2
      $region128: #{siamese_forward.1} parent=5 // pred_fallthru
        _
    $region6: #{siamese_forward.1} parent=1 // loop_footer
      %s37 = sadd.s32 1, %s33
    $region7: #{siamese_forward.1} parent=1 // loop_footer_branch
      %32 = sbr.rel target = $region3
    $region8: #{siamese_forward.1} parent=1 // loop_exit
      _
    %6537 = vsyncpa [#allocation8], 1
    %s6538 = scalar_lea.sflag [#allocation8], 1
    %6539 = vsyncpa %s6538, 1
    %6540 = vsyncpa [#allocation10], 1
    %s6541 = scalar_lea.sflag [#allocation10], 1
    %6542 = vsyncpa %s6541, 1
    %6543 = vsyncpa [#allocation13], 1
    %s6544 = scalar_lea.sflag [#allocation13], 1
    %6545 = vsyncpa %s6544, 1

</llo_original>
